<compile_context>
chip_gen: v7x
topology: tpu7x:2x2x1
jax: 0.10.0
libtpu: 0.0.40
codegen_flags: <defaults>
</compile_context>

<pallas_src>
import functools

import jax
import jax.numpy as jnp
from jax import lax
from jax.experimental import pallas as pl
from jax.experimental.pallas import tpu as pltpu


def _round_up(x, m):
    return (x + m - 1) // m * m


def _pick_m_tile(m):
    """Largest multiple-of-8 divisor of m that is <= 512 (caps col VMEM)."""
    for tm in range(min(m, 512), 7, -1):
        if m % tm == 0 and tm % 8 == 0:
            return tm
    return m


def _basic_block_kernel(H, W, Cp, TM,
                        xpad_ref, mask_ref, w1_ref, s1_ref, b1_ref,
                        w2_ref, s2_ref, b2_ref, out_ref, mid_ref, col_ref):
    # xpad_ref: (1, TOT, Cp) bf16  flat zero-padded input, flat row = r*(W+2)+c
    # mask_ref: (M, 1)       f32   1.0 where (row % (W+2)) < W else 0.0
    # w*_ref  : (9*Cp, Cp)   bf16  tap-major repacked conv weights
    # s*/b*   : (1, Cp)      f32   folded BatchNorm scale / bias
    # out_ref : (1, M, Cp)   f32   flat conv output rows (junk cols kept)
    # mid_ref : (TOT, Cp)    bf16  scratch: zero-bordered relu(bn1(conv1))
    # col_ref : (TM, 9*Cp)   bf16  scratch: tap-stacked im2col tile
    Wp = W + 2
    M = H * Wp
    n_tiles = M // TM
    TOT = mid_ref.shape[0]

    # Zero mid's top border rows (incl. cell (1,0)) and bottom border + tail.
    # Every other border cell is overwritten with a masked zero by the
    # contiguous interior store below, so these are the only explicit zeroes.
    mid_ref[0:Wp + 1, :] = jnp.zeros((Wp + 1, Cp), jnp.bfloat16)
    mid_ref[(H + 1) * Wp:TOT, :] = jnp.zeros((TOT - (H + 1) * Wp, Cp),
                                             jnp.bfloat16)

    def conv3x3(load_rows, w_ref, m0):
        # One contiguous (TM, Cp) slice per tap; destination lane offsets t*Cp
        # are multiples of 128 -> full-width unmasked stores.
        for dy in range(3):
            for dx in range(3):
                t = dy * 3 + dx
                col_ref[:, t * Cp:(t + 1) * Cp] = load_rows(m0 + dy * Wp + dx)
        # Single MXU matmul, K = 9*Cp, bf16 operands, f32 accumulation.
        return jnp.dot(col_ref[...], w_ref[...],
                       preferred_element_type=jnp.float32)      # (TM, Cp)

    load_x = lambda r: xpad_ref[0, r:r + TM, :]
    load_mid = lambda r: mid_ref[r:r + TM, :]

    # ---- conv1 -> bn1 -> relu -> masked store into zero-bordered mid ----
    for ti in range(n_tiles):
        m0 = ti * TM
        y1 = conv3x3(load_x, w1_ref, m0)
        y1 = jnp.maximum(y1 * s1_ref[...] + b1_ref[...], 0.0)
        y1 = y1 * mask_ref[m0:m0 + TM, :]        # junk rows -> 0 (mid border)
        mid_ref[Wp + 1 + m0:Wp + 1 + m0 + TM, :] = y1.astype(jnp.bfloat16)

    # ---- conv2 -> bn2 -> +identity -> relu ----
    for ti in range(n_tiles):
        m0 = ti * TM
        y2 = conv3x3(load_mid, w2_ref, m0)
        identity = xpad_ref[0, Wp + 1 + m0:Wp + 1 + m0 + TM, :].astype(
            jnp.float32)
        out = jnp.maximum(y2 * s2_ref[...] + b2_ref[...] + identity, 0.0)
        out_ref[0, m0:m0 + TM, :] = out.astype(out_ref.dtype)


def basic_block_forward(x_nchw, params):
    """BasicBlock forward (stride=1, downsample=None). x: NCHW float32."""
    w1, s1, b1, w2, s2, b2 = params
    N, C, H, W = x_nchw.shape
    assert w1.shape == (3, 3, C, C) and w2.shape == (3, 3, C, C), (
        "identity residual path requires stride=1 and in_channel == out_channel")

    Cp = _round_up(C, 128)            # lane-dense channel padding
    Hp, Wp = H + 2, W + 2
    M = H * Wp                        # matmul rows (incl. 2 junk cols per row)
    TM = _pick_m_tile(M)
    TOT = _round_up(Hp * Wp + 2, 8)   # flat rows (+tail so tap slices stay in-bounds)

    # --- host-side layout plumbing (no compute) ---
    x = jnp.transpose(x_nchw, (0, 2, 3, 1)).astype(jnp.bfloat16)   # NCHW->NHWC
    xpad = jnp.pad(x, ((0, 0), (1, 1), (1, 1), (0, Cp - C)))       # SAME + lane pad
    xpad = xpad.reshape(N, Hp * Wp, Cp)
    xpad = jnp.pad(xpad, ((0, 0), (0, TOT - Hp * Wp), (0, 0)))

    def repack(w):  # (3,3,C,C) HWIO -> (9*Cp, Cp), tap-major rows, bf16
        wp = jnp.zeros((3, 3, Cp, Cp), jnp.float32).at[:, :, :C, :C].set(w)
        return wp.reshape(9 * Cp, Cp).astype(jnp.bfloat16)

    w1f, w2f = repack(w1), repack(w2)
    pad_bn = lambda v: jnp.pad(v, ((0, 0), (0, Cp - C)))
    s1p, b1p, s2p, b2p = pad_bn(s1), pad_bn(b1), pad_bn(s2), pad_bn(b2)

    # Row-validity mask: flat output row m = y*Wp + x is real only for x < W.
    mask = (jnp.arange(M) % Wp < W).astype(jnp.float32).reshape(M, 1)

    kernel = functools.partial(_basic_block_kernel, H, W, Cp, TM)
    out_flat = pl.pallas_call(
        kernel,
        out_shape=jax.ShapeDtypeStruct((N, M, Cp), jnp.float32),
        grid=(N,),
        in_specs=[
            pl.BlockSpec((1, TOT, Cp), lambda n: (n, 0, 0)),
            pl.BlockSpec((M, 1), lambda n: (0, 0)),
            pl.BlockSpec((9 * Cp, Cp), lambda n: (0, 0)),
            pl.BlockSpec((1, Cp), lambda n: (0, 0)),
            pl.BlockSpec((1, Cp), lambda n: (0, 0)),
            pl.BlockSpec((9 * Cp, Cp), lambda n: (0, 0)),
            pl.BlockSpec((1, Cp), lambda n: (0, 0)),
            pl.BlockSpec((1, Cp), lambda n: (0, 0)),
        ],
        out_specs=pl.BlockSpec((1, M, Cp), lambda n: (n, 0, 0)),
        scratch_shapes=[
            pltpu.VMEM((TOT, Cp), jnp.bfloat16),     # zero-bordered conv1 act
            pltpu.VMEM((TM, 9 * Cp), jnp.bfloat16),  # im2col tile
        ],
        compiler_params=pltpu.CompilerParams(dimension_semantics=("parallel",)),
    )(xpad, mask, w1f, s1p, b1p, w2f, s2p, b2p)

    # Drop junk columns and lane/channel padding, back to NCHW.
    out = out_flat.reshape(N, H, Wp, Cp)[:, :, :W, :C]
    return jnp.transpose(out, (0, 3, 1, 2))


def make_params(key, in_channel, out_channel, eps=1e-5):
    """Deterministic synthetic parameters; BatchNorm folded to scale/bias."""
    ks = jax.random.split(key, 10)
    fan1 = in_channel * 9
    w1 = jax.random.normal(ks[0], (3, 3, in_channel, out_channel),
                           jnp.float32) * (2.0 / fan1) ** 0.5
    fan2 = out_channel * 9
    w2 = jax.random.normal(ks[1], (3, 3, out_channel, out_channel),
                           jnp.float32) * (2.0 / fan2) ** 0.5

    def bn(kg, kb, km, kv):
        gamma = 1.0 + 0.1 * jax.random.normal(kg, (out_channel,), jnp.float32)
        beta = 0.1 * jax.random.normal(kb, (out_channel,), jnp.float32)
        mean = 0.1 * jax.random.normal(km, (out_channel,), jnp.float32)
        var = jnp.abs(1.0 + 0.1 * jax.random.normal(kv, (out_channel,),
                                                    jnp.float32))
        scale = gamma / jnp.sqrt(var + eps)
        bias = beta - mean * scale
        return scale.reshape(1, -1), bias.reshape(1, -1)

    s1, b1 = bn(ks[2], ks[3], ks[4], ks[5])
    s2, b2 = bn(ks[6], ks[7], ks[8], ks[9])
    return (w1, s1, b1, w2, s2, b2)


def reference_forward(x_nchw, params):
    """Pure-JAX reference, precision-matched to the kernel (bf16 conv operands
    and bf16 residual input, f32 accumulation, f32 BN/ReLU/residual math)."""
    w1, s1, b1, w2, s2, b2 = params
    x = jnp.transpose(x_nchw, (0, 2, 3, 1))
    bf = jnp.bfloat16
    xb = x.astype(bf)
    dn = ("NHWC", "HWIO", "NHWC")
    y = lax.conv_general_dilated(xb, w1.astype(bf), (1, 1), "SAME",
                                 dimension_numbers=dn,
                                 preferred_element_type=jnp.float32)
    y = jnp.maximum(y * s1 + b1, 0.0)
    z = lax.conv_general_dilated(y.astype(bf), w2.astype(bf), (1, 1), "SAME",
                                 dimension_numbers=dn,
                                 preferred_element_type=jnp.float32)
    z = jnp.maximum(z * s2 + b2 + xb.astype(jnp.float32), 0.0)
    return jnp.transpose(z, (0, 3, 1, 2))


if __name__ == "__main__":
    key = jax.random.PRNGKey(0)
    kx, kp = jax.random.split(key)

    N, C, H, W = 2, 4, 16, 16            # BasicBlock(in=4, out=4, stride=1)
    x = jax.random.normal(kx, (N, C, H, W), jnp.float32)
    params = make_params(kp, C, C)

    out = jax.block_until_ready(basic_block_forward(x, params))
    ref = reference_forward(x, params)

    assert out.shape == (N, C, H, W), out.shape
    err = float(jnp.max(jnp.abs(out - ref)))
    assert err < 2e-3, f"max abs err {err}"
    print("KERNEL_OK")
</pallas_src>

<mosaic_0001>
module attributes {stable_mosaic.version = 11 : i64} {
  func.func @_basic_block_kernel(%arg0: i32, %arg1: memref<1x328x128xbf16, #tpu.memory_space<vmem>>, %arg2: memref<288x1xf32, #tpu.memory_space<vmem>>, %arg3: memref<1152x128xbf16, #tpu.memory_space<vmem>>, %arg4: memref<1x128xf32, #tpu.memory_space<vmem>>, %arg5: memref<1x128xf32, #tpu.memory_space<vmem>>, %arg6: memref<1152x128xbf16, #tpu.memory_space<vmem>>, %arg7: memref<1x128xf32, #tpu.memory_space<vmem>>, %arg8: memref<1x128xf32, #tpu.memory_space<vmem>>, %arg9: memref<1x288x128xf32, #tpu.memory_space<vmem>>, %arg10: memref<328x128xbf16, #tpu.memory_space<vmem>>, %arg11: memref<288x1152xbf16, #tpu.memory_space<vmem>>) attributes {dimension_semantics = [#tpu.dimension_semantics<parallel>], iteration_bounds = array<i64: 2>, scalar_prefetch = 0 : i64, scratch_operands = 2 : i64, tpu.core_type = #tpu.core_type<tc>, window_params = [{transform_indices = @transform_0, window_bounds = array<i64: 1, 328, 128>}, {pipeline_mode = #tpu.pipeline_mode<synchronous>, transform_indices = @transform_1, window_bounds = array<i64: 288, 1>}, {pipeline_mode = #tpu.pipeline_mode<synchronous>, transform_indices = @transform_2, window_bounds = array<i64: 1152, 128>}, {pipeline_mode = #tpu.pipeline_mode<synchronous>, transform_indices = @transform_3, window_bounds = array<i64: 1, 128>}, {pipeline_mode = #tpu.pipeline_mode<synchronous>, transform_indices = @transform_4, window_bounds = array<i64: 1, 128>}, {pipeline_mode = #tpu.pipeline_mode<synchronous>, transform_indices = @transform_5, window_bounds = array<i64: 1152, 128>}, {pipeline_mode = #tpu.pipeline_mode<synchronous>, transform_indices = @transform_6, window_bounds = array<i64: 1, 128>}, {pipeline_mode = #tpu.pipeline_mode<synchronous>, transform_indices = @transform_7, window_bounds = array<i64: 1, 128>}, {transform_indices = @transform_8, window_bounds = array<i64: 1, 288, 128>}]} {
    %cst = arith.constant 0.000000e+00 : bf16
    %0 = vector.broadcast %cst : bf16 to vector<19x128xbf16>
    %c0 = arith.constant 0 : index
    %c0_0 = arith.constant 0 : index
    %1 = vector.load %arg10[%c0, %c0_0] : memref<328x128xbf16, #tpu.memory_space<vmem>>, vector<19x128xbf16>
    tpu.vector_store %arg10[%c0, %c0_0], %0 {strides = array<i32>} : memref<328x128xbf16, #tpu.memory_space<vmem>>, vector<19x128xbf16>,
    %cst_1 = arith.constant 0.000000e+00 : bf16
    %2 = vector.broadcast %cst_1 : bf16 to vector<22x128xbf16>
    %c306 = arith.constant 306 : index
    %c0_2 = arith.constant 0 : index
    %3 = vector.load %arg10[%c306, %c0_2] : memref<328x128xbf16, #tpu.memory_space<vmem>>, vector<22x128xbf16>
    tpu.vector_store %arg10[%c306, %c0_2], %2 {strides = array<i32>} : memref<328x128xbf16, #tpu.memory_space<vmem>>, vector<22x128xbf16>,
    %c0_3 = arith.constant 0 : index
    %c0_4 = arith.constant 0 : index
    %c0_5 = arith.constant 0 : index
    %4 = vector.load %arg1[%c0_3, %c0_4, %c0_5] : memref<1x328x128xbf16, #tpu.memory_space<vmem>>, vector<1x288x128xbf16>
    %5 = vector.shape_cast %4 : vector<1x288x128xbf16> to vector<288x128xbf16>
    %c0_6 = arith.constant 0 : index
    %c0_7 = arith.constant 0 : index
    %6 = vector.load %arg11[%c0_6, %c0_7] : memref<288x1152xbf16, #tpu.memory_space<vmem>>, vector<288x128xbf16>
    tpu.vector_store %arg11[%c0_6, %c0_7], %5 {strides = array<i32>} : memref<288x1152xbf16, #tpu.memory_space<vmem>>, vector<288x128xbf16>,
    %c0_8 = arith.constant 0 : index
    %c1 = arith.constant 1 : index
    %c0_9 = arith.constant 0 : index
    %7 = vector.load %arg1[%c0_8, %c1, %c0_9] : memref<1x328x128xbf16, #tpu.memory_space<vmem>>, vector<1x288x128xbf16>
    %8 = vector.shape_cast %7 : vector<1x288x128xbf16> to vector<288x128xbf16>
    %c0_10 = arith.constant 0 : index
    %c128 = arith.constant 128 : index
    %9 = vector.load %arg11[%c0_10, %c128] : memref<288x1152xbf16, #tpu.memory_space<vmem>>, vector<288x128xbf16>
    tpu.vector_store %arg11[%c0_10, %c128], %8 {strides = array<i32>} : memref<288x1152xbf16, #tpu.memory_space<vmem>>, vector<288x128xbf16>,
    %c0_11 = arith.constant 0 : index
    %c2 = arith.constant 2 : index
    %c0_12 = arith.constant 0 : index
    %10 = vector.load %arg1[%c0_11, %c2, %c0_12] : memref<1x328x128xbf16, #tpu.memory_space<vmem>>, vector<1x288x128xbf16>
    %11 = vector.shape_cast %10 : vector<1x288x128xbf16> to vector<288x128xbf16>
    %c0_13 = arith.constant 0 : index
    %c256 = arith.constant 256 : index
    %12 = vector.load %arg11[%c0_13, %c256] : memref<288x1152xbf16, #tpu.memory_space<vmem>>, vector<288x128xbf16>
    tpu.vector_store %arg11[%c0_13, %c256], %11 {strides = array<i32>} : memref<288x1152xbf16, #tpu.memory_space<vmem>>, vector<288x128xbf16>,
    %c0_14 = arith.constant 0 : index
    %c18 = arith.constant 18 : index
    %c0_15 = arith.constant 0 : index
    %13 = vector.load %arg1[%c0_14, %c18, %c0_15] : memref<1x328x128xbf16, #tpu.memory_space<vmem>>, vector<1x288x128xbf16>
    %14 = vector.shape_cast %13 : vector<1x288x128xbf16> to vector<288x128xbf16>
    %c0_16 = arith.constant 0 : index
    %c384 = arith.constant 384 : index
    %15 = vector.load %arg11[%c0_16, %c384] : memref<288x1152xbf16, #tpu.memory_space<vmem>>, vector<288x128xbf16>
    tpu.vector_store %arg11[%c0_16, %c384], %14 {strides = array<i32>} : memref<288x1152xbf16, #tpu.memory_space<vmem>>, vector<288x128xbf16>,
    %c0_17 = arith.constant 0 : index
    %c19 = arith.constant 19 : index
    %c0_18 = arith.constant 0 : index
    %16 = vector.load %arg1[%c0_17, %c19, %c0_18] : memref<1x328x128xbf16, #tpu.memory_space<vmem>>, vector<1x288x128xbf16>
    %17 = vector.shape_cast %16 : vector<1x288x128xbf16> to vector<288x128xbf16>
    %c0_19 = arith.constant 0 : index
    %c512 = arith.constant 512 : index
    %18 = vector.load %arg11[%c0_19, %c512] : memref<288x1152xbf16, #tpu.memory_space<vmem>>, vector<288x128xbf16>
    tpu.vector_store %arg11[%c0_19, %c512], %17 {strides = array<i32>} : memref<288x1152xbf16, #tpu.memory_space<vmem>>, vector<288x128xbf16>,
    %c0_20 = arith.constant 0 : index
    %c20 = arith.constant 20 : index
    %c0_21 = arith.constant 0 : index
    %19 = vector.load %arg1[%c0_20, %c20, %c0_21] : memref<1x328x128xbf16, #tpu.memory_space<vmem>>, vector<1x288x128xbf16>
    %20 = vector.shape_cast %19 : vector<1x288x128xbf16> to vector<288x128xbf16>
    %c0_22 = arith.constant 0 : index
    %c640 = arith.constant 640 : index
    %21 = vector.load %arg11[%c0_22, %c640] : memref<288x1152xbf16, #tpu.memory_space<vmem>>, vector<288x128xbf16>
    tpu.vector_store %arg11[%c0_22, %c640], %20 {strides = array<i32>} : memref<288x1152xbf16, #tpu.memory_space<vmem>>, vector<288x128xbf16>,
    %c0_23 = arith.constant 0 : index
    %c36 = arith.constant 36 : index
    %c0_24 = arith.constant 0 : index
    %22 = vector.load %arg1[%c0_23, %c36, %c0_24] : memref<1x328x128xbf16, #tpu.memory_space<vmem>>, vector<1x288x128xbf16>
    %23 = vector.shape_cast %22 : vector<1x288x128xbf16> to vector<288x128xbf16>
    %c0_25 = arith.constant 0 : index
    %c768 = arith.constant 768 : index
    %24 = vector.load %arg11[%c0_25, %c768] : memref<288x1152xbf16, #tpu.memory_space<vmem>>, vector<288x128xbf16>
    tpu.vector_store %arg11[%c0_25, %c768], %23 {strides = array<i32>} : memref<288x1152xbf16, #tpu.memory_space<vmem>>, vector<288x128xbf16>,
    %c0_26 = arith.constant 0 : index
    %c37 = arith.constant 37 : index
    %c0_27 = arith.constant 0 : index
    %25 = vector.load %arg1[%c0_26, %c37, %c0_27] : memref<1x328x128xbf16, #tpu.memory_space<vmem>>, vector<1x288x128xbf16>
    %26 = vector.shape_cast %25 : vector<1x288x128xbf16> to vector<288x128xbf16>
    %c0_28 = arith.constant 0 : index
    %c896 = arith.constant 896 : index
    %27 = vector.load %arg11[%c0_28, %c896] : memref<288x1152xbf16, #tpu.memory_space<vmem>>, vector<288x128xbf16>
    tpu.vector_store %arg11[%c0_28, %c896], %26 {strides = array<i32>} : memref<288x1152xbf16, #tpu.memory_space<vmem>>, vector<288x128xbf16>,
    %c0_29 = arith.constant 0 : index
    %c38 = arith.constant 38 : index
    %c0_30 = arith.constant 0 : index
    %28 = vector.load %arg1[%c0_29, %c38, %c0_30] : memref<1x328x128xbf16, #tpu.memory_space<vmem>>, vector<1x288x128xbf16>
    %29 = vector.shape_cast %28 : vector<1x288x128xbf16> to vector<288x128xbf16>
    %c0_31 = arith.constant 0 : index
    %c1024 = arith.constant 1024 : index
    %30 = vector.load %arg11[%c0_31, %c1024] : memref<288x1152xbf16, #tpu.memory_space<vmem>>, vector<288x128xbf16>
    tpu.vector_store %arg11[%c0_31, %c1024], %29 {strides = array<i32>} : memref<288x1152xbf16, #tpu.memory_space<vmem>>, vector<288x128xbf16>,
    %c0_32 = arith.constant 0 : index
    %c0_33 = arith.constant 0 : index
    %31 = vector.load %arg11[%c0_32, %c0_33] : memref<288x1152xbf16, #tpu.memory_space<vmem>>, vector<288x1152xbf16>
    %c0_34 = arith.constant 0 : index
    %c0_35 = arith.constant 0 : index
    %32 = vector.load %arg3[%c0_34, %c0_35] : memref<1152x128xbf16, #tpu.memory_space<vmem>>, vector<1152x128xbf16>
    %cst_36 = arith.constant dense<0.000000e+00> : vector<288x128xf32>
    %33 = tpu.matmul %31, %32, %cst_36 {dimension_numbers = #tpu.dot_dimension_numbers<[1], [0], [0], [1], [0, 0, 1, 1], [], []>} : vector<288x1152xbf16>, vector<1152x128xbf16>, vector<288x128xf32> -> vector<288x128xf32>
    %c0_37 = arith.constant 0 : index
    %c0_38 = arith.constant 0 : index
    %34 = vector.load %arg4[%c0_37, %c0_38] : memref<1x128xf32, #tpu.memory_space<vmem>>, vector<1x128xf32>
    %35 = vector.broadcast %34 : vector<1x128xf32> to vector<288x128xf32>
    %36 = arith.mulf %33, %35 : vector<288x128xf32>
    %c0_39 = arith.constant 0 : index
    %c0_40 = arith.constant 0 : index
    %37 = vector.load %arg5[%c0_39, %c0_40] : memref<1x128xf32, #tpu.memory_space<vmem>>, vector<1x128xf32>
    %38 = vector.broadcast %37 : vector<1x128xf32> to vector<288x128xf32>
    %39 = arith.addf %36, %38 : vector<288x128xf32>
    %cst_41 = arith.constant 0.000000e+00 : f32
    %40 = vector.broadcast %cst_41 : f32 to vector<288x128xf32>
    %41 = arith.maximumf %39, %40 : vector<288x128xf32>
    %c0_42 = arith.constant 0 : index
    %c0_43 = arith.constant 0 : index
    %42 = vector.load %arg2[%c0_42, %c0_43] : memref<288x1xf32, #tpu.memory_space<vmem>>, vector<288x1xf32>
    %43 = vector.broadcast %42 : vector<288x1xf32> to vector<288x128xf32>
    %44 = arith.mulf %41, %43 : vector<288x128xf32>
    %45 = arith.truncf %44 : vector<288x128xf32> to vector<288x128xbf16>
    %c19_44 = arith.constant 19 : index
    %c0_45 = arith.constant 0 : index
    %46 = vector.load %arg10[%c19_44, %c0_45] : memref<328x128xbf16, #tpu.memory_space<vmem>>, vector<288x128xbf16>
    tpu.vector_store %arg10[%c19_44, %c0_45], %45 {strides = array<i32>} : memref<328x128xbf16, #tpu.memory_space<vmem>>, vector<288x128xbf16>,
    %c0_46 = arith.constant 0 : index
    %c0_47 = arith.constant 0 : index
    %47 = vector.load %arg10[%c0_46, %c0_47] : memref<328x128xbf16, #tpu.memory_space<vmem>>, vector<288x128xbf16>
    %c0_48 = arith.constant 0 : index
    %c0_49 = arith.constant 0 : index
    %48 = vector.load %arg11[%c0_48, %c0_49] : memref<288x1152xbf16, #tpu.memory_space<vmem>>, vector<288x128xbf16>
    tpu.vector_store %arg11[%c0_48, %c0_49], %47 {strides = array<i32>} : memref<288x1152xbf16, #tpu.memory_space<vmem>>, vector<288x128xbf16>,
    %c1_50 = arith.constant 1 : index
    %c0_51 = arith.constant 0 : index
    %49 = vector.load %arg10[%c1_50, %c0_51] : memref<328x128xbf16, #tpu.memory_space<vmem>>, vector<288x128xbf16>
    %c0_52 = arith.constant 0 : index
    %c128_53 = arith.constant 128 : index
    %50 = vector.load %arg11[%c0_52, %c128_53] : memref<288x1152xbf16, #tpu.memory_space<vmem>>, vector<288x128xbf16>
    tpu.vector_store %arg11[%c0_52, %c128_53], %49 {strides = array<i32>} : memref<288x1152xbf16, #tpu.memory_space<vmem>>, vector<288x128xbf16>,
    %c2_54 = arith.constant 2 : index
    %c0_55 = arith.constant 0 : index
    %51 = vector.load %arg10[%c2_54, %c0_55] : memref<328x128xbf16, #tpu.memory_space<vmem>>, vector<288x128xbf16>
    %c0_56 = arith.constant 0 : index
    %c256_57 = arith.constant 256 : index
    %52 = vector.load %arg11[%c0_56, %c256_57] : memref<288x1152xbf16, #tpu.memory_space<vmem>>, vector<288x128xbf16>
    tpu.vector_store %arg11[%c0_56, %c256_57], %51 {strides = array<i32>} : memref<288x1152xbf16, #tpu.memory_space<vmem>>, vector<288x128xbf16>,
    %c18_58 = arith.constant 18 : index
    %c0_59 = arith.constant 0 : index
    %53 = vector.load %arg10[%c18_58, %c0_59] : memref<328x128xbf16, #tpu.memory_space<vmem>>, vector<288x128xbf16>
    %c0_60 = arith.constant 0 : index
    %c384_61 = arith.constant 384 : index
    %54 = vector.load %arg11[%c0_60, %c384_61] : memref<288x1152xbf16, #tpu.memory_space<vmem>>, vector<288x128xbf16>
    tpu.vector_store %arg11[%c0_60, %c384_61], %53 {strides = array<i32>} : memref<288x1152xbf16, #tpu.memory_space<vmem>>, vector<288x128xbf16>,
    %c19_62 = arith.constant 19 : index
    %c0_63 = arith.constant 0 : index
    %55 = vector.load %arg10[%c19_62, %c0_63] : memref<328x128xbf16, #tpu.memory_space<vmem>>, vector<288x128xbf16>
    %c0_64 = arith.constant 0 : index
    %c512_65 = arith.constant 512 : index
    %56 = vector.load %arg11[%c0_64, %c512_65] : memref<288x1152xbf16, #tpu.memory_space<vmem>>, vector<288x128xbf16>
    tpu.vector_store %arg11[%c0_64, %c512_65], %55 {strides = array<i32>} : memref<288x1152xbf16, #tpu.memory_space<vmem>>, vector<288x128xbf16>,
    %c20_66 = arith.constant 20 : index
    %c0_67 = arith.constant 0 : index
    %57 = vector.load %arg10[%c20_66, %c0_67] : memref<328x128xbf16, #tpu.memory_space<vmem>>, vector<288x128xbf16>
    %c0_68 = arith.constant 0 : index
    %c640_69 = arith.constant 640 : index
    %58 = vector.load %arg11[%c0_68, %c640_69] : memref<288x1152xbf16, #tpu.memory_space<vmem>>, vector<288x128xbf16>
    tpu.vector_store %arg11[%c0_68, %c640_69], %57 {strides = array<i32>} : memref<288x1152xbf16, #tpu.memory_space<vmem>>, vector<288x128xbf16>,
    %c36_70 = arith.constant 36 : index
    %c0_71 = arith.constant 0 : index
    %59 = vector.load %arg10[%c36_70, %c0_71] : memref<328x128xbf16, #tpu.memory_space<vmem>>, vector<288x128xbf16>
    %c0_72 = arith.constant 0 : index
    %c768_73 = arith.constant 768 : index
    %60 = vector.load %arg11[%c0_72, %c768_73] : memref<288x1152xbf16, #tpu.memory_space<vmem>>, vector<288x128xbf16>
    tpu.vector_store %arg11[%c0_72, %c768_73], %59 {strides = array<i32>} : memref<288x1152xbf16, #tpu.memory_space<vmem>>, vector<288x128xbf16>,
    %c37_74 = arith.constant 37 : index
    %c0_75 = arith.constant 0 : index
    %61 = vector.load %arg10[%c37_74, %c0_75] : memref<328x128xbf16, #tpu.memory_space<vmem>>, vector<288x128xbf16>
    %c0_76 = arith.constant 0 : index
    %c896_77 = arith.constant 896 : index
    %62 = vector.load %arg11[%c0_76, %c896_77] : memref<288x1152xbf16, #tpu.memory_space<vmem>>, vector<288x128xbf16>
    tpu.vector_store %arg11[%c0_76, %c896_77], %61 {strides = array<i32>} : memref<288x1152xbf16, #tpu.memory_space<vmem>>, vector<288x128xbf16>,
    %c38_78 = arith.constant 38 : index
    %c0_79 = arith.constant 0 : index
    %63 = vector.load %arg10[%c38_78, %c0_79] : memref<328x128xbf16, #tpu.memory_space<vmem>>, vector<288x128xbf16>
    %c0_80 = arith.constant 0 : index
    %c1024_81 = arith.constant 1024 : index
    %64 = vector.load %arg11[%c0_80, %c1024_81] : memref<288x1152xbf16, #tpu.memory_space<vmem>>, vector<288x128xbf16>
    tpu.vector_store %arg11[%c0_80, %c1024_81], %63 {strides = array<i32>} : memref<288x1152xbf16, #tpu.memory_space<vmem>>, vector<288x128xbf16>,
    %c0_82 = arith.constant 0 : index
    %c0_83 = arith.constant 0 : index
    %65 = vector.load %arg11[%c0_82, %c0_83] : memref<288x1152xbf16, #tpu.memory_space<vmem>>, vector<288x1152xbf16>
    %c0_84 = arith.constant 0 : index
    %c0_85 = arith.constant 0 : index
    %66 = vector.load %arg6[%c0_84, %c0_85] : memref<1152x128xbf16, #tpu.memory_space<vmem>>, vector<1152x128xbf16>
    %cst_86 = arith.constant dense<0.000000e+00> : vector<288x128xf32>
    %67 = tpu.matmul %65, %66, %cst_86 {dimension_numbers = #tpu.dot_dimension_numbers<[1], [0], [0], [1], [0, 0, 1, 1], [], []>} : vector<288x1152xbf16>, vector<1152x128xbf16>, vector<288x128xf32> -> vector<288x128xf32>
    %c0_87 = arith.constant 0 : index
    %c19_88 = arith.constant 19 : index
    %c0_89 = arith.constant 0 : index
    %68 = vector.load %arg1[%c0_87, %c19_88, %c0_89] : memref<1x328x128xbf16, #tpu.memory_space<vmem>>, vector<1x288x128xbf16>
    %69 = vector.shape_cast %68 : vector<1x288x128xbf16> to vector<288x128xbf16>
    %70 = arith.extf %69 : vector<288x128xbf16> to vector<288x128xf32>
    %c0_90 = arith.constant 0 : index
    %c0_91 = arith.constant 0 : index
    %71 = vector.load %arg7[%c0_90, %c0_91] : memref<1x128xf32, #tpu.memory_space<vmem>>, vector<1x128xf32>
    %72 = vector.broadcast %71 : vector<1x128xf32> to vector<288x128xf32>
    %73 = arith.mulf %67, %72 : vector<288x128xf32>
    %c0_92 = arith.constant 0 : index
    %c0_93 = arith.constant 0 : index
    %74 = vector.load %arg8[%c0_92, %c0_93] : memref<1x128xf32, #tpu.memory_space<vmem>>, vector<1x128xf32>
    %75 = vector.broadcast %74 : vector<1x128xf32> to vector<288x128xf32>
    %76 = arith.addf %73, %75 : vector<288x128xf32>
    %77 = arith.addf %76, %70 : vector<288x128xf32>
    %cst_94 = arith.constant 0.000000e+00 : f32
    %78 = vector.broadcast %cst_94 : f32 to vector<288x128xf32>
    %79 = arith.maximumf %77, %78 : vector<288x128xf32>
    %c0_95 = arith.constant 0 : index
    %c0_96 = arith.constant 0 : index
    %c0_97 = arith.constant 0 : index
    %80 = vector.load %arg9[%c0_95, %c0_96, %c0_97] : memref<1x288x128xf32, #tpu.memory_space<vmem>>, vector<1x288x128xf32>
    %81 = vector.shape_cast %80 : vector<1x288x128xf32> to vector<288x128xf32>
    %82 = vector.shape_cast %79 : vector<288x128xf32> to vector<1x288x128xf32>
    tpu.vector_store %arg9[%c0_95, %c0_96, %c0_97], %82 {strides = array<i32>} : memref<1x288x128xf32, #tpu.memory_space<vmem>>, vector<1x288x128xf32>,
    return
  }
  func.func @transform_0(%arg0: i32) -> (i32, i32, i32) {
    %c0_i32 = arith.constant 0 : i32
    %c0_i32_0 = arith.constant 0 : i32
    %c0_i32_1 = arith.constant 0 : i32
    return %arg0, %c0_i32, %c0_i32_0 : i32, i32, i32
  }
  func.func @transform_1(%arg0: i32) -> (i32, i32) {
    %c0_i32 = arith.constant 0 : i32
    %c0_i32_0 = arith.constant 0 : i32
    %c0_i32_1 = arith.constant 0 : i32
    return %c0_i32, %c0_i32_0 : i32, i32
  }
  func.func @transform_2(%arg0: i32) -> (i32, i32) {
    %c0_i32 = arith.constant 0 : i32
    %c0_i32_0 = arith.constant 0 : i32
    %c0_i32_1 = arith.constant 0 : i32
    return %c0_i32, %c0_i32_0 : i32, i32
  }
  func.func @transform_3(%arg0: i32) -> (i32, i32) {
    %c0_i32 = arith.constant 0 : i32
    %c0_i32_0 = arith.constant 0 : i32
    %c0_i32_1 = arith.constant 0 : i32
    return %c0_i32, %c0_i32_0 : i32, i32
  }
  func.func @transform_4(%arg0: i32) -> (i32, i32) {
    %c0_i32 = arith.constant 0 : i32
    %c0_i32_0 = arith.constant 0 : i32
    %c0_i32_1 = arith.constant 0 : i32
    return %c0_i32, %c0_i32_0 : i32, i32
  }
  func.func @transform_5(%arg0: i32) -> (i32, i32) {
    %c0_i32 = arith.constant 0 : i32
    %c0_i32_0 = arith.constant 0 : i32
    %c0_i32_1 = arith.constant 0 : i32
    return %c0_i32, %c0_i32_0 : i32, i32
  }
  func.func @transform_6(%arg0: i32) -> (i32, i32) {
    %c0_i32 = arith.constant 0 : i32
    %c0_i32_0 = arith.constant 0 : i32
    %c0_i32_1 = arith.constant 0 : i32
    return %c0_i32, %c0_i32_0 : i32, i32
  }
  func.func @transform_7(%arg0: i32) -> (i32, i32) {
    %c0_i32 = arith.constant 0 : i32
    %c0_i32_0 = arith.constant 0 : i32
    %c0_i32_1 = arith.constant 0 : i32
    return %c0_i32, %c0_i32_0 : i32, i32
  }
  func.func @transform_8(%arg0: i32) -> (i32, i32, i32) {
    %c0_i32 = arith.constant 0 : i32
    %c0_i32_0 = arith.constant 0 : i32
    %c0_i32_1 = arith.constant 0 : i32
    return %arg0, %c0_i32, %c0_i32_0 : i32, i32, i32
  }
}

</mosaic_0001>

<llo_original>
// kernel: tpu_custom_call.1
$region0: #{tpu_custom_call.1}
  #allocation0 [shape = 'u32[]', space=smem, size = 0x4, offset = 0x4, fixed_abs, tag = 'smem constant byte address 0x4 - core index']
  #allocation1 [shape = 'u32[144,128]{1,0:T(1,128)}', space=vmem, size = 0x12000, scoped, tag = 'internal scratch']
  #allocation2 [shape = 'bf16[328,128]{1,0:T(8,128)(2,1)}', space=vmem, size = 0x14800, scoped, tag = 'scratch operand']
  #allocation3 [shape = 'bf16[288,1152]{1,0:T(16,128)(2,1)}', space=vmem, size = 0xa2000, scoped, tag = 'scratch operand']
  %s0 = inlined_call_operand.hbm [shape: bf16[2,328,128], index: 0, kind: input, shape index: {}]
  %s1 = inlined_call_operand.vmem [shape: f32[288,1], index: 1, kind: input, shape index: {}]
  %s2 = inlined_call_operand.hbm [shape: bf16[1152,128], index: 2, kind: input, shape index: {}]
  %s3 = inlined_call_operand.vmem [shape: f32[1,128], index: 3, kind: input, shape index: {}]
  %s4 = inlined_call_operand.vmem [shape: f32[1,128], index: 4, kind: input, shape index: {}]
  %s5 = inlined_call_operand.hbm [shape: bf16[1152,128], index: 5, kind: input, shape index: {}]
  %s6 = inlined_call_operand.vmem [shape: f32[1,128], index: 6, kind: input, shape index: {}]
  %s7 = inlined_call_operand.vmem [shape: f32[1,128], index: 7, kind: input, shape index: {}]
  %s8 = inlined_call_operand.hbm [shape: f32[2,288,128], index: 8, kind: output, shape index: {}]
  %s9 = sld [smem:[#allocation0]]
  $region77: #{tpu_custom_call.1} parent=0
    _
  %s11 = ssub.s32 1, %s9
  %s12 = scalar_select 0, %s11, %s9
  $region1: #{tpu_custom_call.1} parent=0
    #allocation4 [shape = 'u8[167936]{0}', space=vmem, size = 0x29000, scoped, tag = 'input window, operand 0']
    #allocation5 [shape = 's32[2]{0}', space=sflag, size = 0x8, scoped, tag = 'scoped memory for tpu_custom_call.1']
    #allocation6 [shape = 's32[2]{0}', space=sflag, size = 0x8, scoped, tag = 'scoped memory for tpu_custom_call.1']
    #allocation7 [shape = 'u8[294912]{0}', space=vmem, size = 0x48000, scoped, tag = 'input window, operand 2, single buffered']
    #allocation8 [shape = 's32[1]{0}', space=sflag, size = 0x4, scoped, tag = 'scoped memory for tpu_custom_call.1']
    #allocation9 [shape = 'u8[294912]{0}', space=vmem, size = 0x48000, scoped, tag = 'input window, operand 5, single buffered']
    #allocation10 [shape = 'u8[294912]{0}', space=vmem, size = 0x48000, scoped, tag = 'output window, operand 0']
    %13 = vsyncpa [#allocation5], 0
    %s14 = scalar_lea.sflag [#allocation5], 1
    %15 = vsyncpa %s14, 0
    %16 = vsyncpa [#allocation8], 0
    %17 = vsyncpa [#allocation6], 0
    %s18 = scalar_lea.sflag [#allocation6], 1
    %19 = vsyncpa %s18, 0
    loop: start=0, step=1, limit=4
    $region2: #{tpu_custom_call.1} parent=1 // loop_pre_header
      _
    $region3: #{tpu_custom_call.1} parent=1 // loop_header
      %s21 = sphi 0, %s25
      %p22 = scmp.ge.s32.totalorder %s21, 4
      %s31 = sphi 0, %s33
      %s34 = sphi 0, %s31
      %s35 = sphi 0, %s34
      %s51 = sphi 0, %s35
      %s55 = sphi 0, %s55
      %s57 = sphi 0, %s55
      %s58 = sphi 0, %s57
      %s72 = sphi 0, %s58
      %s76 = sphi 0, %s76
      %s78 = sphi 0, %s76
      %s79 = sphi 0, %s78
      %s93 = sphi 0, %s79
      %s97 = sphi 0, %s97
      %s99 = sphi 0, %s97
      %s100 = sphi 0, %s99
      %s114 = sphi 0, %s100
      %s118 = sphi 0, %s118
      %s120 = sphi 0, %s118
      %s121 = sphi 0, %s120
      %s135 = sphi 0, %s121
      %s139 = sphi 0, %s139
      %s141 = sphi 0, %s139
      %s142 = sphi 0, %s141
      %s156 = sphi 0, %s142
      %s160 = sphi 0, %s160
      %s162 = sphi 0, %s160
      %s163 = sphi 0, %s162
      %s177 = sphi 0, %s163
      %s181 = sphi 0, %s181
      %s183 = sphi 0, %s181
      %s184 = sphi 0, %s183
      %s198 = sphi 0, %s184
      %s204 = sphi 0, %s206
      %s207 = sphi 0, %s204
      %s208 = sphi 0, %s207
      %s224 = sphi 0, %s208
    $region4: #{tpu_custom_call.1} parent=1 // loop_header_branch
      %24 = sbr.rel (%p22) target = $region8
    $region5: #{tpu_custom_call.1} parent=1 // loop_body
      %s26 = ssub.s32 %s21, 1
      %s27 = ssub.s32 %s21, 2
      %s28 = sadd.s32 %s21, 1
      %s29 = ssub.s32 %s21, %s28
      %p30 = scmp.eq.s32.totalorder %s29, 0
      %s32 = sadd.s32 %s31, 1
      %s33 = scalar_select %p30, %s31, %s32
      %p36 = pneg %p30
      %p37 = scmp.eq.s32.totalorder %s21, 1
      %p38 = por %p36, %p37
      %p39 = scmp.ne.s32.totalorder %s31, %s34
      %p40 = scmp.eq.s32.totalorder %s21, 0
      %p41 = por %p39, %p40
      %p42 = scmp.ne.s32.totalorder %s31, %s34
      %p43 = scmp.eq.s32.totalorder %s26, 1
      %p44 = por %p42, %p43
      %p45 = scmp.ne.s32.totalorder %s34, %s35
      %p46 = scmp.eq.s32.totalorder %s26, 0
      %p47 = por %p45, %p46
      %p48 = scmp.ne.s32.totalorder %s34, %s35
      %p49 = scmp.eq.s32.totalorder %s27, 1
      %p50 = por %p48, %p49
      %p52 = scmp.ne.s32.totalorder %s35, %s51
      %p53 = scmp.eq.s32.totalorder %s27, 0
      %p54 = por %p52, %p53
      %s56 = sadd.s32 %s55, 1
      %p59 = scmp.eq.s32.totalorder %s21, 1
      %p60 = scmp.ne.s32.totalorder %s55, %s57
      %p61 = scmp.eq.s32.totalorder %s21, 0
      %p62 = por %p60, %p61
      %p63 = scmp.ne.s32.totalorder %s55, %s57
      %p64 = scmp.eq.s32.totalorder %s26, 1
      %p65 = por %p63, %p64
      %p66 = scmp.ne.s32.totalorder %s57, %s58
      %p67 = scmp.eq.s32.totalorder %s26, 0
      %p68 = por %p66, %p67
      %p69 = scmp.ne.s32.totalorder %s57, %s58
      %p70 = scmp.eq.s32.totalorder %s27, 1
      %p71 = por %p69, %p70
      %p73 = scmp.ne.s32.totalorder %s58, %s72
      %p74 = scmp.eq.s32.totalorder %s27, 0
      %p75 = por %p73, %p74
      %s77 = sadd.s32 %s76, 1
      %p80 = scmp.eq.s32.totalorder %s21, 1
      %p81 = scmp.ne.s32.totalorder %s76, %s78
      %p82 = scmp.eq.s32.totalorder %s21, 0
      %p83 = por %p81, %p82
      %p84 = scmp.ne.s32.totalorder %s76, %s78
      %p85 = scmp.eq.s32.totalorder %s26, 1
      %p86 = por %p84, %p85
      %p87 = scmp.ne.s32.totalorder %s78, %s79
      %p88 = scmp.eq.s32.totalorder %s26, 0
      %p89 = por %p87, %p88
      %p90 = scmp.ne.s32.totalorder %s78, %s79
      %p91 = scmp.eq.s32.totalorder %s27, 1
      %p92 = por %p90, %p91
      %p94 = scmp.ne.s32.totalorder %s79, %s93
      %p95 = scmp.eq.s32.totalorder %s27, 0
      %p96 = por %p94, %p95
      %s98 = sadd.s32 %s97, 1
      %p101 = scmp.eq.s32.totalorder %s21, 1
      %p102 = scmp.ne.s32.totalorder %s97, %s99
      %p103 = scmp.eq.s32.totalorder %s21, 0
      %p104 = por %p102, %p103
      %p105 = scmp.ne.s32.totalorder %s97, %s99
      %p106 = scmp.eq.s32.totalorder %s26, 1
      %p107 = por %p105, %p106
      %p108 = scmp.ne.s32.totalorder %s99, %s100
      %p109 = scmp.eq.s32.totalorder %s26, 0
      %p110 = por %p108, %p109
      %p111 = scmp.ne.s32.totalorder %s99, %s100
      %p112 = scmp.eq.s32.totalorder %s27, 1
      %p113 = por %p111, %p112
      %p115 = scmp.ne.s32.totalorder %s100, %s114
      %p116 = scmp.eq.s32.totalorder %s27, 0
      %p117 = por %p115, %p116
      %s119 = sadd.s32 %s118, 1
      %p122 = scmp.eq.s32.totalorder %s21, 1
      %p123 = scmp.ne.s32.totalorder %s118, %s120
      %p124 = scmp.eq.s32.totalorder %s21, 0
      %p125 = por %p123, %p124
      %p126 = scmp.ne.s32.totalorder %s118, %s120
      %p127 = scmp.eq.s32.totalorder %s26, 1
      %p128 = por %p126, %p127
      %p129 = scmp.ne.s32.totalorder %s120, %s121
      %p130 = scmp.eq.s32.totalorder %s26, 0
      %p131 = por %p129, %p130
      %p132 = scmp.ne.s32.totalorder %s120, %s121
      %p133 = scmp.eq.s32.totalorder %s27, 1
      %p134 = por %p132, %p133
      %p136 = scmp.ne.s32.totalorder %s121, %s135
      %p137 = scmp.eq.s32.totalorder %s27, 0
      %p138 = por %p136, %p137
      %s140 = sadd.s32 %s139, 1
      %p143 = scmp.eq.s32.totalorder %s21, 1
      %p144 = scmp.ne.s32.totalorder %s139, %s141
      %p145 = scmp.eq.s32.totalorder %s21, 0
      %p146 = por %p144, %p145
      %p147 = scmp.ne.s32.totalorder %s139, %s141
      %p148 = scmp.eq.s32.totalorder %s26, 1
      %p149 = por %p147, %p148
      %p150 = scmp.ne.s32.totalorder %s141, %s142
      %p151 = scmp.eq.s32.totalorder %s26, 0
      %p152 = por %p150, %p151
      %p153 = scmp.ne.s32.totalorder %s141, %s142
      %p154 = scmp.eq.s32.totalorder %s27, 1
      %p155 = por %p153, %p154
      %p157 = scmp.ne.s32.totalorder %s142, %s156
      %p158 = scmp.eq.s32.totalorder %s27, 0
      %p159 = por %p157, %p158
      %s161 = sadd.s32 %s160, 1
      %p164 = scmp.eq.s32.totalorder %s21, 1
      %p165 = scmp.ne.s32.totalorder %s160, %s162
      %p166 = scmp.eq.s32.totalorder %s21, 0
      %p167 = por %p165, %p166
      %p168 = scmp.ne.s32.totalorder %s160, %s162
      %p169 = scmp.eq.s32.totalorder %s26, 1
      %p170 = por %p168, %p169
      %p171 = scmp.ne.s32.totalorder %s162, %s163
      %p172 = scmp.eq.s32.totalorder %s26, 0
      %p173 = por %p171, %p172
      %p174 = scmp.ne.s32.totalorder %s162, %s163
      %p175 = scmp.eq.s32.totalorder %s27, 1
      %p176 = por %p174, %p175
      %p178 = scmp.ne.s32.totalorder %s163, %s177
      %p179 = scmp.eq.s32.totalorder %s27, 0
      %p180 = por %p178, %p179
      %s182 = sadd.s32 %s181, 1
      %p185 = scmp.eq.s32.totalorder %s21, 1
      %p186 = scmp.ne.s32.totalorder %s181, %s183
      %p187 = scmp.eq.s32.totalorder %s21, 0
      %p188 = por %p186, %p187
      %p189 = scmp.ne.s32.totalorder %s181, %s183
      %p190 = scmp.eq.s32.totalorder %s26, 1
      %p191 = por %p189, %p190
      %p192 = scmp.ne.s32.totalorder %s183, %s184
      %p193 = scmp.eq.s32.totalorder %s26, 0
      %p194 = por %p192, %p193
      %p195 = scmp.ne.s32.totalorder %s183, %s184
      %p196 = scmp.eq.s32.totalorder %s27, 1
      %p197 = por %p195, %p196
      %p199 = scmp.ne.s32.totalorder %s184, %s198
      %p200 = scmp.eq.s32.totalorder %s27, 0
      %p201 = por %p199, %p200
      %s202 = ssub.s32 %s21, %s28
      %p203 = scmp.eq.s32.totalorder %s202, 0
      %s205 = sadd.s32 %s204, 1
      %s206 = scalar_select %p203, %s204, %s205
      %p209 = pneg %p203
      %p210 = scmp.eq.s32.totalorder %s21, 1
      %p211 = por %p209, %p210
      %p212 = scmp.ne.s32.totalorder %s204, %s207
      %p213 = scmp.eq.s32.totalorder %s21, 0
      %p214 = por %p212, %p213
      %p215 = scmp.ne.s32.totalorder %s204, %s207
      %p216 = scmp.eq.s32.totalorder %s26, 1
      %p217 = por %p215, %p216
      %p218 = scmp.ne.s32.totalorder %s207, %s208
      %p219 = scmp.eq.s32.totalorder %s26, 0
      %p220 = por %p218, %p219
      %p221 = scmp.ne.s32.totalorder %s207, %s208
      %p222 = scmp.eq.s32.totalorder %s27, 1
      %p223 = por %p221, %p222
      %p225 = scmp.ne.s32.totalorder %s208, %s224
      %p226 = scmp.eq.s32.totalorder %s27, 0
      %p227 = por %p225, %p226
      %p228 = scmp.le.s32.totalorder 1, %s21
      %p229 = scmp.lt.s32.totalorder %s21, 3
      %p230 = pnand %p228, %p229
      %p231 = pneg %p230
      // Predicated region
      $region9: #{tpu_custom_call.1} parent=5 // pred_check
        _
      $region10: #{tpu_custom_call.1} parent=5 // pred_check_branch
        %233 = sbr.rel (%p230) target = $region12
      $region11: #{tpu_custom_call.1} parent=5 // pred_region
        %s234 = ssub.s32 %s21, 1
        // Predicated region
        $region13: #{tpu_custom_call.1} parent=11 // pred_check
          %p235 = pneg %p68
        $region14: #{tpu_custom_call.1} parent=11 // pred_check_branch
          %237 = sbr.rel (%p235) target = $region16
        $region15: #{tpu_custom_call.1} parent=11 // pred_region
          _
        $region16: #{tpu_custom_call.1} parent=11 // pred_fallthru
          _
        // Predicated region
        $region17: #{tpu_custom_call.1} parent=11 // pred_check
          %p238 = pneg %p89
        $region18: #{tpu_custom_call.1} parent=11 // pred_check_branch
          %240 = sbr.rel (%p238) target = $region20
        $region19: #{tpu_custom_call.1} parent=11 // pred_region
          %s242 = ssub.s32 9216, 9216
          %243 = vsyncadd [#allocation8], %s242
          %s244 = sshll.u32 [#allocation7], 4
          %s245 = int_to_ptr.vmem [resolvable:$true] %s244
          %250 = dma.hbm_to_vmem [thread:$0]  %s2, 9216, %s245, [#allocation8], 64, 64, 4
        $region20: #{tpu_custom_call.1} parent=11 // pred_fallthru
          _
        // Predicated region
        $region21: #{tpu_custom_call.1} parent=11 // pred_check
          %p251 = pneg %p110
        $region22: #{tpu_custom_call.1} parent=11 // pred_check_branch
          %253 = sbr.rel (%p251) target = $region24
        $region23: #{tpu_custom_call.1} parent=11 // pred_region
          _
        $region24: #{tpu_custom_call.1} parent=11 // pred_fallthru
          _
        // Predicated region
        $region25: #{tpu_custom_call.1} parent=11 // pred_check
          %p254 = pneg %p131
        $region26: #{tpu_custom_call.1} parent=11 // pred_check_branch
          %256 = sbr.rel (%p254) target = $region28
        $region27: #{tpu_custom_call.1} parent=11 // pred_region
          _
        $region28: #{tpu_custom_call.1} parent=11 // pred_fallthru
          _
        // Predicated region
        $region29: #{tpu_custom_call.1} parent=11 // pred_check
          %p257 = pneg %p152
        $region30: #{tpu_custom_call.1} parent=11 // pred_check_branch
          %259 = sbr.rel (%p257) target = $region32
        $region31: #{tpu_custom_call.1} parent=11 // pred_region
          %s261 = ssub.s32 9216, 9216
          %262 = vsyncadd [#allocation8], %s261
          %s263 = sshll.u32 [#allocation9], 4
          %s264 = int_to_ptr.vmem [resolvable:$true] %s263
          %269 = dma.hbm_to_vmem [thread:$0]  %s5, 9216, %s264, [#allocation8], 64, 64, 4
        $region32: #{tpu_custom_call.1} parent=11 // pred_fallthru
          _
        // Predicated region
        $region33: #{tpu_custom_call.1} parent=11 // pred_check
          %p270 = pneg %p173
        $region34: #{tpu_custom_call.1} parent=11 // pred_check_branch
          %272 = sbr.rel (%p270) target = $region36
        $region35: #{tpu_custom_call.1} parent=11 // pred_region
          _
        $region36: #{tpu_custom_call.1} parent=11 // pred_fallthru
          _
        // Predicated region
        $region37: #{tpu_custom_call.1} parent=11 // pred_check
          %p273 = pneg %p194
        $region38: #{tpu_custom_call.1} parent=11 // pred_check_branch
          %275 = sbr.rel (%p273) target = $region40
        $region39: #{tpu_custom_call.1} parent=11 // pred_region
          _
        $region40: #{tpu_custom_call.1} parent=11 // pred_fallthru
          _
      $region12: #{tpu_custom_call.1} parent=5 // pred_fallthru
        _
      %p276 = scmp.lt.s32.totalorder %s21, 2
      // Predicated region
      $region41: #{tpu_custom_call.1} parent=5 // pred_check
        %p277 = pneg %p276
      $region42: #{tpu_custom_call.1} parent=5 // pred_check_branch
        %279 = sbr.rel (%p277) target = $region44
      $region43: #{tpu_custom_call.1} parent=5 // pred_region
        // Predicated region
        $region45: #{tpu_custom_call.1} parent=43 // pred_check
          %p280 = pneg %p41
        $region46: #{tpu_custom_call.1} parent=43 // pred_check_branch
          %282 = sbr.rel (%p280) target = $region48
        $region47: #{tpu_custom_call.1} parent=43 // pred_region
          %s283 = sand.u32 %s31, 1
          %s284 = scalar_lea.sflag [#allocation5], %s283
          %s285 = sand.u32 %s31, 1
          %s286 = smul.addr %s285, 164
          %s287 = scalar_lea.vmem [#allocation4], %s286
          %s289 = ssub.s32 2624, 2624
          %290 = vsyncadd %s284, %s289
          %s291 = smul.addr %s21, 41
          %s292 = smul.addr %s291, 64
          %s293 = scalar_lea.hbm %s0, %s292
          %s294 = sshll.u32 %s287, 4
          %s295 = int_to_ptr.vmem [resolvable:$true] %s294
          %300 = dma.hbm_to_vmem [thread:$0]  %s293, 2624, %s295, %s284, 64, 64, 4
        $region48: #{tpu_custom_call.1} parent=43 // pred_fallthru
          _
      $region44: #{tpu_custom_call.1} parent=5 // pred_fallthru
        _
      %p301 = scmp.le.s32.totalorder 1, %s21
      %p302 = scmp.lt.s32.totalorder %s21, 3
      %p303 = pnand %p301, %p302
      %p304 = pneg %p303
      // Predicated region
      $region49: #{tpu_custom_call.1} parent=5 // pred_check
        _
      $region50: #{tpu_custom_call.1} parent=5 // pred_check_branch
        %306 = sbr.rel (%p303) target = $region52
      $region51: #{tpu_custom_call.1} parent=5 // pred_region
        %s307 = ssub.s32 %s21, 1
        %s308 = sand.u32 %s34, 1
        %s309 = scalar_lea.sflag [#allocation5], %s308
        %s310 = sand.u32 %s34, 1
        %s311 = smul.addr %s310, 164
        %s312 = scalar_lea.vmem [#allocation4], %s311
        // Predicated region
        $region53: #{tpu_custom_call.1} parent=51 // pred_check
          %p313 = pneg %p47
        $region54: #{tpu_custom_call.1} parent=51 // pred_check_branch
          %315 = sbr.rel (%p313) target = $region56
        $region55: #{tpu_custom_call.1} parent=51 // pred_region
          %316 = dma.done %s309, 2624
        $region56: #{tpu_custom_call.1} parent=51 // pred_fallthru
          _
        // Predicated region
        $region57: #{tpu_custom_call.1} parent=51 // pred_check
          %p317 = pneg %p89
        $region58: #{tpu_custom_call.1} parent=51 // pred_check_branch
          %319 = sbr.rel (%p317) target = $region60
        $region59: #{tpu_custom_call.1} parent=51 // pred_region
          %320 = dma.done [#allocation8], 9216
        $region60: #{tpu_custom_call.1} parent=51 // pred_fallthru
          _
        // Predicated region
        $region61: #{tpu_custom_call.1} parent=51 // pred_check
          %p321 = pneg %p152
        $region62: #{tpu_custom_call.1} parent=51 // pred_check_branch
          %323 = sbr.rel (%p321) target = $region64
        $region63: #{tpu_custom_call.1} parent=51 // pred_region
          %324 = dma.done [#allocation8], 9216
        $region64: #{tpu_custom_call.1} parent=51 // pred_fallthru
          _
        %s325 = sand.u32 %s34, 1
        %s326 = scalar_lea.sflag [#allocation5], %s325
        %s327 = sand.u32 %s34, 1
        %s328 = smul.addr %s327, 164
        %s329 = scalar_lea.vmem [#allocation4], %s328
        %p330 = pneg %p47
        %p331 = pneg %p44
        %p332 = pneg %p68
        %p333 = pneg %p65
        %p334 = pneg %p89
        %p335 = pneg %p86
        %p336 = pneg %p110
        %p337 = pneg %p107
        %p338 = pneg %p131
        %p339 = pneg %p128
        %p340 = pneg %p152
        %p341 = pneg %p149
        %p342 = pneg %p173
        %p343 = pneg %p170
        %p344 = pneg %p194
        %p345 = pneg %p191
        %p346 = pneg %p220
        %p347 = pneg %p217
        %s348 = sand.u32 %s207, 1
        %s349 = scalar_lea.sflag [#allocation6], %s348
        %s350 = sand.u32 %s207, 1
        %s351 = smul.addr %s350, 288
        %s352 = scalar_lea.vmem [#allocation10], %s351
        %354 = vst [vmem:[#allocation2] sm:$0xf] 0
        %355 = vst [vmem:[#allocation2 + $0x4] sm:$0xf] 0
        %vm356 = vcmask 1041408
        %vm357 = vsmask.f32 1280
        %vm358 = vmand %vm356, %vm357
        %v359 = vld [vmem:[#allocation2 + $0x8] sm:$0x3]
        %v360 = vsel %vm358, 0, %v359
        %361 = vst [vmem:[#allocation2 + $0x8] sm:$0x3] %v360
        %362 = vst [vmem:[#allocation2 + $0x98] sm:$0xe] 0
        %363 = vst [vmem:[#allocation2 + $0x9c] sm:$0xf] 0
        %364 = vst [vmem:[#allocation2 + $0xa0] sm:$0xf] 0
        %v365 = vld [vmem:[%s312] sm:$0xf]
        %v366 = vld [vmem:[%s312 + $0x4] sm:$0xf]
        %v367 = vld [vmem:[%s312 + $0x8] sm:$0xf]
        %v368 = vld [vmem:[%s312 + $0xc] sm:$0xf]
        %v369 = vld [vmem:[%s312 + $0x10] sm:$0xf]
        %v370 = vld [vmem:[%s312 + $0x14] sm:$0xf]
        %v371 = vld [vmem:[%s312 + $0x18] sm:$0xf]
        %v372 = vld [vmem:[%s312 + $0x1c] sm:$0xf]
        %v373 = vld [vmem:[%s312 + $0x20] sm:$0xf]
        %v374 = vld [vmem:[%s312 + $0x24] sm:$0xf]
        %v375 = vld [vmem:[%s312 + $0x28] sm:$0xf]
        %v376 = vld [vmem:[%s312 + $0x2c] sm:$0xf]
        %v377 = vld [vmem:[%s312 + $0x30] sm:$0xf]
        %v378 = vld [vmem:[%s312 + $0x34] sm:$0xf]
        %v379 = vld [vmem:[%s312 + $0x38] sm:$0xf]
        %v380 = vld [vmem:[%s312 + $0x3c] sm:$0xf]
        %v381 = vld [vmem:[%s312 + $0x40] sm:$0xf]
        %v382 = vld [vmem:[%s312 + $0x44] sm:$0xf]
        %v383 = vld [vmem:[%s312 + $0x48] sm:$0xf]
        %v384 = vld [vmem:[%s312 + $0x4c] sm:$0xf]
        %v385 = vld [vmem:[%s312 + $0x50] sm:$0xf]
        %v386 = vld [vmem:[%s312 + $0x54] sm:$0xf]
        %v387 = vld [vmem:[%s312 + $0x58] sm:$0xf]
        %v388 = vld [vmem:[%s312 + $0x5c] sm:$0xf]
        %v389 = vld [vmem:[%s312 + $0x60] sm:$0xf]
        %v390 = vld [vmem:[%s312 + $0x64] sm:$0xf]
        %v391 = vld [vmem:[%s312 + $0x68] sm:$0xf]
        %v392 = vld [vmem:[%s312 + $0x6c] sm:$0xf]
        %v393 = vld [vmem:[%s312 + $0x70] sm:$0xf]
        %v394 = vld [vmem:[%s312 + $0x74] sm:$0xf]
        %v395 = vld [vmem:[%s312 + $0x78] sm:$0xf]
        %v396 = vld [vmem:[%s312 + $0x7c] sm:$0xf]
        %v397 = vld [vmem:[%s312 + $0x80] sm:$0xf]
        %v398 = vld [vmem:[%s312 + $0x84] sm:$0xf]
        %v399 = vld [vmem:[%s312 + $0x88] sm:$0xf]
        %v400 = vld [vmem:[%s312 + $0x8c] sm:$0xf]
        %v437 = vunpack.c.l.b16 %v365
        %v438 = vunpack.c.l.b16 %v366
        %v439 = vunpack.c.l.b16 %v367
        %v440 = vunpack.c.l.b16 %v368
        %v441 = vunpack.c.l.b16 %v369
        %v442 = vunpack.c.l.b16 %v370
        %v443 = vunpack.c.l.b16 %v371
        %v444 = vunpack.c.l.b16 %v372
        %v445 = vunpack.c.l.b16 %v373
        %v446 = vunpack.c.l.b16 %v374
        %v447 = vunpack.c.l.b16 %v375
        %v448 = vunpack.c.l.b16 %v376
        %v449 = vunpack.c.l.b16 %v377
        %v450 = vunpack.c.l.b16 %v378
        %v451 = vunpack.c.l.b16 %v379
        %v452 = vunpack.c.l.b16 %v380
        %v453 = vunpack.c.l.b16 %v381
        %v454 = vunpack.c.l.b16 %v382
        %v455 = vunpack.c.l.b16 %v383
        %v456 = vunpack.c.l.b16 %v384
        %v457 = vunpack.c.l.b16 %v385
        %v458 = vunpack.c.l.b16 %v386
        %v459 = vunpack.c.l.b16 %v387
        %v460 = vunpack.c.l.b16 %v388
        %v461 = vunpack.c.l.b16 %v389
        %v462 = vunpack.c.l.b16 %v390
        %v463 = vunpack.c.l.b16 %v391
        %v464 = vunpack.c.l.b16 %v392
        %v465 = vunpack.c.l.b16 %v393
        %v466 = vunpack.c.l.b16 %v394
        %v467 = vunpack.c.l.b16 %v395
        %v468 = vunpack.c.l.b16 %v396
        %v469 = vunpack.c.l.b16 %v397
        %v470 = vunpack.c.l.b16 %v398
        %v471 = vunpack.c.l.b16 %v399
        %v472 = vunpack.c.l.b16 %v400
        %v473 = vpack.c.b16 %v438, %v437
        %v474 = vpack.c.b16 %v440, %v439
        %v475 = vpack.c.b16 %v442, %v441
        %v476 = vpack.c.b16 %v444, %v443
        %v477 = vpack.c.b16 %v446, %v445
        %v478 = vpack.c.b16 %v448, %v447
        %v479 = vpack.c.b16 %v450, %v449
        %v480 = vpack.c.b16 %v452, %v451
        %v481 = vpack.c.b16 %v454, %v453
        %v482 = vpack.c.b16 %v456, %v455
        %v483 = vpack.c.b16 %v458, %v457
        %v484 = vpack.c.b16 %v460, %v459
        %v485 = vpack.c.b16 %v462, %v461
        %v486 = vpack.c.b16 %v464, %v463
        %v487 = vpack.c.b16 %v466, %v465
        %v488 = vpack.c.b16 %v468, %v467
        %v489 = vpack.c.b16 %v470, %v469
        %v490 = vpack.c.b16 %v472, %v471
        %509 = vst [vmem:[#allocation3] sm:$0xff] %v473
        %510 = vst [vmem:[#allocation3 + $0x48] sm:$0xff] %v474
        %511 = vst [vmem:[#allocation3 + $0x90] sm:$0xff] %v475
        %512 = vst [vmem:[#allocation3 + $0xd8] sm:$0xff] %v476
        %513 = vst [vmem:[#allocation3 + $0x120] sm:$0xff] %v477
        %514 = vst [vmem:[#allocation3 + $0x168] sm:$0xff] %v478
        %515 = vst [vmem:[#allocation3 + $0x1b0] sm:$0xff] %v479
        %516 = vst [vmem:[#allocation3 + $0x1f8] sm:$0xff] %v480
        %517 = vst [vmem:[#allocation3 + $0x240] sm:$0xff] %v481
        %518 = vst [vmem:[#allocation3 + $0x288] sm:$0xff] %v482
        %519 = vst [vmem:[#allocation3 + $0x2d0] sm:$0xff] %v483
        %520 = vst [vmem:[#allocation3 + $0x318] sm:$0xff] %v484
        %521 = vst [vmem:[#allocation3 + $0x360] sm:$0xff] %v485
        %522 = vst [vmem:[#allocation3 + $0x3a8] sm:$0xff] %v486
        %523 = vst [vmem:[#allocation3 + $0x3f0] sm:$0xff] %v487
        %524 = vst [vmem:[#allocation3 + $0x438] sm:$0xff] %v488
        %525 = vst [vmem:[#allocation3 + $0x480] sm:$0xff] %v489
        %526 = vst [vmem:[#allocation3 + $0x4c8] sm:$0xff] %v490
        %v527 = vld [vmem:[%s312] sm:$0xf]
        %v528 = vld [vmem:[%s312 + $0x4] sm:$0xf]
        %v529 = vld [vmem:[%s312 + $0x8] sm:$0xf]
        %v530 = vld [vmem:[%s312 + $0xc] sm:$0xf]
        %v531 = vld [vmem:[%s312 + $0x10] sm:$0xf]
        %v532 = vld [vmem:[%s312 + $0x14] sm:$0xf]
        %v533 = vld [vmem:[%s312 + $0x18] sm:$0xf]
        %v534 = vld [vmem:[%s312 + $0x1c] sm:$0xf]
        %v535 = vld [vmem:[%s312 + $0x20] sm:$0xf]
        %v536 = vld [vmem:[%s312 + $0x24] sm:$0xf]
        %v537 = vld [vmem:[%s312 + $0x28] sm:$0xf]
        %v538 = vld [vmem:[%s312 + $0x2c] sm:$0xf]
        %v539 = vld [vmem:[%s312 + $0x30] sm:$0xf]
        %v540 = vld [vmem:[%s312 + $0x34] sm:$0xf]
        %v541 = vld [vmem:[%s312 + $0x38] sm:$0xf]
        %v542 = vld [vmem:[%s312 + $0x3c] sm:$0xf]
        %v543 = vld [vmem:[%s312 + $0x40] sm:$0xf]
        %v544 = vld [vmem:[%s312 + $0x44] sm:$0xf]
        %v545 = vld [vmem:[%s312 + $0x48] sm:$0xf]
        %v546 = vld [vmem:[%s312 + $0x4c] sm:$0xf]
        %v547 = vld [vmem:[%s312 + $0x50] sm:$0xf]
        %v548 = vld [vmem:[%s312 + $0x54] sm:$0xf]
        %v549 = vld [vmem:[%s312 + $0x58] sm:$0xf]
        %v550 = vld [vmem:[%s312 + $0x5c] sm:$0xf]
        %v551 = vld [vmem:[%s312 + $0x60] sm:$0xf]
        %v552 = vld [vmem:[%s312 + $0x64] sm:$0xf]
        %v553 = vld [vmem:[%s312 + $0x68] sm:$0xf]
        %v554 = vld [vmem:[%s312 + $0x6c] sm:$0xf]
        %v555 = vld [vmem:[%s312 + $0x70] sm:$0xf]
        %v556 = vld [vmem:[%s312 + $0x74] sm:$0xf]
        %v557 = vld [vmem:[%s312 + $0x78] sm:$0xf]
        %v558 = vld [vmem:[%s312 + $0x7c] sm:$0xf]
        %v559 = vld [vmem:[%s312 + $0x80] sm:$0xf]
        %v560 = vld [vmem:[%s312 + $0x84] sm:$0xf]
        %v561 = vld [vmem:[%s312 + $0x88] sm:$0xf]
        %v562 = vld [vmem:[%s312 + $0x8c] sm:$0xf]
        %v563 = vld [vmem:[%s312 + $0x90] sm:$0x1]
        %v601 = vunpack.c.l.b16 %v527
        %v602 = vunpack.c.l.b16 %v528
        %v603 = vunpack.c.l.b16 %v529
        %v604 = vunpack.c.l.b16 %v530
        %v605 = vunpack.c.l.b16 %v531
        %v606 = vunpack.c.l.b16 %v532
        %v607 = vunpack.c.l.b16 %v533
        %v608 = vunpack.c.l.b16 %v534
        %v609 = vunpack.c.l.b16 %v535
        %v610 = vunpack.c.l.b16 %v536
        %v611 = vunpack.c.l.b16 %v537
        %v612 = vunpack.c.l.b16 %v538
        %v613 = vunpack.c.l.b16 %v539
        %v614 = vunpack.c.l.b16 %v540
        %v615 = vunpack.c.l.b16 %v541
        %v616 = vunpack.c.l.b16 %v542
        %v617 = vunpack.c.l.b16 %v543
        %v618 = vunpack.c.l.b16 %v544
        %v619 = vunpack.c.l.b16 %v545
        %v620 = vunpack.c.l.b16 %v546
        %v621 = vunpack.c.l.b16 %v547
        %v622 = vunpack.c.l.b16 %v548
        %v623 = vunpack.c.l.b16 %v549
        %v624 = vunpack.c.l.b16 %v550
        %v625 = vunpack.c.l.b16 %v551
        %v626 = vunpack.c.l.b16 %v552
        %v627 = vunpack.c.l.b16 %v553
        %v628 = vunpack.c.l.b16 %v554
        %v629 = vunpack.c.l.b16 %v555
        %v630 = vunpack.c.l.b16 %v556
        %v631 = vunpack.c.l.b16 %v557
        %v632 = vunpack.c.l.b16 %v558
        %v633 = vunpack.c.l.b16 %v559
        %v634 = vunpack.c.l.b16 %v560
        %v635 = vunpack.c.l.b16 %v561
        %v636 = vunpack.c.l.b16 %v562
        %v637 = vunpack.c.l.b16 %v563
        %v638 = vpack.c.b16 %v602, %v601
        %v639 = vpack.c.b16 %v604, %v603
        %v640 = vpack.c.b16 %v606, %v605
        %v641 = vpack.c.b16 %v608, %v607
        %v642 = vpack.c.b16 %v610, %v609
        %v643 = vpack.c.b16 %v612, %v611
        %v644 = vpack.c.b16 %v614, %v613
        %v645 = vpack.c.b16 %v616, %v615
        %v646 = vpack.c.b16 %v618, %v617
        %v647 = vpack.c.b16 %v620, %v619
        %v648 = vpack.c.b16 %v622, %v621
        %v649 = vpack.c.b16 %v624, %v623
        %v650 = vpack.c.b16 %v626, %v625
        %v651 = vpack.c.b16 %v628, %v627
        %v652 = vpack.c.b16 %v630, %v629
        %v653 = vpack.c.b16 %v632, %v631
        %v654 = vpack.c.b16 %v634, %v633
        %v655 = vpack.c.b16 %v636, %v635
        %v656 = vpack.c.b16 %v637, %v637
        %vm657 = vsmask.f32 7424
        %v659 = vshrl.u32 %v638, 16
        %v661 = vshll.u32 %v638, 16
        %v663 = vrot.slane %v661, 1
        %v664 = vor.u32 %v659, %v663
        %v666 = vshll.u32 %v639, 16
        %v668 = vrot.slane %v666, 1
        %v669 = vsel %vm657, %v664, %v668
        %v670 = vshrl.u32 %v639, 16
        %v672 = vor.u32 %v670, %v668
        %v674 = vshll.u32 %v640, 16
        %v676 = vrot.slane %v674, 1
        %v677 = vsel %vm657, %v672, %v676
        %v678 = vshrl.u32 %v640, 16
        %v680 = vor.u32 %v678, %v676
        %v682 = vshll.u32 %v641, 16
        %v684 = vrot.slane %v682, 1
        %v685 = vsel %vm657, %v680, %v684
        %v686 = vshrl.u32 %v641, 16
        %v688 = vor.u32 %v686, %v684
        %v690 = vshll.u32 %v642, 16
        %v692 = vrot.slane %v690, 1
        %v693 = vsel %vm657, %v688, %v692
        %v694 = vshrl.u32 %v642, 16
        %v696 = vor.u32 %v694, %v692
        %v698 = vshll.u32 %v643, 16
        %v700 = vrot.slane %v698, 1
        %v701 = vsel %vm657, %v696, %v700
        %v702 = vshrl.u32 %v643, 16
        %v704 = vor.u32 %v702, %v700
        %v706 = vshll.u32 %v644, 16
        %v708 = vrot.slane %v706, 1
        %v709 = vsel %vm657, %v704, %v708
        %v710 = vshrl.u32 %v644, 16
        %v712 = vor.u32 %v710, %v708
        %v714 = vshll.u32 %v645, 16
        %v716 = vrot.slane %v714, 1
        %v717 = vsel %vm657, %v712, %v716
        %v718 = vshrl.u32 %v645, 16
        %v720 = vor.u32 %v718, %v716
        %v722 = vshll.u32 %v646, 16
        %v724 = vrot.slane %v722, 1
        %v725 = vsel %vm657, %v720, %v724
        %v726 = vshrl.u32 %v646, 16
        %v728 = vor.u32 %v726, %v724
        %v730 = vshll.u32 %v647, 16
        %v732 = vrot.slane %v730, 1
        %v733 = vsel %vm657, %v728, %v732
        %v734 = vshrl.u32 %v647, 16
        %v736 = vor.u32 %v734, %v732
        %v738 = vshll.u32 %v648, 16
        %v740 = vrot.slane %v738, 1
        %v741 = vsel %vm657, %v736, %v740
        %v742 = vshrl.u32 %v648, 16
        %v744 = vor.u32 %v742, %v740
        %v746 = vshll.u32 %v649, 16
        %v748 = vrot.slane %v746, 1
        %v749 = vsel %vm657, %v744, %v748
        %v750 = vshrl.u32 %v649, 16
        %v752 = vor.u32 %v750, %v748
        %v754 = vshll.u32 %v650, 16
        %v756 = vrot.slane %v754, 1
        %v757 = vsel %vm657, %v752, %v756
        %v758 = vshrl.u32 %v650, 16
        %v760 = vor.u32 %v758, %v756
        %v762 = vshll.u32 %v651, 16
        %v764 = vrot.slane %v762, 1
        %v765 = vsel %vm657, %v760, %v764
        %v766 = vshrl.u32 %v651, 16
        %v768 = vor.u32 %v766, %v764
        %v770 = vshll.u32 %v652, 16
        %v772 = vrot.slane %v770, 1
        %v773 = vsel %vm657, %v768, %v772
        %v774 = vshrl.u32 %v652, 16
        %v776 = vor.u32 %v774, %v772
        %v778 = vshll.u32 %v653, 16
        %v780 = vrot.slane %v778, 1
        %v781 = vsel %vm657, %v776, %v780
        %v782 = vshrl.u32 %v653, 16
        %v784 = vor.u32 %v782, %v780
        %v786 = vshll.u32 %v654, 16
        %v788 = vrot.slane %v786, 1
        %v789 = vsel %vm657, %v784, %v788
        %v790 = vshrl.u32 %v654, 16
        %v792 = vor.u32 %v790, %v788
        %v794 = vshll.u32 %v655, 16
        %v796 = vrot.slane %v794, 1
        %v797 = vsel %vm657, %v792, %v796
        %v798 = vshrl.u32 %v655, 16
        %v800 = vor.u32 %v798, %v796
        %v802 = vshll.u32 %v656, 16
        %v804 = vrot.slane %v802, 1
        %v805 = vsel %vm657, %v800, %v804
        %824 = vst [vmem:[#allocation3 + $0x8] sm:$0xff] %v669
        %825 = vst [vmem:[#allocation3 + $0x50] sm:$0xff] %v677
        %826 = vst [vmem:[#allocation3 + $0x98] sm:$0xff] %v685
        %827 = vst [vmem:[#allocation3 + $0xe0] sm:$0xff] %v693
        %828 = vst [vmem:[#allocation3 + $0x128] sm:$0xff] %v701
        %829 = vst [vmem:[#allocation3 + $0x170] sm:$0xff] %v709
        %830 = vst [vmem:[#allocation3 + $0x1b8] sm:$0xff] %v717
        %831 = vst [vmem:[#allocation3 + $0x200] sm:$0xff] %v725
        %832 = vst [vmem:[#allocation3 + $0x248] sm:$0xff] %v733
        %833 = vst [vmem:[#allocation3 + $0x290] sm:$0xff] %v741
        %834 = vst [vmem:[#allocation3 + $0x2d8] sm:$0xff] %v749
        %835 = vst [vmem:[#allocation3 + $0x320] sm:$0xff] %v757
        %836 = vst [vmem:[#allocation3 + $0x368] sm:$0xff] %v765
        %837 = vst [vmem:[#allocation3 + $0x3b0] sm:$0xff] %v773
        %838 = vst [vmem:[#allocation3 + $0x3f8] sm:$0xff] %v781
        %839 = vst [vmem:[#allocation3 + $0x440] sm:$0xff] %v789
        %840 = vst [vmem:[#allocation3 + $0x488] sm:$0xff] %v797
        %841 = vst [vmem:[#allocation3 + $0x4d0] sm:$0xff] %v805
        %v842 = vld [vmem:[%s312] sm:$0xe]
        %v843 = vld [vmem:[%s312 + $0x4] sm:$0xf]
        %v844 = vld [vmem:[%s312 + $0x8] sm:$0xf]
        %v845 = vld [vmem:[%s312 + $0xc] sm:$0xf]
        %v846 = vld [vmem:[%s312 + $0x10] sm:$0xf]
        %v847 = vld [vmem:[%s312 + $0x14] sm:$0xf]
        %v848 = vld [vmem:[%s312 + $0x18] sm:$0xf]
        %v849 = vld [vmem:[%s312 + $0x1c] sm:$0xf]
        %v850 = vld [vmem:[%s312 + $0x20] sm:$0xf]
        %v851 = vld [vmem:[%s312 + $0x24] sm:$0xf]
        %v852 = vld [vmem:[%s312 + $0x28] sm:$0xf]
        %v853 = vld [vmem:[%s312 + $0x2c] sm:$0xf]
        %v854 = vld [vmem:[%s312 + $0x30] sm:$0xf]
        %v855 = vld [vmem:[%s312 + $0x34] sm:$0xf]
        %v856 = vld [vmem:[%s312 + $0x38] sm:$0xf]
        %v857 = vld [vmem:[%s312 + $0x3c] sm:$0xf]
        %v858 = vld [vmem:[%s312 + $0x40] sm:$0xf]
        %v859 = vld [vmem:[%s312 + $0x44] sm:$0xf]
        %v860 = vld [vmem:[%s312 + $0x48] sm:$0xf]
        %v861 = vld [vmem:[%s312 + $0x4c] sm:$0xf]
        %v862 = vld [vmem:[%s312 + $0x50] sm:$0xf]
        %v863 = vld [vmem:[%s312 + $0x54] sm:$0xf]
        %v864 = vld [vmem:[%s312 + $0x58] sm:$0xf]
        %v865 = vld [vmem:[%s312 + $0x5c] sm:$0xf]
        %v866 = vld [vmem:[%s312 + $0x60] sm:$0xf]
        %v867 = vld [vmem:[%s312 + $0x64] sm:$0xf]
        %v868 = vld [vmem:[%s312 + $0x68] sm:$0xf]
        %v869 = vld [vmem:[%s312 + $0x6c] sm:$0xf]
        %v870 = vld [vmem:[%s312 + $0x70] sm:$0xf]
        %v871 = vld [vmem:[%s312 + $0x74] sm:$0xf]
        %v872 = vld [vmem:[%s312 + $0x78] sm:$0xf]
        %v873 = vld [vmem:[%s312 + $0x7c] sm:$0xf]
        %v874 = vld [vmem:[%s312 + $0x80] sm:$0xf]
        %v875 = vld [vmem:[%s312 + $0x84] sm:$0xf]
        %v876 = vld [vmem:[%s312 + $0x88] sm:$0xf]
        %v877 = vld [vmem:[%s312 + $0x8c] sm:$0xf]
        %v878 = vld [vmem:[%s312 + $0x90] sm:$0x1]
        %v916 = vunpack.c.l.b16 %v842
        %v917 = vunpack.c.l.b16 %v843
        %v918 = vunpack.c.l.b16 %v844
        %v919 = vunpack.c.l.b16 %v845
        %v920 = vunpack.c.l.b16 %v846
        %v921 = vunpack.c.l.b16 %v847
        %v922 = vunpack.c.l.b16 %v848
        %v923 = vunpack.c.l.b16 %v849
        %v924 = vunpack.c.l.b16 %v850
        %v925 = vunpack.c.l.b16 %v851
        %v926 = vunpack.c.l.b16 %v852
        %v927 = vunpack.c.l.b16 %v853
        %v928 = vunpack.c.l.b16 %v854
        %v929 = vunpack.c.l.b16 %v855
        %v930 = vunpack.c.l.b16 %v856
        %v931 = vunpack.c.l.b16 %v857
        %v932 = vunpack.c.l.b16 %v858
        %v933 = vunpack.c.l.b16 %v859
        %v934 = vunpack.c.l.b16 %v860
        %v935 = vunpack.c.l.b16 %v861
        %v936 = vunpack.c.l.b16 %v862
        %v937 = vunpack.c.l.b16 %v863
        %v938 = vunpack.c.l.b16 %v864
        %v939 = vunpack.c.l.b16 %v865
        %v940 = vunpack.c.l.b16 %v866
        %v941 = vunpack.c.l.b16 %v867
        %v942 = vunpack.c.l.b16 %v868
        %v943 = vunpack.c.l.b16 %v869
        %v944 = vunpack.c.l.b16 %v870
        %v945 = vunpack.c.l.b16 %v871
        %v946 = vunpack.c.l.b16 %v872
        %v947 = vunpack.c.l.b16 %v873
        %v948 = vunpack.c.l.b16 %v874
        %v949 = vunpack.c.l.b16 %v875
        %v950 = vunpack.c.l.b16 %v876
        %v951 = vunpack.c.l.b16 %v877
        %v952 = vunpack.c.l.b16 %v878
        %v953 = vpack.c.b16 %v917, %v916
        %v954 = vpack.c.b16 %v919, %v918
        %v955 = vpack.c.b16 %v921, %v920
        %v956 = vpack.c.b16 %v923, %v922
        %v957 = vpack.c.b16 %v925, %v924
        %v958 = vpack.c.b16 %v927, %v926
        %v959 = vpack.c.b16 %v929, %v928
        %v960 = vpack.c.b16 %v931, %v930
        %v961 = vpack.c.b16 %v933, %v932
        %v962 = vpack.c.b16 %v935, %v934
        %v963 = vpack.c.b16 %v937, %v936
        %v964 = vpack.c.b16 %v939, %v938
        %v965 = vpack.c.b16 %v941, %v940
        %v966 = vpack.c.b16 %v943, %v942
        %v967 = vpack.c.b16 %v945, %v944
        %v968 = vpack.c.b16 %v947, %v946
        %v969 = vpack.c.b16 %v949, %v948
        %v970 = vpack.c.b16 %v951, %v950
        %v971 = vpack.c.b16 %v952, %v952
        %vm972 = vcmask 1046528
        %v973 = vrot.slane %v953, 1
        %v974 = vrot.slane %v954, 1
        %v975 = vsel %vm972, %v973, %v974
        %v976 = vrot.slane %v955, 1
        %v977 = vsel %vm972, %v974, %v976
        %v978 = vrot.slane %v956, 1
        %v979 = vsel %vm972, %v976, %v978
        %v980 = vrot.slane %v957, 1
        %v981 = vsel %vm972, %v978, %v980
        %v982 = vrot.slane %v958, 1
        %v983 = vsel %vm972, %v980, %v982
        %v984 = vrot.slane %v959, 1
        %v985 = vsel %vm972, %v982, %v984
        %v986 = vrot.slane %v960, 1
        %v987 = vsel %vm972, %v984, %v986
        %v988 = vrot.slane %v961, 1
        %v989 = vsel %vm972, %v986, %v988
        %v990 = vrot.slane %v962, 1
        %v991 = vsel %vm972, %v988, %v990
        %v992 = vrot.slane %v963, 1
        %v993 = vsel %vm972, %v990, %v992
        %v994 = vrot.slane %v964, 1
        %v995 = vsel %vm972, %v992, %v994
        %v996 = vrot.slane %v965, 1
        %v997 = vsel %vm972, %v994, %v996
        %v998 = vrot.slane %v966, 1
        %v999 = vsel %vm972, %v996, %v998
        %v1000 = vrot.slane %v967, 1
        %v1001 = vsel %vm972, %v998, %v1000
        %v1002 = vrot.slane %v968, 1
        %v1003 = vsel %vm972, %v1000, %v1002
        %v1004 = vrot.slane %v969, 1
        %v1005 = vsel %vm972, %v1002, %v1004
        %v1006 = vrot.slane %v970, 1
        %v1007 = vsel %vm972, %v1004, %v1006
        %v1008 = vrot.slane %v971, 1
        %v1009 = vsel %vm972, %v1006, %v1008
        %1028 = vst [vmem:[#allocation3 + $0x10] sm:$0xff] %v975
        %1029 = vst [vmem:[#allocation3 + $0x58] sm:$0xff] %v977
        %1030 = vst [vmem:[#allocation3 + $0xa0] sm:$0xff] %v979
        %1031 = vst [vmem:[#allocation3 + $0xe8] sm:$0xff] %v981
        %1032 = vst [vmem:[#allocation3 + $0x130] sm:$0xff] %v983
        %1033 = vst [vmem:[#allocation3 + $0x178] sm:$0xff] %v985
        %1034 = vst [vmem:[#allocation3 + $0x1c0] sm:$0xff] %v987
        %1035 = vst [vmem:[#allocation3 + $0x208] sm:$0xff] %v989
        %1036 = vst [vmem:[#allocation3 + $0x250] sm:$0xff] %v991
        %1037 = vst [vmem:[#allocation3 + $0x298] sm:$0xff] %v993
        %1038 = vst [vmem:[#allocation3 + $0x2e0] sm:$0xff] %v995
        %1039 = vst [vmem:[#allocation3 + $0x328] sm:$0xff] %v997
        %1040 = vst [vmem:[#allocation3 + $0x370] sm:$0xff] %v999
        %1041 = vst [vmem:[#allocation3 + $0x3b8] sm:$0xff] %v1001
        %1042 = vst [vmem:[#allocation3 + $0x400] sm:$0xff] %v1003
        %1043 = vst [vmem:[#allocation3 + $0x448] sm:$0xff] %v1005
        %1044 = vst [vmem:[#allocation3 + $0x490] sm:$0xff] %v1007
        %1045 = vst [vmem:[#allocation3 + $0x4d8] sm:$0xff] %v1009
        %v1046 = vld [vmem:[%s312 + $0x8] sm:$0xe]
        %v1047 = vld [vmem:[%s312 + $0xc] sm:$0xf]
        %v1048 = vld [vmem:[%s312 + $0x10] sm:$0xf]
        %v1049 = vld [vmem:[%s312 + $0x14] sm:$0xf]
        %v1050 = vld [vmem:[%s312 + $0x18] sm:$0xf]
        %v1051 = vld [vmem:[%s312 + $0x1c] sm:$0xf]
        %v1052 = vld [vmem:[%s312 + $0x20] sm:$0xf]
        %v1053 = vld [vmem:[%s312 + $0x24] sm:$0xf]
        %v1054 = vld [vmem:[%s312 + $0x28] sm:$0xf]
        %v1055 = vld [vmem:[%s312 + $0x2c] sm:$0xf]
        %v1056 = vld [vmem:[%s312 + $0x30] sm:$0xf]
        %v1057 = vld [vmem:[%s312 + $0x34] sm:$0xf]
        %v1058 = vld [vmem:[%s312 + $0x38] sm:$0xf]
        %v1059 = vld [vmem:[%s312 + $0x3c] sm:$0xf]
        %v1060 = vld [vmem:[%s312 + $0x40] sm:$0xf]
        %v1061 = vld [vmem:[%s312 + $0x44] sm:$0xf]
        %v1062 = vld [vmem:[%s312 + $0x48] sm:$0xf]
        %v1063 = vld [vmem:[%s312 + $0x4c] sm:$0xf]
        %v1064 = vld [vmem:[%s312 + $0x50] sm:$0xf]
        %v1065 = vld [vmem:[%s312 + $0x54] sm:$0xf]
        %v1066 = vld [vmem:[%s312 + $0x58] sm:$0xf]
        %v1067 = vld [vmem:[%s312 + $0x5c] sm:$0xf]
        %v1068 = vld [vmem:[%s312 + $0x60] sm:$0xf]
        %v1069 = vld [vmem:[%s312 + $0x64] sm:$0xf]
        %v1070 = vld [vmem:[%s312 + $0x68] sm:$0xf]
        %v1071 = vld [vmem:[%s312 + $0x6c] sm:$0xf]
        %v1072 = vld [vmem:[%s312 + $0x70] sm:$0xf]
        %v1073 = vld [vmem:[%s312 + $0x74] sm:$0xf]
        %v1074 = vld [vmem:[%s312 + $0x78] sm:$0xf]
        %v1075 = vld [vmem:[%s312 + $0x7c] sm:$0xf]
        %v1076 = vld [vmem:[%s312 + $0x80] sm:$0xf]
        %v1077 = vld [vmem:[%s312 + $0x84] sm:$0xf]
        %v1078 = vld [vmem:[%s312 + $0x88] sm:$0xf]
        %v1079 = vld [vmem:[%s312 + $0x8c] sm:$0xf]
        %v1080 = vld [vmem:[%s312 + $0x90] sm:$0xf]
        %v1081 = vld [vmem:[%s312 + $0x94] sm:$0xf]
        %v1082 = vld [vmem:[%s312 + $0x98] sm:$0x1]
        %v1120 = vunpack.c.l.b16 %v1046
        %v1121 = vunpack.c.l.b16 %v1047
        %v1122 = vunpack.c.l.b16 %v1048
        %v1123 = vunpack.c.l.b16 %v1049
        %v1124 = vunpack.c.l.b16 %v1050
        %v1125 = vunpack.c.l.b16 %v1051
        %v1126 = vunpack.c.l.b16 %v1052
        %v1127 = vunpack.c.l.b16 %v1053
        %v1128 = vunpack.c.l.b16 %v1054
        %v1129 = vunpack.c.l.b16 %v1055
        %v1130 = vunpack.c.l.b16 %v1056
        %v1131 = vunpack.c.l.b16 %v1057
        %v1132 = vunpack.c.l.b16 %v1058
        %v1133 = vunpack.c.l.b16 %v1059
        %v1134 = vunpack.c.l.b16 %v1060
        %v1135 = vunpack.c.l.b16 %v1061
        %v1136 = vunpack.c.l.b16 %v1062
        %v1137 = vunpack.c.l.b16 %v1063
        %v1138 = vunpack.c.l.b16 %v1064
        %v1139 = vunpack.c.l.b16 %v1065
        %v1140 = vunpack.c.l.b16 %v1066
        %v1141 = vunpack.c.l.b16 %v1067
        %v1142 = vunpack.c.l.b16 %v1068
        %v1143 = vunpack.c.l.b16 %v1069
        %v1144 = vunpack.c.l.b16 %v1070
        %v1145 = vunpack.c.l.b16 %v1071
        %v1146 = vunpack.c.l.b16 %v1072
        %v1147 = vunpack.c.l.b16 %v1073
        %v1148 = vunpack.c.l.b16 %v1074
        %v1149 = vunpack.c.l.b16 %v1075
        %v1150 = vunpack.c.l.b16 %v1076
        %v1151 = vunpack.c.l.b16 %v1077
        %v1152 = vunpack.c.l.b16 %v1078
        %v1153 = vunpack.c.l.b16 %v1079
        %v1154 = vunpack.c.l.b16 %v1080
        %v1155 = vunpack.c.l.b16 %v1081
        %v1156 = vunpack.c.l.b16 %v1082
        %v1157 = vpack.c.b16 %v1121, %v1120
        %v1158 = vpack.c.b16 %v1123, %v1122
        %v1159 = vpack.c.b16 %v1125, %v1124
        %v1160 = vpack.c.b16 %v1127, %v1126
        %v1161 = vpack.c.b16 %v1129, %v1128
        %v1162 = vpack.c.b16 %v1131, %v1130
        %v1163 = vpack.c.b16 %v1133, %v1132
        %v1164 = vpack.c.b16 %v1135, %v1134
        %v1165 = vpack.c.b16 %v1137, %v1136
        %v1166 = vpack.c.b16 %v1139, %v1138
        %v1167 = vpack.c.b16 %v1141, %v1140
        %v1168 = vpack.c.b16 %v1143, %v1142
        %v1169 = vpack.c.b16 %v1145, %v1144
        %v1170 = vpack.c.b16 %v1147, %v1146
        %v1171 = vpack.c.b16 %v1149, %v1148
        %v1172 = vpack.c.b16 %v1151, %v1150
        %v1173 = vpack.c.b16 %v1153, %v1152
        %v1174 = vpack.c.b16 %v1155, %v1154
        %v1175 = vpack.c.b16 %v1156, %v1156
        %v1176 = vrot.slane %v1157, 1
        %v1177 = vrot.slane %v1158, 1
        %v1178 = vsel %vm972, %v1176, %v1177
        %v1179 = vrot.slane %v1159, 1
        %v1180 = vsel %vm972, %v1177, %v1179
        %v1181 = vrot.slane %v1160, 1
        %v1182 = vsel %vm972, %v1179, %v1181
        %v1183 = vrot.slane %v1161, 1
        %v1184 = vsel %vm972, %v1181, %v1183
        %v1185 = vrot.slane %v1162, 1
        %v1186 = vsel %vm972, %v1183, %v1185
        %v1187 = vrot.slane %v1163, 1
        %v1188 = vsel %vm972, %v1185, %v1187
        %v1189 = vrot.slane %v1164, 1
        %v1190 = vsel %vm972, %v1187, %v1189
        %v1191 = vrot.slane %v1165, 1
        %v1192 = vsel %vm972, %v1189, %v1191
        %v1193 = vrot.slane %v1166, 1
        %v1194 = vsel %vm972, %v1191, %v1193
        %v1195 = vrot.slane %v1167, 1
        %v1196 = vsel %vm972, %v1193, %v1195
        %v1197 = vrot.slane %v1168, 1
        %v1198 = vsel %vm972, %v1195, %v1197
        %v1199 = vrot.slane %v1169, 1
        %v1200 = vsel %vm972, %v1197, %v1199
        %v1201 = vrot.slane %v1170, 1
        %v1202 = vsel %vm972, %v1199, %v1201
        %v1203 = vrot.slane %v1171, 1
        %v1204 = vsel %vm972, %v1201, %v1203
        %v1205 = vrot.slane %v1172, 1
        %v1206 = vsel %vm972, %v1203, %v1205
        %v1207 = vrot.slane %v1173, 1
        %v1208 = vsel %vm972, %v1205, %v1207
        %v1209 = vrot.slane %v1174, 1
        %v1210 = vsel %vm972, %v1207, %v1209
        %v1211 = vrot.slane %v1175, 1
        %v1212 = vsel %vm972, %v1209, %v1211
        %1231 = vst [vmem:[#allocation3 + $0x18] sm:$0xff] %v1178
        %1232 = vst [vmem:[#allocation3 + $0x60] sm:$0xff] %v1180
        %1233 = vst [vmem:[#allocation3 + $0xa8] sm:$0xff] %v1182
        %1234 = vst [vmem:[#allocation3 + $0xf0] sm:$0xff] %v1184
        %1235 = vst [vmem:[#allocation3 + $0x138] sm:$0xff] %v1186
        %1236 = vst [vmem:[#allocation3 + $0x180] sm:$0xff] %v1188
        %1237 = vst [vmem:[#allocation3 + $0x1c8] sm:$0xff] %v1190
        %1238 = vst [vmem:[#allocation3 + $0x210] sm:$0xff] %v1192
        %1239 = vst [vmem:[#allocation3 + $0x258] sm:$0xff] %v1194
        %1240 = vst [vmem:[#allocation3 + $0x2a0] sm:$0xff] %v1196
        %1241 = vst [vmem:[#allocation3 + $0x2e8] sm:$0xff] %v1198
        %1242 = vst [vmem:[#allocation3 + $0x330] sm:$0xff] %v1200
        %1243 = vst [vmem:[#allocation3 + $0x378] sm:$0xff] %v1202
        %1244 = vst [vmem:[#allocation3 + $0x3c0] sm:$0xff] %v1204
        %1245 = vst [vmem:[#allocation3 + $0x408] sm:$0xff] %v1206
        %1246 = vst [vmem:[#allocation3 + $0x450] sm:$0xff] %v1208
        %1247 = vst [vmem:[#allocation3 + $0x498] sm:$0xff] %v1210
        %1248 = vst [vmem:[#allocation3 + $0x4e0] sm:$0xff] %v1212
        %v1249 = vld [vmem:[%s312 + $0x8] sm:$0xe]
        %v1250 = vld [vmem:[%s312 + $0xc] sm:$0xf]
        %v1251 = vld [vmem:[%s312 + $0x10] sm:$0xf]
        %v1252 = vld [vmem:[%s312 + $0x14] sm:$0xf]
        %v1253 = vld [vmem:[%s312 + $0x18] sm:$0xf]
        %v1254 = vld [vmem:[%s312 + $0x1c] sm:$0xf]
        %v1255 = vld [vmem:[%s312 + $0x20] sm:$0xf]
        %v1256 = vld [vmem:[%s312 + $0x24] sm:$0xf]
        %v1257 = vld [vmem:[%s312 + $0x28] sm:$0xf]
        %v1258 = vld [vmem:[%s312 + $0x2c] sm:$0xf]
        %v1259 = vld [vmem:[%s312 + $0x30] sm:$0xf]
        %v1260 = vld [vmem:[%s312 + $0x34] sm:$0xf]
        %v1261 = vld [vmem:[%s312 + $0x38] sm:$0xf]
        %v1262 = vld [vmem:[%s312 + $0x3c] sm:$0xf]
        %v1263 = vld [vmem:[%s312 + $0x40] sm:$0xf]
        %v1264 = vld [vmem:[%s312 + $0x44] sm:$0xf]
        %v1265 = vld [vmem:[%s312 + $0x48] sm:$0xf]
        %v1266 = vld [vmem:[%s312 + $0x4c] sm:$0xf]
        %v1267 = vld [vmem:[%s312 + $0x50] sm:$0xf]
        %v1268 = vld [vmem:[%s312 + $0x54] sm:$0xf]
        %v1269 = vld [vmem:[%s312 + $0x58] sm:$0xf]
        %v1270 = vld [vmem:[%s312 + $0x5c] sm:$0xf]
        %v1271 = vld [vmem:[%s312 + $0x60] sm:$0xf]
        %v1272 = vld [vmem:[%s312 + $0x64] sm:$0xf]
        %v1273 = vld [vmem:[%s312 + $0x68] sm:$0xf]
        %v1274 = vld [vmem:[%s312 + $0x6c] sm:$0xf]
        %v1275 = vld [vmem:[%s312 + $0x70] sm:$0xf]
        %v1276 = vld [vmem:[%s312 + $0x74] sm:$0xf]
        %v1277 = vld [vmem:[%s312 + $0x78] sm:$0xf]
        %v1278 = vld [vmem:[%s312 + $0x7c] sm:$0xf]
        %v1279 = vld [vmem:[%s312 + $0x80] sm:$0xf]
        %v1280 = vld [vmem:[%s312 + $0x84] sm:$0xf]
        %v1281 = vld [vmem:[%s312 + $0x88] sm:$0xf]
        %v1282 = vld [vmem:[%s312 + $0x8c] sm:$0xf]
        %v1283 = vld [vmem:[%s312 + $0x90] sm:$0xf]
        %v1284 = vld [vmem:[%s312 + $0x94] sm:$0xf]
        %v1285 = vld [vmem:[%s312 + $0x98] sm:$0x3]
        %v1323 = vunpack.c.l.b16 %v1249
        %v1324 = vunpack.c.l.b16 %v1250
        %v1325 = vunpack.c.l.b16 %v1251
        %v1326 = vunpack.c.l.b16 %v1252
        %v1327 = vunpack.c.l.b16 %v1253
        %v1328 = vunpack.c.l.b16 %v1254
        %v1329 = vunpack.c.l.b16 %v1255
        %v1330 = vunpack.c.l.b16 %v1256
        %v1331 = vunpack.c.l.b16 %v1257
        %v1332 = vunpack.c.l.b16 %v1258
        %v1333 = vunpack.c.l.b16 %v1259
        %v1334 = vunpack.c.l.b16 %v1260
        %v1335 = vunpack.c.l.b16 %v1261
        %v1336 = vunpack.c.l.b16 %v1262
        %v1337 = vunpack.c.l.b16 %v1263
        %v1338 = vunpack.c.l.b16 %v1264
        %v1339 = vunpack.c.l.b16 %v1265
        %v1340 = vunpack.c.l.b16 %v1266
        %v1341 = vunpack.c.l.b16 %v1267
        %v1342 = vunpack.c.l.b16 %v1268
        %v1343 = vunpack.c.l.b16 %v1269
        %v1344 = vunpack.c.l.b16 %v1270
        %v1345 = vunpack.c.l.b16 %v1271
        %v1346 = vunpack.c.l.b16 %v1272
        %v1347 = vunpack.c.l.b16 %v1273
        %v1348 = vunpack.c.l.b16 %v1274
        %v1349 = vunpack.c.l.b16 %v1275
        %v1350 = vunpack.c.l.b16 %v1276
        %v1351 = vunpack.c.l.b16 %v1277
        %v1352 = vunpack.c.l.b16 %v1278
        %v1353 = vunpack.c.l.b16 %v1279
        %v1354 = vunpack.c.l.b16 %v1280
        %v1355 = vunpack.c.l.b16 %v1281
        %v1356 = vunpack.c.l.b16 %v1282
        %v1357 = vunpack.c.l.b16 %v1283
        %v1358 = vunpack.c.l.b16 %v1284
        %v1359 = vunpack.c.l.b16 %v1285
        %v1360 = vpack.c.b16 %v1324, %v1323
        %v1361 = vpack.c.b16 %v1326, %v1325
        %v1362 = vpack.c.b16 %v1328, %v1327
        %v1363 = vpack.c.b16 %v1330, %v1329
        %v1364 = vpack.c.b16 %v1332, %v1331
        %v1365 = vpack.c.b16 %v1334, %v1333
        %v1366 = vpack.c.b16 %v1336, %v1335
        %v1367 = vpack.c.b16 %v1338, %v1337
        %v1368 = vpack.c.b16 %v1340, %v1339
        %v1369 = vpack.c.b16 %v1342, %v1341
        %v1370 = vpack.c.b16 %v1344, %v1343
        %v1371 = vpack.c.b16 %v1346, %v1345
        %v1372 = vpack.c.b16 %v1348, %v1347
        %v1373 = vpack.c.b16 %v1350, %v1349
        %v1374 = vpack.c.b16 %v1352, %v1351
        %v1375 = vpack.c.b16 %v1354, %v1353
        %v1376 = vpack.c.b16 %v1356, %v1355
        %v1377 = vpack.c.b16 %v1358, %v1357
        %v1378 = vpack.c.b16 %v1359, %v1359
        %vm1379 = vsmask.f32 6400
        %v1381 = vshrl.u32 %v1360, 16
        %v1383 = vrot.slane %v1381, 1
        %v1384 = vshll.u32 %v1360, 16
        %v1386 = vrot.slane %v1384, 2
        %v1387 = vor.u32 %v1383, %v1386
        %v1389 = vshrl.u32 %v1361, 16
        %v1391 = vrot.slane %v1389, 1
        %v1392 = vshll.u32 %v1361, 16
        %v1394 = vrot.slane %v1392, 2
        %v1395 = vor.u32 %v1391, %v1394
        %v1396 = vsel %vm1379, %v1387, %v1395
        %v1398 = vshrl.u32 %v1362, 16
        %v1400 = vrot.slane %v1398, 1
        %v1401 = vshll.u32 %v1362, 16
        %v1403 = vrot.slane %v1401, 2
        %v1404 = vor.u32 %v1400, %v1403
        %v1405 = vsel %vm1379, %v1395, %v1404
        %v1407 = vshrl.u32 %v1363, 16
        %v1409 = vrot.slane %v1407, 1
        %v1410 = vshll.u32 %v1363, 16
        %v1412 = vrot.slane %v1410, 2
        %v1413 = vor.u32 %v1409, %v1412
        %v1414 = vsel %vm1379, %v1404, %v1413
        %v1416 = vshrl.u32 %v1364, 16
        %v1418 = vrot.slane %v1416, 1
        %v1419 = vshll.u32 %v1364, 16
        %v1421 = vrot.slane %v1419, 2
        %v1422 = vor.u32 %v1418, %v1421
        %v1423 = vsel %vm1379, %v1413, %v1422
        %v1425 = vshrl.u32 %v1365, 16
        %v1427 = vrot.slane %v1425, 1
        %v1428 = vshll.u32 %v1365, 16
        %v1430 = vrot.slane %v1428, 2
        %v1431 = vor.u32 %v1427, %v1430
        %v1432 = vsel %vm1379, %v1422, %v1431
        %v1434 = vshrl.u32 %v1366, 16
        %v1436 = vrot.slane %v1434, 1
        %v1437 = vshll.u32 %v1366, 16
        %v1439 = vrot.slane %v1437, 2
        %v1440 = vor.u32 %v1436, %v1439
        %v1441 = vsel %vm1379, %v1431, %v1440
        %v1443 = vshrl.u32 %v1367, 16
        %v1445 = vrot.slane %v1443, 1
        %v1446 = vshll.u32 %v1367, 16
        %v1448 = vrot.slane %v1446, 2
        %v1449 = vor.u32 %v1445, %v1448
        %v1450 = vsel %vm1379, %v1440, %v1449
        %v1452 = vshrl.u32 %v1368, 16
        %v1454 = vrot.slane %v1452, 1
        %v1455 = vshll.u32 %v1368, 16
        %v1457 = vrot.slane %v1455, 2
        %v1458 = vor.u32 %v1454, %v1457
        %v1459 = vsel %vm1379, %v1449, %v1458
        %v1461 = vshrl.u32 %v1369, 16
        %v1463 = vrot.slane %v1461, 1
        %v1464 = vshll.u32 %v1369, 16
        %v1466 = vrot.slane %v1464, 2
        %v1467 = vor.u32 %v1463, %v1466
        %v1468 = vsel %vm1379, %v1458, %v1467
        %v1470 = vshrl.u32 %v1370, 16
        %v1472 = vrot.slane %v1470, 1
        %v1473 = vshll.u32 %v1370, 16
        %v1475 = vrot.slane %v1473, 2
        %v1476 = vor.u32 %v1472, %v1475
        %v1477 = vsel %vm1379, %v1467, %v1476
        %v1479 = vshrl.u32 %v1371, 16
        %v1481 = vrot.slane %v1479, 1
        %v1482 = vshll.u32 %v1371, 16
        %v1484 = vrot.slane %v1482, 2
        %v1485 = vor.u32 %v1481, %v1484
        %v1486 = vsel %vm1379, %v1476, %v1485
        %v1488 = vshrl.u32 %v1372, 16
        %v1490 = vrot.slane %v1488, 1
        %v1491 = vshll.u32 %v1372, 16
        %v1493 = vrot.slane %v1491, 2
        %v1494 = vor.u32 %v1490, %v1493
        %v1495 = vsel %vm1379, %v1485, %v1494
        %v1497 = vshrl.u32 %v1373, 16
        %v1499 = vrot.slane %v1497, 1
        %v1500 = vshll.u32 %v1373, 16
        %v1502 = vrot.slane %v1500, 2
        %v1503 = vor.u32 %v1499, %v1502
        %v1504 = vsel %vm1379, %v1494, %v1503
        %v1506 = vshrl.u32 %v1374, 16
        %v1508 = vrot.slane %v1506, 1
        %v1509 = vshll.u32 %v1374, 16
        %v1511 = vrot.slane %v1509, 2
        %v1512 = vor.u32 %v1508, %v1511
        %v1513 = vsel %vm1379, %v1503, %v1512
        %v1515 = vshrl.u32 %v1375, 16
        %v1517 = vrot.slane %v1515, 1
        %v1518 = vshll.u32 %v1375, 16
        %v1520 = vrot.slane %v1518, 2
        %v1521 = vor.u32 %v1517, %v1520
        %v1522 = vsel %vm1379, %v1512, %v1521
        %v1524 = vshrl.u32 %v1376, 16
        %v1526 = vrot.slane %v1524, 1
        %v1527 = vshll.u32 %v1376, 16
        %v1529 = vrot.slane %v1527, 2
        %v1530 = vor.u32 %v1526, %v1529
        %v1531 = vsel %vm1379, %v1521, %v1530
        %v1533 = vshrl.u32 %v1377, 16
        %v1535 = vrot.slane %v1533, 1
        %v1536 = vshll.u32 %v1377, 16
        %v1538 = vrot.slane %v1536, 2
        %v1539 = vor.u32 %v1535, %v1538
        %v1540 = vsel %vm1379, %v1530, %v1539
        %v1542 = vshrl.u32 %v1378, 16
        %v1544 = vrot.slane %v1542, 1
        %v1545 = vshll.u32 %v1378, 16
        %v1547 = vrot.slane %v1545, 2
        %v1548 = vor.u32 %v1544, %v1547
        %v1549 = vsel %vm1379, %v1539, %v1548
        %1568 = vst [vmem:[#allocation3 + $0x20] sm:$0xff] %v1396
        %1569 = vst [vmem:[#allocation3 + $0x68] sm:$0xff] %v1405
        %1570 = vst [vmem:[#allocation3 + $0xb0] sm:$0xff] %v1414
        %1571 = vst [vmem:[#allocation3 + $0xf8] sm:$0xff] %v1423
        %1572 = vst [vmem:[#allocation3 + $0x140] sm:$0xff] %v1432
        %1573 = vst [vmem:[#allocation3 + $0x188] sm:$0xff] %v1441
        %1574 = vst [vmem:[#allocation3 + $0x1d0] sm:$0xff] %v1450
        %1575 = vst [vmem:[#allocation3 + $0x218] sm:$0xff] %v1459
        %1576 = vst [vmem:[#allocation3 + $0x260] sm:$0xff] %v1468
        %1577 = vst [vmem:[#allocation3 + $0x2a8] sm:$0xff] %v1477
        %1578 = vst [vmem:[#allocation3 + $0x2f0] sm:$0xff] %v1486
        %1579 = vst [vmem:[#allocation3 + $0x338] sm:$0xff] %v1495
        %1580 = vst [vmem:[#allocation3 + $0x380] sm:$0xff] %v1504
        %1581 = vst [vmem:[#allocation3 + $0x3c8] sm:$0xff] %v1513
        %1582 = vst [vmem:[#allocation3 + $0x410] sm:$0xff] %v1522
        %1583 = vst [vmem:[#allocation3 + $0x458] sm:$0xff] %v1531
        %1584 = vst [vmem:[#allocation3 + $0x4a0] sm:$0xff] %v1540
        %1585 = vst [vmem:[#allocation3 + $0x4e8] sm:$0xff] %v1549
        %v1586 = vld [vmem:[%s312 + $0x8] sm:$0xc]
        %v1587 = vld [vmem:[%s312 + $0xc] sm:$0xf]
        %v1588 = vld [vmem:[%s312 + $0x10] sm:$0xf]
        %v1589 = vld [vmem:[%s312 + $0x14] sm:$0xf]
        %v1590 = vld [vmem:[%s312 + $0x18] sm:$0xf]
        %v1591 = vld [vmem:[%s312 + $0x1c] sm:$0xf]
        %v1592 = vld [vmem:[%s312 + $0x20] sm:$0xf]
        %v1593 = vld [vmem:[%s312 + $0x24] sm:$0xf]
        %v1594 = vld [vmem:[%s312 + $0x28] sm:$0xf]
        %v1595 = vld [vmem:[%s312 + $0x2c] sm:$0xf]
        %v1596 = vld [vmem:[%s312 + $0x30] sm:$0xf]
        %v1597 = vld [vmem:[%s312 + $0x34] sm:$0xf]
        %v1598 = vld [vmem:[%s312 + $0x38] sm:$0xf]
        %v1599 = vld [vmem:[%s312 + $0x3c] sm:$0xf]
        %v1600 = vld [vmem:[%s312 + $0x40] sm:$0xf]
        %v1601 = vld [vmem:[%s312 + $0x44] sm:$0xf]
        %v1602 = vld [vmem:[%s312 + $0x48] sm:$0xf]
        %v1603 = vld [vmem:[%s312 + $0x4c] sm:$0xf]
        %v1604 = vld [vmem:[%s312 + $0x50] sm:$0xf]
        %v1605 = vld [vmem:[%s312 + $0x54] sm:$0xf]
        %v1606 = vld [vmem:[%s312 + $0x58] sm:$0xf]
        %v1607 = vld [vmem:[%s312 + $0x5c] sm:$0xf]
        %v1608 = vld [vmem:[%s312 + $0x60] sm:$0xf]
        %v1609 = vld [vmem:[%s312 + $0x64] sm:$0xf]
        %v1610 = vld [vmem:[%s312 + $0x68] sm:$0xf]
        %v1611 = vld [vmem:[%s312 + $0x6c] sm:$0xf]
        %v1612 = vld [vmem:[%s312 + $0x70] sm:$0xf]
        %v1613 = vld [vmem:[%s312 + $0x74] sm:$0xf]
        %v1614 = vld [vmem:[%s312 + $0x78] sm:$0xf]
        %v1615 = vld [vmem:[%s312 + $0x7c] sm:$0xf]
        %v1616 = vld [vmem:[%s312 + $0x80] sm:$0xf]
        %v1617 = vld [vmem:[%s312 + $0x84] sm:$0xf]
        %v1618 = vld [vmem:[%s312 + $0x88] sm:$0xf]
        %v1619 = vld [vmem:[%s312 + $0x8c] sm:$0xf]
        %v1620 = vld [vmem:[%s312 + $0x90] sm:$0xf]
        %v1621 = vld [vmem:[%s312 + $0x94] sm:$0xf]
        %v1622 = vld [vmem:[%s312 + $0x98] sm:$0x3]
        %v1660 = vunpack.c.l.b16 %v1586
        %v1661 = vunpack.c.l.b16 %v1587
        %v1662 = vunpack.c.l.b16 %v1588
        %v1663 = vunpack.c.l.b16 %v1589
        %v1664 = vunpack.c.l.b16 %v1590
        %v1665 = vunpack.c.l.b16 %v1591
        %v1666 = vunpack.c.l.b16 %v1592
        %v1667 = vunpack.c.l.b16 %v1593
        %v1668 = vunpack.c.l.b16 %v1594
        %v1669 = vunpack.c.l.b16 %v1595
        %v1670 = vunpack.c.l.b16 %v1596
        %v1671 = vunpack.c.l.b16 %v1597
        %v1672 = vunpack.c.l.b16 %v1598
        %v1673 = vunpack.c.l.b16 %v1599
        %v1674 = vunpack.c.l.b16 %v1600
        %v1675 = vunpack.c.l.b16 %v1601
        %v1676 = vunpack.c.l.b16 %v1602
        %v1677 = vunpack.c.l.b16 %v1603
        %v1678 = vunpack.c.l.b16 %v1604
        %v1679 = vunpack.c.l.b16 %v1605
        %v1680 = vunpack.c.l.b16 %v1606
        %v1681 = vunpack.c.l.b16 %v1607
        %v1682 = vunpack.c.l.b16 %v1608
        %v1683 = vunpack.c.l.b16 %v1609
        %v1684 = vunpack.c.l.b16 %v1610
        %v1685 = vunpack.c.l.b16 %v1611
        %v1686 = vunpack.c.l.b16 %v1612
        %v1687 = vunpack.c.l.b16 %v1613
        %v1688 = vunpack.c.l.b16 %v1614
        %v1689 = vunpack.c.l.b16 %v1615
        %v1690 = vunpack.c.l.b16 %v1616
        %v1691 = vunpack.c.l.b16 %v1617
        %v1692 = vunpack.c.l.b16 %v1618
        %v1693 = vunpack.c.l.b16 %v1619
        %v1694 = vunpack.c.l.b16 %v1620
        %v1695 = vunpack.c.l.b16 %v1621
        %v1696 = vunpack.c.l.b16 %v1622
        %v1697 = vpack.c.b16 %v1661, %v1660
        %v1698 = vpack.c.b16 %v1663, %v1662
        %v1699 = vpack.c.b16 %v1665, %v1664
        %v1700 = vpack.c.b16 %v1667, %v1666
        %v1701 = vpack.c.b16 %v1669, %v1668
        %v1702 = vpack.c.b16 %v1671, %v1670
        %v1703 = vpack.c.b16 %v1673, %v1672
        %v1704 = vpack.c.b16 %v1675, %v1674
        %v1705 = vpack.c.b16 %v1677, %v1676
        %v1706 = vpack.c.b16 %v1679, %v1678
        %v1707 = vpack.c.b16 %v1681, %v1680
        %v1708 = vpack.c.b16 %v1683, %v1682
        %v1709 = vpack.c.b16 %v1685, %v1684
        %v1710 = vpack.c.b16 %v1687, %v1686
        %v1711 = vpack.c.b16 %v1689, %v1688
        %v1712 = vpack.c.b16 %v1691, %v1690
        %v1713 = vpack.c.b16 %v1693, %v1692
        %v1714 = vpack.c.b16 %v1695, %v1694
        %v1715 = vpack.c.b16 %v1696, %v1696
        %vm1716 = vcmask 1045504
        %v1717 = vrot.slane %v1697, 2
        %v1718 = vrot.slane %v1698, 2
        %v1719 = vsel %vm1716, %v1717, %v1718
        %v1720 = vrot.slane %v1699, 2
        %v1721 = vsel %vm1716, %v1718, %v1720
        %v1722 = vrot.slane %v1700, 2
        %v1723 = vsel %vm1716, %v1720, %v1722
        %v1724 = vrot.slane %v1701, 2
        %v1725 = vsel %vm1716, %v1722, %v1724
        %v1726 = vrot.slane %v1702, 2
        %v1727 = vsel %vm1716, %v1724, %v1726
        %v1728 = vrot.slane %v1703, 2
        %v1729 = vsel %vm1716, %v1726, %v1728
        %v1730 = vrot.slane %v1704, 2
        %v1731 = vsel %vm1716, %v1728, %v1730
        %v1732 = vrot.slane %v1705, 2
        %v1733 = vsel %vm1716, %v1730, %v1732
        %v1734 = vrot.slane %v1706, 2
        %v1735 = vsel %vm1716, %v1732, %v1734
        %v1736 = vrot.slane %v1707, 2
        %v1737 = vsel %vm1716, %v1734, %v1736
        %v1738 = vrot.slane %v1708, 2
        %v1739 = vsel %vm1716, %v1736, %v1738
        %v1740 = vrot.slane %v1709, 2
        %v1741 = vsel %vm1716, %v1738, %v1740
        %v1742 = vrot.slane %v1710, 2
        %v1743 = vsel %vm1716, %v1740, %v1742
        %v1744 = vrot.slane %v1711, 2
        %v1745 = vsel %vm1716, %v1742, %v1744
        %v1746 = vrot.slane %v1712, 2
        %v1747 = vsel %vm1716, %v1744, %v1746
        %v1748 = vrot.slane %v1713, 2
        %v1749 = vsel %vm1716, %v1746, %v1748
        %v1750 = vrot.slane %v1714, 2
        %v1751 = vsel %vm1716, %v1748, %v1750
        %v1752 = vrot.slane %v1715, 2
        %v1753 = vsel %vm1716, %v1750, %v1752
        %1772 = vst [vmem:[#allocation3 + $0x28] sm:$0xff] %v1719
        %1773 = vst [vmem:[#allocation3 + $0x70] sm:$0xff] %v1721
        %1774 = vst [vmem:[#allocation3 + $0xb8] sm:$0xff] %v1723
        %1775 = vst [vmem:[#allocation3 + $0x100] sm:$0xff] %v1725
        %1776 = vst [vmem:[#allocation3 + $0x148] sm:$0xff] %v1727
        %1777 = vst [vmem:[#allocation3 + $0x190] sm:$0xff] %v1729
        %1778 = vst [vmem:[#allocation3 + $0x1d8] sm:$0xff] %v1731
        %1779 = vst [vmem:[#allocation3 + $0x220] sm:$0xff] %v1733
        %1780 = vst [vmem:[#allocation3 + $0x268] sm:$0xff] %v1735
        %1781 = vst [vmem:[#allocation3 + $0x2b0] sm:$0xff] %v1737
        %1782 = vst [vmem:[#allocation3 + $0x2f8] sm:$0xff] %v1739
        %1783 = vst [vmem:[#allocation3 + $0x340] sm:$0xff] %v1741
        %1784 = vst [vmem:[#allocation3 + $0x388] sm:$0xff] %v1743
        %1785 = vst [vmem:[#allocation3 + $0x3d0] sm:$0xff] %v1745
        %1786 = vst [vmem:[#allocation3 + $0x418] sm:$0xff] %v1747
        %1787 = vst [vmem:[#allocation3 + $0x460] sm:$0xff] %v1749
        %1788 = vst [vmem:[#allocation3 + $0x4a8] sm:$0xff] %v1751
        %1789 = vst [vmem:[#allocation3 + $0x4f0] sm:$0xff] %v1753
        %v1790 = vld [vmem:[%s312 + $0x10] sm:$0xc]
        %v1791 = vld [vmem:[%s312 + $0x14] sm:$0xf]
        %v1792 = vld [vmem:[%s312 + $0x18] sm:$0xf]
        %v1793 = vld [vmem:[%s312 + $0x1c] sm:$0xf]
        %v1794 = vld [vmem:[%s312 + $0x20] sm:$0xf]
        %v1795 = vld [vmem:[%s312 + $0x24] sm:$0xf]
        %v1796 = vld [vmem:[%s312 + $0x28] sm:$0xf]
        %v1797 = vld [vmem:[%s312 + $0x2c] sm:$0xf]
        %v1798 = vld [vmem:[%s312 + $0x30] sm:$0xf]
        %v1799 = vld [vmem:[%s312 + $0x34] sm:$0xf]
        %v1800 = vld [vmem:[%s312 + $0x38] sm:$0xf]
        %v1801 = vld [vmem:[%s312 + $0x3c] sm:$0xf]
        %v1802 = vld [vmem:[%s312 + $0x40] sm:$0xf]
        %v1803 = vld [vmem:[%s312 + $0x44] sm:$0xf]
        %v1804 = vld [vmem:[%s312 + $0x48] sm:$0xf]
        %v1805 = vld [vmem:[%s312 + $0x4c] sm:$0xf]
        %v1806 = vld [vmem:[%s312 + $0x50] sm:$0xf]
        %v1807 = vld [vmem:[%s312 + $0x54] sm:$0xf]
        %v1808 = vld [vmem:[%s312 + $0x58] sm:$0xf]
        %v1809 = vld [vmem:[%s312 + $0x5c] sm:$0xf]
        %v1810 = vld [vmem:[%s312 + $0x60] sm:$0xf]
        %v1811 = vld [vmem:[%s312 + $0x64] sm:$0xf]
        %v1812 = vld [vmem:[%s312 + $0x68] sm:$0xf]
        %v1813 = vld [vmem:[%s312 + $0x6c] sm:$0xf]
        %v1814 = vld [vmem:[%s312 + $0x70] sm:$0xf]
        %v1815 = vld [vmem:[%s312 + $0x74] sm:$0xf]
        %v1816 = vld [vmem:[%s312 + $0x78] sm:$0xf]
        %v1817 = vld [vmem:[%s312 + $0x7c] sm:$0xf]
        %v1818 = vld [vmem:[%s312 + $0x80] sm:$0xf]
        %v1819 = vld [vmem:[%s312 + $0x84] sm:$0xf]
        %v1820 = vld [vmem:[%s312 + $0x88] sm:$0xf]
        %v1821 = vld [vmem:[%s312 + $0x8c] sm:$0xf]
        %v1822 = vld [vmem:[%s312 + $0x90] sm:$0xf]
        %v1823 = vld [vmem:[%s312 + $0x94] sm:$0xf]
        %v1824 = vld [vmem:[%s312 + $0x98] sm:$0xf]
        %v1825 = vld [vmem:[%s312 + $0x9c] sm:$0xf]
        %v1826 = vld [vmem:[%s312 + $0xa0] sm:$0x3]
        %v1864 = vunpack.c.l.b16 %v1790
        %v1865 = vunpack.c.l.b16 %v1791
        %v1866 = vunpack.c.l.b16 %v1792
        %v1867 = vunpack.c.l.b16 %v1793
        %v1868 = vunpack.c.l.b16 %v1794
        %v1869 = vunpack.c.l.b16 %v1795
        %v1870 = vunpack.c.l.b16 %v1796
        %v1871 = vunpack.c.l.b16 %v1797
        %v1872 = vunpack.c.l.b16 %v1798
        %v1873 = vunpack.c.l.b16 %v1799
        %v1874 = vunpack.c.l.b16 %v1800
        %v1875 = vunpack.c.l.b16 %v1801
        %v1876 = vunpack.c.l.b16 %v1802
        %v1877 = vunpack.c.l.b16 %v1803
        %v1878 = vunpack.c.l.b16 %v1804
        %v1879 = vunpack.c.l.b16 %v1805
        %v1880 = vunpack.c.l.b16 %v1806
        %v1881 = vunpack.c.l.b16 %v1807
        %v1882 = vunpack.c.l.b16 %v1808
        %v1883 = vunpack.c.l.b16 %v1809
        %v1884 = vunpack.c.l.b16 %v1810
        %v1885 = vunpack.c.l.b16 %v1811
        %v1886 = vunpack.c.l.b16 %v1812
        %v1887 = vunpack.c.l.b16 %v1813
        %v1888 = vunpack.c.l.b16 %v1814
        %v1889 = vunpack.c.l.b16 %v1815
        %v1890 = vunpack.c.l.b16 %v1816
        %v1891 = vunpack.c.l.b16 %v1817
        %v1892 = vunpack.c.l.b16 %v1818
        %v1893 = vunpack.c.l.b16 %v1819
        %v1894 = vunpack.c.l.b16 %v1820
        %v1895 = vunpack.c.l.b16 %v1821
        %v1896 = vunpack.c.l.b16 %v1822
        %v1897 = vunpack.c.l.b16 %v1823
        %v1898 = vunpack.c.l.b16 %v1824
        %v1899 = vunpack.c.l.b16 %v1825
        %v1900 = vunpack.c.l.b16 %v1826
        %v1901 = vpack.c.b16 %v1865, %v1864
        %v1902 = vpack.c.b16 %v1867, %v1866
        %v1903 = vpack.c.b16 %v1869, %v1868
        %v1904 = vpack.c.b16 %v1871, %v1870
        %v1905 = vpack.c.b16 %v1873, %v1872
        %v1906 = vpack.c.b16 %v1875, %v1874
        %v1907 = vpack.c.b16 %v1877, %v1876
        %v1908 = vpack.c.b16 %v1879, %v1878
        %v1909 = vpack.c.b16 %v1881, %v1880
        %v1910 = vpack.c.b16 %v1883, %v1882
        %v1911 = vpack.c.b16 %v1885, %v1884
        %v1912 = vpack.c.b16 %v1887, %v1886
        %v1913 = vpack.c.b16 %v1889, %v1888
        %v1914 = vpack.c.b16 %v1891, %v1890
        %v1915 = vpack.c.b16 %v1893, %v1892
        %v1916 = vpack.c.b16 %v1895, %v1894
        %v1917 = vpack.c.b16 %v1897, %v1896
        %v1918 = vpack.c.b16 %v1899, %v1898
        %v1919 = vpack.c.b16 %v1900, %v1900
        %v1920 = vrot.slane %v1901, 2
        %v1921 = vrot.slane %v1902, 2
        %v1922 = vsel %vm1716, %v1920, %v1921
        %v1923 = vrot.slane %v1903, 2
        %v1924 = vsel %vm1716, %v1921, %v1923
        %v1925 = vrot.slane %v1904, 2
        %v1926 = vsel %vm1716, %v1923, %v1925
        %v1927 = vrot.slane %v1905, 2
        %v1928 = vsel %vm1716, %v1925, %v1927
        %v1929 = vrot.slane %v1906, 2
        %v1930 = vsel %vm1716, %v1927, %v1929
        %v1931 = vrot.slane %v1907, 2
        %v1932 = vsel %vm1716, %v1929, %v1931
        %v1933 = vrot.slane %v1908, 2
        %v1934 = vsel %vm1716, %v1931, %v1933
        %v1935 = vrot.slane %v1909, 2
        %v1936 = vsel %vm1716, %v1933, %v1935
        %v1937 = vrot.slane %v1910, 2
        %v1938 = vsel %vm1716, %v1935, %v1937
        %v1939 = vrot.slane %v1911, 2
        %v1940 = vsel %vm1716, %v1937, %v1939
        %v1941 = vrot.slane %v1912, 2
        %v1942 = vsel %vm1716, %v1939, %v1941
        %v1943 = vrot.slane %v1913, 2
        %v1944 = vsel %vm1716, %v1941, %v1943
        %v1945 = vrot.slane %v1914, 2
        %v1946 = vsel %vm1716, %v1943, %v1945
        %v1947 = vrot.slane %v1915, 2
        %v1948 = vsel %vm1716, %v1945, %v1947
        %v1949 = vrot.slane %v1916, 2
        %v1950 = vsel %vm1716, %v1947, %v1949
        %v1951 = vrot.slane %v1917, 2
        %v1952 = vsel %vm1716, %v1949, %v1951
        %v1953 = vrot.slane %v1918, 2
        %v1954 = vsel %vm1716, %v1951, %v1953
        %v1955 = vrot.slane %v1919, 2
        %v1956 = vsel %vm1716, %v1953, %v1955
        %1975 = vst [vmem:[#allocation3 + $0x30] sm:$0xff] %v1922
        %1976 = vst [vmem:[#allocation3 + $0x78] sm:$0xff] %v1924
        %1977 = vst [vmem:[#allocation3 + $0xc0] sm:$0xff] %v1926
        %1978 = vst [vmem:[#allocation3 + $0x108] sm:$0xff] %v1928
        %1979 = vst [vmem:[#allocation3 + $0x150] sm:$0xff] %v1930
        %1980 = vst [vmem:[#allocation3 + $0x198] sm:$0xff] %v1932
        %1981 = vst [vmem:[#allocation3 + $0x1e0] sm:$0xff] %v1934
        %1982 = vst [vmem:[#allocation3 + $0x228] sm:$0xff] %v1936
        %1983 = vst [vmem:[#allocation3 + $0x270] sm:$0xff] %v1938
        %1984 = vst [vmem:[#allocation3 + $0x2b8] sm:$0xff] %v1940
        %1985 = vst [vmem:[#allocation3 + $0x300] sm:$0xff] %v1942
        %1986 = vst [vmem:[#allocation3 + $0x348] sm:$0xff] %v1944
        %1987 = vst [vmem:[#allocation3 + $0x390] sm:$0xff] %v1946
        %1988 = vst [vmem:[#allocation3 + $0x3d8] sm:$0xff] %v1948
        %1989 = vst [vmem:[#allocation3 + $0x420] sm:$0xff] %v1950
        %1990 = vst [vmem:[#allocation3 + $0x468] sm:$0xff] %v1952
        %1991 = vst [vmem:[#allocation3 + $0x4b0] sm:$0xff] %v1954
        %1992 = vst [vmem:[#allocation3 + $0x4f8] sm:$0xff] %v1956
        %v1993 = vld [vmem:[%s312 + $0x10] sm:$0xc]
        %v1994 = vld [vmem:[%s312 + $0x14] sm:$0xf]
        %v1995 = vld [vmem:[%s312 + $0x18] sm:$0xf]
        %v1996 = vld [vmem:[%s312 + $0x1c] sm:$0xf]
        %v1997 = vld [vmem:[%s312 + $0x20] sm:$0xf]
        %v1998 = vld [vmem:[%s312 + $0x24] sm:$0xf]
        %v1999 = vld [vmem:[%s312 + $0x28] sm:$0xf]
        %v2000 = vld [vmem:[%s312 + $0x2c] sm:$0xf]
        %v2001 = vld [vmem:[%s312 + $0x30] sm:$0xf]
        %v2002 = vld [vmem:[%s312 + $0x34] sm:$0xf]
        %v2003 = vld [vmem:[%s312 + $0x38] sm:$0xf]
        %v2004 = vld [vmem:[%s312 + $0x3c] sm:$0xf]
        %v2005 = vld [vmem:[%s312 + $0x40] sm:$0xf]
        %v2006 = vld [vmem:[%s312 + $0x44] sm:$0xf]
        %v2007 = vld [vmem:[%s312 + $0x48] sm:$0xf]
        %v2008 = vld [vmem:[%s312 + $0x4c] sm:$0xf]
        %v2009 = vld [vmem:[%s312 + $0x50] sm:$0xf]
        %v2010 = vld [vmem:[%s312 + $0x54] sm:$0xf]
        %v2011 = vld [vmem:[%s312 + $0x58] sm:$0xf]
        %v2012 = vld [vmem:[%s312 + $0x5c] sm:$0xf]
        %v2013 = vld [vmem:[%s312 + $0x60] sm:$0xf]
        %v2014 = vld [vmem:[%s312 + $0x64] sm:$0xf]
        %v2015 = vld [vmem:[%s312 + $0x68] sm:$0xf]
        %v2016 = vld [vmem:[%s312 + $0x6c] sm:$0xf]
        %v2017 = vld [vmem:[%s312 + $0x70] sm:$0xf]
        %v2018 = vld [vmem:[%s312 + $0x74] sm:$0xf]
        %v2019 = vld [vmem:[%s312 + $0x78] sm:$0xf]
        %v2020 = vld [vmem:[%s312 + $0x7c] sm:$0xf]
        %v2021 = vld [vmem:[%s312 + $0x80] sm:$0xf]
        %v2022 = vld [vmem:[%s312 + $0x84] sm:$0xf]
        %v2023 = vld [vmem:[%s312 + $0x88] sm:$0xf]
        %v2024 = vld [vmem:[%s312 + $0x8c] sm:$0xf]
        %v2025 = vld [vmem:[%s312 + $0x90] sm:$0xf]
        %v2026 = vld [vmem:[%s312 + $0x94] sm:$0xf]
        %v2027 = vld [vmem:[%s312 + $0x98] sm:$0xf]
        %v2028 = vld [vmem:[%s312 + $0x9c] sm:$0xf]
        %v2029 = vld [vmem:[%s312 + $0xa0] sm:$0x7]
        %v2067 = vunpack.c.l.b16 %v1993
        %v2068 = vunpack.c.l.b16 %v1994
        %v2069 = vunpack.c.l.b16 %v1995
        %v2070 = vunpack.c.l.b16 %v1996
        %v2071 = vunpack.c.l.b16 %v1997
        %v2072 = vunpack.c.l.b16 %v1998
        %v2073 = vunpack.c.l.b16 %v1999
        %v2074 = vunpack.c.l.b16 %v2000
        %v2075 = vunpack.c.l.b16 %v2001
        %v2076 = vunpack.c.l.b16 %v2002
        %v2077 = vunpack.c.l.b16 %v2003
        %v2078 = vunpack.c.l.b16 %v2004
        %v2079 = vunpack.c.l.b16 %v2005
        %v2080 = vunpack.c.l.b16 %v2006
        %v2081 = vunpack.c.l.b16 %v2007
        %v2082 = vunpack.c.l.b16 %v2008
        %v2083 = vunpack.c.l.b16 %v2009
        %v2084 = vunpack.c.l.b16 %v2010
        %v2085 = vunpack.c.l.b16 %v2011
        %v2086 = vunpack.c.l.b16 %v2012
        %v2087 = vunpack.c.l.b16 %v2013
        %v2088 = vunpack.c.l.b16 %v2014
        %v2089 = vunpack.c.l.b16 %v2015
        %v2090 = vunpack.c.l.b16 %v2016
        %v2091 = vunpack.c.l.b16 %v2017
        %v2092 = vunpack.c.l.b16 %v2018
        %v2093 = vunpack.c.l.b16 %v2019
        %v2094 = vunpack.c.l.b16 %v2020
        %v2095 = vunpack.c.l.b16 %v2021
        %v2096 = vunpack.c.l.b16 %v2022
        %v2097 = vunpack.c.l.b16 %v2023
        %v2098 = vunpack.c.l.b16 %v2024
        %v2099 = vunpack.c.l.b16 %v2025
        %v2100 = vunpack.c.l.b16 %v2026
        %v2101 = vunpack.c.l.b16 %v2027
        %v2102 = vunpack.c.l.b16 %v2028
        %v2103 = vunpack.c.l.b16 %v2029
        %v2104 = vpack.c.b16 %v2068, %v2067
        %v2105 = vpack.c.b16 %v2070, %v2069
        %v2106 = vpack.c.b16 %v2072, %v2071
        %v2107 = vpack.c.b16 %v2074, %v2073
        %v2108 = vpack.c.b16 %v2076, %v2075
        %v2109 = vpack.c.b16 %v2078, %v2077
        %v2110 = vpack.c.b16 %v2080, %v2079
        %v2111 = vpack.c.b16 %v2082, %v2081
        %v2112 = vpack.c.b16 %v2084, %v2083
        %v2113 = vpack.c.b16 %v2086, %v2085
        %v2114 = vpack.c.b16 %v2088, %v2087
        %v2115 = vpack.c.b16 %v2090, %v2089
        %v2116 = vpack.c.b16 %v2092, %v2091
        %v2117 = vpack.c.b16 %v2094, %v2093
        %v2118 = vpack.c.b16 %v2096, %v2095
        %v2119 = vpack.c.b16 %v2098, %v2097
        %v2120 = vpack.c.b16 %v2100, %v2099
        %v2121 = vpack.c.b16 %v2102, %v2101
        %v2122 = vpack.c.b16 %v2103, %v2103
        %vm2123 = vsmask.f32 5376
        %v2125 = vshrl.u32 %v2104, 16
        %v2127 = vrot.slane %v2125, 2
        %v2128 = vshll.u32 %v2104, 16
        %v2130 = vrot.slane %v2128, 3
        %v2131 = vor.u32 %v2127, %v2130
        %v2133 = vshrl.u32 %v2105, 16
        %v2135 = vrot.slane %v2133, 2
        %v2136 = vshll.u32 %v2105, 16
        %v2138 = vrot.slane %v2136, 3
        %v2139 = vor.u32 %v2135, %v2138
        %v2140 = vsel %vm2123, %v2131, %v2139
        %v2142 = vshrl.u32 %v2106, 16
        %v2144 = vrot.slane %v2142, 2
        %v2145 = vshll.u32 %v2106, 16
        %v2147 = vrot.slane %v2145, 3
        %v2148 = vor.u32 %v2144, %v2147
        %v2149 = vsel %vm2123, %v2139, %v2148
        %v2151 = vshrl.u32 %v2107, 16
        %v2153 = vrot.slane %v2151, 2
        %v2154 = vshll.u32 %v2107, 16
        %v2156 = vrot.slane %v2154, 3
        %v2157 = vor.u32 %v2153, %v2156
        %v2158 = vsel %vm2123, %v2148, %v2157
        %v2160 = vshrl.u32 %v2108, 16
        %v2162 = vrot.slane %v2160, 2
        %v2163 = vshll.u32 %v2108, 16
        %v2165 = vrot.slane %v2163, 3
        %v2166 = vor.u32 %v2162, %v2165
        %v2167 = vsel %vm2123, %v2157, %v2166
        %v2169 = vshrl.u32 %v2109, 16
        %v2171 = vrot.slane %v2169, 2
        %v2172 = vshll.u32 %v2109, 16
        %v2174 = vrot.slane %v2172, 3
        %v2175 = vor.u32 %v2171, %v2174
        %v2176 = vsel %vm2123, %v2166, %v2175
        %v2178 = vshrl.u32 %v2110, 16
        %v2180 = vrot.slane %v2178, 2
        %v2181 = vshll.u32 %v2110, 16
        %v2183 = vrot.slane %v2181, 3
        %v2184 = vor.u32 %v2180, %v2183
        %v2185 = vsel %vm2123, %v2175, %v2184
        %v2187 = vshrl.u32 %v2111, 16
        %v2189 = vrot.slane %v2187, 2
        %v2190 = vshll.u32 %v2111, 16
        %v2192 = vrot.slane %v2190, 3
        %v2193 = vor.u32 %v2189, %v2192
        %v2194 = vsel %vm2123, %v2184, %v2193
        %v2196 = vshrl.u32 %v2112, 16
        %v2198 = vrot.slane %v2196, 2
        %v2199 = vshll.u32 %v2112, 16
        %v2201 = vrot.slane %v2199, 3
        %v2202 = vor.u32 %v2198, %v2201
        %v2203 = vsel %vm2123, %v2193, %v2202
        %v2205 = vshrl.u32 %v2113, 16
        %v2207 = vrot.slane %v2205, 2
        %v2208 = vshll.u32 %v2113, 16
        %v2210 = vrot.slane %v2208, 3
        %v2211 = vor.u32 %v2207, %v2210
        %v2212 = vsel %vm2123, %v2202, %v2211
        %v2214 = vshrl.u32 %v2114, 16
        %v2216 = vrot.slane %v2214, 2
        %v2217 = vshll.u32 %v2114, 16
        %v2219 = vrot.slane %v2217, 3
        %v2220 = vor.u32 %v2216, %v2219
        %v2221 = vsel %vm2123, %v2211, %v2220
        %v2223 = vshrl.u32 %v2115, 16
        %v2225 = vrot.slane %v2223, 2
        %v2226 = vshll.u32 %v2115, 16
        %v2228 = vrot.slane %v2226, 3
        %v2229 = vor.u32 %v2225, %v2228
        %v2230 = vsel %vm2123, %v2220, %v2229
        %v2232 = vshrl.u32 %v2116, 16
        %v2234 = vrot.slane %v2232, 2
        %v2235 = vshll.u32 %v2116, 16
        %v2237 = vrot.slane %v2235, 3
        %v2238 = vor.u32 %v2234, %v2237
        %v2239 = vsel %vm2123, %v2229, %v2238
        %v2241 = vshrl.u32 %v2117, 16
        %v2243 = vrot.slane %v2241, 2
        %v2244 = vshll.u32 %v2117, 16
        %v2246 = vrot.slane %v2244, 3
        %v2247 = vor.u32 %v2243, %v2246
        %v2248 = vsel %vm2123, %v2238, %v2247
        %v2250 = vshrl.u32 %v2118, 16
        %v2252 = vrot.slane %v2250, 2
        %v2253 = vshll.u32 %v2118, 16
        %v2255 = vrot.slane %v2253, 3
        %v2256 = vor.u32 %v2252, %v2255
        %v2257 = vsel %vm2123, %v2247, %v2256
        %v2259 = vshrl.u32 %v2119, 16
        %v2261 = vrot.slane %v2259, 2
        %v2262 = vshll.u32 %v2119, 16
        %v2264 = vrot.slane %v2262, 3
        %v2265 = vor.u32 %v2261, %v2264
        %v2266 = vsel %vm2123, %v2256, %v2265
        %v2268 = vshrl.u32 %v2120, 16
        %v2270 = vrot.slane %v2268, 2
        %v2271 = vshll.u32 %v2120, 16
        %v2273 = vrot.slane %v2271, 3
        %v2274 = vor.u32 %v2270, %v2273
        %v2275 = vsel %vm2123, %v2265, %v2274
        %v2277 = vshrl.u32 %v2121, 16
        %v2279 = vrot.slane %v2277, 2
        %v2280 = vshll.u32 %v2121, 16
        %v2282 = vrot.slane %v2280, 3
        %v2283 = vor.u32 %v2279, %v2282
        %v2284 = vsel %vm2123, %v2274, %v2283
        %v2286 = vshrl.u32 %v2122, 16
        %v2288 = vrot.slane %v2286, 2
        %v2289 = vshll.u32 %v2122, 16
        %v2291 = vrot.slane %v2289, 3
        %v2292 = vor.u32 %v2288, %v2291
        %v2293 = vsel %vm2123, %v2283, %v2292
        %2312 = vst [vmem:[#allocation3 + $0x38] sm:$0xff] %v2140
        %2313 = vst [vmem:[#allocation3 + $0x80] sm:$0xff] %v2149
        %2314 = vst [vmem:[#allocation3 + $0xc8] sm:$0xff] %v2158
        %2315 = vst [vmem:[#allocation3 + $0x110] sm:$0xff] %v2167
        %2316 = vst [vmem:[#allocation3 + $0x158] sm:$0xff] %v2176
        %2317 = vst [vmem:[#allocation3 + $0x1a0] sm:$0xff] %v2185
        %2318 = vst [vmem:[#allocation3 + $0x1e8] sm:$0xff] %v2194
        %2319 = vst [vmem:[#allocation3 + $0x230] sm:$0xff] %v2203
        %2320 = vst [vmem:[#allocation3 + $0x278] sm:$0xff] %v2212
        %2321 = vst [vmem:[#allocation3 + $0x2c0] sm:$0xff] %v2221
        %2322 = vst [vmem:[#allocation3 + $0x308] sm:$0xff] %v2230
        %2323 = vst [vmem:[#allocation3 + $0x350] sm:$0xff] %v2239
        %2324 = vst [vmem:[#allocation3 + $0x398] sm:$0xff] %v2248
        %2325 = vst [vmem:[#allocation3 + $0x3e0] sm:$0xff] %v2257
        %2326 = vst [vmem:[#allocation3 + $0x428] sm:$0xff] %v2266
        %2327 = vst [vmem:[#allocation3 + $0x470] sm:$0xff] %v2275
        %2328 = vst [vmem:[#allocation3 + $0x4b8] sm:$0xff] %v2284
        %2329 = vst [vmem:[#allocation3 + $0x500] sm:$0xff] %v2293
        %v2330 = vld [vmem:[%s312 + $0x10] sm:$0x8]
        %v2331 = vld [vmem:[%s312 + $0x14] sm:$0xf]
        %v2332 = vld [vmem:[%s312 + $0x18] sm:$0xf]
        %v2333 = vld [vmem:[%s312 + $0x1c] sm:$0xf]
        %v2334 = vld [vmem:[%s312 + $0x20] sm:$0xf]
        %v2335 = vld [vmem:[%s312 + $0x24] sm:$0xf]
        %v2336 = vld [vmem:[%s312 + $0x28] sm:$0xf]
        %v2337 = vld [vmem:[%s312 + $0x2c] sm:$0xf]
        %v2338 = vld [vmem:[%s312 + $0x30] sm:$0xf]
        %v2339 = vld [vmem:[%s312 + $0x34] sm:$0xf]
        %v2340 = vld [vmem:[%s312 + $0x38] sm:$0xf]
        %v2341 = vld [vmem:[%s312 + $0x3c] sm:$0xf]
        %v2342 = vld [vmem:[%s312 + $0x40] sm:$0xf]
        %v2343 = vld [vmem:[%s312 + $0x44] sm:$0xf]
        %v2344 = vld [vmem:[%s312 + $0x48] sm:$0xf]
        %v2345 = vld [vmem:[%s312 + $0x4c] sm:$0xf]
        %v2346 = vld [vmem:[%s312 + $0x50] sm:$0xf]
        %v2347 = vld [vmem:[%s312 + $0x54] sm:$0xf]
        %v2348 = vld [vmem:[%s312 + $0x58] sm:$0xf]
        %v2349 = vld [vmem:[%s312 + $0x5c] sm:$0xf]
        %v2350 = vld [vmem:[%s312 + $0x60] sm:$0xf]
        %v2351 = vld [vmem:[%s312 + $0x64] sm:$0xf]
        %v2352 = vld [vmem:[%s312 + $0x68] sm:$0xf]
        %v2353 = vld [vmem:[%s312 + $0x6c] sm:$0xf]
        %v2354 = vld [vmem:[%s312 + $0x70] sm:$0xf]
        %v2355 = vld [vmem:[%s312 + $0x74] sm:$0xf]
        %v2356 = vld [vmem:[%s312 + $0x78] sm:$0xf]
        %v2357 = vld [vmem:[%s312 + $0x7c] sm:$0xf]
        %v2358 = vld [vmem:[%s312 + $0x80] sm:$0xf]
        %v2359 = vld [vmem:[%s312 + $0x84] sm:$0xf]
        %v2360 = vld [vmem:[%s312 + $0x88] sm:$0xf]
        %v2361 = vld [vmem:[%s312 + $0x8c] sm:$0xf]
        %v2362 = vld [vmem:[%s312 + $0x90] sm:$0xf]
        %v2363 = vld [vmem:[%s312 + $0x94] sm:$0xf]
        %v2364 = vld [vmem:[%s312 + $0x98] sm:$0xf]
        %v2365 = vld [vmem:[%s312 + $0x9c] sm:$0xf]
        %v2366 = vld [vmem:[%s312 + $0xa0] sm:$0x7]
        %v2404 = vunpack.c.l.b16 %v2330
        %v2405 = vunpack.c.l.b16 %v2331
        %v2406 = vunpack.c.l.b16 %v2332
        %v2407 = vunpack.c.l.b16 %v2333
        %v2408 = vunpack.c.l.b16 %v2334
        %v2409 = vunpack.c.l.b16 %v2335
        %v2410 = vunpack.c.l.b16 %v2336
        %v2411 = vunpack.c.l.b16 %v2337
        %v2412 = vunpack.c.l.b16 %v2338
        %v2413 = vunpack.c.l.b16 %v2339
        %v2414 = vunpack.c.l.b16 %v2340
        %v2415 = vunpack.c.l.b16 %v2341
        %v2416 = vunpack.c.l.b16 %v2342
        %v2417 = vunpack.c.l.b16 %v2343
        %v2418 = vunpack.c.l.b16 %v2344
        %v2419 = vunpack.c.l.b16 %v2345
        %v2420 = vunpack.c.l.b16 %v2346
        %v2421 = vunpack.c.l.b16 %v2347
        %v2422 = vunpack.c.l.b16 %v2348
        %v2423 = vunpack.c.l.b16 %v2349
        %v2424 = vunpack.c.l.b16 %v2350
        %v2425 = vunpack.c.l.b16 %v2351
        %v2426 = vunpack.c.l.b16 %v2352
        %v2427 = vunpack.c.l.b16 %v2353
        %v2428 = vunpack.c.l.b16 %v2354
        %v2429 = vunpack.c.l.b16 %v2355
        %v2430 = vunpack.c.l.b16 %v2356
        %v2431 = vunpack.c.l.b16 %v2357
        %v2432 = vunpack.c.l.b16 %v2358
        %v2433 = vunpack.c.l.b16 %v2359
        %v2434 = vunpack.c.l.b16 %v2360
        %v2435 = vunpack.c.l.b16 %v2361
        %v2436 = vunpack.c.l.b16 %v2362
        %v2437 = vunpack.c.l.b16 %v2363
        %v2438 = vunpack.c.l.b16 %v2364
        %v2439 = vunpack.c.l.b16 %v2365
        %v2440 = vunpack.c.l.b16 %v2366
        %v2441 = vpack.c.b16 %v2405, %v2404
        %v2442 = vpack.c.b16 %v2407, %v2406
        %v2443 = vpack.c.b16 %v2409, %v2408
        %v2444 = vpack.c.b16 %v2411, %v2410
        %v2445 = vpack.c.b16 %v2413, %v2412
        %v2446 = vpack.c.b16 %v2415, %v2414
        %v2447 = vpack.c.b16 %v2417, %v2416
        %v2448 = vpack.c.b16 %v2419, %v2418
        %v2449 = vpack.c.b16 %v2421, %v2420
        %v2450 = vpack.c.b16 %v2423, %v2422
        %v2451 = vpack.c.b16 %v2425, %v2424
        %v2452 = vpack.c.b16 %v2427, %v2426
        %v2453 = vpack.c.b16 %v2429, %v2428
        %v2454 = vpack.c.b16 %v2431, %v2430
        %v2455 = vpack.c.b16 %v2433, %v2432
        %v2456 = vpack.c.b16 %v2435, %v2434
        %v2457 = vpack.c.b16 %v2437, %v2436
        %v2458 = vpack.c.b16 %v2439, %v2438
        %v2459 = vpack.c.b16 %v2440, %v2440
        %vm2460 = vcmask 1044480
        %v2461 = vrot.slane %v2441, 3
        %v2462 = vrot.slane %v2442, 3
        %v2463 = vsel %vm2460, %v2461, %v2462
        %v2464 = vrot.slane %v2443, 3
        %v2465 = vsel %vm2460, %v2462, %v2464
        %v2466 = vrot.slane %v2444, 3
        %v2467 = vsel %vm2460, %v2464, %v2466
        %v2468 = vrot.slane %v2445, 3
        %v2469 = vsel %vm2460, %v2466, %v2468
        %v2470 = vrot.slane %v2446, 3
        %v2471 = vsel %vm2460, %v2468, %v2470
        %v2472 = vrot.slane %v2447, 3
        %v2473 = vsel %vm2460, %v2470, %v2472
        %v2474 = vrot.slane %v2448, 3
        %v2475 = vsel %vm2460, %v2472, %v2474
        %v2476 = vrot.slane %v2449, 3
        %v2477 = vsel %vm2460, %v2474, %v2476
        %v2478 = vrot.slane %v2450, 3
        %v2479 = vsel %vm2460, %v2476, %v2478
        %v2480 = vrot.slane %v2451, 3
        %v2481 = vsel %vm2460, %v2478, %v2480
        %v2482 = vrot.slane %v2452, 3
        %v2483 = vsel %vm2460, %v2480, %v2482
        %v2484 = vrot.slane %v2453, 3
        %v2485 = vsel %vm2460, %v2482, %v2484
        %v2486 = vrot.slane %v2454, 3
        %v2487 = vsel %vm2460, %v2484, %v2486
        %v2488 = vrot.slane %v2455, 3
        %v2489 = vsel %vm2460, %v2486, %v2488
        %v2490 = vrot.slane %v2456, 3
        %v2491 = vsel %vm2460, %v2488, %v2490
        %v2492 = vrot.slane %v2457, 3
        %v2493 = vsel %vm2460, %v2490, %v2492
        %v2494 = vrot.slane %v2458, 3
        %v2495 = vsel %vm2460, %v2492, %v2494
        %v2496 = vrot.slane %v2459, 3
        %v2497 = vsel %vm2460, %v2494, %v2496
        %2516 = vst [vmem:[#allocation3 + $0x40] sm:$0xff] %v2463
        %2517 = vst [vmem:[#allocation3 + $0x88] sm:$0xff] %v2465
        %2518 = vst [vmem:[#allocation3 + $0xd0] sm:$0xff] %v2467
        %2519 = vst [vmem:[#allocation3 + $0x118] sm:$0xff] %v2469
        %2520 = vst [vmem:[#allocation3 + $0x160] sm:$0xff] %v2471
        %2521 = vst [vmem:[#allocation3 + $0x1a8] sm:$0xff] %v2473
        %2522 = vst [vmem:[#allocation3 + $0x1f0] sm:$0xff] %v2475
        %2523 = vst [vmem:[#allocation3 + $0x238] sm:$0xff] %v2477
        %2524 = vst [vmem:[#allocation3 + $0x280] sm:$0xff] %v2479
        %2525 = vst [vmem:[#allocation3 + $0x2c8] sm:$0xff] %v2481
        %2526 = vst [vmem:[#allocation3 + $0x310] sm:$0xff] %v2483
        %2527 = vst [vmem:[#allocation3 + $0x358] sm:$0xff] %v2485
        %2528 = vst [vmem:[#allocation3 + $0x3a0] sm:$0xff] %v2487
        %2529 = vst [vmem:[#allocation3 + $0x3e8] sm:$0xff] %v2489
        %2530 = vst [vmem:[#allocation3 + $0x430] sm:$0xff] %v2491
        %2531 = vst [vmem:[#allocation3 + $0x478] sm:$0xff] %v2493
        %2532 = vst [vmem:[#allocation3 + $0x4c0] sm:$0xff] %v2495
        %2533 = vst [vmem:[#allocation3 + $0x508] sm:$0xff] %v2497
        %v2534 = vld [vmem:[#allocation3] sm:$0xff]
        %v2535 = vld [vmem:[#allocation3 + $0x8] sm:$0xff]
        %v2536 = vld [vmem:[#allocation3 + $0x10] sm:$0xff]
        %v2537 = vld [vmem:[#allocation3 + $0x18] sm:$0xff]
        %v2538 = vld [vmem:[#allocation3 + $0x20] sm:$0xff]
        %v2539 = vld [vmem:[#allocation3 + $0x28] sm:$0xff]
        %v2540 = vld [vmem:[#allocation3 + $0x30] sm:$0xff]
        %v2541 = vld [vmem:[#allocation3 + $0x38] sm:$0xff]
        %v2542 = vld [vmem:[#allocation3 + $0x40] sm:$0xff]
        %v2543 = vld [vmem:[#allocation3 + $0x48] sm:$0xff]
        %v2544 = vld [vmem:[#allocation3 + $0x50] sm:$0xff]
        %v2545 = vld [vmem:[#allocation3 + $0x58] sm:$0xff]
        %v2546 = vld [vmem:[#allocation3 + $0x60] sm:$0xff]
        %v2547 = vld [vmem:[#allocation3 + $0x68] sm:$0xff]
        %v2548 = vld [vmem:[#allocation3 + $0x70] sm:$0xff]
        %v2549 = vld [vmem:[#allocation3 + $0x78] sm:$0xff]
        %v2550 = vld [vmem:[#allocation3 + $0x80] sm:$0xff]
        %v2551 = vld [vmem:[#allocation3 + $0x88] sm:$0xff]
        %v2552 = vld [vmem:[#allocation3 + $0x90] sm:$0xff]
        %v2553 = vld [vmem:[#allocation3 + $0x98] sm:$0xff]
        %v2554 = vld [vmem:[#allocation3 + $0xa0] sm:$0xff]
        %v2555 = vld [vmem:[#allocation3 + $0xa8] sm:$0xff]
        %v2556 = vld [vmem:[#allocation3 + $0xb0] sm:$0xff]
        %v2557 = vld [vmem:[#allocation3 + $0xb8] sm:$0xff]
        %v2558 = vld [vmem:[#allocation3 + $0xc0] sm:$0xff]
        %v2559 = vld [vmem:[#allocation3 + $0xc8] sm:$0xff]
        %v2560 = vld [vmem:[#allocation3 + $0xd0] sm:$0xff]
        %v2561 = vld [vmem:[#allocation3 + $0xd8] sm:$0xff]
        %v2562 = vld [vmem:[#allocation3 + $0xe0] sm:$0xff]
        %v2563 = vld [vmem:[#allocation3 + $0xe8] sm:$0xff]
        %v2564 = vld [vmem:[#allocation3 + $0xf0] sm:$0xff]
        %v2565 = vld [vmem:[#allocation3 + $0xf8] sm:$0xff]
        %v2566 = vld [vmem:[#allocation3 + $0x100] sm:$0xff]
        %v2567 = vld [vmem:[#allocation3 + $0x108] sm:$0xff]
        %v2568 = vld [vmem:[#allocation3 + $0x110] sm:$0xff]
        %v2569 = vld [vmem:[#allocation3 + $0x118] sm:$0xff]
        %v2570 = vld [vmem:[#allocation3 + $0x120] sm:$0xff]
        %v2571 = vld [vmem:[#allocation3 + $0x128] sm:$0xff]
        %v2572 = vld [vmem:[#allocation3 + $0x130] sm:$0xff]
        %v2573 = vld [vmem:[#allocation3 + $0x138] sm:$0xff]
        %v2574 = vld [vmem:[#allocation3 + $0x140] sm:$0xff]
        %v2575 = vld [vmem:[#allocation3 + $0x148] sm:$0xff]
        %v2576 = vld [vmem:[#allocation3 + $0x150] sm:$0xff]
        %v2577 = vld [vmem:[#allocation3 + $0x158] sm:$0xff]
        %v2578 = vld [vmem:[#allocation3 + $0x160] sm:$0xff]
        %v2579 = vld [vmem:[#allocation3 + $0x168] sm:$0xff]
        %v2580 = vld [vmem:[#allocation3 + $0x170] sm:$0xff]
        %v2581 = vld [vmem:[#allocation3 + $0x178] sm:$0xff]
        %v2582 = vld [vmem:[#allocation3 + $0x180] sm:$0xff]
        %v2583 = vld [vmem:[#allocation3 + $0x188] sm:$0xff]
        %v2584 = vld [vmem:[#allocation3 + $0x190] sm:$0xff]
        %v2585 = vld [vmem:[#allocation3 + $0x198] sm:$0xff]
        %v2586 = vld [vmem:[#allocation3 + $0x1a0] sm:$0xff]
        %v2587 = vld [vmem:[#allocation3 + $0x1a8] sm:$0xff]
        %v2588 = vld [vmem:[#allocation3 + $0x1b0] sm:$0xff]
        %v2589 = vld [vmem:[#allocation3 + $0x1b8] sm:$0xff]
        %v2590 = vld [vmem:[#allocation3 + $0x1c0] sm:$0xff]
        %v2591 = vld [vmem:[#allocation3 + $0x1c8] sm:$0xff]
        %v2592 = vld [vmem:[#allocation3 + $0x1d0] sm:$0xff]
        %v2593 = vld [vmem:[#allocation3 + $0x1d8] sm:$0xff]
        %v2594 = vld [vmem:[#allocation3 + $0x1e0] sm:$0xff]
        %v2595 = vld [vmem:[#allocation3 + $0x1e8] sm:$0xff]
        %v2596 = vld [vmem:[#allocation3 + $0x1f0] sm:$0xff]
        %v2597 = vld [vmem:[#allocation3 + $0x1f8] sm:$0xff]
        %v2598 = vld [vmem:[#allocation3 + $0x200] sm:$0xff]
        %v2599 = vld [vmem:[#allocation3 + $0x208] sm:$0xff]
        %v2600 = vld [vmem:[#allocation3 + $0x210] sm:$0xff]
        %v2601 = vld [vmem:[#allocation3 + $0x218] sm:$0xff]
        %v2602 = vld [vmem:[#allocation3 + $0x220] sm:$0xff]
        %v2603 = vld [vmem:[#allocation3 + $0x228] sm:$0xff]
        %v2604 = vld [vmem:[#allocation3 + $0x230] sm:$0xff]
        %v2605 = vld [vmem:[#allocation3 + $0x238] sm:$0xff]
        %v2606 = vld [vmem:[#allocation3 + $0x240] sm:$0xff]
        %v2607 = vld [vmem:[#allocation3 + $0x248] sm:$0xff]
        %v2608 = vld [vmem:[#allocation3 + $0x250] sm:$0xff]
        %v2609 = vld [vmem:[#allocation3 + $0x258] sm:$0xff]
        %v2610 = vld [vmem:[#allocation3 + $0x260] sm:$0xff]
        %v2611 = vld [vmem:[#allocation3 + $0x268] sm:$0xff]
        %v2612 = vld [vmem:[#allocation3 + $0x270] sm:$0xff]
        %v2613 = vld [vmem:[#allocation3 + $0x278] sm:$0xff]
        %v2614 = vld [vmem:[#allocation3 + $0x280] sm:$0xff]
        %v2615 = vld [vmem:[#allocation3 + $0x288] sm:$0xff]
        %v2616 = vld [vmem:[#allocation3 + $0x290] sm:$0xff]
        %v2617 = vld [vmem:[#allocation3 + $0x298] sm:$0xff]
        %v2618 = vld [vmem:[#allocation3 + $0x2a0] sm:$0xff]
        %v2619 = vld [vmem:[#allocation3 + $0x2a8] sm:$0xff]
        %v2620 = vld [vmem:[#allocation3 + $0x2b0] sm:$0xff]
        %v2621 = vld [vmem:[#allocation3 + $0x2b8] sm:$0xff]
        %v2622 = vld [vmem:[#allocation3 + $0x2c0] sm:$0xff]
        %v2623 = vld [vmem:[#allocation3 + $0x2c8] sm:$0xff]
        %v2624 = vld [vmem:[#allocation3 + $0x2d0] sm:$0xff]
        %v2625 = vld [vmem:[#allocation3 + $0x2d8] sm:$0xff]
        %v2626 = vld [vmem:[#allocation3 + $0x2e0] sm:$0xff]
        %v2627 = vld [vmem:[#allocation3 + $0x2e8] sm:$0xff]
        %v2628 = vld [vmem:[#allocation3 + $0x2f0] sm:$0xff]
        %v2629 = vld [vmem:[#allocation3 + $0x2f8] sm:$0xff]
        %v2630 = vld [vmem:[#allocation3 + $0x300] sm:$0xff]
        %v2631 = vld [vmem:[#allocation3 + $0x308] sm:$0xff]
        %v2632 = vld [vmem:[#allocation3 + $0x310] sm:$0xff]
        %v2633 = vld [vmem:[#allocation3 + $0x318] sm:$0xff]
        %v2634 = vld [vmem:[#allocation3 + $0x320] sm:$0xff]
        %v2635 = vld [vmem:[#allocation3 + $0x328] sm:$0xff]
        %v2636 = vld [vmem:[#allocation3 + $0x330] sm:$0xff]
        %v2637 = vld [vmem:[#allocation3 + $0x338] sm:$0xff]
        %v2638 = vld [vmem:[#allocation3 + $0x340] sm:$0xff]
        %v2639 = vld [vmem:[#allocation3 + $0x348] sm:$0xff]
        %v2640 = vld [vmem:[#allocation3 + $0x350] sm:$0xff]
        %v2641 = vld [vmem:[#allocation3 + $0x358] sm:$0xff]
        %v2642 = vld [vmem:[#allocation3 + $0x360] sm:$0xff]
        %v2643 = vld [vmem:[#allocation3 + $0x368] sm:$0xff]
        %v2644 = vld [vmem:[#allocation3 + $0x370] sm:$0xff]
        %v2645 = vld [vmem:[#allocation3 + $0x378] sm:$0xff]
        %v2646 = vld [vmem:[#allocation3 + $0x380] sm:$0xff]
        %v2647 = vld [vmem:[#allocation3 + $0x388] sm:$0xff]
        %v2648 = vld [vmem:[#allocation3 + $0x390] sm:$0xff]
        %v2649 = vld [vmem:[#allocation3 + $0x398] sm:$0xff]
        %v2650 = vld [vmem:[#allocation3 + $0x3a0] sm:$0xff]
        %v2651 = vld [vmem:[#allocation3 + $0x3a8] sm:$0xff]
        %v2652 = vld [vmem:[#allocation3 + $0x3b0] sm:$0xff]
        %v2653 = vld [vmem:[#allocation3 + $0x3b8] sm:$0xff]
        %v2654 = vld [vmem:[#allocation3 + $0x3c0] sm:$0xff]
        %v2655 = vld [vmem:[#allocation3 + $0x3c8] sm:$0xff]
        %v2656 = vld [vmem:[#allocation3 + $0x3d0] sm:$0xff]
        %v2657 = vld [vmem:[#allocation3 + $0x3d8] sm:$0xff]
        %v2658 = vld [vmem:[#allocation3 + $0x3e0] sm:$0xff]
        %v2659 = vld [vmem:[#allocation3 + $0x3e8] sm:$0xff]
        %v2660 = vld [vmem:[#allocation3 + $0x3f0] sm:$0xff]
        %v2661 = vld [vmem:[#allocation3 + $0x3f8] sm:$0xff]
        %v2662 = vld [vmem:[#allocation3 + $0x400] sm:$0xff]
        %v2663 = vld [vmem:[#allocation3 + $0x408] sm:$0xff]
        %v2664 = vld [vmem:[#allocation3 + $0x410] sm:$0xff]
        %v2665 = vld [vmem:[#allocation3 + $0x418] sm:$0xff]
        %v2666 = vld [vmem:[#allocation3 + $0x420] sm:$0xff]
        %v2667 = vld [vmem:[#allocation3 + $0x428] sm:$0xff]
        %v2668 = vld [vmem:[#allocation3 + $0x430] sm:$0xff]
        %v2669 = vld [vmem:[#allocation3 + $0x438] sm:$0xff]
        %v2670 = vld [vmem:[#allocation3 + $0x440] sm:$0xff]
        %v2671 = vld [vmem:[#allocation3 + $0x448] sm:$0xff]
        %v2672 = vld [vmem:[#allocation3 + $0x450] sm:$0xff]
        %v2673 = vld [vmem:[#allocation3 + $0x458] sm:$0xff]
        %v2674 = vld [vmem:[#allocation3 + $0x460] sm:$0xff]
        %v2675 = vld [vmem:[#allocation3 + $0x468] sm:$0xff]
        %v2676 = vld [vmem:[#allocation3 + $0x470] sm:$0xff]
        %v2677 = vld [vmem:[#allocation3 + $0x478] sm:$0xff]
        %v2678 = vld [vmem:[#allocation3 + $0x480] sm:$0xff]
        %v2679 = vld [vmem:[#allocation3 + $0x488] sm:$0xff]
        %v2680 = vld [vmem:[#allocation3 + $0x490] sm:$0xff]
        %v2681 = vld [vmem:[#allocation3 + $0x498] sm:$0xff]
        %v2682 = vld [vmem:[#allocation3 + $0x4a0] sm:$0xff]
        %v2683 = vld [vmem:[#allocation3 + $0x4a8] sm:$0xff]
        %v2684 = vld [vmem:[#allocation3 + $0x4b0] sm:$0xff]
        %v2685 = vld [vmem:[#allocation3 + $0x4b8] sm:$0xff]
        %v2686 = vld [vmem:[#allocation3 + $0x4c0] sm:$0xff]
        %v2687 = vld [vmem:[#allocation3 + $0x4c8] sm:$0xff]
        %v2688 = vld [vmem:[#allocation3 + $0x4d0] sm:$0xff]
        %v2689 = vld [vmem:[#allocation3 + $0x4d8] sm:$0xff]
        %v2690 = vld [vmem:[#allocation3 + $0x4e0] sm:$0xff]
        %v2691 = vld [vmem:[#allocation3 + $0x4e8] sm:$0xff]
        %v2692 = vld [vmem:[#allocation3 + $0x4f0] sm:$0xff]
        %v2693 = vld [vmem:[#allocation3 + $0x4f8] sm:$0xff]
        %v2694 = vld [vmem:[#allocation3 + $0x500] sm:$0xff]
        %v2695 = vld [vmem:[#allocation3 + $0x508] sm:$0xff]
        %v2696 = vld [vmem:[#allocation7] sm:$0xf]
        %v2697 = vld [vmem:[#allocation7 + $0x4] sm:$0xf]
        %v2698 = vld [vmem:[#allocation7 + $0x8] sm:$0xf]
        %v2699 = vld [vmem:[#allocation7 + $0xc] sm:$0xf]
        %v2700 = vld [vmem:[#allocation7 + $0x10] sm:$0xf]
        %v2701 = vld [vmem:[#allocation7 + $0x14] sm:$0xf]
        %v2702 = vld [vmem:[#allocation7 + $0x18] sm:$0xf]
        %v2703 = vld [vmem:[#allocation7 + $0x1c] sm:$0xf]
        %v2704 = vld [vmem:[#allocation7 + $0x20] sm:$0xf]
        %v2705 = vld [vmem:[#allocation7 + $0x24] sm:$0xf]
        %v2706 = vld [vmem:[#allocation7 + $0x28] sm:$0xf]
        %v2707 = vld [vmem:[#allocation7 + $0x2c] sm:$0xf]
        %v2708 = vld [vmem:[#allocation7 + $0x30] sm:$0xf]
        %v2709 = vld [vmem:[#allocation7 + $0x34] sm:$0xf]
        %v2710 = vld [vmem:[#allocation7 + $0x38] sm:$0xf]
        %v2711 = vld [vmem:[#allocation7 + $0x3c] sm:$0xf]
        %v2712 = vld [vmem:[#allocation7 + $0x40] sm:$0xf]
        %v2713 = vld [vmem:[#allocation7 + $0x44] sm:$0xf]
        %v2714 = vld [vmem:[#allocation7 + $0x48] sm:$0xf]
        %v2715 = vld [vmem:[#allocation7 + $0x4c] sm:$0xf]
        %v2716 = vld [vmem:[#allocation7 + $0x50] sm:$0xf]
        %v2717 = vld [vmem:[#allocation7 + $0x54] sm:$0xf]
        %v2718 = vld [vmem:[#allocation7 + $0x58] sm:$0xf]
        %v2719 = vld [vmem:[#allocation7 + $0x5c] sm:$0xf]
        %v2720 = vld [vmem:[#allocation7 + $0x60] sm:$0xf]
        %v2721 = vld [vmem:[#allocation7 + $0x64] sm:$0xf]
        %v2722 = vld [vmem:[#allocation7 + $0x68] sm:$0xf]
        %v2723 = vld [vmem:[#allocation7 + $0x6c] sm:$0xf]
        %v2724 = vld [vmem:[#allocation7 + $0x70] sm:$0xf]
        %v2725 = vld [vmem:[#allocation7 + $0x74] sm:$0xf]
        %v2726 = vld [vmem:[#allocation7 + $0x78] sm:$0xf]
        %v2727 = vld [vmem:[#allocation7 + $0x7c] sm:$0xf]
        %v2728 = vld [vmem:[#allocation7 + $0x80] sm:$0xf]
        %v2729 = vld [vmem:[#allocation7 + $0x84] sm:$0xf]
        %v2730 = vld [vmem:[#allocation7 + $0x88] sm:$0xf]
        %v2731 = vld [vmem:[#allocation7 + $0x8c] sm:$0xf]
        %v2732 = vld [vmem:[#allocation7 + $0x90] sm:$0xf]
        %v2733 = vld [vmem:[#allocation7 + $0x94] sm:$0xf]
        %v2734 = vld [vmem:[#allocation7 + $0x98] sm:$0xf]
        %v2735 = vld [vmem:[#allocation7 + $0x9c] sm:$0xf]
        %v2736 = vld [vmem:[#allocation7 + $0xa0] sm:$0xf]
        %v2737 = vld [vmem:[#allocation7 + $0xa4] sm:$0xf]
        %v2738 = vld [vmem:[#allocation7 + $0xa8] sm:$0xf]
        %v2739 = vld [vmem:[#allocation7 + $0xac] sm:$0xf]
        %v2740 = vld [vmem:[#allocation7 + $0xb0] sm:$0xf]
        %v2741 = vld [vmem:[#allocation7 + $0xb4] sm:$0xf]
        %v2742 = vld [vmem:[#allocation7 + $0xb8] sm:$0xf]
        %v2743 = vld [vmem:[#allocation7 + $0xbc] sm:$0xf]
        %v2744 = vld [vmem:[#allocation7 + $0xc0] sm:$0xf]
        %v2745 = vld [vmem:[#allocation7 + $0xc4] sm:$0xf]
        %v2746 = vld [vmem:[#allocation7 + $0xc8] sm:$0xf]
        %v2747 = vld [vmem:[#allocation7 + $0xcc] sm:$0xf]
        %v2748 = vld [vmem:[#allocation7 + $0xd0] sm:$0xf]
        %v2749 = vld [vmem:[#allocation7 + $0xd4] sm:$0xf]
        %v2750 = vld [vmem:[#allocation7 + $0xd8] sm:$0xf]
        %v2751 = vld [vmem:[#allocation7 + $0xdc] sm:$0xf]
        %v2752 = vld [vmem:[#allocation7 + $0xe0] sm:$0xf]
        %v2753 = vld [vmem:[#allocation7 + $0xe4] sm:$0xf]
        %v2754 = vld [vmem:[#allocation7 + $0xe8] sm:$0xf]
        %v2755 = vld [vmem:[#allocation7 + $0xec] sm:$0xf]
        %v2756 = vld [vmem:[#allocation7 + $0xf0] sm:$0xf]
        %v2757 = vld [vmem:[#allocation7 + $0xf4] sm:$0xf]
        %v2758 = vld [vmem:[#allocation7 + $0xf8] sm:$0xf]
        %v2759 = vld [vmem:[#allocation7 + $0xfc] sm:$0xf]
        %v2760 = vld [vmem:[#allocation7 + $0x100] sm:$0xf]
        %v2761 = vld [vmem:[#allocation7 + $0x104] sm:$0xf]
        %v2762 = vld [vmem:[#allocation7 + $0x108] sm:$0xf]
        %v2763 = vld [vmem:[#allocation7 + $0x10c] sm:$0xf]
        %v2764 = vld [vmem:[#allocation7 + $0x110] sm:$0xf]
        %v2765 = vld [vmem:[#allocation7 + $0x114] sm:$0xf]
        %v2766 = vld [vmem:[#allocation7 + $0x118] sm:$0xf]
        %v2767 = vld [vmem:[#allocation7 + $0x11c] sm:$0xf]
        %v2768 = vld [vmem:[#allocation7 + $0x120] sm:$0xf]
        %v2769 = vld [vmem:[#allocation7 + $0x124] sm:$0xf]
        %v2770 = vld [vmem:[#allocation7 + $0x128] sm:$0xf]
        %v2771 = vld [vmem:[#allocation7 + $0x12c] sm:$0xf]
        %v2772 = vld [vmem:[#allocation7 + $0x130] sm:$0xf]
        %v2773 = vld [vmem:[#allocation7 + $0x134] sm:$0xf]
        %v2774 = vld [vmem:[#allocation7 + $0x138] sm:$0xf]
        %v2775 = vld [vmem:[#allocation7 + $0x13c] sm:$0xf]
        %v2776 = vld [vmem:[#allocation7 + $0x140] sm:$0xf]
        %v2777 = vld [vmem:[#allocation7 + $0x144] sm:$0xf]
        %v2778 = vld [vmem:[#allocation7 + $0x148] sm:$0xf]
        %v2779 = vld [vmem:[#allocation7 + $0x14c] sm:$0xf]
        %v2780 = vld [vmem:[#allocation7 + $0x150] sm:$0xf]
        %v2781 = vld [vmem:[#allocation7 + $0x154] sm:$0xf]
        %v2782 = vld [vmem:[#allocation7 + $0x158] sm:$0xf]
        %v2783 = vld [vmem:[#allocation7 + $0x15c] sm:$0xf]
        %v2784 = vld [vmem:[#allocation7 + $0x160] sm:$0xf]
        %v2785 = vld [vmem:[#allocation7 + $0x164] sm:$0xf]
        %v2786 = vld [vmem:[#allocation7 + $0x168] sm:$0xf]
        %v2787 = vld [vmem:[#allocation7 + $0x16c] sm:$0xf]
        %v2788 = vld [vmem:[#allocation7 + $0x170] sm:$0xf]
        %v2789 = vld [vmem:[#allocation7 + $0x174] sm:$0xf]
        %v2790 = vld [vmem:[#allocation7 + $0x178] sm:$0xf]
        %v2791 = vld [vmem:[#allocation7 + $0x17c] sm:$0xf]
        %v2792 = vld [vmem:[#allocation7 + $0x180] sm:$0xf]
        %v2793 = vld [vmem:[#allocation7 + $0x184] sm:$0xf]
        %v2794 = vld [vmem:[#allocation7 + $0x188] sm:$0xf]
        %v2795 = vld [vmem:[#allocation7 + $0x18c] sm:$0xf]
        %v2796 = vld [vmem:[#allocation7 + $0x190] sm:$0xf]
        %v2797 = vld [vmem:[#allocation7 + $0x194] sm:$0xf]
        %v2798 = vld [vmem:[#allocation7 + $0x198] sm:$0xf]
        %v2799 = vld [vmem:[#allocation7 + $0x19c] sm:$0xf]
        %v2800 = vld [vmem:[#allocation7 + $0x1a0] sm:$0xf]
        %v2801 = vld [vmem:[#allocation7 + $0x1a4] sm:$0xf]
        %v2802 = vld [vmem:[#allocation7 + $0x1a8] sm:$0xf]
        %v2803 = vld [vmem:[#allocation7 + $0x1ac] sm:$0xf]
        %v2804 = vld [vmem:[#allocation7 + $0x1b0] sm:$0xf]
        %v2805 = vld [vmem:[#allocation7 + $0x1b4] sm:$0xf]
        %v2806 = vld [vmem:[#allocation7 + $0x1b8] sm:$0xf]
        %v2807 = vld [vmem:[#allocation7 + $0x1bc] sm:$0xf]
        %v2808 = vld [vmem:[#allocation7 + $0x1c0] sm:$0xf]
        %v2809 = vld [vmem:[#allocation7 + $0x1c4] sm:$0xf]
        %v2810 = vld [vmem:[#allocation7 + $0x1c8] sm:$0xf]
        %v2811 = vld [vmem:[#allocation7 + $0x1cc] sm:$0xf]
        %v2812 = vld [vmem:[#allocation7 + $0x1d0] sm:$0xf]
        %v2813 = vld [vmem:[#allocation7 + $0x1d4] sm:$0xf]
        %v2814 = vld [vmem:[#allocation7 + $0x1d8] sm:$0xf]
        %v2815 = vld [vmem:[#allocation7 + $0x1dc] sm:$0xf]
        %v2816 = vld [vmem:[#allocation7 + $0x1e0] sm:$0xf]
        %v2817 = vld [vmem:[#allocation7 + $0x1e4] sm:$0xf]
        %v2818 = vld [vmem:[#allocation7 + $0x1e8] sm:$0xf]
        %v2819 = vld [vmem:[#allocation7 + $0x1ec] sm:$0xf]
        %v2820 = vld [vmem:[#allocation7 + $0x1f0] sm:$0xf]
        %v2821 = vld [vmem:[#allocation7 + $0x1f4] sm:$0xf]
        %v2822 = vld [vmem:[#allocation7 + $0x1f8] sm:$0xf]
        %v2823 = vld [vmem:[#allocation7 + $0x1fc] sm:$0xf]
        %v2824 = vld [vmem:[#allocation7 + $0x200] sm:$0xf]
        %v2825 = vld [vmem:[#allocation7 + $0x204] sm:$0xf]
        %v2826 = vld [vmem:[#allocation7 + $0x208] sm:$0xf]
        %v2827 = vld [vmem:[#allocation7 + $0x20c] sm:$0xf]
        %v2828 = vld [vmem:[#allocation7 + $0x210] sm:$0xf]
        %v2829 = vld [vmem:[#allocation7 + $0x214] sm:$0xf]
        %v2830 = vld [vmem:[#allocation7 + $0x218] sm:$0xf]
        %v2831 = vld [vmem:[#allocation7 + $0x21c] sm:$0xf]
        %v2832 = vld [vmem:[#allocation7 + $0x220] sm:$0xf]
        %v2833 = vld [vmem:[#allocation7 + $0x224] sm:$0xf]
        %v2834 = vld [vmem:[#allocation7 + $0x228] sm:$0xf]
        %v2835 = vld [vmem:[#allocation7 + $0x22c] sm:$0xf]
        %v2836 = vld [vmem:[#allocation7 + $0x230] sm:$0xf]
        %v2837 = vld [vmem:[#allocation7 + $0x234] sm:$0xf]
        %v2838 = vld [vmem:[#allocation7 + $0x238] sm:$0xf]
        %v2839 = vld [vmem:[#allocation7 + $0x23c] sm:$0xf]
        %v2984 = vunpack.c.l.b16 %v2696
        %v2985 = vunpack.c.l.b16 %v2697
        %v2986 = vunpack.c.l.b16 %v2698
        %v2987 = vunpack.c.l.b16 %v2699
        %v2988 = vunpack.c.l.b16 %v2700
        %v2989 = vunpack.c.l.b16 %v2701
        %v2990 = vunpack.c.l.b16 %v2702
        %v2991 = vunpack.c.l.b16 %v2703
        %v2992 = vunpack.c.l.b16 %v2704
        %v2993 = vunpack.c.l.b16 %v2705
        %v2994 = vunpack.c.l.b16 %v2706
        %v2995 = vunpack.c.l.b16 %v2707
        %v2996 = vunpack.c.l.b16 %v2708
        %v2997 = vunpack.c.l.b16 %v2709
        %v2998 = vunpack.c.l.b16 %v2710
        %v2999 = vunpack.c.l.b16 %v2711
        %v3000 = vunpack.c.l.b16 %v2712
        %v3001 = vunpack.c.l.b16 %v2713
        %v3002 = vunpack.c.l.b16 %v2714
        %v3003 = vunpack.c.l.b16 %v2715
        %v3004 = vunpack.c.l.b16 %v2716
        %v3005 = vunpack.c.l.b16 %v2717
        %v3006 = vunpack.c.l.b16 %v2718
        %v3007 = vunpack.c.l.b16 %v2719
        %v3008 = vunpack.c.l.b16 %v2720
        %v3009 = vunpack.c.l.b16 %v2721
        %v3010 = vunpack.c.l.b16 %v2722
        %v3011 = vunpack.c.l.b16 %v2723
        %v3012 = vunpack.c.l.b16 %v2724
        %v3013 = vunpack.c.l.b16 %v2725
        %v3014 = vunpack.c.l.b16 %v2726
        %v3015 = vunpack.c.l.b16 %v2727
        %v3016 = vunpack.c.l.b16 %v2728
        %v3017 = vunpack.c.l.b16 %v2729
        %v3018 = vunpack.c.l.b16 %v2730
        %v3019 = vunpack.c.l.b16 %v2731
        %v3020 = vunpack.c.l.b16 %v2732
        %v3021 = vunpack.c.l.b16 %v2733
        %v3022 = vunpack.c.l.b16 %v2734
        %v3023 = vunpack.c.l.b16 %v2735
        %v3024 = vunpack.c.l.b16 %v2736
        %v3025 = vunpack.c.l.b16 %v2737
        %v3026 = vunpack.c.l.b16 %v2738
        %v3027 = vunpack.c.l.b16 %v2739
        %v3028 = vunpack.c.l.b16 %v2740
        %v3029 = vunpack.c.l.b16 %v2741
        %v3030 = vunpack.c.l.b16 %v2742
        %v3031 = vunpack.c.l.b16 %v2743
        %v3032 = vunpack.c.l.b16 %v2744
        %v3033 = vunpack.c.l.b16 %v2745
        %v3034 = vunpack.c.l.b16 %v2746
        %v3035 = vunpack.c.l.b16 %v2747
        %v3036 = vunpack.c.l.b16 %v2748
        %v3037 = vunpack.c.l.b16 %v2749
        %v3038 = vunpack.c.l.b16 %v2750
        %v3039 = vunpack.c.l.b16 %v2751
        %v3040 = vunpack.c.l.b16 %v2752
        %v3041 = vunpack.c.l.b16 %v2753
        %v3042 = vunpack.c.l.b16 %v2754
        %v3043 = vunpack.c.l.b16 %v2755
        %v3044 = vunpack.c.l.b16 %v2756
        %v3045 = vunpack.c.l.b16 %v2757
        %v3046 = vunpack.c.l.b16 %v2758
        %v3047 = vunpack.c.l.b16 %v2759
        %v3048 = vunpack.c.l.b16 %v2760
        %v3049 = vunpack.c.l.b16 %v2761
        %v3050 = vunpack.c.l.b16 %v2762
        %v3051 = vunpack.c.l.b16 %v2763
        %v3052 = vunpack.c.l.b16 %v2764
        %v3053 = vunpack.c.l.b16 %v2765
        %v3054 = vunpack.c.l.b16 %v2766
        %v3055 = vunpack.c.l.b16 %v2767
        %v3056 = vunpack.c.l.b16 %v2768
        %v3057 = vunpack.c.l.b16 %v2769
        %v3058 = vunpack.c.l.b16 %v2770
        %v3059 = vunpack.c.l.b16 %v2771
        %v3060 = vunpack.c.l.b16 %v2772
        %v3061 = vunpack.c.l.b16 %v2773
        %v3062 = vunpack.c.l.b16 %v2774
        %v3063 = vunpack.c.l.b16 %v2775
        %v3064 = vunpack.c.l.b16 %v2776
        %v3065 = vunpack.c.l.b16 %v2777
        %v3066 = vunpack.c.l.b16 %v2778
        %v3067 = vunpack.c.l.b16 %v2779
        %v3068 = vunpack.c.l.b16 %v2780
        %v3069 = vunpack.c.l.b16 %v2781
        %v3070 = vunpack.c.l.b16 %v2782
        %v3071 = vunpack.c.l.b16 %v2783
        %v3072 = vunpack.c.l.b16 %v2784
        %v3073 = vunpack.c.l.b16 %v2785
        %v3074 = vunpack.c.l.b16 %v2786
        %v3075 = vunpack.c.l.b16 %v2787
        %v3076 = vunpack.c.l.b16 %v2788
        %v3077 = vunpack.c.l.b16 %v2789
        %v3078 = vunpack.c.l.b16 %v2790
        %v3079 = vunpack.c.l.b16 %v2791
        %v3080 = vunpack.c.l.b16 %v2792
        %v3081 = vunpack.c.l.b16 %v2793
        %v3082 = vunpack.c.l.b16 %v2794
        %v3083 = vunpack.c.l.b16 %v2795
        %v3084 = vunpack.c.l.b16 %v2796
        %v3085 = vunpack.c.l.b16 %v2797
        %v3086 = vunpack.c.l.b16 %v2798
        %v3087 = vunpack.c.l.b16 %v2799
        %v3088 = vunpack.c.l.b16 %v2800
        %v3089 = vunpack.c.l.b16 %v2801
        %v3090 = vunpack.c.l.b16 %v2802
        %v3091 = vunpack.c.l.b16 %v2803
        %v3092 = vunpack.c.l.b16 %v2804
        %v3093 = vunpack.c.l.b16 %v2805
        %v3094 = vunpack.c.l.b16 %v2806
        %v3095 = vunpack.c.l.b16 %v2807
        %v3096 = vunpack.c.l.b16 %v2808
        %v3097 = vunpack.c.l.b16 %v2809
        %v3098 = vunpack.c.l.b16 %v2810
        %v3099 = vunpack.c.l.b16 %v2811
        %v3100 = vunpack.c.l.b16 %v2812
        %v3101 = vunpack.c.l.b16 %v2813
        %v3102 = vunpack.c.l.b16 %v2814
        %v3103 = vunpack.c.l.b16 %v2815
        %v3104 = vunpack.c.l.b16 %v2816
        %v3105 = vunpack.c.l.b16 %v2817
        %v3106 = vunpack.c.l.b16 %v2818
        %v3107 = vunpack.c.l.b16 %v2819
        %v3108 = vunpack.c.l.b16 %v2820
        %v3109 = vunpack.c.l.b16 %v2821
        %v3110 = vunpack.c.l.b16 %v2822
        %v3111 = vunpack.c.l.b16 %v2823
        %v3112 = vunpack.c.l.b16 %v2824
        %v3113 = vunpack.c.l.b16 %v2825
        %v3114 = vunpack.c.l.b16 %v2826
        %v3115 = vunpack.c.l.b16 %v2827
        %v3116 = vunpack.c.l.b16 %v2828
        %v3117 = vunpack.c.l.b16 %v2829
        %v3118 = vunpack.c.l.b16 %v2830
        %v3119 = vunpack.c.l.b16 %v2831
        %v3120 = vunpack.c.l.b16 %v2832
        %v3121 = vunpack.c.l.b16 %v2833
        %v3122 = vunpack.c.l.b16 %v2834
        %v3123 = vunpack.c.l.b16 %v2835
        %v3124 = vunpack.c.l.b16 %v2836
        %v3125 = vunpack.c.l.b16 %v2837
        %v3126 = vunpack.c.l.b16 %v2838
        %v3127 = vunpack.c.l.b16 %v2839
        %v3128 = vpack.c.b16 %v2985, %v2984
        %v3129 = vpack.c.b16 %v2987, %v2986
        %v3130 = vpack.c.b16 %v2989, %v2988
        %v3131 = vpack.c.b16 %v2991, %v2990
        %v3132 = vpack.c.b16 %v2993, %v2992
        %v3133 = vpack.c.b16 %v2995, %v2994
        %v3134 = vpack.c.b16 %v2997, %v2996
        %v3135 = vpack.c.b16 %v2999, %v2998
        %v3136 = vpack.c.b16 %v3001, %v3000
        %v3137 = vpack.c.b16 %v3003, %v3002
        %v3138 = vpack.c.b16 %v3005, %v3004
        %v3139 = vpack.c.b16 %v3007, %v3006
        %v3140 = vpack.c.b16 %v3009, %v3008
        %v3141 = vpack.c.b16 %v3011, %v3010
        %v3142 = vpack.c.b16 %v3013, %v3012
        %v3143 = vpack.c.b16 %v3015, %v3014
        %v3144 = vpack.c.b16 %v3017, %v3016
        %v3145 = vpack.c.b16 %v3019, %v3018
        %v3146 = vpack.c.b16 %v3021, %v3020
        %v3147 = vpack.c.b16 %v3023, %v3022
        %v3148 = vpack.c.b16 %v3025, %v3024
        %v3149 = vpack.c.b16 %v3027, %v3026
        %v3150 = vpack.c.b16 %v3029, %v3028
        %v3151 = vpack.c.b16 %v3031, %v3030
        %v3152 = vpack.c.b16 %v3033, %v3032
        %v3153 = vpack.c.b16 %v3035, %v3034
        %v3154 = vpack.c.b16 %v3037, %v3036
        %v3155 = vpack.c.b16 %v3039, %v3038
        %v3156 = vpack.c.b16 %v3041, %v3040
        %v3157 = vpack.c.b16 %v3043, %v3042
        %v3158 = vpack.c.b16 %v3045, %v3044
        %v3159 = vpack.c.b16 %v3047, %v3046
        %v3160 = vpack.c.b16 %v3049, %v3048
        %v3161 = vpack.c.b16 %v3051, %v3050
        %v3162 = vpack.c.b16 %v3053, %v3052
        %v3163 = vpack.c.b16 %v3055, %v3054
        %v3164 = vpack.c.b16 %v3057, %v3056
        %v3165 = vpack.c.b16 %v3059, %v3058
        %v3166 = vpack.c.b16 %v3061, %v3060
        %v3167 = vpack.c.b16 %v3063, %v3062
        %v3168 = vpack.c.b16 %v3065, %v3064
        %v3169 = vpack.c.b16 %v3067, %v3066
        %v3170 = vpack.c.b16 %v3069, %v3068
        %v3171 = vpack.c.b16 %v3071, %v3070
        %v3172 = vpack.c.b16 %v3073, %v3072
        %v3173 = vpack.c.b16 %v3075, %v3074
        %v3174 = vpack.c.b16 %v3077, %v3076
        %v3175 = vpack.c.b16 %v3079, %v3078
        %v3176 = vpack.c.b16 %v3081, %v3080
        %v3177 = vpack.c.b16 %v3083, %v3082
        %v3178 = vpack.c.b16 %v3085, %v3084
        %v3179 = vpack.c.b16 %v3087, %v3086
        %v3180 = vpack.c.b16 %v3089, %v3088
        %v3181 = vpack.c.b16 %v3091, %v3090
        %v3182 = vpack.c.b16 %v3093, %v3092
        %v3183 = vpack.c.b16 %v3095, %v3094
        %v3184 = vpack.c.b16 %v3097, %v3096
        %v3185 = vpack.c.b16 %v3099, %v3098
        %v3186 = vpack.c.b16 %v3101, %v3100
        %v3187 = vpack.c.b16 %v3103, %v3102
        %v3188 = vpack.c.b16 %v3105, %v3104
        %v3189 = vpack.c.b16 %v3107, %v3106
        %v3190 = vpack.c.b16 %v3109, %v3108
        %v3191 = vpack.c.b16 %v3111, %v3110
        %v3192 = vpack.c.b16 %v3113, %v3112
        %v3193 = vpack.c.b16 %v3115, %v3114
        %v3194 = vpack.c.b16 %v3117, %v3116
        %v3195 = vpack.c.b16 %v3119, %v3118
        %v3196 = vpack.c.b16 %v3121, %v3120
        %v3197 = vpack.c.b16 %v3123, %v3122
        %v3198 = vpack.c.b16 %v3125, %v3124
        %v3199 = vpack.c.b16 %v3127, %v3126
        %3272 = vmatprep.subr.bf16.mxu0 0
        %3273 = vmatpush1.bf16.msra.mxu0 %v3128
        %3274 = vmatprep.subr.bf16.mxu0 0
        %3275 = vmatpush1.bf16.msra.mxu0 %v3129
        %3276 = vmatprep.subr.bf16.mxu0 0
        %3277 = vmatpush1.bf16.msra.mxu0 %v3130
        %3278 = vmatprep.subr.bf16.mxu0 0
        %3279 = vmatpush1.bf16.msra.mxu0 %v3131
        %3280 = vmatprep.subr.bf16.mxu0 0
        %3281 = vmatpush1.bf16.msra.mxu0 %v3132
        %3282 = vmatprep.subr.bf16.mxu0 0
        %3283 = vmatpush1.bf16.msra.mxu0 %v3133
        %3284 = vmatprep.subr.bf16.mxu0 0
        %3285 = vmatpush1.bf16.msra.mxu0 %v3134
        %3286 = vmatprep.subr.bf16.mxu0 0
        %3287 = vmatpush1.bf16.msra.mxu0 %v3135
        %3288 = vmatprep.subr.bf16.mxu0 0
        %3289 = vmatpush1.bf16.msra.mxu0 %v3136
        %3290 = vmatprep.subr.bf16.mxu0 0
        %3291 = vmatpush1.bf16.msra.mxu0 %v3137
        %3292 = vmatprep.subr.bf16.mxu0 0
        %3293 = vmatpush1.bf16.msra.mxu0 %v3138
        %3294 = vmatprep.subr.bf16.mxu0 0
        %3295 = vmatpush1.bf16.msra.mxu0 %v3139
        %3296 = vmatprep.subr.bf16.mxu0 0
        %3297 = vmatpush1.bf16.msra.mxu0 %v3140
        %3298 = vmatprep.subr.bf16.mxu0 0
        %3299 = vmatpush1.bf16.msra.mxu0 %v3141
        %3300 = vmatprep.subr.bf16.mxu0 0
        %3301 = vmatpush1.bf16.msra.mxu0 %v3142
        %3302 = vmatprep.subr.bf16.mxu0 0
        %3303 = vmatpush1.bf16.msra.mxu0 %v3143
        %3304 = vmatprep.mubr.bf16.mxu0 %v2535
        %3305 = vmatmul.mubr.bf16.gmra.mrb[0].mxu0 %v2534
        %v3306 = vpop.f32.mrb[0].mxu0
        %v3307 = vadd.f32 0.0, %v3306
        %v3308 = vpop.f32.mrb[0].mxu0
        %v3309 = vpop.f32.mrb[0].mxu0
        %v3310 = vadd.f32 0.0, %v3309
        %v3311 = vpop.f32.mrb[0].mxu0
        %3312 = vmatprep.mubr.bf16.mxu0 %v2544
        %3313 = vmatmul.mubr.bf16.gmra.mrb[0].mxu0 %v2543
        %v3314 = vpop.f32.mrb[0].mxu0
        %v3315 = vadd.f32 0.0, %v3314
        %v3316 = vpop.f32.mrb[0].mxu0
        %v3317 = vpop.f32.mrb[0].mxu0
        %v3318 = vadd.f32 0.0, %v3317
        %v3319 = vpop.f32.mrb[0].mxu0
        %3320 = vmatprep.mubr.bf16.mxu0 %v2553
        %3321 = vmatmul.mubr.bf16.gmra.mrb[0].mxu0 %v2552
        %v3322 = vpop.f32.mrb[0].mxu0
        %v3323 = vadd.f32 0.0, %v3322
        %v3324 = vpop.f32.mrb[0].mxu0
        %v3325 = vpop.f32.mrb[0].mxu0
        %v3326 = vadd.f32 0.0, %v3325
        %v3327 = vpop.f32.mrb[0].mxu0
        %3328 = vmatprep.mubr.bf16.mxu0 %v2562
        %3329 = vmatmul.mubr.bf16.gmra.mrb[0].mxu0 %v2561
        %v3330 = vpop.f32.mrb[0].mxu0
        %v3331 = vadd.f32 0.0, %v3330
        %v3332 = vpop.f32.mrb[0].mxu0
        %v3333 = vpop.f32.mrb[0].mxu0
        %v3334 = vadd.f32 0.0, %v3333
        %v3335 = vpop.f32.mrb[0].mxu0
        %3336 = vmatprep.mubr.bf16.mxu0 %v2571
        %3337 = vmatmul.mubr.bf16.gmra.mrb[0].mxu0 %v2570
        %v3338 = vpop.f32.mrb[0].mxu0
        %v3339 = vadd.f32 0.0, %v3338
        %v3340 = vpop.f32.mrb[0].mxu0
        %v3341 = vpop.f32.mrb[0].mxu0
        %v3342 = vadd.f32 0.0, %v3341
        %v3343 = vpop.f32.mrb[0].mxu0
        %3344 = vmatprep.mubr.bf16.mxu0 %v2580
        %3345 = vmatmul.mubr.bf16.gmra.mrb[0].mxu0 %v2579
        %v3346 = vpop.f32.mrb[0].mxu0
        %v3347 = vadd.f32 0.0, %v3346
        %v3348 = vpop.f32.mrb[0].mxu0
        %v3349 = vpop.f32.mrb[0].mxu0
        %v3350 = vadd.f32 0.0, %v3349
        %v3351 = vpop.f32.mrb[0].mxu0
        %3352 = vmatprep.mubr.bf16.mxu0 %v2589
        %3353 = vmatmul.mubr.bf16.gmra.mrb[0].mxu0 %v2588
        %v3354 = vpop.f32.mrb[0].mxu0
        %v3355 = vadd.f32 0.0, %v3354
        %v3356 = vpop.f32.mrb[0].mxu0
        %v3357 = vpop.f32.mrb[0].mxu0
        %v3358 = vadd.f32 0.0, %v3357
        %v3359 = vpop.f32.mrb[0].mxu0
        %3360 = vmatprep.mubr.bf16.mxu0 %v2598
        %3361 = vmatmul.mubr.bf16.gmra.mrb[0].mxu0 %v2597
        %v3362 = vpop.f32.mrb[0].mxu0
        %v3363 = vadd.f32 0.0, %v3362
        %v3364 = vpop.f32.mrb[0].mxu0
        %v3365 = vpop.f32.mrb[0].mxu0
        %v3366 = vadd.f32 0.0, %v3365
        %v3367 = vpop.f32.mrb[0].mxu0
        %3368 = vmatprep.mubr.bf16.mxu0 %v2607
        %3369 = vmatmul.mubr.bf16.gmra.mrb[0].mxu0 %v2606
        %v3370 = vpop.f32.mrb[0].mxu0
        %v3371 = vadd.f32 0.0, %v3370
        %v3372 = vpop.f32.mrb[0].mxu0
        %v3373 = vpop.f32.mrb[0].mxu0
        %v3374 = vadd.f32 0.0, %v3373
        %v3375 = vpop.f32.mrb[0].mxu0
        %3376 = vmatprep.mubr.bf16.mxu0 %v2616
        %3377 = vmatmul.mubr.bf16.gmra.mrb[0].mxu0 %v2615
        %v3378 = vpop.f32.mrb[0].mxu0
        %v3379 = vadd.f32 0.0, %v3378
        %v3380 = vpop.f32.mrb[0].mxu0
        %v3381 = vpop.f32.mrb[0].mxu0
        %v3382 = vadd.f32 0.0, %v3381
        %v3383 = vpop.f32.mrb[0].mxu0
        %3384 = vmatprep.mubr.bf16.mxu0 %v2625
        %3385 = vmatmul.mubr.bf16.gmra.mrb[0].mxu0 %v2624
        %v3386 = vpop.f32.mrb[0].mxu0
        %v3387 = vadd.f32 0.0, %v3386
        %v3388 = vpop.f32.mrb[0].mxu0
        %v3389 = vpop.f32.mrb[0].mxu0
        %v3390 = vadd.f32 0.0, %v3389
        %v3391 = vpop.f32.mrb[0].mxu0
        %3392 = vmatprep.mubr.bf16.mxu0 %v2634
        %3393 = vmatmul.mubr.bf16.gmra.mrb[0].mxu0 %v2633
        %v3394 = vpop.f32.mrb[0].mxu0
        %v3395 = vadd.f32 0.0, %v3394
        %v3396 = vpop.f32.mrb[0].mxu0
        %v3397 = vpop.f32.mrb[0].mxu0
        %v3398 = vadd.f32 0.0, %v3397
        %v3399 = vpop.f32.mrb[0].mxu0
        %3400 = vmatprep.mubr.bf16.mxu0 %v2643
        %3401 = vmatmul.mubr.bf16.gmra.mrb[0].mxu0 %v2642
        %v3402 = vpop.f32.mrb[0].mxu0
        %v3403 = vadd.f32 0.0, %v3402
        %v3404 = vpop.f32.mrb[0].mxu0
        %v3405 = vpop.f32.mrb[0].mxu0
        %v3406 = vadd.f32 0.0, %v3405
        %v3407 = vpop.f32.mrb[0].mxu0
        %3408 = vmatprep.mubr.bf16.mxu0 %v2652
        %3409 = vmatmul.mubr.bf16.gmra.mrb[0].mxu0 %v2651
        %v3410 = vpop.f32.mrb[0].mxu0
        %v3411 = vadd.f32 0.0, %v3410
        %v3412 = vpop.f32.mrb[0].mxu0
        %v3413 = vpop.f32.mrb[0].mxu0
        %v3414 = vadd.f32 0.0, %v3413
        %v3415 = vpop.f32.mrb[0].mxu0
        %3416 = vmatprep.mubr.bf16.mxu0 %v2661
        %3417 = vmatmul.mubr.bf16.gmra.mrb[0].mxu0 %v2660
        %v3418 = vpop.f32.mrb[0].mxu0
        %v3419 = vadd.f32 0.0, %v3418
        %v3420 = vpop.f32.mrb[0].mxu0
        %v3421 = vpop.f32.mrb[0].mxu0
        %v3422 = vadd.f32 0.0, %v3421
        %v3423 = vpop.f32.mrb[0].mxu0
        %3424 = vmatprep.mubr.bf16.mxu0 %v2670
        %3425 = vmatmul.mubr.bf16.gmra.mrb[0].mxu0 %v2669
        %v3426 = vpop.f32.mrb[0].mxu0
        %v3427 = vadd.f32 0.0, %v3426
        %v3428 = vpop.f32.mrb[0].mxu0
        %v3429 = vpop.f32.mrb[0].mxu0
        %v3430 = vadd.f32 0.0, %v3429
        %v3431 = vpop.f32.mrb[0].mxu0
        %3432 = vmatprep.mubr.bf16.mxu0 %v2679
        %3433 = vmatmul.mubr.bf16.gmra.mrb[0].mxu0 %v2678
        %v3434 = vpop.f32.mrb[0].mxu0
        %v3435 = vadd.f32 0.0, %v3434
        %v3436 = vpop.f32.mrb[0].mxu0
        %v3437 = vpop.f32.mrb[0].mxu0
        %v3438 = vadd.f32 0.0, %v3437
        %v3439 = vpop.f32.mrb[0].mxu0
        %3440 = vmatprep.mubr.bf16.mxu0 %v2688
        %3441 = vmatmul.mubr.bf16.gmra.mrb[0].mxu0 %v2687
        %v3442 = vpop.f32.mrb[0].mxu0
        %v3443 = vadd.f32 0.0, %v3442
        %v3444 = vpop.f32.mrb[0].mxu0
        %v3445 = vpop.f32.mrb[0].mxu0
        %v3446 = vadd.f32 0.0, %v3445
        %v3447 = vpop.f32.mrb[0].mxu0
        %3448 = vdwg.mxu0
        %3449 = vmatprep.subr.bf16.mxu0 0
        %3450 = vmatpush1.bf16.msra.mxu0 %v3144
        %3451 = vmatprep.subr.bf16.mxu0 0
        %3452 = vmatpush1.bf16.msra.mxu0 %v3145
        %3453 = vmatprep.subr.bf16.mxu0 0
        %3454 = vmatpush1.bf16.msra.mxu0 %v3146
        %3455 = vmatprep.subr.bf16.mxu0 0
        %3456 = vmatpush1.bf16.msra.mxu0 %v3147
        %3457 = vmatprep.subr.bf16.mxu0 0
        %3458 = vmatpush1.bf16.msra.mxu0 %v3148
        %3459 = vmatprep.subr.bf16.mxu0 0
        %3460 = vmatpush1.bf16.msra.mxu0 %v3149
        %3461 = vmatprep.subr.bf16.mxu0 0
        %3462 = vmatpush1.bf16.msra.mxu0 %v3150
        %3463 = vmatprep.subr.bf16.mxu0 0
        %3464 = vmatpush1.bf16.msra.mxu0 %v3151
        %3465 = vmatprep.subr.bf16.mxu0 0
        %3466 = vmatpush1.bf16.msra.mxu0 %v3152
        %3467 = vmatprep.subr.bf16.mxu0 0
        %3468 = vmatpush1.bf16.msra.mxu0 %v3153
        %3469 = vmatprep.subr.bf16.mxu0 0
        %3470 = vmatpush1.bf16.msra.mxu0 %v3154
        %3471 = vmatprep.subr.bf16.mxu0 0
        %3472 = vmatpush1.bf16.msra.mxu0 %v3155
        %3473 = vmatprep.subr.bf16.mxu0 0
        %3474 = vmatpush1.bf16.msra.mxu0 %v3156
        %3475 = vmatprep.subr.bf16.mxu0 0
        %3476 = vmatpush1.bf16.msra.mxu0 %v3157
        %3477 = vmatprep.subr.bf16.mxu0 0
        %3478 = vmatpush1.bf16.msra.mxu0 %v3158
        %3479 = vmatprep.subr.bf16.mxu0 0
        %3480 = vmatpush1.bf16.msra.mxu0 %v3159
        %3481 = vmatprep.mubr.bf16.mxu0 %v2537
        %3482 = vmatmul.mubr.bf16.gmra.mrb[0].mxu0 %v2536
        %v3483 = vpop.f32.mrb[0].mxu0
        %v3484 = vadd.f32 %v3307, %v3483
        %v3485 = vpop.f32.mrb[0].mxu0
        %v3486 = vpop.f32.mrb[0].mxu0
        %v3487 = vadd.f32 %v3310, %v3486
        %v3488 = vpop.f32.mrb[0].mxu0
        %3489 = vmatprep.mubr.bf16.mxu0 %v2546
        %3490 = vmatmul.mubr.bf16.gmra.mrb[0].mxu0 %v2545
        %v3491 = vpop.f32.mrb[0].mxu0
        %v3492 = vadd.f32 %v3315, %v3491
        %v3493 = vpop.f32.mrb[0].mxu0
        %v3494 = vpop.f32.mrb[0].mxu0
        %v3495 = vadd.f32 %v3318, %v3494
        %v3496 = vpop.f32.mrb[0].mxu0
        %3497 = vmatprep.mubr.bf16.mxu0 %v2555
        %3498 = vmatmul.mubr.bf16.gmra.mrb[0].mxu0 %v2554
        %v3499 = vpop.f32.mrb[0].mxu0
        %v3500 = vadd.f32 %v3323, %v3499
        %v3501 = vpop.f32.mrb[0].mxu0
        %v3502 = vpop.f32.mrb[0].mxu0
        %v3503 = vadd.f32 %v3326, %v3502
        %v3504 = vpop.f32.mrb[0].mxu0
        %3505 = vmatprep.mubr.bf16.mxu0 %v2564
        %3506 = vmatmul.mubr.bf16.gmra.mrb[0].mxu0 %v2563
        %v3507 = vpop.f32.mrb[0].mxu0
        %v3508 = vadd.f32 %v3331, %v3507
        %v3509 = vpop.f32.mrb[0].mxu0
        %v3510 = vpop.f32.mrb[0].mxu0
        %v3511 = vadd.f32 %v3334, %v3510
        %v3512 = vpop.f32.mrb[0].mxu0
        %3513 = vmatprep.mubr.bf16.mxu0 %v2573
        %3514 = vmatmul.mubr.bf16.gmra.mrb[0].mxu0 %v2572
        %v3515 = vpop.f32.mrb[0].mxu0
        %v3516 = vadd.f32 %v3339, %v3515
        %v3517 = vpop.f32.mrb[0].mxu0
        %v3518 = vpop.f32.mrb[0].mxu0
        %v3519 = vadd.f32 %v3342, %v3518
        %v3520 = vpop.f32.mrb[0].mxu0
        %3521 = vmatprep.mubr.bf16.mxu0 %v2582
        %3522 = vmatmul.mubr.bf16.gmra.mrb[0].mxu0 %v2581
        %v3523 = vpop.f32.mrb[0].mxu0
        %v3524 = vadd.f32 %v3347, %v3523
        %v3525 = vpop.f32.mrb[0].mxu0
        %v3526 = vpop.f32.mrb[0].mxu0
        %v3527 = vadd.f32 %v3350, %v3526
        %v3528 = vpop.f32.mrb[0].mxu0
        %3529 = vmatprep.mubr.bf16.mxu0 %v2591
        %3530 = vmatmul.mubr.bf16.gmra.mrb[0].mxu0 %v2590
        %v3531 = vpop.f32.mrb[0].mxu0
        %v3532 = vadd.f32 %v3355, %v3531
        %v3533 = vpop.f32.mrb[0].mxu0
        %v3534 = vpop.f32.mrb[0].mxu0
        %v3535 = vadd.f32 %v3358, %v3534
        %v3536 = vpop.f32.mrb[0].mxu0
        %3537 = vmatprep.mubr.bf16.mxu0 %v2600
        %3538 = vmatmul.mubr.bf16.gmra.mrb[0].mxu0 %v2599
        %v3539 = vpop.f32.mrb[0].mxu0
        %v3540 = vadd.f32 %v3363, %v3539
        %v3541 = vpop.f32.mrb[0].mxu0
        %v3542 = vpop.f32.mrb[0].mxu0
        %v3543 = vadd.f32 %v3366, %v3542
        %v3544 = vpop.f32.mrb[0].mxu0
        %3545 = vmatprep.mubr.bf16.mxu0 %v2609
        %3546 = vmatmul.mubr.bf16.gmra.mrb[0].mxu0 %v2608
        %v3547 = vpop.f32.mrb[0].mxu0
        %v3548 = vadd.f32 %v3371, %v3547
        %v3549 = vpop.f32.mrb[0].mxu0
        %v3550 = vpop.f32.mrb[0].mxu0
        %v3551 = vadd.f32 %v3374, %v3550
        %v3552 = vpop.f32.mrb[0].mxu0
        %3553 = vmatprep.mubr.bf16.mxu0 %v2618
        %3554 = vmatmul.mubr.bf16.gmra.mrb[0].mxu0 %v2617
        %v3555 = vpop.f32.mrb[0].mxu0
        %v3556 = vadd.f32 %v3379, %v3555
        %v3557 = vpop.f32.mrb[0].mxu0
        %v3558 = vpop.f32.mrb[0].mxu0
        %v3559 = vadd.f32 %v3382, %v3558
        %v3560 = vpop.f32.mrb[0].mxu0
        %3561 = vmatprep.mubr.bf16.mxu0 %v2627
        %3562 = vmatmul.mubr.bf16.gmra.mrb[0].mxu0 %v2626
        %v3563 = vpop.f32.mrb[0].mxu0
        %v3564 = vadd.f32 %v3387, %v3563
        %v3565 = vpop.f32.mrb[0].mxu0
        %v3566 = vpop.f32.mrb[0].mxu0
        %v3567 = vadd.f32 %v3390, %v3566
        %v3568 = vpop.f32.mrb[0].mxu0
        %3569 = vmatprep.mubr.bf16.mxu0 %v2636
        %3570 = vmatmul.mubr.bf16.gmra.mrb[0].mxu0 %v2635
        %v3571 = vpop.f32.mrb[0].mxu0
        %v3572 = vadd.f32 %v3395, %v3571
        %v3573 = vpop.f32.mrb[0].mxu0
        %v3574 = vpop.f32.mrb[0].mxu0
        %v3575 = vadd.f32 %v3398, %v3574
        %v3576 = vpop.f32.mrb[0].mxu0
        %3577 = vmatprep.mubr.bf16.mxu0 %v2645
        %3578 = vmatmul.mubr.bf16.gmra.mrb[0].mxu0 %v2644
        %v3579 = vpop.f32.mrb[0].mxu0
        %v3580 = vadd.f32 %v3403, %v3579
        %v3581 = vpop.f32.mrb[0].mxu0
        %v3582 = vpop.f32.mrb[0].mxu0
        %v3583 = vadd.f32 %v3406, %v3582
        %v3584 = vpop.f32.mrb[0].mxu0
        %3585 = vmatprep.mubr.bf16.mxu0 %v2654
        %3586 = vmatmul.mubr.bf16.gmra.mrb[0].mxu0 %v2653
        %v3587 = vpop.f32.mrb[0].mxu0
        %v3588 = vadd.f32 %v3411, %v3587
        %v3589 = vpop.f32.mrb[0].mxu0
        %v3590 = vpop.f32.mrb[0].mxu0
        %v3591 = vadd.f32 %v3414, %v3590
        %v3592 = vpop.f32.mrb[0].mxu0
        %3593 = vmatprep.mubr.bf16.mxu0 %v2663
        %3594 = vmatmul.mubr.bf16.gmra.mrb[0].mxu0 %v2662
        %v3595 = vpop.f32.mrb[0].mxu0
        %v3596 = vadd.f32 %v3419, %v3595
        %v3597 = vpop.f32.mrb[0].mxu0
        %v3598 = vpop.f32.mrb[0].mxu0
        %v3599 = vadd.f32 %v3422, %v3598
        %v3600 = vpop.f32.mrb[0].mxu0
        %3601 = vmatprep.mubr.bf16.mxu0 %v2672
        %3602 = vmatmul.mubr.bf16.gmra.mrb[0].mxu0 %v2671
        %v3603 = vpop.f32.mrb[0].mxu0
        %v3604 = vadd.f32 %v3427, %v3603
        %v3605 = vpop.f32.mrb[0].mxu0
        %v3606 = vpop.f32.mrb[0].mxu0
        %v3607 = vadd.f32 %v3430, %v3606
        %v3608 = vpop.f32.mrb[0].mxu0
        %3609 = vmatprep.mubr.bf16.mxu0 %v2681
        %3610 = vmatmul.mubr.bf16.gmra.mrb[0].mxu0 %v2680
        %v3611 = vpop.f32.mrb[0].mxu0
        %v3612 = vadd.f32 %v3435, %v3611
        %v3613 = vpop.f32.mrb[0].mxu0
        %v3614 = vpop.f32.mrb[0].mxu0
        %v3615 = vadd.f32 %v3438, %v3614
        %v3616 = vpop.f32.mrb[0].mxu0
        %3617 = vmatprep.mubr.bf16.mxu0 %v2690
        %3618 = vmatmul.mubr.bf16.gmra.mrb[0].mxu0 %v2689
        %v3619 = vpop.f32.mrb[0].mxu0
        %v3620 = vadd.f32 %v3443, %v3619
        %v3621 = vpop.f32.mrb[0].mxu0
        %v3622 = vpop.f32.mrb[0].mxu0
        %v3623 = vadd.f32 %v3446, %v3622
        %v3624 = vpop.f32.mrb[0].mxu0
        %3625 = vdwg.mxu0
        %3626 = vmatprep.subr.bf16.mxu0 0
        %3627 = vmatpush1.bf16.msra.mxu0 %v3160
        %3628 = vmatprep.subr.bf16.mxu0 0
        %3629 = vmatpush1.bf16.msra.mxu0 %v3161
        %3630 = vmatprep.subr.bf16.mxu0 0
        %3631 = vmatpush1.bf16.msra.mxu0 %v3162
        %3632 = vmatprep.subr.bf16.mxu0 0
        %3633 = vmatpush1.bf16.msra.mxu0 %v3163
        %3634 = vmatprep.subr.bf16.mxu0 0
        %3635 = vmatpush1.bf16.msra.mxu0 %v3164
        %3636 = vmatprep.subr.bf16.mxu0 0
        %3637 = vmatpush1.bf16.msra.mxu0 %v3165
        %3638 = vmatprep.subr.bf16.mxu0 0
        %3639 = vmatpush1.bf16.msra.mxu0 %v3166
        %3640 = vmatprep.subr.bf16.mxu0 0
        %3641 = vmatpush1.bf16.msra.mxu0 %v3167
        %3642 = vmatprep.subr.bf16.mxu0 0
        %3643 = vmatpush1.bf16.msra.mxu0 %v3168
        %3644 = vmatprep.subr.bf16.mxu0 0
        %3645 = vmatpush1.bf16.msra.mxu0 %v3169
        %3646 = vmatprep.subr.bf16.mxu0 0
        %3647 = vmatpush1.bf16.msra.mxu0 %v3170
        %3648 = vmatprep.subr.bf16.mxu0 0
        %3649 = vmatpush1.bf16.msra.mxu0 %v3171
        %3650 = vmatprep.subr.bf16.mxu0 0
        %3651 = vmatpush1.bf16.msra.mxu0 %v3172
        %3652 = vmatprep.subr.bf16.mxu0 0
        %3653 = vmatpush1.bf16.msra.mxu0 %v3173
        %3654 = vmatprep.subr.bf16.mxu0 0
        %3655 = vmatpush1.bf16.msra.mxu0 %v3174
        %3656 = vmatprep.subr.bf16.mxu0 0
        %3657 = vmatpush1.bf16.msra.mxu0 %v3175
        %3658 = vmatprep.mubr.bf16.mxu0 %v2539
        %3659 = vmatmul.mubr.bf16.gmra.mrb[0].mxu0 %v2538
        %v3660 = vpop.f32.mrb[0].mxu0
        %v3661 = vadd.f32 %v3484, %v3660
        %v3662 = vpop.f32.mrb[0].mxu0
        %v3663 = vpop.f32.mrb[0].mxu0
        %v3664 = vadd.f32 %v3487, %v3663
        %v3665 = vpop.f32.mrb[0].mxu0
        %3666 = vmatprep.mubr.bf16.mxu0 %v2548
        %3667 = vmatmul.mubr.bf16.gmra.mrb[0].mxu0 %v2547
        %v3668 = vpop.f32.mrb[0].mxu0
        %v3669 = vadd.f32 %v3492, %v3668
        %v3670 = vpop.f32.mrb[0].mxu0
        %v3671 = vpop.f32.mrb[0].mxu0
        %v3672 = vadd.f32 %v3495, %v3671
        %v3673 = vpop.f32.mrb[0].mxu0
        %3674 = vmatprep.mubr.bf16.mxu0 %v2557
        %3675 = vmatmul.mubr.bf16.gmra.mrb[0].mxu0 %v2556
        %v3676 = vpop.f32.mrb[0].mxu0
        %v3677 = vadd.f32 %v3500, %v3676
        %v3678 = vpop.f32.mrb[0].mxu0
        %v3679 = vpop.f32.mrb[0].mxu0
        %v3680 = vadd.f32 %v3503, %v3679
        %v3681 = vpop.f32.mrb[0].mxu0
        %3682 = vmatprep.mubr.bf16.mxu0 %v2566
        %3683 = vmatmul.mubr.bf16.gmra.mrb[0].mxu0 %v2565
        %v3684 = vpop.f32.mrb[0].mxu0
        %v3685 = vadd.f32 %v3508, %v3684
        %v3686 = vpop.f32.mrb[0].mxu0
        %v3687 = vpop.f32.mrb[0].mxu0
        %v3688 = vadd.f32 %v3511, %v3687
        %v3689 = vpop.f32.mrb[0].mxu0
        %3690 = vmatprep.mubr.bf16.mxu0 %v2575
        %3691 = vmatmul.mubr.bf16.gmra.mrb[0].mxu0 %v2574
        %v3692 = vpop.f32.mrb[0].mxu0
        %v3693 = vadd.f32 %v3516, %v3692
        %v3694 = vpop.f32.mrb[0].mxu0
        %v3695 = vpop.f32.mrb[0].mxu0
        %v3696 = vadd.f32 %v3519, %v3695
        %v3697 = vpop.f32.mrb[0].mxu0
        %3698 = vmatprep.mubr.bf16.mxu0 %v2584
        %3699 = vmatmul.mubr.bf16.gmra.mrb[0].mxu0 %v2583
        %v3700 = vpop.f32.mrb[0].mxu0
        %v3701 = vadd.f32 %v3524, %v3700
        %v3702 = vpop.f32.mrb[0].mxu0
        %v3703 = vpop.f32.mrb[0].mxu0
        %v3704 = vadd.f32 %v3527, %v3703
        %v3705 = vpop.f32.mrb[0].mxu0
        %3706 = vmatprep.mubr.bf16.mxu0 %v2593
        %3707 = vmatmul.mubr.bf16.gmra.mrb[0].mxu0 %v2592
        %v3708 = vpop.f32.mrb[0].mxu0
        %v3709 = vadd.f32 %v3532, %v3708
        %v3710 = vpop.f32.mrb[0].mxu0
        %v3711 = vpop.f32.mrb[0].mxu0
        %v3712 = vadd.f32 %v3535, %v3711
        %v3713 = vpop.f32.mrb[0].mxu0
        %3714 = vmatprep.mubr.bf16.mxu0 %v2602
        %3715 = vmatmul.mubr.bf16.gmra.mrb[0].mxu0 %v2601
        %v3716 = vpop.f32.mrb[0].mxu0
        %v3717 = vadd.f32 %v3540, %v3716
        %v3718 = vpop.f32.mrb[0].mxu0
        %v3719 = vpop.f32.mrb[0].mxu0
        %v3720 = vadd.f32 %v3543, %v3719
        %v3721 = vpop.f32.mrb[0].mxu0
        %3722 = vmatprep.mubr.bf16.mxu0 %v2611
        %3723 = vmatmul.mubr.bf16.gmra.mrb[0].mxu0 %v2610
        %v3724 = vpop.f32.mrb[0].mxu0
        %v3725 = vadd.f32 %v3548, %v3724
        %v3726 = vpop.f32.mrb[0].mxu0
        %v3727 = vpop.f32.mrb[0].mxu0
        %v3728 = vadd.f32 %v3551, %v3727
        %v3729 = vpop.f32.mrb[0].mxu0
        %3730 = vmatprep.mubr.bf16.mxu0 %v2620
        %3731 = vmatmul.mubr.bf16.gmra.mrb[0].mxu0 %v2619
        %v3732 = vpop.f32.mrb[0].mxu0
        %v3733 = vadd.f32 %v3556, %v3732
        %v3734 = vpop.f32.mrb[0].mxu0
        %v3735 = vpop.f32.mrb[0].mxu0
        %v3736 = vadd.f32 %v3559, %v3735
        %v3737 = vpop.f32.mrb[0].mxu0
        %3738 = vmatprep.mubr.bf16.mxu0 %v2629
        %3739 = vmatmul.mubr.bf16.gmra.mrb[0].mxu0 %v2628
        %v3740 = vpop.f32.mrb[0].mxu0
        %v3741 = vadd.f32 %v3564, %v3740
        %v3742 = vpop.f32.mrb[0].mxu0
        %v3743 = vpop.f32.mrb[0].mxu0
        %v3744 = vadd.f32 %v3567, %v3743
        %v3745 = vpop.f32.mrb[0].mxu0
        %3746 = vmatprep.mubr.bf16.mxu0 %v2638
        %3747 = vmatmul.mubr.bf16.gmra.mrb[0].mxu0 %v2637
        %v3748 = vpop.f32.mrb[0].mxu0
        %v3749 = vadd.f32 %v3572, %v3748
        %v3750 = vpop.f32.mrb[0].mxu0
        %v3751 = vpop.f32.mrb[0].mxu0
        %v3752 = vadd.f32 %v3575, %v3751
        %v3753 = vpop.f32.mrb[0].mxu0
        %3754 = vmatprep.mubr.bf16.mxu0 %v2647
        %3755 = vmatmul.mubr.bf16.gmra.mrb[0].mxu0 %v2646
        %v3756 = vpop.f32.mrb[0].mxu0
        %v3757 = vadd.f32 %v3580, %v3756
        %v3758 = vpop.f32.mrb[0].mxu0
        %v3759 = vpop.f32.mrb[0].mxu0
        %v3760 = vadd.f32 %v3583, %v3759
        %v3761 = vpop.f32.mrb[0].mxu0
        %3762 = vmatprep.mubr.bf16.mxu0 %v2656
        %3763 = vmatmul.mubr.bf16.gmra.mrb[0].mxu0 %v2655
        %v3764 = vpop.f32.mrb[0].mxu0
        %v3765 = vadd.f32 %v3588, %v3764
        %v3766 = vpop.f32.mrb[0].mxu0
        %v3767 = vpop.f32.mrb[0].mxu0
        %v3768 = vadd.f32 %v3591, %v3767
        %v3769 = vpop.f32.mrb[0].mxu0
        %3770 = vmatprep.mubr.bf16.mxu0 %v2665
        %3771 = vmatmul.mubr.bf16.gmra.mrb[0].mxu0 %v2664
        %v3772 = vpop.f32.mrb[0].mxu0
        %v3773 = vadd.f32 %v3596, %v3772
        %v3774 = vpop.f32.mrb[0].mxu0
        %v3775 = vpop.f32.mrb[0].mxu0
        %v3776 = vadd.f32 %v3599, %v3775
        %v3777 = vpop.f32.mrb[0].mxu0
        %3778 = vmatprep.mubr.bf16.mxu0 %v2674
        %3779 = vmatmul.mubr.bf16.gmra.mrb[0].mxu0 %v2673
        %v3780 = vpop.f32.mrb[0].mxu0
        %v3781 = vadd.f32 %v3604, %v3780
        %v3782 = vpop.f32.mrb[0].mxu0
        %v3783 = vpop.f32.mrb[0].mxu0
        %v3784 = vadd.f32 %v3607, %v3783
        %v3785 = vpop.f32.mrb[0].mxu0
        %3786 = vmatprep.mubr.bf16.mxu0 %v2683
        %3787 = vmatmul.mubr.bf16.gmra.mrb[0].mxu0 %v2682
        %v3788 = vpop.f32.mrb[0].mxu0
        %v3789 = vadd.f32 %v3612, %v3788
        %v3790 = vpop.f32.mrb[0].mxu0
        %v3791 = vpop.f32.mrb[0].mxu0
        %v3792 = vadd.f32 %v3615, %v3791
        %v3793 = vpop.f32.mrb[0].mxu0
        %3794 = vmatprep.mubr.bf16.mxu0 %v2692
        %3795 = vmatmul.mubr.bf16.gmra.mrb[0].mxu0 %v2691
        %v3796 = vpop.f32.mrb[0].mxu0
        %v3797 = vadd.f32 %v3620, %v3796
        %v3798 = vpop.f32.mrb[0].mxu0
        %v3799 = vpop.f32.mrb[0].mxu0
        %v3800 = vadd.f32 %v3623, %v3799
        %v3801 = vpop.f32.mrb[0].mxu0
        %3802 = vdwg.mxu0
        %3803 = vmatprep.subr.bf16.mxu0 0
        %3804 = vmatpush1.bf16.msra.mxu0 %v3176
        %3805 = vmatprep.subr.bf16.mxu0 0
        %3806 = vmatpush1.bf16.msra.mxu0 %v3177
        %3807 = vmatprep.subr.bf16.mxu0 0
        %3808 = vmatpush1.bf16.msra.mxu0 %v3178
        %3809 = vmatprep.subr.bf16.mxu0 0
        %3810 = vmatpush1.bf16.msra.mxu0 %v3179
        %3811 = vmatprep.subr.bf16.mxu0 0
        %3812 = vmatpush1.bf16.msra.mxu0 %v3180
        %3813 = vmatprep.subr.bf16.mxu0 0
        %3814 = vmatpush1.bf16.msra.mxu0 %v3181
        %3815 = vmatprep.subr.bf16.mxu0 0
        %3816 = vmatpush1.bf16.msra.mxu0 %v3182
        %3817 = vmatprep.subr.bf16.mxu0 0
        %3818 = vmatpush1.bf16.msra.mxu0 %v3183
        %3819 = vmatprep.subr.bf16.mxu0 0
        %3820 = vmatpush1.bf16.msra.mxu0 %v3184
        %3821 = vmatprep.subr.bf16.mxu0 0
        %3822 = vmatpush1.bf16.msra.mxu0 %v3185
        %3823 = vmatprep.subr.bf16.mxu0 0
        %3824 = vmatpush1.bf16.msra.mxu0 %v3186
        %3825 = vmatprep.subr.bf16.mxu0 0
        %3826 = vmatpush1.bf16.msra.mxu0 %v3187
        %3827 = vmatprep.subr.bf16.mxu0 0
        %3828 = vmatpush1.bf16.msra.mxu0 %v3188
        %3829 = vmatprep.subr.bf16.mxu0 0
        %3830 = vmatpush1.bf16.msra.mxu0 %v3189
        %3831 = vmatprep.subr.bf16.mxu0 0
        %3832 = vmatpush1.bf16.msra.mxu0 %v3190
        %3833 = vmatprep.subr.bf16.mxu0 0
        %3834 = vmatpush1.bf16.msra.mxu0 %v3191
        %3835 = vmatprep.mubr.bf16.mxu0 %v2541
        %3836 = vmatmul.mubr.bf16.gmra.mrb[0].mxu0 %v2540
        %v3837 = vpop.f32.mrb[0].mxu0
        %v3838 = vadd.f32 %v3661, %v3837
        %v3839 = vpop.f32.mrb[0].mxu0
        %v3840 = vpop.f32.mrb[0].mxu0
        %v3841 = vadd.f32 %v3664, %v3840
        %v3842 = vpop.f32.mrb[0].mxu0
        %3843 = vmatprep.mubr.bf16.mxu0 %v2550
        %3844 = vmatmul.mubr.bf16.gmra.mrb[0].mxu0 %v2549
        %v3845 = vpop.f32.mrb[0].mxu0
        %v3846 = vadd.f32 %v3669, %v3845
        %v3847 = vpop.f32.mrb[0].mxu0
        %v3848 = vpop.f32.mrb[0].mxu0
        %v3849 = vadd.f32 %v3672, %v3848
        %v3850 = vpop.f32.mrb[0].mxu0
        %3851 = vmatprep.mubr.bf16.mxu0 %v2559
        %3852 = vmatmul.mubr.bf16.gmra.mrb[0].mxu0 %v2558
        %v3853 = vpop.f32.mrb[0].mxu0
        %v3854 = vadd.f32 %v3677, %v3853
        %v3855 = vpop.f32.mrb[0].mxu0
        %v3856 = vpop.f32.mrb[0].mxu0
        %v3857 = vadd.f32 %v3680, %v3856
        %v3858 = vpop.f32.mrb[0].mxu0
        %3859 = vmatprep.mubr.bf16.mxu0 %v2568
        %3860 = vmatmul.mubr.bf16.gmra.mrb[0].mxu0 %v2567
        %v3861 = vpop.f32.mrb[0].mxu0
        %v3862 = vadd.f32 %v3685, %v3861
        %v3863 = vpop.f32.mrb[0].mxu0
        %v3864 = vpop.f32.mrb[0].mxu0
        %v3865 = vadd.f32 %v3688, %v3864
        %v3866 = vpop.f32.mrb[0].mxu0
        %3867 = vmatprep.mubr.bf16.mxu0 %v2577
        %3868 = vmatmul.mubr.bf16.gmra.mrb[0].mxu0 %v2576
        %v3869 = vpop.f32.mrb[0].mxu0
        %v3870 = vadd.f32 %v3693, %v3869
        %v3871 = vpop.f32.mrb[0].mxu0
        %v3872 = vpop.f32.mrb[0].mxu0
        %v3873 = vadd.f32 %v3696, %v3872
        %v3874 = vpop.f32.mrb[0].mxu0
        %3875 = vmatprep.mubr.bf16.mxu0 %v2586
        %3876 = vmatmul.mubr.bf16.gmra.mrb[0].mxu0 %v2585
        %v3877 = vpop.f32.mrb[0].mxu0
        %v3878 = vadd.f32 %v3701, %v3877
        %v3879 = vpop.f32.mrb[0].mxu0
        %v3880 = vpop.f32.mrb[0].mxu0
        %v3881 = vadd.f32 %v3704, %v3880
        %v3882 = vpop.f32.mrb[0].mxu0
        %3883 = vmatprep.mubr.bf16.mxu0 %v2595
        %3884 = vmatmul.mubr.bf16.gmra.mrb[0].mxu0 %v2594
        %v3885 = vpop.f32.mrb[0].mxu0
        %v3886 = vadd.f32 %v3709, %v3885
        %v3887 = vpop.f32.mrb[0].mxu0
        %v3888 = vpop.f32.mrb[0].mxu0
        %v3889 = vadd.f32 %v3712, %v3888
        %v3890 = vpop.f32.mrb[0].mxu0
        %3891 = vmatprep.mubr.bf16.mxu0 %v2604
        %3892 = vmatmul.mubr.bf16.gmra.mrb[0].mxu0 %v2603
        %v3893 = vpop.f32.mrb[0].mxu0
        %v3894 = vadd.f32 %v3717, %v3893
        %v3895 = vpop.f32.mrb[0].mxu0
        %v3896 = vpop.f32.mrb[0].mxu0
        %v3897 = vadd.f32 %v3720, %v3896
        %v3898 = vpop.f32.mrb[0].mxu0
        %3899 = vmatprep.mubr.bf16.mxu0 %v2613
        %3900 = vmatmul.mubr.bf16.gmra.mrb[0].mxu0 %v2612
        %v3901 = vpop.f32.mrb[0].mxu0
        %v3902 = vadd.f32 %v3725, %v3901
        %v3903 = vpop.f32.mrb[0].mxu0
        %v3904 = vpop.f32.mrb[0].mxu0
        %v3905 = vadd.f32 %v3728, %v3904
        %v3906 = vpop.f32.mrb[0].mxu0
        %3907 = vmatprep.mubr.bf16.mxu0 %v2622
        %3908 = vmatmul.mubr.bf16.gmra.mrb[0].mxu0 %v2621
        %v3909 = vpop.f32.mrb[0].mxu0
        %v3910 = vadd.f32 %v3733, %v3909
        %v3911 = vpop.f32.mrb[0].mxu0
        %v3912 = vpop.f32.mrb[0].mxu0
        %v3913 = vadd.f32 %v3736, %v3912
        %v3914 = vpop.f32.mrb[0].mxu0
        %3915 = vmatprep.mubr.bf16.mxu0 %v2631
        %3916 = vmatmul.mubr.bf16.gmra.mrb[0].mxu0 %v2630
        %v3917 = vpop.f32.mrb[0].mxu0
        %v3918 = vadd.f32 %v3741, %v3917
        %v3919 = vpop.f32.mrb[0].mxu0
        %v3920 = vpop.f32.mrb[0].mxu0
        %v3921 = vadd.f32 %v3744, %v3920
        %v3922 = vpop.f32.mrb[0].mxu0
        %3923 = vmatprep.mubr.bf16.mxu0 %v2640
        %3924 = vmatmul.mubr.bf16.gmra.mrb[0].mxu0 %v2639
        %v3925 = vpop.f32.mrb[0].mxu0
        %v3926 = vadd.f32 %v3749, %v3925
        %v3927 = vpop.f32.mrb[0].mxu0
        %v3928 = vpop.f32.mrb[0].mxu0
        %v3929 = vadd.f32 %v3752, %v3928
        %v3930 = vpop.f32.mrb[0].mxu0
        %3931 = vmatprep.mubr.bf16.mxu0 %v2649
        %3932 = vmatmul.mubr.bf16.gmra.mrb[0].mxu0 %v2648
        %v3933 = vpop.f32.mrb[0].mxu0
        %v3934 = vadd.f32 %v3757, %v3933
        %v3935 = vpop.f32.mrb[0].mxu0
        %v3936 = vpop.f32.mrb[0].mxu0
        %v3937 = vadd.f32 %v3760, %v3936
        %v3938 = vpop.f32.mrb[0].mxu0
        %3939 = vmatprep.mubr.bf16.mxu0 %v2658
        %3940 = vmatmul.mubr.bf16.gmra.mrb[0].mxu0 %v2657
        %v3941 = vpop.f32.mrb[0].mxu0
        %v3942 = vadd.f32 %v3765, %v3941
        %v3943 = vpop.f32.mrb[0].mxu0
        %v3944 = vpop.f32.mrb[0].mxu0
        %v3945 = vadd.f32 %v3768, %v3944
        %v3946 = vpop.f32.mrb[0].mxu0
        %3947 = vmatprep.mubr.bf16.mxu0 %v2667
        %3948 = vmatmul.mubr.bf16.gmra.mrb[0].mxu0 %v2666
        %v3949 = vpop.f32.mrb[0].mxu0
        %v3950 = vadd.f32 %v3773, %v3949
        %v3951 = vpop.f32.mrb[0].mxu0
        %v3952 = vpop.f32.mrb[0].mxu0
        %v3953 = vadd.f32 %v3776, %v3952
        %v3954 = vpop.f32.mrb[0].mxu0
        %3955 = vmatprep.mubr.bf16.mxu0 %v2676
        %3956 = vmatmul.mubr.bf16.gmra.mrb[0].mxu0 %v2675
        %v3957 = vpop.f32.mrb[0].mxu0
        %v3958 = vadd.f32 %v3781, %v3957
        %v3959 = vpop.f32.mrb[0].mxu0
        %v3960 = vpop.f32.mrb[0].mxu0
        %v3961 = vadd.f32 %v3784, %v3960
        %v3962 = vpop.f32.mrb[0].mxu0
        %3963 = vmatprep.mubr.bf16.mxu0 %v2685
        %3964 = vmatmul.mubr.bf16.gmra.mrb[0].mxu0 %v2684
        %v3965 = vpop.f32.mrb[0].mxu0
        %v3966 = vadd.f32 %v3789, %v3965
        %v3967 = vpop.f32.mrb[0].mxu0
        %v3968 = vpop.f32.mrb[0].mxu0
        %v3969 = vadd.f32 %v3792, %v3968
        %v3970 = vpop.f32.mrb[0].mxu0
        %3971 = vmatprep.mubr.bf16.mxu0 %v2694
        %3972 = vmatmul.mubr.bf16.gmra.mrb[0].mxu0 %v2693
        %v3973 = vpop.f32.mrb[0].mxu0
        %v3974 = vadd.f32 %v3797, %v3973
        %v3975 = vpop.f32.mrb[0].mxu0
        %v3976 = vpop.f32.mrb[0].mxu0
        %v3977 = vadd.f32 %v3800, %v3976
        %v3978 = vpop.f32.mrb[0].mxu0
        %3979 = vdwg.mxu0
        %3980 = vmatprep.subr.bf16.mxu0 0
        %3981 = vmatpush1.bf16.msra.mxu0 %v3192
        %3982 = vmatprep.subr.bf16.mxu0 0
        %3983 = vmatpush1.bf16.msra.mxu0 %v3193
        %3984 = vmatprep.subr.bf16.mxu0 0
        %3985 = vmatpush1.bf16.msra.mxu0 %v3194
        %3986 = vmatprep.subr.bf16.mxu0 0
        %3987 = vmatpush1.bf16.msra.mxu0 %v3195
        %3988 = vmatprep.subr.bf16.mxu0 0
        %3989 = vmatpush1.bf16.msra.mxu0 %v3196
        %3990 = vmatprep.subr.bf16.mxu0 0
        %3991 = vmatpush1.bf16.msra.mxu0 %v3197
        %3992 = vmatprep.subr.bf16.mxu0 0
        %3993 = vmatpush1.bf16.msra.mxu0 %v3198
        %3994 = vmatprep.subr.bf16.mxu0 0
        %3995 = vmatpush1.bf16.msra.mxu0 %v3199
        %3996 = vmatprep.subr.bf16.mxu0 0
        %3997 = vmatpush1.bf16.msra.mxu0 0
        %3998 = vmatprep.subr.bf16.mxu0 0
        %3999 = vmatpush1.bf16.msra.mxu0 0
        %4000 = vmatprep.subr.bf16.mxu0 0
        %4001 = vmatpush1.bf16.msra.mxu0 0
        %4002 = vmatprep.subr.bf16.mxu0 0
        %4003 = vmatpush1.bf16.msra.mxu0 0
        %4004 = vmatprep.subr.bf16.mxu0 0
        %4005 = vmatpush1.bf16.msra.mxu0 0
        %4006 = vmatprep.subr.bf16.mxu0 0
        %4007 = vmatpush1.bf16.msra.mxu0 0
        %4008 = vmatprep.subr.bf16.mxu0 0
        %4009 = vmatpush1.bf16.msra.mxu0 0
        %4010 = vmatprep.subr.bf16.mxu0 0
        %4011 = vmatpush1.bf16.msra.mxu0 0
        %4012 = vmatprep.mubr.bf16.mxu0 0
        %4013 = vmatmul.mubr.bf16.gmra.mrb[0].mxu0 %v2542
        %v4014 = vpop.f32.mrb[0].mxu0
        %v4015 = vadd.f32 %v3838, %v4014
        %v4016 = vpop.f32.mrb[0].mxu0
        %v4017 = vpop.f32.mrb[0].mxu0
        %v4018 = vadd.f32 %v3841, %v4017
        %v4019 = vpop.f32.mrb[0].mxu0
        %4020 = vmatprep.mubr.bf16.mxu0 0
        %4021 = vmatmul.mubr.bf16.gmra.mrb[0].mxu0 %v2551
        %v4022 = vpop.f32.mrb[0].mxu0
        %v4023 = vadd.f32 %v3846, %v4022
        %v4024 = vpop.f32.mrb[0].mxu0
        %v4025 = vpop.f32.mrb[0].mxu0
        %v4026 = vadd.f32 %v3849, %v4025
        %v4027 = vpop.f32.mrb[0].mxu0
        %4028 = vmatprep.mubr.bf16.mxu0 0
        %4029 = vmatmul.mubr.bf16.gmra.mrb[0].mxu0 %v2560
        %v4030 = vpop.f32.mrb[0].mxu0
        %v4031 = vadd.f32 %v3854, %v4030
        %v4032 = vpop.f32.mrb[0].mxu0
        %v4033 = vpop.f32.mrb[0].mxu0
        %v4034 = vadd.f32 %v3857, %v4033
        %v4035 = vpop.f32.mrb[0].mxu0
        %4036 = vmatprep.mubr.bf16.mxu0 0
        %4037 = vmatmul.mubr.bf16.gmra.mrb[0].mxu0 %v2569
        %v4038 = vpop.f32.mrb[0].mxu0
        %v4039 = vadd.f32 %v3862, %v4038
        %v4040 = vpop.f32.mrb[0].mxu0
        %v4041 = vpop.f32.mrb[0].mxu0
        %v4042 = vadd.f32 %v3865, %v4041
        %v4043 = vpop.f32.mrb[0].mxu0
        %4044 = vmatprep.mubr.bf16.mxu0 0
        %4045 = vmatmul.mubr.bf16.gmra.mrb[0].mxu0 %v2578
        %v4046 = vpop.f32.mrb[0].mxu0
        %v4047 = vadd.f32 %v3870, %v4046
        %v4048 = vpop.f32.mrb[0].mxu0
        %v4049 = vpop.f32.mrb[0].mxu0
        %v4050 = vadd.f32 %v3873, %v4049
        %v4051 = vpop.f32.mrb[0].mxu0
        %4052 = vmatprep.mubr.bf16.mxu0 0
        %4053 = vmatmul.mubr.bf16.gmra.mrb[0].mxu0 %v2587
        %v4054 = vpop.f32.mrb[0].mxu0
        %v4055 = vadd.f32 %v3878, %v4054
        %v4056 = vpop.f32.mrb[0].mxu0
        %v4057 = vpop.f32.mrb[0].mxu0
        %v4058 = vadd.f32 %v3881, %v4057
        %v4059 = vpop.f32.mrb[0].mxu0
        %4060 = vmatprep.mubr.bf16.mxu0 0
        %4061 = vmatmul.mubr.bf16.gmra.mrb[0].mxu0 %v2596
        %v4062 = vpop.f32.mrb[0].mxu0
        %v4063 = vadd.f32 %v3886, %v4062
        %v4064 = vpop.f32.mrb[0].mxu0
        %v4065 = vpop.f32.mrb[0].mxu0
        %v4066 = vadd.f32 %v3889, %v4065
        %v4067 = vpop.f32.mrb[0].mxu0
        %4068 = vmatprep.mubr.bf16.mxu0 0
        %4069 = vmatmul.mubr.bf16.gmra.mrb[0].mxu0 %v2605
        %v4070 = vpop.f32.mrb[0].mxu0
        %v4071 = vadd.f32 %v3894, %v4070
        %v4072 = vpop.f32.mrb[0].mxu0
        %v4073 = vpop.f32.mrb[0].mxu0
        %v4074 = vadd.f32 %v3897, %v4073
        %v4075 = vpop.f32.mrb[0].mxu0
        %4076 = vmatprep.mubr.bf16.mxu0 0
        %4077 = vmatmul.mubr.bf16.gmra.mrb[0].mxu0 %v2614
        %v4078 = vpop.f32.mrb[0].mxu0
        %v4079 = vadd.f32 %v3902, %v4078
        %v4080 = vpop.f32.mrb[0].mxu0
        %v4081 = vpop.f32.mrb[0].mxu0
        %v4082 = vadd.f32 %v3905, %v4081
        %v4083 = vpop.f32.mrb[0].mxu0
        %4084 = vmatprep.mubr.bf16.mxu0 0
        %4085 = vmatmul.mubr.bf16.gmra.mrb[0].mxu0 %v2623
        %v4086 = vpop.f32.mrb[0].mxu0
        %v4087 = vadd.f32 %v3910, %v4086
        %v4088 = vpop.f32.mrb[0].mxu0
        %v4089 = vpop.f32.mrb[0].mxu0
        %v4090 = vadd.f32 %v3913, %v4089
        %v4091 = vpop.f32.mrb[0].mxu0
        %4092 = vmatprep.mubr.bf16.mxu0 0
        %4093 = vmatmul.mubr.bf16.gmra.mrb[0].mxu0 %v2632
        %v4094 = vpop.f32.mrb[0].mxu0
        %v4095 = vadd.f32 %v3918, %v4094
        %v4096 = vpop.f32.mrb[0].mxu0
        %v4097 = vpop.f32.mrb[0].mxu0
        %v4098 = vadd.f32 %v3921, %v4097
        %v4099 = vpop.f32.mrb[0].mxu0
        %4100 = vmatprep.mubr.bf16.mxu0 0
        %4101 = vmatmul.mubr.bf16.gmra.mrb[0].mxu0 %v2641
        %v4102 = vpop.f32.mrb[0].mxu0
        %v4103 = vadd.f32 %v3926, %v4102
        %v4104 = vpop.f32.mrb[0].mxu0
        %v4105 = vpop.f32.mrb[0].mxu0
        %v4106 = vadd.f32 %v3929, %v4105
        %v4107 = vpop.f32.mrb[0].mxu0
        %4108 = vmatprep.mubr.bf16.mxu0 0
        %4109 = vmatmul.mubr.bf16.gmra.mrb[0].mxu0 %v2650
        %v4110 = vpop.f32.mrb[0].mxu0
        %v4111 = vadd.f32 %v3934, %v4110
        %v4112 = vpop.f32.mrb[0].mxu0
        %v4113 = vpop.f32.mrb[0].mxu0
        %v4114 = vadd.f32 %v3937, %v4113
        %v4115 = vpop.f32.mrb[0].mxu0
        %4116 = vmatprep.mubr.bf16.mxu0 0
        %4117 = vmatmul.mubr.bf16.gmra.mrb[0].mxu0 %v2659
        %v4118 = vpop.f32.mrb[0].mxu0
        %v4119 = vadd.f32 %v3942, %v4118
        %v4120 = vpop.f32.mrb[0].mxu0
        %v4121 = vpop.f32.mrb[0].mxu0
        %v4122 = vadd.f32 %v3945, %v4121
        %v4123 = vpop.f32.mrb[0].mxu0
        %4124 = vmatprep.mubr.bf16.mxu0 0
        %4125 = vmatmul.mubr.bf16.gmra.mrb[0].mxu0 %v2668
        %v4126 = vpop.f32.mrb[0].mxu0
        %v4127 = vadd.f32 %v3950, %v4126
        %v4128 = vpop.f32.mrb[0].mxu0
        %v4129 = vpop.f32.mrb[0].mxu0
        %v4130 = vadd.f32 %v3953, %v4129
        %v4131 = vpop.f32.mrb[0].mxu0
        %4132 = vmatprep.mubr.bf16.mxu0 0
        %4133 = vmatmul.mubr.bf16.gmra.mrb[0].mxu0 %v2677
        %v4134 = vpop.f32.mrb[0].mxu0
        %v4135 = vadd.f32 %v3958, %v4134
        %v4136 = vpop.f32.mrb[0].mxu0
        %v4137 = vpop.f32.mrb[0].mxu0
        %v4138 = vadd.f32 %v3961, %v4137
        %v4139 = vpop.f32.mrb[0].mxu0
        %4140 = vmatprep.mubr.bf16.mxu0 0
        %4141 = vmatmul.mubr.bf16.gmra.mrb[0].mxu0 %v2686
        %v4142 = vpop.f32.mrb[0].mxu0
        %v4143 = vadd.f32 %v3966, %v4142
        %v4144 = vpop.f32.mrb[0].mxu0
        %v4145 = vpop.f32.mrb[0].mxu0
        %v4146 = vadd.f32 %v3969, %v4145
        %v4147 = vpop.f32.mrb[0].mxu0
        %4148 = vmatprep.mubr.bf16.mxu0 0
        %4149 = vmatmul.mubr.bf16.gmra.mrb[0].mxu0 %v2695
        %v4150 = vpop.f32.mrb[0].mxu0
        %v4151 = vadd.f32 %v3974, %v4150
        %v4152 = vpop.f32.mrb[0].mxu0
        %v4153 = vpop.f32.mrb[0].mxu0
        %v4154 = vadd.f32 %v3977, %v4153
        %v4155 = vpop.f32.mrb[0].mxu0
        %4156 = vdwg.mxu0
        %v4157 = vld [vmem:[%s3] sm:$0x1]
        %v4159 = vlaneseq
        %v4160 = vshrl.u32 %v4159, 7
        %v4161 = vsub.s32 0, %v4160
        %v4162 = vrot.slane %v4157, %v4161
        %v4164 = vmul.f32 %v4015, %v4162
        %v4165 = vmul.f32 %v4018, %v4162
        %v4166 = vmul.f32 %v4023, %v4162
        %v4167 = vmul.f32 %v4026, %v4162
        %v4168 = vmul.f32 %v4031, %v4162
        %v4169 = vmul.f32 %v4034, %v4162
        %v4170 = vmul.f32 %v4039, %v4162
        %v4171 = vmul.f32 %v4042, %v4162
        %v4172 = vmul.f32 %v4047, %v4162
        %v4173 = vmul.f32 %v4050, %v4162
        %v4174 = vmul.f32 %v4055, %v4162
        %v4175 = vmul.f32 %v4058, %v4162
        %v4176 = vmul.f32 %v4063, %v4162
        %v4177 = vmul.f32 %v4066, %v4162
        %v4178 = vmul.f32 %v4071, %v4162
        %v4179 = vmul.f32 %v4074, %v4162
        %v4180 = vmul.f32 %v4079, %v4162
        %v4181 = vmul.f32 %v4082, %v4162
        %v4182 = vmul.f32 %v4087, %v4162
        %v4183 = vmul.f32 %v4090, %v4162
        %v4184 = vmul.f32 %v4095, %v4162
        %v4185 = vmul.f32 %v4098, %v4162
        %v4186 = vmul.f32 %v4103, %v4162
        %v4187 = vmul.f32 %v4106, %v4162
        %v4188 = vmul.f32 %v4111, %v4162
        %v4189 = vmul.f32 %v4114, %v4162
        %v4190 = vmul.f32 %v4119, %v4162
        %v4191 = vmul.f32 %v4122, %v4162
        %v4192 = vmul.f32 %v4127, %v4162
        %v4193 = vmul.f32 %v4130, %v4162
        %v4194 = vmul.f32 %v4135, %v4162
        %v4195 = vmul.f32 %v4138, %v4162
        %v4196 = vmul.f32 %v4143, %v4162
        %v4197 = vmul.f32 %v4146, %v4162
        %v4198 = vmul.f32 %v4151, %v4162
        %v4199 = vmul.f32 %v4154, %v4162
        %v4200 = vld [vmem:[%s4] sm:$0x1]
        %v4202 = vlaneseq
        %v4203 = vshrl.u32 %v4202, 7
        %v4204 = vsub.s32 0, %v4203
        %v4205 = vrot.slane %v4200, %v4204
        %v4207 = vadd.f32 %v4164, %v4205
        %v4208 = vadd.f32 %v4165, %v4205
        %v4209 = vadd.f32 %v4166, %v4205
        %v4210 = vadd.f32 %v4167, %v4205
        %v4211 = vadd.f32 %v4168, %v4205
        %v4212 = vadd.f32 %v4169, %v4205
        %v4213 = vadd.f32 %v4170, %v4205
        %v4214 = vadd.f32 %v4171, %v4205
        %v4215 = vadd.f32 %v4172, %v4205
        %v4216 = vadd.f32 %v4173, %v4205
        %v4217 = vadd.f32 %v4174, %v4205
        %v4218 = vadd.f32 %v4175, %v4205
        %v4219 = vadd.f32 %v4176, %v4205
        %v4220 = vadd.f32 %v4177, %v4205
        %v4221 = vadd.f32 %v4178, %v4205
        %v4222 = vadd.f32 %v4179, %v4205
        %v4223 = vadd.f32 %v4180, %v4205
        %v4224 = vadd.f32 %v4181, %v4205
        %v4225 = vadd.f32 %v4182, %v4205
        %v4226 = vadd.f32 %v4183, %v4205
        %v4227 = vadd.f32 %v4184, %v4205
        %v4228 = vadd.f32 %v4185, %v4205
        %v4229 = vadd.f32 %v4186, %v4205
        %v4230 = vadd.f32 %v4187, %v4205
        %v4231 = vadd.f32 %v4188, %v4205
        %v4232 = vadd.f32 %v4189, %v4205
        %v4233 = vadd.f32 %v4190, %v4205
        %v4234 = vadd.f32 %v4191, %v4205
        %v4235 = vadd.f32 %v4192, %v4205
        %v4236 = vadd.f32 %v4193, %v4205
        %v4237 = vadd.f32 %v4194, %v4205
        %v4238 = vadd.f32 %v4195, %v4205
        %v4239 = vadd.f32 %v4196, %v4205
        %v4240 = vadd.f32 %v4197, %v4205
        %v4241 = vadd.f32 %v4198, %v4205
        %v4242 = vadd.f32 %v4199, %v4205
        %v4243 = vmax.f32 %v4207, 0.0
        %v4244 = vmax.f32 %v4208, 0.0
        %v4245 = vmax.f32 %v4209, 0.0
        %v4246 = vmax.f32 %v4210, 0.0
        %v4247 = vmax.f32 %v4211, 0.0
        %v4248 = vmax.f32 %v4212, 0.0
        %v4249 = vmax.f32 %v4213, 0.0
        %v4250 = vmax.f32 %v4214, 0.0
        %v4251 = vmax.f32 %v4215, 0.0
        %v4252 = vmax.f32 %v4216, 0.0
        %v4253 = vmax.f32 %v4217, 0.0
        %v4254 = vmax.f32 %v4218, 0.0
        %v4255 = vmax.f32 %v4219, 0.0
        %v4256 = vmax.f32 %v4220, 0.0
        %v4257 = vmax.f32 %v4221, 0.0
        %v4258 = vmax.f32 %v4222, 0.0
        %v4259 = vmax.f32 %v4223, 0.0
        %v4260 = vmax.f32 %v4224, 0.0
        %v4261 = vmax.f32 %v4225, 0.0
        %v4262 = vmax.f32 %v4226, 0.0
        %v4263 = vmax.f32 %v4227, 0.0
        %v4264 = vmax.f32 %v4228, 0.0
        %v4265 = vmax.f32 %v4229, 0.0
        %v4266 = vmax.f32 %v4230, 0.0
        %v4267 = vmax.f32 %v4231, 0.0
        %v4268 = vmax.f32 %v4232, 0.0
        %v4269 = vmax.f32 %v4233, 0.0
        %v4270 = vmax.f32 %v4234, 0.0
        %v4271 = vmax.f32 %v4235, 0.0
        %v4272 = vmax.f32 %v4236, 0.0
        %v4273 = vmax.f32 %v4237, 0.0
        %v4274 = vmax.f32 %v4238, 0.0
        %v4275 = vmax.f32 %v4239, 0.0
        %v4276 = vmax.f32 %v4240, 0.0
        %v4277 = vmax.f32 %v4241, 0.0
        %v4278 = vmax.f32 %v4242, 0.0
        %v4279 = vld [vmem:[%s1] sm:$0xff]
        %v4280 = vld [vmem:[%s1 + $0x8] sm:$0xff]
        %v4281 = vld [vmem:[%s1 + $0x10] sm:$0xff]
        %v4282 = vld [vmem:[%s1 + $0x18] sm:$0xff]
        %v4283 = vld [vmem:[%s1 + $0x20] sm:$0xff]
        %v4284 = vld [vmem:[%s1 + $0x28] sm:$0xff]
        %v4285 = vld [vmem:[%s1 + $0x30] sm:$0xff]
        %v4286 = vld [vmem:[%s1 + $0x38] sm:$0xff]
        %v4287 = vld [vmem:[%s1 + $0x40] sm:$0xff]
        %v4288 = vld [vmem:[%s1 + $0x48] sm:$0xff]
        %v4289 = vld [vmem:[%s1 + $0x50] sm:$0xff]
        %v4290 = vld [vmem:[%s1 + $0x58] sm:$0xff]
        %v4291 = vld [vmem:[%s1 + $0x60] sm:$0xff]
        %v4292 = vld [vmem:[%s1 + $0x68] sm:$0xff]
        %v4293 = vld [vmem:[%s1 + $0x70] sm:$0xff]
        %v4294 = vld [vmem:[%s1 + $0x78] sm:$0xff]
        %v4295 = vld [vmem:[%s1 + $0x80] sm:$0xff]
        %v4296 = vld [vmem:[%s1 + $0x88] sm:$0xff]
        %v4297 = vld [vmem:[%s1 + $0x90] sm:$0xff]
        %v4298 = vld [vmem:[%s1 + $0x98] sm:$0xff]
        %v4299 = vld [vmem:[%s1 + $0xa0] sm:$0xff]
        %v4300 = vld [vmem:[%s1 + $0xa8] sm:$0xff]
        %v4301 = vld [vmem:[%s1 + $0xb0] sm:$0xff]
        %v4302 = vld [vmem:[%s1 + $0xb8] sm:$0xff]
        %v4303 = vld [vmem:[%s1 + $0xc0] sm:$0xff]
        %v4304 = vld [vmem:[%s1 + $0xc8] sm:$0xff]
        %v4305 = vld [vmem:[%s1 + $0xd0] sm:$0xff]
        %v4306 = vld [vmem:[%s1 + $0xd8] sm:$0xff]
        %v4307 = vld [vmem:[%s1 + $0xe0] sm:$0xff]
        %v4308 = vld [vmem:[%s1 + $0xe8] sm:$0xff]
        %v4309 = vld [vmem:[%s1 + $0xf0] sm:$0xff]
        %v4310 = vld [vmem:[%s1 + $0xf8] sm:$0xff]
        %v4311 = vld [vmem:[%s1 + $0x100] sm:$0xff]
        %v4312 = vld [vmem:[%s1 + $0x108] sm:$0xff]
        %v4313 = vld [vmem:[%s1 + $0x110] sm:$0xff]
        %v4314 = vld [vmem:[%s1 + $0x118] sm:$0xff]
        %4316 = vset.pattern.permute.xlu0 0
        %4317 = vperm.xlu0 %4316, %v4279
        %v4318 = vpop.permute.xlu0 %4317
        %4321 = vset.pattern.permute.xlu0 0
        %4322 = vperm.xlu0 %4321, %v4280
        %v4323 = vpop.permute.xlu0 %4322
        %4326 = vset.pattern.permute.xlu0 0
        %4327 = vperm.xlu0 %4326, %v4281
        %v4328 = vpop.permute.xlu0 %4327
        %4331 = vset.pattern.permute.xlu0 0
        %4332 = vperm.xlu0 %4331, %v4282
        %v4333 = vpop.permute.xlu0 %4332
        %4336 = vset.pattern.permute.xlu0 0
        %4337 = vperm.xlu0 %4336, %v4283
        %v4338 = vpop.permute.xlu0 %4337
        %4341 = vset.pattern.permute.xlu0 0
        %4342 = vperm.xlu0 %4341, %v4284
        %v4343 = vpop.permute.xlu0 %4342
        %4346 = vset.pattern.permute.xlu0 0
        %4347 = vperm.xlu0 %4346, %v4285
        %v4348 = vpop.permute.xlu0 %4347
        %4351 = vset.pattern.permute.xlu0 0
        %4352 = vperm.xlu0 %4351, %v4286
        %v4353 = vpop.permute.xlu0 %4352
        %4356 = vset.pattern.permute.xlu0 0
        %4357 = vperm.xlu0 %4356, %v4287
        %v4358 = vpop.permute.xlu0 %4357
        %4361 = vset.pattern.permute.xlu0 0
        %4362 = vperm.xlu0 %4361, %v4288
        %v4363 = vpop.permute.xlu0 %4362
        %4366 = vset.pattern.permute.xlu0 0
        %4367 = vperm.xlu0 %4366, %v4289
        %v4368 = vpop.permute.xlu0 %4367
        %4371 = vset.pattern.permute.xlu0 0
        %4372 = vperm.xlu0 %4371, %v4290
        %v4373 = vpop.permute.xlu0 %4372
        %4376 = vset.pattern.permute.xlu0 0
        %4377 = vperm.xlu0 %4376, %v4291
        %v4378 = vpop.permute.xlu0 %4377
        %4381 = vset.pattern.permute.xlu0 0
        %4382 = vperm.xlu0 %4381, %v4292
        %v4383 = vpop.permute.xlu0 %4382
        %4386 = vset.pattern.permute.xlu0 0
        %4387 = vperm.xlu0 %4386, %v4293
        %v4388 = vpop.permute.xlu0 %4387
        %4391 = vset.pattern.permute.xlu0 0
        %4392 = vperm.xlu0 %4391, %v4294
        %v4393 = vpop.permute.xlu0 %4392
        %4396 = vset.pattern.permute.xlu0 0
        %4397 = vperm.xlu0 %4396, %v4295
        %v4398 = vpop.permute.xlu0 %4397
        %4401 = vset.pattern.permute.xlu0 0
        %4402 = vperm.xlu0 %4401, %v4296
        %v4403 = vpop.permute.xlu0 %4402
        %4406 = vset.pattern.permute.xlu0 0
        %4407 = vperm.xlu0 %4406, %v4297
        %v4408 = vpop.permute.xlu0 %4407
        %4411 = vset.pattern.permute.xlu0 0
        %4412 = vperm.xlu0 %4411, %v4298
        %v4413 = vpop.permute.xlu0 %4412
        %4416 = vset.pattern.permute.xlu0 0
        %4417 = vperm.xlu0 %4416, %v4299
        %v4418 = vpop.permute.xlu0 %4417
        %4421 = vset.pattern.permute.xlu0 0
        %4422 = vperm.xlu0 %4421, %v4300
        %v4423 = vpop.permute.xlu0 %4422
        %4426 = vset.pattern.permute.xlu0 0
        %4427 = vperm.xlu0 %4426, %v4301
        %v4428 = vpop.permute.xlu0 %4427
        %4431 = vset.pattern.permute.xlu0 0
        %4432 = vperm.xlu0 %4431, %v4302
        %v4433 = vpop.permute.xlu0 %4432
        %4436 = vset.pattern.permute.xlu0 0
        %4437 = vperm.xlu0 %4436, %v4303
        %v4438 = vpop.permute.xlu0 %4437
        %4441 = vset.pattern.permute.xlu0 0
        %4442 = vperm.xlu0 %4441, %v4304
        %v4443 = vpop.permute.xlu0 %4442
        %4446 = vset.pattern.permute.xlu0 0
        %4447 = vperm.xlu0 %4446, %v4305
        %v4448 = vpop.permute.xlu0 %4447
        %4451 = vset.pattern.permute.xlu0 0
        %4452 = vperm.xlu0 %4451, %v4306
        %v4453 = vpop.permute.xlu0 %4452
        %4456 = vset.pattern.permute.xlu0 0
        %4457 = vperm.xlu0 %4456, %v4307
        %v4458 = vpop.permute.xlu0 %4457
        %4461 = vset.pattern.permute.xlu0 0
        %4462 = vperm.xlu0 %4461, %v4308
        %v4463 = vpop.permute.xlu0 %4462
        %4466 = vset.pattern.permute.xlu0 0
        %4467 = vperm.xlu0 %4466, %v4309
        %v4468 = vpop.permute.xlu0 %4467
        %4471 = vset.pattern.permute.xlu0 0
        %4472 = vperm.xlu0 %4471, %v4310
        %v4473 = vpop.permute.xlu0 %4472
        %4476 = vset.pattern.permute.xlu0 0
        %4477 = vperm.xlu0 %4476, %v4311
        %v4478 = vpop.permute.xlu0 %4477
        %4481 = vset.pattern.permute.xlu0 0
        %4482 = vperm.xlu0 %4481, %v4312
        %v4483 = vpop.permute.xlu0 %4482
        %4486 = vset.pattern.permute.xlu0 0
        %4487 = vperm.xlu0 %4486, %v4313
        %v4488 = vpop.permute.xlu0 %4487
        %4491 = vset.pattern.permute.xlu0 0
        %4492 = vperm.xlu0 %4491, %v4314
        %v4493 = vpop.permute.xlu0 %4492
        %v4495 = vmul.f32 %v4243, %v4318
        %v4496 = vmul.f32 %v4244, %v4323
        %v4497 = vmul.f32 %v4245, %v4328
        %v4498 = vmul.f32 %v4246, %v4333
        %v4499 = vmul.f32 %v4247, %v4338
        %v4500 = vmul.f32 %v4248, %v4343
        %v4501 = vmul.f32 %v4249, %v4348
        %v4502 = vmul.f32 %v4250, %v4353
        %v4503 = vmul.f32 %v4251, %v4358
        %v4504 = vmul.f32 %v4252, %v4363
        %v4505 = vmul.f32 %v4253, %v4368
        %v4506 = vmul.f32 %v4254, %v4373
        %v4507 = vmul.f32 %v4255, %v4378
        %v4508 = vmul.f32 %v4256, %v4383
        %v4509 = vmul.f32 %v4257, %v4388
        %v4510 = vmul.f32 %v4258, %v4393
        %v4511 = vmul.f32 %v4259, %v4398
        %v4512 = vmul.f32 %v4260, %v4403
        %v4513 = vmul.f32 %v4261, %v4408
        %v4514 = vmul.f32 %v4262, %v4413
        %v4515 = vmul.f32 %v4263, %v4418
        %v4516 = vmul.f32 %v4264, %v4423
        %v4517 = vmul.f32 %v4265, %v4428
        %v4518 = vmul.f32 %v4266, %v4433
        %v4519 = vmul.f32 %v4267, %v4438
        %v4520 = vmul.f32 %v4268, %v4443
        %v4521 = vmul.f32 %v4269, %v4448
        %v4522 = vmul.f32 %v4270, %v4453
        %v4523 = vmul.f32 %v4271, %v4458
        %v4524 = vmul.f32 %v4272, %v4463
        %v4525 = vmul.f32 %v4273, %v4468
        %v4526 = vmul.f32 %v4274, %v4473
        %v4527 = vmul.f32 %v4275, %v4478
        %v4528 = vmul.f32 %v4276, %v4483
        %v4529 = vmul.f32 %v4277, %v4488
        %v4530 = vmul.f32 %v4278, %v4493
        %v4531 = vpack.c.bf16 %v4496, %v4495
        %v4532 = vpack.c.bf16 %v4498, %v4497
        %v4533 = vpack.c.bf16 %v4500, %v4499
        %v4534 = vpack.c.bf16 %v4502, %v4501
        %v4535 = vpack.c.bf16 %v4504, %v4503
        %v4536 = vpack.c.bf16 %v4506, %v4505
        %v4537 = vpack.c.bf16 %v4508, %v4507
        %v4538 = vpack.c.bf16 %v4510, %v4509
        %v4539 = vpack.c.bf16 %v4512, %v4511
        %v4540 = vpack.c.bf16 %v4514, %v4513
        %v4541 = vpack.c.bf16 %v4516, %v4515
        %v4542 = vpack.c.bf16 %v4518, %v4517
        %v4543 = vpack.c.bf16 %v4520, %v4519
        %v4544 = vpack.c.bf16 %v4522, %v4521
        %v4545 = vpack.c.bf16 %v4524, %v4523
        %v4546 = vpack.c.bf16 %v4526, %v4525
        %v4547 = vpack.c.bf16 %v4528, %v4527
        %v4548 = vpack.c.bf16 %v4530, %v4529
        %v4567 = vunpack.c.l.b16 %v4531
        %v4568 = vunpack.c.h.b16 %v4531
        %v4569 = vunpack.c.l.b16 %v4532
        %v4570 = vunpack.c.h.b16 %v4532
        %v4571 = vunpack.c.l.b16 %v4533
        %v4572 = vunpack.c.h.b16 %v4533
        %v4573 = vunpack.c.l.b16 %v4534
        %v4574 = vunpack.c.h.b16 %v4534
        %v4575 = vunpack.c.l.b16 %v4535
        %v4576 = vunpack.c.h.b16 %v4535
        %v4577 = vunpack.c.l.b16 %v4536
        %v4578 = vunpack.c.h.b16 %v4536
        %v4579 = vunpack.c.l.b16 %v4537
        %v4580 = vunpack.c.h.b16 %v4537
        %v4581 = vunpack.c.l.b16 %v4538
        %v4582 = vunpack.c.h.b16 %v4538
        %v4583 = vunpack.c.l.b16 %v4539
        %v4584 = vunpack.c.h.b16 %v4539
        %v4585 = vunpack.c.l.b16 %v4540
        %v4586 = vunpack.c.h.b16 %v4540
        %v4587 = vunpack.c.l.b16 %v4541
        %v4588 = vunpack.c.h.b16 %v4541
        %v4589 = vunpack.c.l.b16 %v4542
        %v4590 = vunpack.c.h.b16 %v4542
        %v4591 = vunpack.c.l.b16 %v4543
        %v4592 = vunpack.c.h.b16 %v4543
        %v4593 = vunpack.c.l.b16 %v4544
        %v4594 = vunpack.c.h.b16 %v4544
        %v4595 = vunpack.c.l.b16 %v4545
        %v4596 = vunpack.c.h.b16 %v4545
        %v4597 = vunpack.c.l.b16 %v4546
        %v4598 = vunpack.c.h.b16 %v4546
        %v4599 = vunpack.c.l.b16 %v4547
        %v4600 = vunpack.c.h.b16 %v4547
        %v4601 = vunpack.c.l.b16 %v4548
        %v4602 = vunpack.c.h.b16 %v4548
        %v4603 = vpack.c.b16 %v4567, %v4567
        %v4604 = vpack.c.b16 %v4568, %v4568
        %v4605 = vpack.c.b16 %v4569, %v4569
        %v4606 = vpack.c.b16 %v4570, %v4570
        %v4607 = vpack.c.b16 %v4571, %v4571
        %v4608 = vpack.c.b16 %v4572, %v4572
        %v4609 = vpack.c.b16 %v4573, %v4573
        %v4610 = vpack.c.b16 %v4574, %v4574
        %v4611 = vpack.c.b16 %v4575, %v4575
        %v4612 = vpack.c.b16 %v4576, %v4576
        %v4613 = vpack.c.b16 %v4577, %v4577
        %v4614 = vpack.c.b16 %v4578, %v4578
        %v4615 = vpack.c.b16 %v4579, %v4579
        %v4616 = vpack.c.b16 %v4580, %v4580
        %v4617 = vpack.c.b16 %v4581, %v4581
        %v4618 = vpack.c.b16 %v4582, %v4582
        %v4619 = vpack.c.b16 %v4583, %v4583
        %v4620 = vpack.c.b16 %v4584, %v4584
        %v4621 = vpack.c.b16 %v4585, %v4585
        %v4622 = vpack.c.b16 %v4586, %v4586
        %v4623 = vpack.c.b16 %v4587, %v4587
        %v4624 = vpack.c.b16 %v4588, %v4588
        %v4625 = vpack.c.b16 %v4589, %v4589
        %v4626 = vpack.c.b16 %v4590, %v4590
        %v4627 = vpack.c.b16 %v4591, %v4591
        %v4628 = vpack.c.b16 %v4592, %v4592
        %v4629 = vpack.c.b16 %v4593, %v4593
        %v4630 = vpack.c.b16 %v4594, %v4594
        %v4631 = vpack.c.b16 %v4595, %v4595
        %v4632 = vpack.c.b16 %v4596, %v4596
        %v4633 = vpack.c.b16 %v4597, %v4597
        %v4634 = vpack.c.b16 %v4598, %v4598
        %v4635 = vpack.c.b16 %v4599, %v4599
        %v4636 = vpack.c.b16 %v4600, %v4600
        %v4637 = vpack.c.b16 %v4601, %v4601
        %v4638 = vpack.c.b16 %v4602, %v4602
        %vm4639 = vsmask.f32 5392
        %vm4640 = vmor %vm357, %vm4639
        %v4642 = vshrl.u32 %v4603, 16
        %v4644 = vrot.slane %v4642, 6
        %v4645 = vshll.u32 %v4603, 16
        %v4647 = vrot.slane %v4645, 7
        %v4648 = vor.u32 %v4644, %v4647
        %v4649 = vrot.slane %v4648, 4
        %v4651 = vshrl.u32 %v4604, 16
        %v4653 = vrot.slane %v4651, 6
        %v4654 = vshll.u32 %v4604, 16
        %v4656 = vrot.slane %v4654, 7
        %v4657 = vor.u32 %v4653, %v4656
        %v4658 = vsel %vm4640, %v4649, %v4657
        %v4659 = vrot.slane %v4657, 4
        %v4661 = vshrl.u32 %v4605, 16
        %v4663 = vrot.slane %v4661, 6
        %v4664 = vshll.u32 %v4605, 16
        %v4666 = vrot.slane %v4664, 7
        %v4667 = vor.u32 %v4663, %v4666
        %v4668 = vsel %vm4640, %v4659, %v4667
        %v4669 = vrot.slane %v4667, 4
        %v4671 = vshrl.u32 %v4606, 16
        %v4673 = vrot.slane %v4671, 6
        %v4674 = vshll.u32 %v4606, 16
        %v4676 = vrot.slane %v4674, 7
        %v4677 = vor.u32 %v4673, %v4676
        %v4678 = vsel %vm4640, %v4669, %v4677
        %v4679 = vrot.slane %v4677, 4
        %v4681 = vshrl.u32 %v4607, 16
        %v4683 = vrot.slane %v4681, 6
        %v4684 = vshll.u32 %v4607, 16
        %v4686 = vrot.slane %v4684, 7
        %v4687 = vor.u32 %v4683, %v4686
        %v4688 = vsel %vm4640, %v4679, %v4687
        %v4689 = vrot.slane %v4687, 4
        %v4691 = vshrl.u32 %v4608, 16
        %v4693 = vrot.slane %v4691, 6
        %v4694 = vshll.u32 %v4608, 16
        %v4696 = vrot.slane %v4694, 7
        %v4697 = vor.u32 %v4693, %v4696
        %v4698 = vsel %vm4640, %v4689, %v4697
        %v4699 = vrot.slane %v4697, 4
        %v4701 = vshrl.u32 %v4609, 16
        %v4703 = vrot.slane %v4701, 6
        %v4704 = vshll.u32 %v4609, 16
        %v4706 = vrot.slane %v4704, 7
        %v4707 = vor.u32 %v4703, %v4706
        %v4708 = vsel %vm4640, %v4699, %v4707
        %v4709 = vrot.slane %v4707, 4
        %v4711 = vshrl.u32 %v4610, 16
        %v4713 = vrot.slane %v4711, 6
        %v4714 = vshll.u32 %v4610, 16
        %v4716 = vrot.slane %v4714, 7
        %v4717 = vor.u32 %v4713, %v4716
        %v4718 = vsel %vm4640, %v4709, %v4717
        %v4719 = vrot.slane %v4717, 4
        %v4721 = vshrl.u32 %v4611, 16
        %v4723 = vrot.slane %v4721, 6
        %v4724 = vshll.u32 %v4611, 16
        %v4726 = vrot.slane %v4724, 7
        %v4727 = vor.u32 %v4723, %v4726
        %v4728 = vsel %vm4640, %v4719, %v4727
        %v4729 = vrot.slane %v4727, 4
        %v4731 = vshrl.u32 %v4612, 16
        %v4733 = vrot.slane %v4731, 6
        %v4734 = vshll.u32 %v4612, 16
        %v4736 = vrot.slane %v4734, 7
        %v4737 = vor.u32 %v4733, %v4736
        %v4738 = vsel %vm4640, %v4729, %v4737
        %v4739 = vrot.slane %v4737, 4
        %v4741 = vshrl.u32 %v4613, 16
        %v4743 = vrot.slane %v4741, 6
        %v4744 = vshll.u32 %v4613, 16
        %v4746 = vrot.slane %v4744, 7
        %v4747 = vor.u32 %v4743, %v4746
        %v4748 = vsel %vm4640, %v4739, %v4747
        %v4749 = vrot.slane %v4747, 4
        %v4751 = vshrl.u32 %v4614, 16
        %v4753 = vrot.slane %v4751, 6
        %v4754 = vshll.u32 %v4614, 16
        %v4756 = vrot.slane %v4754, 7
        %v4757 = vor.u32 %v4753, %v4756
        %v4758 = vsel %vm4640, %v4749, %v4757
        %v4759 = vrot.slane %v4757, 4
        %v4761 = vshrl.u32 %v4615, 16
        %v4763 = vrot.slane %v4761, 6
        %v4764 = vshll.u32 %v4615, 16
        %v4766 = vrot.slane %v4764, 7
        %v4767 = vor.u32 %v4763, %v4766
        %v4768 = vsel %vm4640, %v4759, %v4767
        %v4769 = vrot.slane %v4767, 4
        %v4771 = vshrl.u32 %v4616, 16
        %v4773 = vrot.slane %v4771, 6
        %v4774 = vshll.u32 %v4616, 16
        %v4776 = vrot.slane %v4774, 7
        %v4777 = vor.u32 %v4773, %v4776
        %v4778 = vsel %vm4640, %v4769, %v4777
        %v4779 = vrot.slane %v4777, 4
        %v4781 = vshrl.u32 %v4617, 16
        %v4783 = vrot.slane %v4781, 6
        %v4784 = vshll.u32 %v4617, 16
        %v4786 = vrot.slane %v4784, 7
        %v4787 = vor.u32 %v4783, %v4786
        %v4788 = vsel %vm4640, %v4779, %v4787
        %v4789 = vrot.slane %v4787, 4
        %v4791 = vshrl.u32 %v4618, 16
        %v4793 = vrot.slane %v4791, 6
        %v4794 = vshll.u32 %v4618, 16
        %v4796 = vrot.slane %v4794, 7
        %v4797 = vor.u32 %v4793, %v4796
        %v4798 = vsel %vm4640, %v4789, %v4797
        %v4799 = vrot.slane %v4797, 4
        %v4801 = vshrl.u32 %v4619, 16
        %v4803 = vrot.slane %v4801, 6
        %v4804 = vshll.u32 %v4619, 16
        %v4806 = vrot.slane %v4804, 7
        %v4807 = vor.u32 %v4803, %v4806
        %v4808 = vsel %vm4640, %v4799, %v4807
        %v4809 = vrot.slane %v4807, 4
        %v4811 = vshrl.u32 %v4620, 16
        %v4813 = vrot.slane %v4811, 6
        %v4814 = vshll.u32 %v4620, 16
        %v4816 = vrot.slane %v4814, 7
        %v4817 = vor.u32 %v4813, %v4816
        %v4818 = vsel %vm4640, %v4809, %v4817
        %v4819 = vrot.slane %v4817, 4
        %v4821 = vshrl.u32 %v4621, 16
        %v4823 = vrot.slane %v4821, 6
        %v4824 = vshll.u32 %v4621, 16
        %v4826 = vrot.slane %v4824, 7
        %v4827 = vor.u32 %v4823, %v4826
        %v4828 = vsel %vm4640, %v4819, %v4827
        %v4829 = vrot.slane %v4827, 4
        %v4831 = vshrl.u32 %v4622, 16
        %v4833 = vrot.slane %v4831, 6
        %v4834 = vshll.u32 %v4622, 16
        %v4836 = vrot.slane %v4834, 7
        %v4837 = vor.u32 %v4833, %v4836
        %v4838 = vsel %vm4640, %v4829, %v4837
        %v4839 = vrot.slane %v4837, 4
        %v4841 = vshrl.u32 %v4623, 16
        %v4843 = vrot.slane %v4841, 6
        %v4844 = vshll.u32 %v4623, 16
        %v4846 = vrot.slane %v4844, 7
        %v4847 = vor.u32 %v4843, %v4846
        %v4848 = vsel %vm4640, %v4839, %v4847
        %v4849 = vrot.slane %v4847, 4
        %v4851 = vshrl.u32 %v4624, 16
        %v4853 = vrot.slane %v4851, 6
        %v4854 = vshll.u32 %v4624, 16
        %v4856 = vrot.slane %v4854, 7
        %v4857 = vor.u32 %v4853, %v4856
        %v4858 = vsel %vm4640, %v4849, %v4857
        %v4859 = vrot.slane %v4857, 4
        %v4861 = vshrl.u32 %v4625, 16
        %v4863 = vrot.slane %v4861, 6
        %v4864 = vshll.u32 %v4625, 16
        %v4866 = vrot.slane %v4864, 7
        %v4867 = vor.u32 %v4863, %v4866
        %v4868 = vsel %vm4640, %v4859, %v4867
        %v4869 = vrot.slane %v4867, 4
        %v4871 = vshrl.u32 %v4626, 16
        %v4873 = vrot.slane %v4871, 6
        %v4874 = vshll.u32 %v4626, 16
        %v4876 = vrot.slane %v4874, 7
        %v4877 = vor.u32 %v4873, %v4876
        %v4878 = vsel %vm4640, %v4869, %v4877
        %v4879 = vrot.slane %v4877, 4
        %v4881 = vshrl.u32 %v4627, 16
        %v4883 = vrot.slane %v4881, 6
        %v4884 = vshll.u32 %v4627, 16
        %v4886 = vrot.slane %v4884, 7
        %v4887 = vor.u32 %v4883, %v4886
        %v4888 = vsel %vm4640, %v4879, %v4887
        %v4889 = vrot.slane %v4887, 4
        %v4891 = vshrl.u32 %v4628, 16
        %v4893 = vrot.slane %v4891, 6
        %v4894 = vshll.u32 %v4628, 16
        %v4896 = vrot.slane %v4894, 7
        %v4897 = vor.u32 %v4893, %v4896
        %v4898 = vsel %vm4640, %v4889, %v4897
        %v4899 = vrot.slane %v4897, 4
        %v4901 = vshrl.u32 %v4629, 16
        %v4903 = vrot.slane %v4901, 6
        %v4904 = vshll.u32 %v4629, 16
        %v4906 = vrot.slane %v4904, 7
        %v4907 = vor.u32 %v4903, %v4906
        %v4908 = vsel %vm4640, %v4899, %v4907
        %v4909 = vrot.slane %v4907, 4
        %v4911 = vshrl.u32 %v4630, 16
        %v4913 = vrot.slane %v4911, 6
        %v4914 = vshll.u32 %v4630, 16
        %v4916 = vrot.slane %v4914, 7
        %v4917 = vor.u32 %v4913, %v4916
        %v4918 = vsel %vm4640, %v4909, %v4917
        %v4919 = vrot.slane %v4917, 4
        %v4921 = vshrl.u32 %v4631, 16
        %v4923 = vrot.slane %v4921, 6
        %v4924 = vshll.u32 %v4631, 16
        %v4926 = vrot.slane %v4924, 7
        %v4927 = vor.u32 %v4923, %v4926
        %v4928 = vsel %vm4640, %v4919, %v4927
        %v4929 = vrot.slane %v4927, 4
        %v4931 = vshrl.u32 %v4632, 16
        %v4933 = vrot.slane %v4931, 6
        %v4934 = vshll.u32 %v4632, 16
        %v4936 = vrot.slane %v4934, 7
        %v4937 = vor.u32 %v4933, %v4936
        %v4938 = vsel %vm4640, %v4929, %v4937
        %v4939 = vrot.slane %v4937, 4
        %v4941 = vshrl.u32 %v4633, 16
        %v4943 = vrot.slane %v4941, 6
        %v4944 = vshll.u32 %v4633, 16
        %v4946 = vrot.slane %v4944, 7
        %v4947 = vor.u32 %v4943, %v4946
        %v4948 = vsel %vm4640, %v4939, %v4947
        %v4949 = vrot.slane %v4947, 4
        %v4951 = vshrl.u32 %v4634, 16
        %v4953 = vrot.slane %v4951, 6
        %v4954 = vshll.u32 %v4634, 16
        %v4956 = vrot.slane %v4954, 7
        %v4957 = vor.u32 %v4953, %v4956
        %v4958 = vsel %vm4640, %v4949, %v4957
        %v4959 = vrot.slane %v4957, 4
        %v4961 = vshrl.u32 %v4635, 16
        %v4963 = vrot.slane %v4961, 6
        %v4964 = vshll.u32 %v4635, 16
        %v4966 = vrot.slane %v4964, 7
        %v4967 = vor.u32 %v4963, %v4966
        %v4968 = vsel %vm4640, %v4959, %v4967
        %v4969 = vrot.slane %v4967, 4
        %v4971 = vshrl.u32 %v4636, 16
        %v4973 = vrot.slane %v4971, 6
        %v4974 = vshll.u32 %v4636, 16
        %v4976 = vrot.slane %v4974, 7
        %v4977 = vor.u32 %v4973, %v4976
        %v4978 = vsel %vm4640, %v4969, %v4977
        %v4979 = vrot.slane %v4977, 4
        %v4981 = vshrl.u32 %v4637, 16
        %v4983 = vrot.slane %v4981, 6
        %v4984 = vshll.u32 %v4637, 16
        %v4986 = vrot.slane %v4984, 7
        %v4987 = vor.u32 %v4983, %v4986
        %v4988 = vsel %vm4640, %v4979, %v4987
        %v4989 = vrot.slane %v4987, 4
        %v4991 = vshrl.u32 %v4638, 16
        %v4993 = vrot.slane %v4991, 6
        %v4994 = vshll.u32 %v4638, 16
        %v4996 = vrot.slane %v4994, 7
        %v4997 = vor.u32 %v4993, %v4996
        %v4998 = vsel %vm4640, %v4989, %v4997
        %v4999 = vrot.slane %v4997, 4
        %vm5037 = vcmask 1043457
        %vm5038 = vsmask.f32 7942
        %vm5039 = vmand %vm5037, %vm5038
        %v5040 = vld [vmem:[#allocation2 + $0x8] sm:$0xe]
        %v5041 = vsel %vm5039, %v4648, %v5040
        %5042 = vst [vmem:[#allocation2 + $0x8] sm:$0xe] %v5041
        %5043 = vst [vmem:[#allocation2 + $0xc] sm:$0xf] %v4658
        %5044 = vst [vmem:[#allocation2 + $0x10] sm:$0xf] %v4668
        %5045 = vst [vmem:[#allocation2 + $0x14] sm:$0xf] %v4678
        %5046 = vst [vmem:[#allocation2 + $0x18] sm:$0xf] %v4688
        %5047 = vst [vmem:[#allocation2 + $0x1c] sm:$0xf] %v4698
        %5048 = vst [vmem:[#allocation2 + $0x20] sm:$0xf] %v4708
        %5049 = vst [vmem:[#allocation2 + $0x24] sm:$0xf] %v4718
        %5050 = vst [vmem:[#allocation2 + $0x28] sm:$0xf] %v4728
        %5051 = vst [vmem:[#allocation2 + $0x2c] sm:$0xf] %v4738
        %5052 = vst [vmem:[#allocation2 + $0x30] sm:$0xf] %v4748
        %5053 = vst [vmem:[#allocation2 + $0x34] sm:$0xf] %v4758
        %5054 = vst [vmem:[#allocation2 + $0x38] sm:$0xf] %v4768
        %5055 = vst [vmem:[#allocation2 + $0x3c] sm:$0xf] %v4778
        %5056 = vst [vmem:[#allocation2 + $0x40] sm:$0xf] %v4788
        %5057 = vst [vmem:[#allocation2 + $0x44] sm:$0xf] %v4798
        %5058 = vst [vmem:[#allocation2 + $0x48] sm:$0xf] %v4808
        %5059 = vst [vmem:[#allocation2 + $0x4c] sm:$0xf] %v4818
        %5060 = vst [vmem:[#allocation2 + $0x50] sm:$0xf] %v4828
        %5061 = vst [vmem:[#allocation2 + $0x54] sm:$0xf] %v4838
        %5062 = vst [vmem:[#allocation2 + $0x58] sm:$0xf] %v4848
        %5063 = vst [vmem:[#allocation2 + $0x5c] sm:$0xf] %v4858
        %5064 = vst [vmem:[#allocation2 + $0x60] sm:$0xf] %v4868
        %5065 = vst [vmem:[#allocation2 + $0x64] sm:$0xf] %v4878
        %5066 = vst [vmem:[#allocation2 + $0x68] sm:$0xf] %v4888
        %5067 = vst [vmem:[#allocation2 + $0x6c] sm:$0xf] %v4898
        %5068 = vst [vmem:[#allocation2 + $0x70] sm:$0xf] %v4908
        %5069 = vst [vmem:[#allocation2 + $0x74] sm:$0xf] %v4918
        %5070 = vst [vmem:[#allocation2 + $0x78] sm:$0xf] %v4928
        %5071 = vst [vmem:[#allocation2 + $0x7c] sm:$0xf] %v4938
        %5072 = vst [vmem:[#allocation2 + $0x80] sm:$0xf] %v4948
        %5073 = vst [vmem:[#allocation2 + $0x84] sm:$0xf] %v4958
        %5074 = vst [vmem:[#allocation2 + $0x88] sm:$0xf] %v4968
        %5075 = vst [vmem:[#allocation2 + $0x8c] sm:$0xf] %v4978
        %5076 = vst [vmem:[#allocation2 + $0x90] sm:$0xf] %v4988
        %5077 = vst [vmem:[#allocation2 + $0x94] sm:$0xf] %v4998
        %v5078 = vld [vmem:[#allocation2 + $0x98] sm:$0x3]
        %v5079 = vsel %vm358, %v4999, %v5078
        %5080 = vst [vmem:[#allocation2 + $0x98] sm:$0x3] %v5079
        %v5081 = vld [vmem:[#allocation2] sm:$0xf]
        %v5082 = vld [vmem:[#allocation2 + $0x4] sm:$0xf]
        %v5083 = vld [vmem:[#allocation2 + $0x8] sm:$0xf]
        %v5084 = vld [vmem:[#allocation2 + $0xc] sm:$0xf]
        %v5085 = vld [vmem:[#allocation2 + $0x10] sm:$0xf]
        %v5086 = vld [vmem:[#allocation2 + $0x14] sm:$0xf]
        %v5087 = vld [vmem:[#allocation2 + $0x18] sm:$0xf]
        %v5088 = vld [vmem:[#allocation2 + $0x1c] sm:$0xf]
        %v5089 = vld [vmem:[#allocation2 + $0x20] sm:$0xf]
        %v5090 = vld [vmem:[#allocation2 + $0x24] sm:$0xf]
        %v5091 = vld [vmem:[#allocation2 + $0x28] sm:$0xf]
        %v5092 = vld [vmem:[#allocation2 + $0x2c] sm:$0xf]
        %v5093 = vld [vmem:[#allocation2 + $0x30] sm:$0xf]
        %v5094 = vld [vmem:[#allocation2 + $0x34] sm:$0xf]
        %v5095 = vld [vmem:[#allocation2 + $0x38] sm:$0xf]
        %v5096 = vld [vmem:[#allocation2 + $0x3c] sm:$0xf]
        %v5097 = vld [vmem:[#allocation2 + $0x40] sm:$0xf]
        %v5098 = vld [vmem:[#allocation2 + $0x44] sm:$0xf]
        %v5099 = vld [vmem:[#allocation2 + $0x48] sm:$0xf]
        %v5100 = vld [vmem:[#allocation2 + $0x4c] sm:$0xf]
        %v5101 = vld [vmem:[#allocation2 + $0x50] sm:$0xf]
        %v5102 = vld [vmem:[#allocation2 + $0x54] sm:$0xf]
        %v5103 = vld [vmem:[#allocation2 + $0x58] sm:$0xf]
        %v5104 = vld [vmem:[#allocation2 + $0x5c] sm:$0xf]
        %v5105 = vld [vmem:[#allocation2 + $0x60] sm:$0xf]
        %v5106 = vld [vmem:[#allocation2 + $0x64] sm:$0xf]
        %v5107 = vld [vmem:[#allocation2 + $0x68] sm:$0xf]
        %v5108 = vld [vmem:[#allocation2 + $0x6c] sm:$0xf]
        %v5109 = vld [vmem:[#allocation2 + $0x70] sm:$0xf]
        %v5110 = vld [vmem:[#allocation2 + $0x74] sm:$0xf]
        %v5111 = vld [vmem:[#allocation2 + $0x78] sm:$0xf]
        %v5112 = vld [vmem:[#allocation2 + $0x7c] sm:$0xf]
        %v5113 = vld [vmem:[#allocation2 + $0x80] sm:$0xf]
        %v5114 = vld [vmem:[#allocation2 + $0x84] sm:$0xf]
        %v5115 = vld [vmem:[#allocation2 + $0x88] sm:$0xf]
        %v5116 = vld [vmem:[#allocation2 + $0x8c] sm:$0xf]
        %v5153 = vunpack.c.l.b16 %v5081
        %v5154 = vunpack.c.l.b16 %v5082
        %v5155 = vunpack.c.l.b16 %v5083
        %v5156 = vunpack.c.l.b16 %v5084
        %v5157 = vunpack.c.l.b16 %v5085
        %v5158 = vunpack.c.l.b16 %v5086
        %v5159 = vunpack.c.l.b16 %v5087
        %v5160 = vunpack.c.l.b16 %v5088
        %v5161 = vunpack.c.l.b16 %v5089
        %v5162 = vunpack.c.l.b16 %v5090
        %v5163 = vunpack.c.l.b16 %v5091
        %v5164 = vunpack.c.l.b16 %v5092
        %v5165 = vunpack.c.l.b16 %v5093
        %v5166 = vunpack.c.l.b16 %v5094
        %v5167 = vunpack.c.l.b16 %v5095
        %v5168 = vunpack.c.l.b16 %v5096
        %v5169 = vunpack.c.l.b16 %v5097
        %v5170 = vunpack.c.l.b16 %v5098
        %v5171 = vunpack.c.l.b16 %v5099
        %v5172 = vunpack.c.l.b16 %v5100
        %v5173 = vunpack.c.l.b16 %v5101
        %v5174 = vunpack.c.l.b16 %v5102
        %v5175 = vunpack.c.l.b16 %v5103
        %v5176 = vunpack.c.l.b16 %v5104
        %v5177 = vunpack.c.l.b16 %v5105
        %v5178 = vunpack.c.l.b16 %v5106
        %v5179 = vunpack.c.l.b16 %v5107
        %v5180 = vunpack.c.l.b16 %v5108
        %v5181 = vunpack.c.l.b16 %v5109
        %v5182 = vunpack.c.l.b16 %v5110
        %v5183 = vunpack.c.l.b16 %v5111
        %v5184 = vunpack.c.l.b16 %v5112
        %v5185 = vunpack.c.l.b16 %v5113
        %v5186 = vunpack.c.l.b16 %v5114
        %v5187 = vunpack.c.l.b16 %v5115
        %v5188 = vunpack.c.l.b16 %v5116
        %v5189 = vpack.c.b16 %v5154, %v5153
        %v5190 = vpack.c.b16 %v5156, %v5155
        %v5191 = vpack.c.b16 %v5158, %v5157
        %v5192 = vpack.c.b16 %v5160, %v5159
        %v5193 = vpack.c.b16 %v5162, %v5161
        %v5194 = vpack.c.b16 %v5164, %v5163
        %v5195 = vpack.c.b16 %v5166, %v5165
        %v5196 = vpack.c.b16 %v5168, %v5167
        %v5197 = vpack.c.b16 %v5170, %v5169
        %v5198 = vpack.c.b16 %v5172, %v5171
        %v5199 = vpack.c.b16 %v5174, %v5173
        %v5200 = vpack.c.b16 %v5176, %v5175
        %v5201 = vpack.c.b16 %v5178, %v5177
        %v5202 = vpack.c.b16 %v5180, %v5179
        %v5203 = vpack.c.b16 %v5182, %v5181
        %v5204 = vpack.c.b16 %v5184, %v5183
        %v5205 = vpack.c.b16 %v5186, %v5185
        %v5206 = vpack.c.b16 %v5188, %v5187
        %5225 = vst [vmem:[#allocation3] sm:$0xff] %v5189
        %5226 = vst [vmem:[#allocation3 + $0x48] sm:$0xff] %v5190
        %5227 = vst [vmem:[#allocation3 + $0x90] sm:$0xff] %v5191
        %5228 = vst [vmem:[#allocation3 + $0xd8] sm:$0xff] %v5192
        %5229 = vst [vmem:[#allocation3 + $0x120] sm:$0xff] %v5193
        %5230 = vst [vmem:[#allocation3 + $0x168] sm:$0xff] %v5194
        %5231 = vst [vmem:[#allocation3 + $0x1b0] sm:$0xff] %v5195
        %5232 = vst [vmem:[#allocation3 + $0x1f8] sm:$0xff] %v5196
        %5233 = vst [vmem:[#allocation3 + $0x240] sm:$0xff] %v5197
        %5234 = vst [vmem:[#allocation3 + $0x288] sm:$0xff] %v5198
        %5235 = vst [vmem:[#allocation3 + $0x2d0] sm:$0xff] %v5199
        %5236 = vst [vmem:[#allocation3 + $0x318] sm:$0xff] %v5200
        %5237 = vst [vmem:[#allocation3 + $0x360] sm:$0xff] %v5201
        %5238 = vst [vmem:[#allocation3 + $0x3a8] sm:$0xff] %v5202
        %5239 = vst [vmem:[#allocation3 + $0x3f0] sm:$0xff] %v5203
        %5240 = vst [vmem:[#allocation3 + $0x438] sm:$0xff] %v5204
        %5241 = vst [vmem:[#allocation3 + $0x480] sm:$0xff] %v5205
        %5242 = vst [vmem:[#allocation3 + $0x4c8] sm:$0xff] %v5206
        %v5243 = vld [vmem:[#allocation2] sm:$0xf]
        %v5244 = vld [vmem:[#allocation2 + $0x4] sm:$0xf]
        %v5245 = vld [vmem:[#allocation2 + $0x8] sm:$0xf]
        %v5246 = vld [vmem:[#allocation2 + $0xc] sm:$0xf]
        %v5247 = vld [vmem:[#allocation2 + $0x10] sm:$0xf]
        %v5248 = vld [vmem:[#allocation2 + $0x14] sm:$0xf]
        %v5249 = vld [vmem:[#allocation2 + $0x18] sm:$0xf]
        %v5250 = vld [vmem:[#allocation2 + $0x1c] sm:$0xf]
        %v5251 = vld [vmem:[#allocation2 + $0x20] sm:$0xf]
        %v5252 = vld [vmem:[#allocation2 + $0x24] sm:$0xf]
        %v5253 = vld [vmem:[#allocation2 + $0x28] sm:$0xf]
        %v5254 = vld [vmem:[#allocation2 + $0x2c] sm:$0xf]
        %v5255 = vld [vmem:[#allocation2 + $0x30] sm:$0xf]
        %v5256 = vld [vmem:[#allocation2 + $0x34] sm:$0xf]
        %v5257 = vld [vmem:[#allocation2 + $0x38] sm:$0xf]
        %v5258 = vld [vmem:[#allocation2 + $0x3c] sm:$0xf]
        %v5259 = vld [vmem:[#allocation2 + $0x40] sm:$0xf]
        %v5260 = vld [vmem:[#allocation2 + $0x44] sm:$0xf]
        %v5261 = vld [vmem:[#allocation2 + $0x48] sm:$0xf]
        %v5262 = vld [vmem:[#allocation2 + $0x4c] sm:$0xf]
        %v5263 = vld [vmem:[#allocation2 + $0x50] sm:$0xf]
        %v5264 = vld [vmem:[#allocation2 + $0x54] sm:$0xf]
        %v5265 = vld [vmem:[#allocation2 + $0x58] sm:$0xf]
        %v5266 = vld [vmem:[#allocation2 + $0x5c] sm:$0xf]
        %v5267 = vld [vmem:[#allocation2 + $0x60] sm:$0xf]
        %v5268 = vld [vmem:[#allocation2 + $0x64] sm:$0xf]
        %v5269 = vld [vmem:[#allocation2 + $0x68] sm:$0xf]
        %v5270 = vld [vmem:[#allocation2 + $0x6c] sm:$0xf]
        %v5271 = vld [vmem:[#allocation2 + $0x70] sm:$0xf]
        %v5272 = vld [vmem:[#allocation2 + $0x74] sm:$0xf]
        %v5273 = vld [vmem:[#allocation2 + $0x78] sm:$0xf]
        %v5274 = vld [vmem:[#allocation2 + $0x7c] sm:$0xf]
        %v5275 = vld [vmem:[#allocation2 + $0x80] sm:$0xf]
        %v5276 = vld [vmem:[#allocation2 + $0x84] sm:$0xf]
        %v5277 = vld [vmem:[#allocation2 + $0x88] sm:$0xf]
        %v5278 = vld [vmem:[#allocation2 + $0x8c] sm:$0xf]
        %v5279 = vld [vmem:[#allocation2 + $0x90] sm:$0x1]
        %v5317 = vunpack.c.l.b16 %v5243
        %v5318 = vunpack.c.l.b16 %v5244
        %v5319 = vunpack.c.l.b16 %v5245
        %v5320 = vunpack.c.l.b16 %v5246
        %v5321 = vunpack.c.l.b16 %v5247
        %v5322 = vunpack.c.l.b16 %v5248
        %v5323 = vunpack.c.l.b16 %v5249
        %v5324 = vunpack.c.l.b16 %v5250
        %v5325 = vunpack.c.l.b16 %v5251
        %v5326 = vunpack.c.l.b16 %v5252
        %v5327 = vunpack.c.l.b16 %v5253
        %v5328 = vunpack.c.l.b16 %v5254
        %v5329 = vunpack.c.l.b16 %v5255
        %v5330 = vunpack.c.l.b16 %v5256
        %v5331 = vunpack.c.l.b16 %v5257
        %v5332 = vunpack.c.l.b16 %v5258
        %v5333 = vunpack.c.l.b16 %v5259
        %v5334 = vunpack.c.l.b16 %v5260
        %v5335 = vunpack.c.l.b16 %v5261
        %v5336 = vunpack.c.l.b16 %v5262
        %v5337 = vunpack.c.l.b16 %v5263
        %v5338 = vunpack.c.l.b16 %v5264
        %v5339 = vunpack.c.l.b16 %v5265
        %v5340 = vunpack.c.l.b16 %v5266
        %v5341 = vunpack.c.l.b16 %v5267
        %v5342 = vunpack.c.l.b16 %v5268
        %v5343 = vunpack.c.l.b16 %v5269
        %v5344 = vunpack.c.l.b16 %v5270
        %v5345 = vunpack.c.l.b16 %v5271
        %v5346 = vunpack.c.l.b16 %v5272
        %v5347 = vunpack.c.l.b16 %v5273
        %v5348 = vunpack.c.l.b16 %v5274
        %v5349 = vunpack.c.l.b16 %v5275
        %v5350 = vunpack.c.l.b16 %v5276
        %v5351 = vunpack.c.l.b16 %v5277
        %v5352 = vunpack.c.l.b16 %v5278
        %v5353 = vunpack.c.l.b16 %v5279
        %v5354 = vpack.c.b16 %v5318, %v5317
        %v5355 = vpack.c.b16 %v5320, %v5319
        %v5356 = vpack.c.b16 %v5322, %v5321
        %v5357 = vpack.c.b16 %v5324, %v5323
        %v5358 = vpack.c.b16 %v5326, %v5325
        %v5359 = vpack.c.b16 %v5328, %v5327
        %v5360 = vpack.c.b16 %v5330, %v5329
        %v5361 = vpack.c.b16 %v5332, %v5331
        %v5362 = vpack.c.b16 %v5334, %v5333
        %v5363 = vpack.c.b16 %v5336, %v5335
        %v5364 = vpack.c.b16 %v5338, %v5337
        %v5365 = vpack.c.b16 %v5340, %v5339
        %v5366 = vpack.c.b16 %v5342, %v5341
        %v5367 = vpack.c.b16 %v5344, %v5343
        %v5368 = vpack.c.b16 %v5346, %v5345
        %v5369 = vpack.c.b16 %v5348, %v5347
        %v5370 = vpack.c.b16 %v5350, %v5349
        %v5371 = vpack.c.b16 %v5352, %v5351
        %v5372 = vpack.c.b16 %v5353, %v5353
        %v5374 = vshrl.u32 %v5354, 16
        %v5376 = vshll.u32 %v5354, 16
        %v5378 = vrot.slane %v5376, 1
        %v5379 = vor.u32 %v5374, %v5378
        %v5381 = vshll.u32 %v5355, 16
        %v5383 = vrot.slane %v5381, 1
        %v5384 = vsel %vm657, %v5379, %v5383
        %v5385 = vshrl.u32 %v5355, 16
        %v5387 = vor.u32 %v5385, %v5383
        %v5389 = vshll.u32 %v5356, 16
        %v5391 = vrot.slane %v5389, 1
        %v5392 = vsel %vm657, %v5387, %v5391
        %v5393 = vshrl.u32 %v5356, 16
        %v5395 = vor.u32 %v5393, %v5391
        %v5397 = vshll.u32 %v5357, 16
        %v5399 = vrot.slane %v5397, 1
        %v5400 = vsel %vm657, %v5395, %v5399
        %v5401 = vshrl.u32 %v5357, 16
        %v5403 = vor.u32 %v5401, %v5399
        %v5405 = vshll.u32 %v5358, 16
        %v5407 = vrot.slane %v5405, 1
        %v5408 = vsel %vm657, %v5403, %v5407
        %v5409 = vshrl.u32 %v5358, 16
        %v5411 = vor.u32 %v5409, %v5407
        %v5413 = vshll.u32 %v5359, 16
        %v5415 = vrot.slane %v5413, 1
        %v5416 = vsel %vm657, %v5411, %v5415
        %v5417 = vshrl.u32 %v5359, 16
        %v5419 = vor.u32 %v5417, %v5415
        %v5421 = vshll.u32 %v5360, 16
        %v5423 = vrot.slane %v5421, 1
        %v5424 = vsel %vm657, %v5419, %v5423
        %v5425 = vshrl.u32 %v5360, 16
        %v5427 = vor.u32 %v5425, %v5423
        %v5429 = vshll.u32 %v5361, 16
        %v5431 = vrot.slane %v5429, 1
        %v5432 = vsel %vm657, %v5427, %v5431
        %v5433 = vshrl.u32 %v5361, 16
        %v5435 = vor.u32 %v5433, %v5431
        %v5437 = vshll.u32 %v5362, 16
        %v5439 = vrot.slane %v5437, 1
        %v5440 = vsel %vm657, %v5435, %v5439
        %v5441 = vshrl.u32 %v5362, 16
        %v5443 = vor.u32 %v5441, %v5439
        %v5445 = vshll.u32 %v5363, 16
        %v5447 = vrot.slane %v5445, 1
        %v5448 = vsel %vm657, %v5443, %v5447
        %v5449 = vshrl.u32 %v5363, 16
        %v5451 = vor.u32 %v5449, %v5447
        %v5453 = vshll.u32 %v5364, 16
        %v5455 = vrot.slane %v5453, 1
        %v5456 = vsel %vm657, %v5451, %v5455
        %v5457 = vshrl.u32 %v5364, 16
        %v5459 = vor.u32 %v5457, %v5455
        %v5461 = vshll.u32 %v5365, 16
        %v5463 = vrot.slane %v5461, 1
        %v5464 = vsel %vm657, %v5459, %v5463
        %v5465 = vshrl.u32 %v5365, 16
        %v5467 = vor.u32 %v5465, %v5463
        %v5469 = vshll.u32 %v5366, 16
        %v5471 = vrot.slane %v5469, 1
        %v5472 = vsel %vm657, %v5467, %v5471
        %v5473 = vshrl.u32 %v5366, 16
        %v5475 = vor.u32 %v5473, %v5471
        %v5477 = vshll.u32 %v5367, 16
        %v5479 = vrot.slane %v5477, 1
        %v5480 = vsel %vm657, %v5475, %v5479
        %v5481 = vshrl.u32 %v5367, 16
        %v5483 = vor.u32 %v5481, %v5479
        %v5485 = vshll.u32 %v5368, 16
        %v5487 = vrot.slane %v5485, 1
        %v5488 = vsel %vm657, %v5483, %v5487
        %v5489 = vshrl.u32 %v5368, 16
        %v5491 = vor.u32 %v5489, %v5487
        %v5493 = vshll.u32 %v5369, 16
        %v5495 = vrot.slane %v5493, 1
        %v5496 = vsel %vm657, %v5491, %v5495
        %v5497 = vshrl.u32 %v5369, 16
        %v5499 = vor.u32 %v5497, %v5495
        %v5501 = vshll.u32 %v5370, 16
        %v5503 = vrot.slane %v5501, 1
        %v5504 = vsel %vm657, %v5499, %v5503
        %v5505 = vshrl.u32 %v5370, 16
        %v5507 = vor.u32 %v5505, %v5503
        %v5509 = vshll.u32 %v5371, 16
        %v5511 = vrot.slane %v5509, 1
        %v5512 = vsel %vm657, %v5507, %v5511
        %v5513 = vshrl.u32 %v5371, 16
        %v5515 = vor.u32 %v5513, %v5511
        %v5517 = vshll.u32 %v5372, 16
        %v5519 = vrot.slane %v5517, 1
        %v5520 = vsel %vm657, %v5515, %v5519
        %5539 = vst [vmem:[#allocation3 + $0x8] sm:$0xff] %v5384
        %5540 = vst [vmem:[#allocation3 + $0x50] sm:$0xff] %v5392
        %5541 = vst [vmem:[#allocation3 + $0x98] sm:$0xff] %v5400
        %5542 = vst [vmem:[#allocation3 + $0xe0] sm:$0xff] %v5408
        %5543 = vst [vmem:[#allocation3 + $0x128] sm:$0xff] %v5416
        %5544 = vst [vmem:[#allocation3 + $0x170] sm:$0xff] %v5424
        %5545 = vst [vmem:[#allocation3 + $0x1b8] sm:$0xff] %v5432
        %5546 = vst [vmem:[#allocation3 + $0x200] sm:$0xff] %v5440
        %5547 = vst [vmem:[#allocation3 + $0x248] sm:$0xff] %v5448
        %5548 = vst [vmem:[#allocation3 + $0x290] sm:$0xff] %v5456
        %5549 = vst [vmem:[#allocation3 + $0x2d8] sm:$0xff] %v5464
        %5550 = vst [vmem:[#allocation3 + $0x320] sm:$0xff] %v5472
        %5551 = vst [vmem:[#allocation3 + $0x368] sm:$0xff] %v5480
        %5552 = vst [vmem:[#allocation3 + $0x3b0] sm:$0xff] %v5488
        %5553 = vst [vmem:[#allocation3 + $0x3f8] sm:$0xff] %v5496
        %5554 = vst [vmem:[#allocation3 + $0x440] sm:$0xff] %v5504
        %5555 = vst [vmem:[#allocation3 + $0x488] sm:$0xff] %v5512
        %5556 = vst [vmem:[#allocation3 + $0x4d0] sm:$0xff] %v5520
        %v5557 = vld [vmem:[#allocation2] sm:$0xe]
        %v5558 = vld [vmem:[#allocation2 + $0x4] sm:$0xf]
        %v5559 = vld [vmem:[#allocation2 + $0x8] sm:$0xf]
        %v5560 = vld [vmem:[#allocation2 + $0xc] sm:$0xf]
        %v5561 = vld [vmem:[#allocation2 + $0x10] sm:$0xf]
        %v5562 = vld [vmem:[#allocation2 + $0x14] sm:$0xf]
        %v5563 = vld [vmem:[#allocation2 + $0x18] sm:$0xf]
        %v5564 = vld [vmem:[#allocation2 + $0x1c] sm:$0xf]
        %v5565 = vld [vmem:[#allocation2 + $0x20] sm:$0xf]
        %v5566 = vld [vmem:[#allocation2 + $0x24] sm:$0xf]
        %v5567 = vld [vmem:[#allocation2 + $0x28] sm:$0xf]
        %v5568 = vld [vmem:[#allocation2 + $0x2c] sm:$0xf]
        %v5569 = vld [vmem:[#allocation2 + $0x30] sm:$0xf]
        %v5570 = vld [vmem:[#allocation2 + $0x34] sm:$0xf]
        %v5571 = vld [vmem:[#allocation2 + $0x38] sm:$0xf]
        %v5572 = vld [vmem:[#allocation2 + $0x3c] sm:$0xf]
        %v5573 = vld [vmem:[#allocation2 + $0x40] sm:$0xf]
        %v5574 = vld [vmem:[#allocation2 + $0x44] sm:$0xf]
        %v5575 = vld [vmem:[#allocation2 + $0x48] sm:$0xf]
        %v5576 = vld [vmem:[#allocation2 + $0x4c] sm:$0xf]
        %v5577 = vld [vmem:[#allocation2 + $0x50] sm:$0xf]
        %v5578 = vld [vmem:[#allocation2 + $0x54] sm:$0xf]
        %v5579 = vld [vmem:[#allocation2 + $0x58] sm:$0xf]
        %v5580 = vld [vmem:[#allocation2 + $0x5c] sm:$0xf]
        %v5581 = vld [vmem:[#allocation2 + $0x60] sm:$0xf]
        %v5582 = vld [vmem:[#allocation2 + $0x64] sm:$0xf]
        %v5583 = vld [vmem:[#allocation2 + $0x68] sm:$0xf]
        %v5584 = vld [vmem:[#allocation2 + $0x6c] sm:$0xf]
        %v5585 = vld [vmem:[#allocation2 + $0x70] sm:$0xf]
        %v5586 = vld [vmem:[#allocation2 + $0x74] sm:$0xf]
        %v5587 = vld [vmem:[#allocation2 + $0x78] sm:$0xf]
        %v5588 = vld [vmem:[#allocation2 + $0x7c] sm:$0xf]
        %v5589 = vld [vmem:[#allocation2 + $0x80] sm:$0xf]
        %v5590 = vld [vmem:[#allocation2 + $0x84] sm:$0xf]
        %v5591 = vld [vmem:[#allocation2 + $0x88] sm:$0xf]
        %v5592 = vld [vmem:[#allocation2 + $0x8c] sm:$0xf]
        %v5593 = vld [vmem:[#allocation2 + $0x90] sm:$0x1]
        %v5631 = vunpack.c.l.b16 %v5557
        %v5632 = vunpack.c.l.b16 %v5558
        %v5633 = vunpack.c.l.b16 %v5559
        %v5634 = vunpack.c.l.b16 %v5560
        %v5635 = vunpack.c.l.b16 %v5561
        %v5636 = vunpack.c.l.b16 %v5562
        %v5637 = vunpack.c.l.b16 %v5563
        %v5638 = vunpack.c.l.b16 %v5564
        %v5639 = vunpack.c.l.b16 %v5565
        %v5640 = vunpack.c.l.b16 %v5566
        %v5641 = vunpack.c.l.b16 %v5567
        %v5642 = vunpack.c.l.b16 %v5568
        %v5643 = vunpack.c.l.b16 %v5569
        %v5644 = vunpack.c.l.b16 %v5570
        %v5645 = vunpack.c.l.b16 %v5571
        %v5646 = vunpack.c.l.b16 %v5572
        %v5647 = vunpack.c.l.b16 %v5573
        %v5648 = vunpack.c.l.b16 %v5574
        %v5649 = vunpack.c.l.b16 %v5575
        %v5650 = vunpack.c.l.b16 %v5576
        %v5651 = vunpack.c.l.b16 %v5577
        %v5652 = vunpack.c.l.b16 %v5578
        %v5653 = vunpack.c.l.b16 %v5579
        %v5654 = vunpack.c.l.b16 %v5580
        %v5655 = vunpack.c.l.b16 %v5581
        %v5656 = vunpack.c.l.b16 %v5582
        %v5657 = vunpack.c.l.b16 %v5583
        %v5658 = vunpack.c.l.b16 %v5584
        %v5659 = vunpack.c.l.b16 %v5585
        %v5660 = vunpack.c.l.b16 %v5586
        %v5661 = vunpack.c.l.b16 %v5587
        %v5662 = vunpack.c.l.b16 %v5588
        %v5663 = vunpack.c.l.b16 %v5589
        %v5664 = vunpack.c.l.b16 %v5590
        %v5665 = vunpack.c.l.b16 %v5591
        %v5666 = vunpack.c.l.b16 %v5592
        %v5667 = vunpack.c.l.b16 %v5593
        %v5668 = vpack.c.b16 %v5632, %v5631
        %v5669 = vpack.c.b16 %v5634, %v5633
        %v5670 = vpack.c.b16 %v5636, %v5635
        %v5671 = vpack.c.b16 %v5638, %v5637
        %v5672 = vpack.c.b16 %v5640, %v5639
        %v5673 = vpack.c.b16 %v5642, %v5641
        %v5674 = vpack.c.b16 %v5644, %v5643
        %v5675 = vpack.c.b16 %v5646, %v5645
        %v5676 = vpack.c.b16 %v5648, %v5647
        %v5677 = vpack.c.b16 %v5650, %v5649
        %v5678 = vpack.c.b16 %v5652, %v5651
        %v5679 = vpack.c.b16 %v5654, %v5653
        %v5680 = vpack.c.b16 %v5656, %v5655
        %v5681 = vpack.c.b16 %v5658, %v5657
        %v5682 = vpack.c.b16 %v5660, %v5659
        %v5683 = vpack.c.b16 %v5662, %v5661
        %v5684 = vpack.c.b16 %v5664, %v5663
        %v5685 = vpack.c.b16 %v5666, %v5665
        %v5686 = vpack.c.b16 %v5667, %v5667
        %v5687 = vrot.slane %v5668, 1
        %v5688 = vrot.slane %v5669, 1
        %v5689 = vsel %vm972, %v5687, %v5688
        %v5690 = vrot.slane %v5670, 1
        %v5691 = vsel %vm972, %v5688, %v5690
        %v5692 = vrot.slane %v5671, 1
        %v5693 = vsel %vm972, %v5690, %v5692
        %v5694 = vrot.slane %v5672, 1
        %v5695 = vsel %vm972, %v5692, %v5694
        %v5696 = vrot.slane %v5673, 1
        %v5697 = vsel %vm972, %v5694, %v5696
        %v5698 = vrot.slane %v5674, 1
        %v5699 = vsel %vm972, %v5696, %v5698
        %v5700 = vrot.slane %v5675, 1
        %v5701 = vsel %vm972, %v5698, %v5700
        %v5702 = vrot.slane %v5676, 1
        %v5703 = vsel %vm972, %v5700, %v5702
        %v5704 = vrot.slane %v5677, 1
        %v5705 = vsel %vm972, %v5702, %v5704
        %v5706 = vrot.slane %v5678, 1
        %v5707 = vsel %vm972, %v5704, %v5706
        %v5708 = vrot.slane %v5679, 1
        %v5709 = vsel %vm972, %v5706, %v5708
        %v5710 = vrot.slane %v5680, 1
        %v5711 = vsel %vm972, %v5708, %v5710
        %v5712 = vrot.slane %v5681, 1
        %v5713 = vsel %vm972, %v5710, %v5712
        %v5714 = vrot.slane %v5682, 1
        %v5715 = vsel %vm972, %v5712, %v5714
        %v5716 = vrot.slane %v5683, 1
        %v5717 = vsel %vm972, %v5714, %v5716
        %v5718 = vrot.slane %v5684, 1
        %v5719 = vsel %vm972, %v5716, %v5718
        %v5720 = vrot.slane %v5685, 1
        %v5721 = vsel %vm972, %v5718, %v5720
        %v5722 = vrot.slane %v5686, 1
        %v5723 = vsel %vm972, %v5720, %v5722
        %5742 = vst [vmem:[#allocation3 + $0x10] sm:$0xff] %v5689
        %5743 = vst [vmem:[#allocation3 + $0x58] sm:$0xff] %v5691
        %5744 = vst [vmem:[#allocation3 + $0xa0] sm:$0xff] %v5693
        %5745 = vst [vmem:[#allocation3 + $0xe8] sm:$0xff] %v5695
        %5746 = vst [vmem:[#allocation3 + $0x130] sm:$0xff] %v5697
        %5747 = vst [vmem:[#allocation3 + $0x178] sm:$0xff] %v5699
        %5748 = vst [vmem:[#allocation3 + $0x1c0] sm:$0xff] %v5701
        %5749 = vst [vmem:[#allocation3 + $0x208] sm:$0xff] %v5703
        %5750 = vst [vmem:[#allocation3 + $0x250] sm:$0xff] %v5705
        %5751 = vst [vmem:[#allocation3 + $0x298] sm:$0xff] %v5707
        %5752 = vst [vmem:[#allocation3 + $0x2e0] sm:$0xff] %v5709
        %5753 = vst [vmem:[#allocation3 + $0x328] sm:$0xff] %v5711
        %5754 = vst [vmem:[#allocation3 + $0x370] sm:$0xff] %v5713
        %5755 = vst [vmem:[#allocation3 + $0x3b8] sm:$0xff] %v5715
        %5756 = vst [vmem:[#allocation3 + $0x400] sm:$0xff] %v5717
        %5757 = vst [vmem:[#allocation3 + $0x448] sm:$0xff] %v5719
        %5758 = vst [vmem:[#allocation3 + $0x490] sm:$0xff] %v5721
        %5759 = vst [vmem:[#allocation3 + $0x4d8] sm:$0xff] %v5723
        %v5760 = vld [vmem:[#allocation2 + $0x8] sm:$0xe]
        %v5761 = vld [vmem:[#allocation2 + $0xc] sm:$0xf]
        %v5762 = vld [vmem:[#allocation2 + $0x10] sm:$0xf]
        %v5763 = vld [vmem:[#allocation2 + $0x14] sm:$0xf]
        %v5764 = vld [vmem:[#allocation2 + $0x18] sm:$0xf]
        %v5765 = vld [vmem:[#allocation2 + $0x1c] sm:$0xf]
        %v5766 = vld [vmem:[#allocation2 + $0x20] sm:$0xf]
        %v5767 = vld [vmem:[#allocation2 + $0x24] sm:$0xf]
        %v5768 = vld [vmem:[#allocation2 + $0x28] sm:$0xf]
        %v5769 = vld [vmem:[#allocation2 + $0x2c] sm:$0xf]
        %v5770 = vld [vmem:[#allocation2 + $0x30] sm:$0xf]
        %v5771 = vld [vmem:[#allocation2 + $0x34] sm:$0xf]
        %v5772 = vld [vmem:[#allocation2 + $0x38] sm:$0xf]
        %v5773 = vld [vmem:[#allocation2 + $0x3c] sm:$0xf]
        %v5774 = vld [vmem:[#allocation2 + $0x40] sm:$0xf]
        %v5775 = vld [vmem:[#allocation2 + $0x44] sm:$0xf]
        %v5776 = vld [vmem:[#allocation2 + $0x48] sm:$0xf]
        %v5777 = vld [vmem:[#allocation2 + $0x4c] sm:$0xf]
        %v5778 = vld [vmem:[#allocation2 + $0x50] sm:$0xf]
        %v5779 = vld [vmem:[#allocation2 + $0x54] sm:$0xf]
        %v5780 = vld [vmem:[#allocation2 + $0x58] sm:$0xf]
        %v5781 = vld [vmem:[#allocation2 + $0x5c] sm:$0xf]
        %v5782 = vld [vmem:[#allocation2 + $0x60] sm:$0xf]
        %v5783 = vld [vmem:[#allocation2 + $0x64] sm:$0xf]
        %v5784 = vld [vmem:[#allocation2 + $0x68] sm:$0xf]
        %v5785 = vld [vmem:[#allocation2 + $0x6c] sm:$0xf]
        %v5786 = vld [vmem:[#allocation2 + $0x70] sm:$0xf]
        %v5787 = vld [vmem:[#allocation2 + $0x74] sm:$0xf]
        %v5788 = vld [vmem:[#allocation2 + $0x78] sm:$0xf]
        %v5789 = vld [vmem:[#allocation2 + $0x7c] sm:$0xf]
        %v5790 = vld [vmem:[#allocation2 + $0x80] sm:$0xf]
        %v5791 = vld [vmem:[#allocation2 + $0x84] sm:$0xf]
        %v5792 = vld [vmem:[#allocation2 + $0x88] sm:$0xf]
        %v5793 = vld [vmem:[#allocation2 + $0x8c] sm:$0xf]
        %v5794 = vld [vmem:[#allocation2 + $0x90] sm:$0xf]
        %v5795 = vld [vmem:[#allocation2 + $0x94] sm:$0xf]
        %v5796 = vld [vmem:[#allocation2 + $0x98] sm:$0x1]
        %v5834 = vunpack.c.l.b16 %v5760
        %v5835 = vunpack.c.l.b16 %v5761
        %v5836 = vunpack.c.l.b16 %v5762
        %v5837 = vunpack.c.l.b16 %v5763
        %v5838 = vunpack.c.l.b16 %v5764
        %v5839 = vunpack.c.l.b16 %v5765
        %v5840 = vunpack.c.l.b16 %v5766
        %v5841 = vunpack.c.l.b16 %v5767
        %v5842 = vunpack.c.l.b16 %v5768
        %v5843 = vunpack.c.l.b16 %v5769
        %v5844 = vunpack.c.l.b16 %v5770
        %v5845 = vunpack.c.l.b16 %v5771
        %v5846 = vunpack.c.l.b16 %v5772
        %v5847 = vunpack.c.l.b16 %v5773
        %v5848 = vunpack.c.l.b16 %v5774
        %v5849 = vunpack.c.l.b16 %v5775
        %v5850 = vunpack.c.l.b16 %v5776
        %v5851 = vunpack.c.l.b16 %v5777
        %v5852 = vunpack.c.l.b16 %v5778
        %v5853 = vunpack.c.l.b16 %v5779
        %v5854 = vunpack.c.l.b16 %v5780
        %v5855 = vunpack.c.l.b16 %v5781
        %v5856 = vunpack.c.l.b16 %v5782
        %v5857 = vunpack.c.l.b16 %v5783
        %v5858 = vunpack.c.l.b16 %v5784
        %v5859 = vunpack.c.l.b16 %v5785
        %v5860 = vunpack.c.l.b16 %v5786
        %v5861 = vunpack.c.l.b16 %v5787
        %v5862 = vunpack.c.l.b16 %v5788
        %v5863 = vunpack.c.l.b16 %v5789
        %v5864 = vunpack.c.l.b16 %v5790
        %v5865 = vunpack.c.l.b16 %v5791
        %v5866 = vunpack.c.l.b16 %v5792
        %v5867 = vunpack.c.l.b16 %v5793
        %v5868 = vunpack.c.l.b16 %v5794
        %v5869 = vunpack.c.l.b16 %v5795
        %v5870 = vunpack.c.l.b16 %v5796
        %v5871 = vpack.c.b16 %v5835, %v5834
        %v5872 = vpack.c.b16 %v5837, %v5836
        %v5873 = vpack.c.b16 %v5839, %v5838
        %v5874 = vpack.c.b16 %v5841, %v5840
        %v5875 = vpack.c.b16 %v5843, %v5842
        %v5876 = vpack.c.b16 %v5845, %v5844
        %v5877 = vpack.c.b16 %v5847, %v5846
        %v5878 = vpack.c.b16 %v5849, %v5848
        %v5879 = vpack.c.b16 %v5851, %v5850
        %v5880 = vpack.c.b16 %v5853, %v5852
        %v5881 = vpack.c.b16 %v5855, %v5854
        %v5882 = vpack.c.b16 %v5857, %v5856
        %v5883 = vpack.c.b16 %v5859, %v5858
        %v5884 = vpack.c.b16 %v5861, %v5860
        %v5885 = vpack.c.b16 %v5863, %v5862
        %v5886 = vpack.c.b16 %v5865, %v5864
        %v5887 = vpack.c.b16 %v5867, %v5866
        %v5888 = vpack.c.b16 %v5869, %v5868
        %v5889 = vpack.c.b16 %v5870, %v5870
        %v5890 = vrot.slane %v5871, 1
        %v5891 = vrot.slane %v5872, 1
        %v5892 = vsel %vm972, %v5890, %v5891
        %v5893 = vrot.slane %v5873, 1
        %v5894 = vsel %vm972, %v5891, %v5893
        %v5895 = vrot.slane %v5874, 1
        %v5896 = vsel %vm972, %v5893, %v5895
        %v5897 = vrot.slane %v5875, 1
        %v5898 = vsel %vm972, %v5895, %v5897
        %v5899 = vrot.slane %v5876, 1
        %v5900 = vsel %vm972, %v5897, %v5899
        %v5901 = vrot.slane %v5877, 1
        %v5902 = vsel %vm972, %v5899, %v5901
        %v5903 = vrot.slane %v5878, 1
        %v5904 = vsel %vm972, %v5901, %v5903
        %v5905 = vrot.slane %v5879, 1
        %v5906 = vsel %vm972, %v5903, %v5905
        %v5907 = vrot.slane %v5880, 1
        %v5908 = vsel %vm972, %v5905, %v5907
        %v5909 = vrot.slane %v5881, 1
        %v5910 = vsel %vm972, %v5907, %v5909
        %v5911 = vrot.slane %v5882, 1
        %v5912 = vsel %vm972, %v5909, %v5911
        %v5913 = vrot.slane %v5883, 1
        %v5914 = vsel %vm972, %v5911, %v5913
        %v5915 = vrot.slane %v5884, 1
        %v5916 = vsel %vm972, %v5913, %v5915
        %v5917 = vrot.slane %v5885, 1
        %v5918 = vsel %vm972, %v5915, %v5917
        %v5919 = vrot.slane %v5886, 1
        %v5920 = vsel %vm972, %v5917, %v5919
        %v5921 = vrot.slane %v5887, 1
        %v5922 = vsel %vm972, %v5919, %v5921
        %v5923 = vrot.slane %v5888, 1
        %v5924 = vsel %vm972, %v5921, %v5923
        %v5925 = vrot.slane %v5889, 1
        %v5926 = vsel %vm972, %v5923, %v5925
        %5945 = vst [vmem:[#allocation3 + $0x18] sm:$0xff] %v5892
        %5946 = vst [vmem:[#allocation3 + $0x60] sm:$0xff] %v5894
        %5947 = vst [vmem:[#allocation3 + $0xa8] sm:$0xff] %v5896
        %5948 = vst [vmem:[#allocation3 + $0xf0] sm:$0xff] %v5898
        %5949 = vst [vmem:[#allocation3 + $0x138] sm:$0xff] %v5900
        %5950 = vst [vmem:[#allocation3 + $0x180] sm:$0xff] %v5902
        %5951 = vst [vmem:[#allocation3 + $0x1c8] sm:$0xff] %v5904
        %5952 = vst [vmem:[#allocation3 + $0x210] sm:$0xff] %v5906
        %5953 = vst [vmem:[#allocation3 + $0x258] sm:$0xff] %v5908
        %5954 = vst [vmem:[#allocation3 + $0x2a0] sm:$0xff] %v5910
        %5955 = vst [vmem:[#allocation3 + $0x2e8] sm:$0xff] %v5912
        %5956 = vst [vmem:[#allocation3 + $0x330] sm:$0xff] %v5914
        %5957 = vst [vmem:[#allocation3 + $0x378] sm:$0xff] %v5916
        %5958 = vst [vmem:[#allocation3 + $0x3c0] sm:$0xff] %v5918
        %5959 = vst [vmem:[#allocation3 + $0x408] sm:$0xff] %v5920
        %5960 = vst [vmem:[#allocation3 + $0x450] sm:$0xff] %v5922
        %5961 = vst [vmem:[#allocation3 + $0x498] sm:$0xff] %v5924
        %5962 = vst [vmem:[#allocation3 + $0x4e0] sm:$0xff] %v5926
        %v5963 = vld [vmem:[#allocation2 + $0x8] sm:$0xe]
        %v5964 = vld [vmem:[#allocation2 + $0xc] sm:$0xf]
        %v5965 = vld [vmem:[#allocation2 + $0x10] sm:$0xf]
        %v5966 = vld [vmem:[#allocation2 + $0x14] sm:$0xf]
        %v5967 = vld [vmem:[#allocation2 + $0x18] sm:$0xf]
        %v5968 = vld [vmem:[#allocation2 + $0x1c] sm:$0xf]
        %v5969 = vld [vmem:[#allocation2 + $0x20] sm:$0xf]
        %v5970 = vld [vmem:[#allocation2 + $0x24] sm:$0xf]
        %v5971 = vld [vmem:[#allocation2 + $0x28] sm:$0xf]
        %v5972 = vld [vmem:[#allocation2 + $0x2c] sm:$0xf]
        %v5973 = vld [vmem:[#allocation2 + $0x30] sm:$0xf]
        %v5974 = vld [vmem:[#allocation2 + $0x34] sm:$0xf]
        %v5975 = vld [vmem:[#allocation2 + $0x38] sm:$0xf]
        %v5976 = vld [vmem:[#allocation2 + $0x3c] sm:$0xf]
        %v5977 = vld [vmem:[#allocation2 + $0x40] sm:$0xf]
        %v5978 = vld [vmem:[#allocation2 + $0x44] sm:$0xf]
        %v5979 = vld [vmem:[#allocation2 + $0x48] sm:$0xf]
        %v5980 = vld [vmem:[#allocation2 + $0x4c] sm:$0xf]
        %v5981 = vld [vmem:[#allocation2 + $0x50] sm:$0xf]
        %v5982 = vld [vmem:[#allocation2 + $0x54] sm:$0xf]
        %v5983 = vld [vmem:[#allocation2 + $0x58] sm:$0xf]
        %v5984 = vld [vmem:[#allocation2 + $0x5c] sm:$0xf]
        %v5985 = vld [vmem:[#allocation2 + $0x60] sm:$0xf]
        %v5986 = vld [vmem:[#allocation2 + $0x64] sm:$0xf]
        %v5987 = vld [vmem:[#allocation2 + $0x68] sm:$0xf]
        %v5988 = vld [vmem:[#allocation2 + $0x6c] sm:$0xf]
        %v5989 = vld [vmem:[#allocation2 + $0x70] sm:$0xf]
        %v5990 = vld [vmem:[#allocation2 + $0x74] sm:$0xf]
        %v5991 = vld [vmem:[#allocation2 + $0x78] sm:$0xf]
        %v5992 = vld [vmem:[#allocation2 + $0x7c] sm:$0xf]
        %v5993 = vld [vmem:[#allocation2 + $0x80] sm:$0xf]
        %v5994 = vld [vmem:[#allocation2 + $0x84] sm:$0xf]
        %v5995 = vld [vmem:[#allocation2 + $0x88] sm:$0xf]
        %v5996 = vld [vmem:[#allocation2 + $0x8c] sm:$0xf]
        %v5997 = vld [vmem:[#allocation2 + $0x90] sm:$0xf]
        %v5998 = vld [vmem:[#allocation2 + $0x94] sm:$0xf]
        %v5999 = vld [vmem:[#allocation2 + $0x98] sm:$0x3]
        %v6037 = vunpack.c.l.b16 %v5963
        %v6038 = vunpack.c.l.b16 %v5964
        %v6039 = vunpack.c.l.b16 %v5965
        %v6040 = vunpack.c.l.b16 %v5966
        %v6041 = vunpack.c.l.b16 %v5967
        %v6042 = vunpack.c.l.b16 %v5968
        %v6043 = vunpack.c.l.b16 %v5969
        %v6044 = vunpack.c.l.b16 %v5970
        %v6045 = vunpack.c.l.b16 %v5971
        %v6046 = vunpack.c.l.b16 %v5972
        %v6047 = vunpack.c.l.b16 %v5973
        %v6048 = vunpack.c.l.b16 %v5974
        %v6049 = vunpack.c.l.b16 %v5975
        %v6050 = vunpack.c.l.b16 %v5976
        %v6051 = vunpack.c.l.b16 %v5977
        %v6052 = vunpack.c.l.b16 %v5978
        %v6053 = vunpack.c.l.b16 %v5979
        %v6054 = vunpack.c.l.b16 %v5980
        %v6055 = vunpack.c.l.b16 %v5981
        %v6056 = vunpack.c.l.b16 %v5982
        %v6057 = vunpack.c.l.b16 %v5983
        %v6058 = vunpack.c.l.b16 %v5984
        %v6059 = vunpack.c.l.b16 %v5985
        %v6060 = vunpack.c.l.b16 %v5986
        %v6061 = vunpack.c.l.b16 %v5987
        %v6062 = vunpack.c.l.b16 %v5988
        %v6063 = vunpack.c.l.b16 %v5989
        %v6064 = vunpack.c.l.b16 %v5990
        %v6065 = vunpack.c.l.b16 %v5991
        %v6066 = vunpack.c.l.b16 %v5992
        %v6067 = vunpack.c.l.b16 %v5993
        %v6068 = vunpack.c.l.b16 %v5994
        %v6069 = vunpack.c.l.b16 %v5995
        %v6070 = vunpack.c.l.b16 %v5996
        %v6071 = vunpack.c.l.b16 %v5997
        %v6072 = vunpack.c.l.b16 %v5998
        %v6073 = vunpack.c.l.b16 %v5999
        %v6074 = vpack.c.b16 %v6038, %v6037
        %v6075 = vpack.c.b16 %v6040, %v6039
        %v6076 = vpack.c.b16 %v6042, %v6041
        %v6077 = vpack.c.b16 %v6044, %v6043
        %v6078 = vpack.c.b16 %v6046, %v6045
        %v6079 = vpack.c.b16 %v6048, %v6047
        %v6080 = vpack.c.b16 %v6050, %v6049
        %v6081 = vpack.c.b16 %v6052, %v6051
        %v6082 = vpack.c.b16 %v6054, %v6053
        %v6083 = vpack.c.b16 %v6056, %v6055
        %v6084 = vpack.c.b16 %v6058, %v6057
        %v6085 = vpack.c.b16 %v6060, %v6059
        %v6086 = vpack.c.b16 %v6062, %v6061
        %v6087 = vpack.c.b16 %v6064, %v6063
        %v6088 = vpack.c.b16 %v6066, %v6065
        %v6089 = vpack.c.b16 %v6068, %v6067
        %v6090 = vpack.c.b16 %v6070, %v6069
        %v6091 = vpack.c.b16 %v6072, %v6071
        %v6092 = vpack.c.b16 %v6073, %v6073
        %v6094 = vshrl.u32 %v6074, 16
        %v6096 = vrot.slane %v6094, 1
        %v6097 = vshll.u32 %v6074, 16
        %v6099 = vrot.slane %v6097, 2
        %v6100 = vor.u32 %v6096, %v6099
        %v6102 = vshrl.u32 %v6075, 16
        %v6104 = vrot.slane %v6102, 1
        %v6105 = vshll.u32 %v6075, 16
        %v6107 = vrot.slane %v6105, 2
        %v6108 = vor.u32 %v6104, %v6107
        %v6109 = vsel %vm1379, %v6100, %v6108
        %v6111 = vshrl.u32 %v6076, 16
        %v6113 = vrot.slane %v6111, 1
        %v6114 = vshll.u32 %v6076, 16
        %v6116 = vrot.slane %v6114, 2
        %v6117 = vor.u32 %v6113, %v6116
        %v6118 = vsel %vm1379, %v6108, %v6117
        %v6120 = vshrl.u32 %v6077, 16
        %v6122 = vrot.slane %v6120, 1
        %v6123 = vshll.u32 %v6077, 16
        %v6125 = vrot.slane %v6123, 2
        %v6126 = vor.u32 %v6122, %v6125
        %v6127 = vsel %vm1379, %v6117, %v6126
        %v6129 = vshrl.u32 %v6078, 16
        %v6131 = vrot.slane %v6129, 1
        %v6132 = vshll.u32 %v6078, 16
        %v6134 = vrot.slane %v6132, 2
        %v6135 = vor.u32 %v6131, %v6134
        %v6136 = vsel %vm1379, %v6126, %v6135
        %v6138 = vshrl.u32 %v6079, 16
        %v6140 = vrot.slane %v6138, 1
        %v6141 = vshll.u32 %v6079, 16
        %v6143 = vrot.slane %v6141, 2
        %v6144 = vor.u32 %v6140, %v6143
        %v6145 = vsel %vm1379, %v6135, %v6144
        %v6147 = vshrl.u32 %v6080, 16
        %v6149 = vrot.slane %v6147, 1
        %v6150 = vshll.u32 %v6080, 16
        %v6152 = vrot.slane %v6150, 2
        %v6153 = vor.u32 %v6149, %v6152
        %v6154 = vsel %vm1379, %v6144, %v6153
        %v6156 = vshrl.u32 %v6081, 16
        %v6158 = vrot.slane %v6156, 1
        %v6159 = vshll.u32 %v6081, 16
        %v6161 = vrot.slane %v6159, 2
        %v6162 = vor.u32 %v6158, %v6161
        %v6163 = vsel %vm1379, %v6153, %v6162
        %v6165 = vshrl.u32 %v6082, 16
        %v6167 = vrot.slane %v6165, 1
        %v6168 = vshll.u32 %v6082, 16
        %v6170 = vrot.slane %v6168, 2
        %v6171 = vor.u32 %v6167, %v6170
        %v6172 = vsel %vm1379, %v6162, %v6171
        %v6174 = vshrl.u32 %v6083, 16
        %v6176 = vrot.slane %v6174, 1
        %v6177 = vshll.u32 %v6083, 16
        %v6179 = vrot.slane %v6177, 2
        %v6180 = vor.u32 %v6176, %v6179
        %v6181 = vsel %vm1379, %v6171, %v6180
        %v6183 = vshrl.u32 %v6084, 16
        %v6185 = vrot.slane %v6183, 1
        %v6186 = vshll.u32 %v6084, 16
        %v6188 = vrot.slane %v6186, 2
        %v6189 = vor.u32 %v6185, %v6188
        %v6190 = vsel %vm1379, %v6180, %v6189
        %v6192 = vshrl.u32 %v6085, 16
        %v6194 = vrot.slane %v6192, 1
        %v6195 = vshll.u32 %v6085, 16
        %v6197 = vrot.slane %v6195, 2
        %v6198 = vor.u32 %v6194, %v6197
        %v6199 = vsel %vm1379, %v6189, %v6198
        %v6201 = vshrl.u32 %v6086, 16
        %v6203 = vrot.slane %v6201, 1
        %v6204 = vshll.u32 %v6086, 16
        %v6206 = vrot.slane %v6204, 2
        %v6207 = vor.u32 %v6203, %v6206
        %v6208 = vsel %vm1379, %v6198, %v6207
        %v6210 = vshrl.u32 %v6087, 16
        %v6212 = vrot.slane %v6210, 1
        %v6213 = vshll.u32 %v6087, 16
        %v6215 = vrot.slane %v6213, 2
        %v6216 = vor.u32 %v6212, %v6215
        %v6217 = vsel %vm1379, %v6207, %v6216
        %v6219 = vshrl.u32 %v6088, 16
        %v6221 = vrot.slane %v6219, 1
        %v6222 = vshll.u32 %v6088, 16
        %v6224 = vrot.slane %v6222, 2
        %v6225 = vor.u32 %v6221, %v6224
        %v6226 = vsel %vm1379, %v6216, %v6225
        %v6228 = vshrl.u32 %v6089, 16
        %v6230 = vrot.slane %v6228, 1
        %v6231 = vshll.u32 %v6089, 16
        %v6233 = vrot.slane %v6231, 2
        %v6234 = vor.u32 %v6230, %v6233
        %v6235 = vsel %vm1379, %v6225, %v6234
        %v6237 = vshrl.u32 %v6090, 16
        %v6239 = vrot.slane %v6237, 1
        %v6240 = vshll.u32 %v6090, 16
        %v6242 = vrot.slane %v6240, 2
        %v6243 = vor.u32 %v6239, %v6242
        %v6244 = vsel %vm1379, %v6234, %v6243
        %v6246 = vshrl.u32 %v6091, 16
        %v6248 = vrot.slane %v6246, 1
        %v6249 = vshll.u32 %v6091, 16
        %v6251 = vrot.slane %v6249, 2
        %v6252 = vor.u32 %v6248, %v6251
        %v6253 = vsel %vm1379, %v6243, %v6252
        %v6255 = vshrl.u32 %v6092, 16
        %v6257 = vrot.slane %v6255, 1
        %v6258 = vshll.u32 %v6092, 16
        %v6260 = vrot.slane %v6258, 2
        %v6261 = vor.u32 %v6257, %v6260
        %v6262 = vsel %vm1379, %v6252, %v6261
        %6281 = vst [vmem:[#allocation3 + $0x20] sm:$0xff] %v6109
        %6282 = vst [vmem:[#allocation3 + $0x68] sm:$0xff] %v6118
        %6283 = vst [vmem:[#allocation3 + $0xb0] sm:$0xff] %v6127
        %6284 = vst [vmem:[#allocation3 + $0xf8] sm:$0xff] %v6136
        %6285 = vst [vmem:[#allocation3 + $0x140] sm:$0xff] %v6145
        %6286 = vst [vmem:[#allocation3 + $0x188] sm:$0xff] %v6154
        %6287 = vst [vmem:[#allocation3 + $0x1d0] sm:$0xff] %v6163
        %6288 = vst [vmem:[#allocation3 + $0x218] sm:$0xff] %v6172
        %6289 = vst [vmem:[#allocation3 + $0x260] sm:$0xff] %v6181
        %6290 = vst [vmem:[#allocation3 + $0x2a8] sm:$0xff] %v6190
        %6291 = vst [vmem:[#allocation3 + $0x2f0] sm:$0xff] %v6199
        %6292 = vst [vmem:[#allocation3 + $0x338] sm:$0xff] %v6208
        %6293 = vst [vmem:[#allocation3 + $0x380] sm:$0xff] %v6217
        %6294 = vst [vmem:[#allocation3 + $0x3c8] sm:$0xff] %v6226
        %6295 = vst [vmem:[#allocation3 + $0x410] sm:$0xff] %v6235
        %6296 = vst [vmem:[#allocation3 + $0x458] sm:$0xff] %v6244
        %6297 = vst [vmem:[#allocation3 + $0x4a0] sm:$0xff] %v6253
        %6298 = vst [vmem:[#allocation3 + $0x4e8] sm:$0xff] %v6262
        %v6299 = vld [vmem:[#allocation2 + $0x8] sm:$0xc]
        %v6300 = vld [vmem:[#allocation2 + $0xc] sm:$0xf]
        %v6301 = vld [vmem:[#allocation2 + $0x10] sm:$0xf]
        %v6302 = vld [vmem:[#allocation2 + $0x14] sm:$0xf]
        %v6303 = vld [vmem:[#allocation2 + $0x18] sm:$0xf]
        %v6304 = vld [vmem:[#allocation2 + $0x1c] sm:$0xf]
        %v6305 = vld [vmem:[#allocation2 + $0x20] sm:$0xf]
        %v6306 = vld [vmem:[#allocation2 + $0x24] sm:$0xf]
        %v6307 = vld [vmem:[#allocation2 + $0x28] sm:$0xf]
        %v6308 = vld [vmem:[#allocation2 + $0x2c] sm:$0xf]
        %v6309 = vld [vmem:[#allocation2 + $0x30] sm:$0xf]
        %v6310 = vld [vmem:[#allocation2 + $0x34] sm:$0xf]
        %v6311 = vld [vmem:[#allocation2 + $0x38] sm:$0xf]
        %v6312 = vld [vmem:[#allocation2 + $0x3c] sm:$0xf]
        %v6313 = vld [vmem:[#allocation2 + $0x40] sm:$0xf]
        %v6314 = vld [vmem:[#allocation2 + $0x44] sm:$0xf]
        %v6315 = vld [vmem:[#allocation2 + $0x48] sm:$0xf]
        %v6316 = vld [vmem:[#allocation2 + $0x4c] sm:$0xf]
        %v6317 = vld [vmem:[#allocation2 + $0x50] sm:$0xf]
        %v6318 = vld [vmem:[#allocation2 + $0x54] sm:$0xf]
        %v6319 = vld [vmem:[#allocation2 + $0x58] sm:$0xf]
        %v6320 = vld [vmem:[#allocation2 + $0x5c] sm:$0xf]
        %v6321 = vld [vmem:[#allocation2 + $0x60] sm:$0xf]
        %v6322 = vld [vmem:[#allocation2 + $0x64] sm:$0xf]
        %v6323 = vld [vmem:[#allocation2 + $0x68] sm:$0xf]
        %v6324 = vld [vmem:[#allocation2 + $0x6c] sm:$0xf]
        %v6325 = vld [vmem:[#allocation2 + $0x70] sm:$0xf]
        %v6326 = vld [vmem:[#allocation2 + $0x74] sm:$0xf]
        %v6327 = vld [vmem:[#allocation2 + $0x78] sm:$0xf]
        %v6328 = vld [vmem:[#allocation2 + $0x7c] sm:$0xf]
        %v6329 = vld [vmem:[#allocation2 + $0x80] sm:$0xf]
        %v6330 = vld [vmem:[#allocation2 + $0x84] sm:$0xf]
        %v6331 = vld [vmem:[#allocation2 + $0x88] sm:$0xf]
        %v6332 = vld [vmem:[#allocation2 + $0x8c] sm:$0xf]
        %v6333 = vld [vmem:[#allocation2 + $0x90] sm:$0xf]
        %v6334 = vld [vmem:[#allocation2 + $0x94] sm:$0xf]
        %v6335 = vld [vmem:[#allocation2 + $0x98] sm:$0x3]
        %v6373 = vunpack.c.l.b16 %v6299
        %v6374 = vunpack.c.l.b16 %v6300
        %v6375 = vunpack.c.l.b16 %v6301
        %v6376 = vunpack.c.l.b16 %v6302
        %v6377 = vunpack.c.l.b16 %v6303
        %v6378 = vunpack.c.l.b16 %v6304
        %v6379 = vunpack.c.l.b16 %v6305
        %v6380 = vunpack.c.l.b16 %v6306
        %v6381 = vunpack.c.l.b16 %v6307
        %v6382 = vunpack.c.l.b16 %v6308
        %v6383 = vunpack.c.l.b16 %v6309
        %v6384 = vunpack.c.l.b16 %v6310
        %v6385 = vunpack.c.l.b16 %v6311
        %v6386 = vunpack.c.l.b16 %v6312
        %v6387 = vunpack.c.l.b16 %v6313
        %v6388 = vunpack.c.l.b16 %v6314
        %v6389 = vunpack.c.l.b16 %v6315
        %v6390 = vunpack.c.l.b16 %v6316
        %v6391 = vunpack.c.l.b16 %v6317
        %v6392 = vunpack.c.l.b16 %v6318
        %v6393 = vunpack.c.l.b16 %v6319
        %v6394 = vunpack.c.l.b16 %v6320
        %v6395 = vunpack.c.l.b16 %v6321
        %v6396 = vunpack.c.l.b16 %v6322
        %v6397 = vunpack.c.l.b16 %v6323
        %v6398 = vunpack.c.l.b16 %v6324
        %v6399 = vunpack.c.l.b16 %v6325
        %v6400 = vunpack.c.l.b16 %v6326
        %v6401 = vunpack.c.l.b16 %v6327
        %v6402 = vunpack.c.l.b16 %v6328
        %v6403 = vunpack.c.l.b16 %v6329
        %v6404 = vunpack.c.l.b16 %v6330
        %v6405 = vunpack.c.l.b16 %v6331
        %v6406 = vunpack.c.l.b16 %v6332
        %v6407 = vunpack.c.l.b16 %v6333
        %v6408 = vunpack.c.l.b16 %v6334
        %v6409 = vunpack.c.l.b16 %v6335
        %v6410 = vpack.c.b16 %v6374, %v6373
        %v6411 = vpack.c.b16 %v6376, %v6375
        %v6412 = vpack.c.b16 %v6378, %v6377
        %v6413 = vpack.c.b16 %v6380, %v6379
        %v6414 = vpack.c.b16 %v6382, %v6381
        %v6415 = vpack.c.b16 %v6384, %v6383
        %v6416 = vpack.c.b16 %v6386, %v6385
        %v6417 = vpack.c.b16 %v6388, %v6387
        %v6418 = vpack.c.b16 %v6390, %v6389
        %v6419 = vpack.c.b16 %v6392, %v6391
        %v6420 = vpack.c.b16 %v6394, %v6393
        %v6421 = vpack.c.b16 %v6396, %v6395
        %v6422 = vpack.c.b16 %v6398, %v6397
        %v6423 = vpack.c.b16 %v6400, %v6399
        %v6424 = vpack.c.b16 %v6402, %v6401
        %v6425 = vpack.c.b16 %v6404, %v6403
        %v6426 = vpack.c.b16 %v6406, %v6405
        %v6427 = vpack.c.b16 %v6408, %v6407
        %v6428 = vpack.c.b16 %v6409, %v6409
        %v6429 = vrot.slane %v6410, 2
        %v6430 = vrot.slane %v6411, 2
        %v6431 = vsel %vm1716, %v6429, %v6430
        %v6432 = vrot.slane %v6412, 2
        %v6433 = vsel %vm1716, %v6430, %v6432
        %v6434 = vrot.slane %v6413, 2
        %v6435 = vsel %vm1716, %v6432, %v6434
        %v6436 = vrot.slane %v6414, 2
        %v6437 = vsel %vm1716, %v6434, %v6436
        %v6438 = vrot.slane %v6415, 2
        %v6439 = vsel %vm1716, %v6436, %v6438
        %v6440 = vrot.slane %v6416, 2
        %v6441 = vsel %vm1716, %v6438, %v6440
        %v6442 = vrot.slane %v6417, 2
        %v6443 = vsel %vm1716, %v6440, %v6442
        %v6444 = vrot.slane %v6418, 2
        %v6445 = vsel %vm1716, %v6442, %v6444
        %v6446 = vrot.slane %v6419, 2
        %v6447 = vsel %vm1716, %v6444, %v6446
        %v6448 = vrot.slane %v6420, 2
        %v6449 = vsel %vm1716, %v6446, %v6448
        %v6450 = vrot.slane %v6421, 2
        %v6451 = vsel %vm1716, %v6448, %v6450
        %v6452 = vrot.slane %v6422, 2
        %v6453 = vsel %vm1716, %v6450, %v6452
        %v6454 = vrot.slane %v6423, 2
        %v6455 = vsel %vm1716, %v6452, %v6454
        %v6456 = vrot.slane %v6424, 2
        %v6457 = vsel %vm1716, %v6454, %v6456
        %v6458 = vrot.slane %v6425, 2
        %v6459 = vsel %vm1716, %v6456, %v6458
        %v6460 = vrot.slane %v6426, 2
        %v6461 = vsel %vm1716, %v6458, %v6460
        %v6462 = vrot.slane %v6427, 2
        %v6463 = vsel %vm1716, %v6460, %v6462
        %v6464 = vrot.slane %v6428, 2
        %v6465 = vsel %vm1716, %v6462, %v6464
        %6484 = vst [vmem:[#allocation3 + $0x28] sm:$0xff] %v6431
        %6485 = vst [vmem:[#allocation3 + $0x70] sm:$0xff] %v6433
        %6486 = vst [vmem:[#allocation3 + $0xb8] sm:$0xff] %v6435
        %6487 = vst [vmem:[#allocation3 + $0x100] sm:$0xff] %v6437
        %6488 = vst [vmem:[#allocation3 + $0x148] sm:$0xff] %v6439
        %6489 = vst [vmem:[#allocation3 + $0x190] sm:$0xff] %v6441
        %6490 = vst [vmem:[#allocation3 + $0x1d8] sm:$0xff] %v6443
        %6491 = vst [vmem:[#allocation3 + $0x220] sm:$0xff] %v6445
        %6492 = vst [vmem:[#allocation3 + $0x268] sm:$0xff] %v6447
        %6493 = vst [vmem:[#allocation3 + $0x2b0] sm:$0xff] %v6449
        %6494 = vst [vmem:[#allocation3 + $0x2f8] sm:$0xff] %v6451
        %6495 = vst [vmem:[#allocation3 + $0x340] sm:$0xff] %v6453
        %6496 = vst [vmem:[#allocation3 + $0x388] sm:$0xff] %v6455
        %6497 = vst [vmem:[#allocation3 + $0x3d0] sm:$0xff] %v6457
        %6498 = vst [vmem:[#allocation3 + $0x418] sm:$0xff] %v6459
        %6499 = vst [vmem:[#allocation3 + $0x460] sm:$0xff] %v6461
        %6500 = vst [vmem:[#allocation3 + $0x4a8] sm:$0xff] %v6463
        %6501 = vst [vmem:[#allocation3 + $0x4f0] sm:$0xff] %v6465
        %v6502 = vld [vmem:[#allocation2 + $0x10] sm:$0xc]
        %v6503 = vld [vmem:[#allocation2 + $0x14] sm:$0xf]
        %v6504 = vld [vmem:[#allocation2 + $0x18] sm:$0xf]
        %v6505 = vld [vmem:[#allocation2 + $0x1c] sm:$0xf]
        %v6506 = vld [vmem:[#allocation2 + $0x20] sm:$0xf]
        %v6507 = vld [vmem:[#allocation2 + $0x24] sm:$0xf]
        %v6508 = vld [vmem:[#allocation2 + $0x28] sm:$0xf]
        %v6509 = vld [vmem:[#allocation2 + $0x2c] sm:$0xf]
        %v6510 = vld [vmem:[#allocation2 + $0x30] sm:$0xf]
        %v6511 = vld [vmem:[#allocation2 + $0x34] sm:$0xf]
        %v6512 = vld [vmem:[#allocation2 + $0x38] sm:$0xf]
        %v6513 = vld [vmem:[#allocation2 + $0x3c] sm:$0xf]
        %v6514 = vld [vmem:[#allocation2 + $0x40] sm:$0xf]
        %v6515 = vld [vmem:[#allocation2 + $0x44] sm:$0xf]
        %v6516 = vld [vmem:[#allocation2 + $0x48] sm:$0xf]
        %v6517 = vld [vmem:[#allocation2 + $0x4c] sm:$0xf]
        %v6518 = vld [vmem:[#allocation2 + $0x50] sm:$0xf]
        %v6519 = vld [vmem:[#allocation2 + $0x54] sm:$0xf]
        %v6520 = vld [vmem:[#allocation2 + $0x58] sm:$0xf]
        %v6521 = vld [vmem:[#allocation2 + $0x5c] sm:$0xf]
        %v6522 = vld [vmem:[#allocation2 + $0x60] sm:$0xf]
        %v6523 = vld [vmem:[#allocation2 + $0x64] sm:$0xf]
        %v6524 = vld [vmem:[#allocation2 + $0x68] sm:$0xf]
        %v6525 = vld [vmem:[#allocation2 + $0x6c] sm:$0xf]
        %v6526 = vld [vmem:[#allocation2 + $0x70] sm:$0xf]
        %v6527 = vld [vmem:[#allocation2 + $0x74] sm:$0xf]
        %v6528 = vld [vmem:[#allocation2 + $0x78] sm:$0xf]
        %v6529 = vld [vmem:[#allocation2 + $0x7c] sm:$0xf]
        %v6530 = vld [vmem:[#allocation2 + $0x80] sm:$0xf]
        %v6531 = vld [vmem:[#allocation2 + $0x84] sm:$0xf]
        %v6532 = vld [vmem:[#allocation2 + $0x88] sm:$0xf]
        %v6533 = vld [vmem:[#allocation2 + $0x8c] sm:$0xf]
        %v6534 = vld [vmem:[#allocation2 + $0x90] sm:$0xf]
        %v6535 = vld [vmem:[#allocation2 + $0x94] sm:$0xf]
        %v6536 = vld [vmem:[#allocation2 + $0x98] sm:$0xf]
        %v6537 = vld [vmem:[#allocation2 + $0x9c] sm:$0xf]
        %v6538 = vld [vmem:[#allocation2 + $0xa0] sm:$0x3]
        %v6576 = vunpack.c.l.b16 %v6502
        %v6577 = vunpack.c.l.b16 %v6503
        %v6578 = vunpack.c.l.b16 %v6504
        %v6579 = vunpack.c.l.b16 %v6505
        %v6580 = vunpack.c.l.b16 %v6506
        %v6581 = vunpack.c.l.b16 %v6507
        %v6582 = vunpack.c.l.b16 %v6508
        %v6583 = vunpack.c.l.b16 %v6509
        %v6584 = vunpack.c.l.b16 %v6510
        %v6585 = vunpack.c.l.b16 %v6511
        %v6586 = vunpack.c.l.b16 %v6512
        %v6587 = vunpack.c.l.b16 %v6513
        %v6588 = vunpack.c.l.b16 %v6514
        %v6589 = vunpack.c.l.b16 %v6515
        %v6590 = vunpack.c.l.b16 %v6516
        %v6591 = vunpack.c.l.b16 %v6517
        %v6592 = vunpack.c.l.b16 %v6518
        %v6593 = vunpack.c.l.b16 %v6519
        %v6594 = vunpack.c.l.b16 %v6520
        %v6595 = vunpack.c.l.b16 %v6521
        %v6596 = vunpack.c.l.b16 %v6522
        %v6597 = vunpack.c.l.b16 %v6523
        %v6598 = vunpack.c.l.b16 %v6524
        %v6599 = vunpack.c.l.b16 %v6525
        %v6600 = vunpack.c.l.b16 %v6526
        %v6601 = vunpack.c.l.b16 %v6527
        %v6602 = vunpack.c.l.b16 %v6528
        %v6603 = vunpack.c.l.b16 %v6529
        %v6604 = vunpack.c.l.b16 %v6530
        %v6605 = vunpack.c.l.b16 %v6531
        %v6606 = vunpack.c.l.b16 %v6532
        %v6607 = vunpack.c.l.b16 %v6533
        %v6608 = vunpack.c.l.b16 %v6534
        %v6609 = vunpack.c.l.b16 %v6535
        %v6610 = vunpack.c.l.b16 %v6536
        %v6611 = vunpack.c.l.b16 %v6537
        %v6612 = vunpack.c.l.b16 %v6538
        %v6613 = vpack.c.b16 %v6577, %v6576
        %v6614 = vpack.c.b16 %v6579, %v6578
        %v6615 = vpack.c.b16 %v6581, %v6580
        %v6616 = vpack.c.b16 %v6583, %v6582
        %v6617 = vpack.c.b16 %v6585, %v6584
        %v6618 = vpack.c.b16 %v6587, %v6586
        %v6619 = vpack.c.b16 %v6589, %v6588
        %v6620 = vpack.c.b16 %v6591, %v6590
        %v6621 = vpack.c.b16 %v6593, %v6592
        %v6622 = vpack.c.b16 %v6595, %v6594
        %v6623 = vpack.c.b16 %v6597, %v6596
        %v6624 = vpack.c.b16 %v6599, %v6598
        %v6625 = vpack.c.b16 %v6601, %v6600
        %v6626 = vpack.c.b16 %v6603, %v6602
        %v6627 = vpack.c.b16 %v6605, %v6604
        %v6628 = vpack.c.b16 %v6607, %v6606
        %v6629 = vpack.c.b16 %v6609, %v6608
        %v6630 = vpack.c.b16 %v6611, %v6610
        %v6631 = vpack.c.b16 %v6612, %v6612
        %v6632 = vrot.slane %v6613, 2
        %v6633 = vrot.slane %v6614, 2
        %v6634 = vsel %vm1716, %v6632, %v6633
        %v6635 = vrot.slane %v6615, 2
        %v6636 = vsel %vm1716, %v6633, %v6635
        %v6637 = vrot.slane %v6616, 2
        %v6638 = vsel %vm1716, %v6635, %v6637
        %v6639 = vrot.slane %v6617, 2
        %v6640 = vsel %vm1716, %v6637, %v6639
        %v6641 = vrot.slane %v6618, 2
        %v6642 = vsel %vm1716, %v6639, %v6641
        %v6643 = vrot.slane %v6619, 2
        %v6644 = vsel %vm1716, %v6641, %v6643
        %v6645 = vrot.slane %v6620, 2
        %v6646 = vsel %vm1716, %v6643, %v6645
        %v6647 = vrot.slane %v6621, 2
        %v6648 = vsel %vm1716, %v6645, %v6647
        %v6649 = vrot.slane %v6622, 2
        %v6650 = vsel %vm1716, %v6647, %v6649
        %v6651 = vrot.slane %v6623, 2
        %v6652 = vsel %vm1716, %v6649, %v6651
        %v6653 = vrot.slane %v6624, 2
        %v6654 = vsel %vm1716, %v6651, %v6653
        %v6655 = vrot.slane %v6625, 2
        %v6656 = vsel %vm1716, %v6653, %v6655
        %v6657 = vrot.slane %v6626, 2
        %v6658 = vsel %vm1716, %v6655, %v6657
        %v6659 = vrot.slane %v6627, 2
        %v6660 = vsel %vm1716, %v6657, %v6659
        %v6661 = vrot.slane %v6628, 2
        %v6662 = vsel %vm1716, %v6659, %v6661
        %v6663 = vrot.slane %v6629, 2
        %v6664 = vsel %vm1716, %v6661, %v6663
        %v6665 = vrot.slane %v6630, 2
        %v6666 = vsel %vm1716, %v6663, %v6665
        %v6667 = vrot.slane %v6631, 2
        %v6668 = vsel %vm1716, %v6665, %v6667
        %6687 = vst [vmem:[#allocation3 + $0x30] sm:$0xff] %v6634
        %6688 = vst [vmem:[#allocation3 + $0x78] sm:$0xff] %v6636
        %6689 = vst [vmem:[#allocation3 + $0xc0] sm:$0xff] %v6638
        %6690 = vst [vmem:[#allocation3 + $0x108] sm:$0xff] %v6640
        %6691 = vst [vmem:[#allocation3 + $0x150] sm:$0xff] %v6642
        %6692 = vst [vmem:[#allocation3 + $0x198] sm:$0xff] %v6644
        %6693 = vst [vmem:[#allocation3 + $0x1e0] sm:$0xff] %v6646
        %6694 = vst [vmem:[#allocation3 + $0x228] sm:$0xff] %v6648
        %6695 = vst [vmem:[#allocation3 + $0x270] sm:$0xff] %v6650
        %6696 = vst [vmem:[#allocation3 + $0x2b8] sm:$0xff] %v6652
        %6697 = vst [vmem:[#allocation3 + $0x300] sm:$0xff] %v6654
        %6698 = vst [vmem:[#allocation3 + $0x348] sm:$0xff] %v6656
        %6699 = vst [vmem:[#allocation3 + $0x390] sm:$0xff] %v6658
        %6700 = vst [vmem:[#allocation3 + $0x3d8] sm:$0xff] %v6660
        %6701 = vst [vmem:[#allocation3 + $0x420] sm:$0xff] %v6662
        %6702 = vst [vmem:[#allocation3 + $0x468] sm:$0xff] %v6664
        %6703 = vst [vmem:[#allocation3 + $0x4b0] sm:$0xff] %v6666
        %6704 = vst [vmem:[#allocation3 + $0x4f8] sm:$0xff] %v6668
        %v6705 = vld [vmem:[#allocation2 + $0x10] sm:$0xc]
        %v6706 = vld [vmem:[#allocation2 + $0x14] sm:$0xf]
        %v6707 = vld [vmem:[#allocation2 + $0x18] sm:$0xf]
        %v6708 = vld [vmem:[#allocation2 + $0x1c] sm:$0xf]
        %v6709 = vld [vmem:[#allocation2 + $0x20] sm:$0xf]
        %v6710 = vld [vmem:[#allocation2 + $0x24] sm:$0xf]
        %v6711 = vld [vmem:[#allocation2 + $0x28] sm:$0xf]
        %v6712 = vld [vmem:[#allocation2 + $0x2c] sm:$0xf]
        %v6713 = vld [vmem:[#allocation2 + $0x30] sm:$0xf]
        %v6714 = vld [vmem:[#allocation2 + $0x34] sm:$0xf]
        %v6715 = vld [vmem:[#allocation2 + $0x38] sm:$0xf]
        %v6716 = vld [vmem:[#allocation2 + $0x3c] sm:$0xf]
        %v6717 = vld [vmem:[#allocation2 + $0x40] sm:$0xf]
        %v6718 = vld [vmem:[#allocation2 + $0x44] sm:$0xf]
        %v6719 = vld [vmem:[#allocation2 + $0x48] sm:$0xf]
        %v6720 = vld [vmem:[#allocation2 + $0x4c] sm:$0xf]
        %v6721 = vld [vmem:[#allocation2 + $0x50] sm:$0xf]
        %v6722 = vld [vmem:[#allocation2 + $0x54] sm:$0xf]
        %v6723 = vld [vmem:[#allocation2 + $0x58] sm:$0xf]
        %v6724 = vld [vmem:[#allocation2 + $0x5c] sm:$0xf]
        %v6725 = vld [vmem:[#allocation2 + $0x60] sm:$0xf]
        %v6726 = vld [vmem:[#allocation2 + $0x64] sm:$0xf]
        %v6727 = vld [vmem:[#allocation2 + $0x68] sm:$0xf]
        %v6728 = vld [vmem:[#allocation2 + $0x6c] sm:$0xf]
        %v6729 = vld [vmem:[#allocation2 + $0x70] sm:$0xf]
        %v6730 = vld [vmem:[#allocation2 + $0x74] sm:$0xf]
        %v6731 = vld [vmem:[#allocation2 + $0x78] sm:$0xf]
        %v6732 = vld [vmem:[#allocation2 + $0x7c] sm:$0xf]
        %v6733 = vld [vmem:[#allocation2 + $0x80] sm:$0xf]
        %v6734 = vld [vmem:[#allocation2 + $0x84] sm:$0xf]
        %v6735 = vld [vmem:[#allocation2 + $0x88] sm:$0xf]
        %v6736 = vld [vmem:[#allocation2 + $0x8c] sm:$0xf]
        %v6737 = vld [vmem:[#allocation2 + $0x90] sm:$0xf]
        %v6738 = vld [vmem:[#allocation2 + $0x94] sm:$0xf]
        %v6739 = vld [vmem:[#allocation2 + $0x98] sm:$0xf]
        %v6740 = vld [vmem:[#allocation2 + $0x9c] sm:$0xf]
        %v6741 = vld [vmem:[#allocation2 + $0xa0] sm:$0x7]
        %v6779 = vunpack.c.l.b16 %v6705
        %v6780 = vunpack.c.l.b16 %v6706
        %v6781 = vunpack.c.l.b16 %v6707
        %v6782 = vunpack.c.l.b16 %v6708
        %v6783 = vunpack.c.l.b16 %v6709
        %v6784 = vunpack.c.l.b16 %v6710
        %v6785 = vunpack.c.l.b16 %v6711
        %v6786 = vunpack.c.l.b16 %v6712
        %v6787 = vunpack.c.l.b16 %v6713
        %v6788 = vunpack.c.l.b16 %v6714
        %v6789 = vunpack.c.l.b16 %v6715
        %v6790 = vunpack.c.l.b16 %v6716
        %v6791 = vunpack.c.l.b16 %v6717
        %v6792 = vunpack.c.l.b16 %v6718
        %v6793 = vunpack.c.l.b16 %v6719
        %v6794 = vunpack.c.l.b16 %v6720
        %v6795 = vunpack.c.l.b16 %v6721
        %v6796 = vunpack.c.l.b16 %v6722
        %v6797 = vunpack.c.l.b16 %v6723
        %v6798 = vunpack.c.l.b16 %v6724
        %v6799 = vunpack.c.l.b16 %v6725
        %v6800 = vunpack.c.l.b16 %v6726
        %v6801 = vunpack.c.l.b16 %v6727
        %v6802 = vunpack.c.l.b16 %v6728
        %v6803 = vunpack.c.l.b16 %v6729
        %v6804 = vunpack.c.l.b16 %v6730
        %v6805 = vunpack.c.l.b16 %v6731
        %v6806 = vunpack.c.l.b16 %v6732
        %v6807 = vunpack.c.l.b16 %v6733
        %v6808 = vunpack.c.l.b16 %v6734
        %v6809 = vunpack.c.l.b16 %v6735
        %v6810 = vunpack.c.l.b16 %v6736
        %v6811 = vunpack.c.l.b16 %v6737
        %v6812 = vunpack.c.l.b16 %v6738
        %v6813 = vunpack.c.l.b16 %v6739
        %v6814 = vunpack.c.l.b16 %v6740
        %v6815 = vunpack.c.l.b16 %v6741
        %v6816 = vpack.c.b16 %v6780, %v6779
        %v6817 = vpack.c.b16 %v6782, %v6781
        %v6818 = vpack.c.b16 %v6784, %v6783
        %v6819 = vpack.c.b16 %v6786, %v6785
        %v6820 = vpack.c.b16 %v6788, %v6787
        %v6821 = vpack.c.b16 %v6790, %v6789
        %v6822 = vpack.c.b16 %v6792, %v6791
        %v6823 = vpack.c.b16 %v6794, %v6793
        %v6824 = vpack.c.b16 %v6796, %v6795
        %v6825 = vpack.c.b16 %v6798, %v6797
        %v6826 = vpack.c.b16 %v6800, %v6799
        %v6827 = vpack.c.b16 %v6802, %v6801
        %v6828 = vpack.c.b16 %v6804, %v6803
        %v6829 = vpack.c.b16 %v6806, %v6805
        %v6830 = vpack.c.b16 %v6808, %v6807
        %v6831 = vpack.c.b16 %v6810, %v6809
        %v6832 = vpack.c.b16 %v6812, %v6811
        %v6833 = vpack.c.b16 %v6814, %v6813
        %v6834 = vpack.c.b16 %v6815, %v6815
        %v6836 = vshrl.u32 %v6816, 16
        %v6838 = vrot.slane %v6836, 2
        %v6839 = vshll.u32 %v6816, 16
        %v6841 = vrot.slane %v6839, 3
        %v6842 = vor.u32 %v6838, %v6841
        %v6844 = vshrl.u32 %v6817, 16
        %v6846 = vrot.slane %v6844, 2
        %v6847 = vshll.u32 %v6817, 16
        %v6849 = vrot.slane %v6847, 3
        %v6850 = vor.u32 %v6846, %v6849
        %v6851 = vsel %vm2123, %v6842, %v6850
        %v6853 = vshrl.u32 %v6818, 16
        %v6855 = vrot.slane %v6853, 2
        %v6856 = vshll.u32 %v6818, 16
        %v6858 = vrot.slane %v6856, 3
        %v6859 = vor.u32 %v6855, %v6858
        %v6860 = vsel %vm2123, %v6850, %v6859
        %v6862 = vshrl.u32 %v6819, 16
        %v6864 = vrot.slane %v6862, 2
        %v6865 = vshll.u32 %v6819, 16
        %v6867 = vrot.slane %v6865, 3
        %v6868 = vor.u32 %v6864, %v6867
        %v6869 = vsel %vm2123, %v6859, %v6868
        %v6871 = vshrl.u32 %v6820, 16
        %v6873 = vrot.slane %v6871, 2
        %v6874 = vshll.u32 %v6820, 16
        %v6876 = vrot.slane %v6874, 3
        %v6877 = vor.u32 %v6873, %v6876
        %v6878 = vsel %vm2123, %v6868, %v6877
        %v6880 = vshrl.u32 %v6821, 16
        %v6882 = vrot.slane %v6880, 2
        %v6883 = vshll.u32 %v6821, 16
        %v6885 = vrot.slane %v6883, 3
        %v6886 = vor.u32 %v6882, %v6885
        %v6887 = vsel %vm2123, %v6877, %v6886
        %v6889 = vshrl.u32 %v6822, 16
        %v6891 = vrot.slane %v6889, 2
        %v6892 = vshll.u32 %v6822, 16
        %v6894 = vrot.slane %v6892, 3
        %v6895 = vor.u32 %v6891, %v6894
        %v6896 = vsel %vm2123, %v6886, %v6895
        %v6898 = vshrl.u32 %v6823, 16
        %v6900 = vrot.slane %v6898, 2
        %v6901 = vshll.u32 %v6823, 16
        %v6903 = vrot.slane %v6901, 3
        %v6904 = vor.u32 %v6900, %v6903
        %v6905 = vsel %vm2123, %v6895, %v6904
        %v6907 = vshrl.u32 %v6824, 16
        %v6909 = vrot.slane %v6907, 2
        %v6910 = vshll.u32 %v6824, 16
        %v6912 = vrot.slane %v6910, 3
        %v6913 = vor.u32 %v6909, %v6912
        %v6914 = vsel %vm2123, %v6904, %v6913
        %v6916 = vshrl.u32 %v6825, 16
        %v6918 = vrot.slane %v6916, 2
        %v6919 = vshll.u32 %v6825, 16
        %v6921 = vrot.slane %v6919, 3
        %v6922 = vor.u32 %v6918, %v6921
        %v6923 = vsel %vm2123, %v6913, %v6922
        %v6925 = vshrl.u32 %v6826, 16
        %v6927 = vrot.slane %v6925, 2
        %v6928 = vshll.u32 %v6826, 16
        %v6930 = vrot.slane %v6928, 3
        %v6931 = vor.u32 %v6927, %v6930
        %v6932 = vsel %vm2123, %v6922, %v6931
        %v6934 = vshrl.u32 %v6827, 16
        %v6936 = vrot.slane %v6934, 2
        %v6937 = vshll.u32 %v6827, 16
        %v6939 = vrot.slane %v6937, 3
        %v6940 = vor.u32 %v6936, %v6939
        %v6941 = vsel %vm2123, %v6931, %v6940
        %v6943 = vshrl.u32 %v6828, 16
        %v6945 = vrot.slane %v6943, 2
        %v6946 = vshll.u32 %v6828, 16
        %v6948 = vrot.slane %v6946, 3
        %v6949 = vor.u32 %v6945, %v6948
        %v6950 = vsel %vm2123, %v6940, %v6949
        %v6952 = vshrl.u32 %v6829, 16
        %v6954 = vrot.slane %v6952, 2
        %v6955 = vshll.u32 %v6829, 16
        %v6957 = vrot.slane %v6955, 3
        %v6958 = vor.u32 %v6954, %v6957
        %v6959 = vsel %vm2123, %v6949, %v6958
        %v6961 = vshrl.u32 %v6830, 16
        %v6963 = vrot.slane %v6961, 2
        %v6964 = vshll.u32 %v6830, 16
        %v6966 = vrot.slane %v6964, 3
        %v6967 = vor.u32 %v6963, %v6966
        %v6968 = vsel %vm2123, %v6958, %v6967
        %v6970 = vshrl.u32 %v6831, 16
        %v6972 = vrot.slane %v6970, 2
        %v6973 = vshll.u32 %v6831, 16
        %v6975 = vrot.slane %v6973, 3
        %v6976 = vor.u32 %v6972, %v6975
        %v6977 = vsel %vm2123, %v6967, %v6976
        %v6979 = vshrl.u32 %v6832, 16
        %v6981 = vrot.slane %v6979, 2
        %v6982 = vshll.u32 %v6832, 16
        %v6984 = vrot.slane %v6982, 3
        %v6985 = vor.u32 %v6981, %v6984
        %v6986 = vsel %vm2123, %v6976, %v6985
        %v6988 = vshrl.u32 %v6833, 16
        %v6990 = vrot.slane %v6988, 2
        %v6991 = vshll.u32 %v6833, 16
        %v6993 = vrot.slane %v6991, 3
        %v6994 = vor.u32 %v6990, %v6993
        %v6995 = vsel %vm2123, %v6985, %v6994
        %v6997 = vshrl.u32 %v6834, 16
        %v6999 = vrot.slane %v6997, 2
        %v7000 = vshll.u32 %v6834, 16
        %v7002 = vrot.slane %v7000, 3
        %v7003 = vor.u32 %v6999, %v7002
        %v7004 = vsel %vm2123, %v6994, %v7003
        %7023 = vst [vmem:[#allocation3 + $0x38] sm:$0xff] %v6851
        %7024 = vst [vmem:[#allocation3 + $0x80] sm:$0xff] %v6860
        %7025 = vst [vmem:[#allocation3 + $0xc8] sm:$0xff] %v6869
        %7026 = vst [vmem:[#allocation3 + $0x110] sm:$0xff] %v6878
        %7027 = vst [vmem:[#allocation3 + $0x158] sm:$0xff] %v6887
        %7028 = vst [vmem:[#allocation3 + $0x1a0] sm:$0xff] %v6896
        %7029 = vst [vmem:[#allocation3 + $0x1e8] sm:$0xff] %v6905
        %7030 = vst [vmem:[#allocation3 + $0x230] sm:$0xff] %v6914
        %7031 = vst [vmem:[#allocation3 + $0x278] sm:$0xff] %v6923
        %7032 = vst [vmem:[#allocation3 + $0x2c0] sm:$0xff] %v6932
        %7033 = vst [vmem:[#allocation3 + $0x308] sm:$0xff] %v6941
        %7034 = vst [vmem:[#allocation3 + $0x350] sm:$0xff] %v6950
        %7035 = vst [vmem:[#allocation3 + $0x398] sm:$0xff] %v6959
        %7036 = vst [vmem:[#allocation3 + $0x3e0] sm:$0xff] %v6968
        %7037 = vst [vmem:[#allocation3 + $0x428] sm:$0xff] %v6977
        %7038 = vst [vmem:[#allocation3 + $0x470] sm:$0xff] %v6986
        %7039 = vst [vmem:[#allocation3 + $0x4b8] sm:$0xff] %v6995
        %7040 = vst [vmem:[#allocation3 + $0x500] sm:$0xff] %v7004
        %v7041 = vld [vmem:[#allocation2 + $0x10] sm:$0x8]
        %v7042 = vld [vmem:[#allocation2 + $0x14] sm:$0xf]
        %v7043 = vld [vmem:[#allocation2 + $0x18] sm:$0xf]
        %v7044 = vld [vmem:[#allocation2 + $0x1c] sm:$0xf]
        %v7045 = vld [vmem:[#allocation2 + $0x20] sm:$0xf]
        %v7046 = vld [vmem:[#allocation2 + $0x24] sm:$0xf]
        %v7047 = vld [vmem:[#allocation2 + $0x28] sm:$0xf]
        %v7048 = vld [vmem:[#allocation2 + $0x2c] sm:$0xf]
        %v7049 = vld [vmem:[#allocation2 + $0x30] sm:$0xf]
        %v7050 = vld [vmem:[#allocation2 + $0x34] sm:$0xf]
        %v7051 = vld [vmem:[#allocation2 + $0x38] sm:$0xf]
        %v7052 = vld [vmem:[#allocation2 + $0x3c] sm:$0xf]
        %v7053 = vld [vmem:[#allocation2 + $0x40] sm:$0xf]
        %v7054 = vld [vmem:[#allocation2 + $0x44] sm:$0xf]
        %v7055 = vld [vmem:[#allocation2 + $0x48] sm:$0xf]
        %v7056 = vld [vmem:[#allocation2 + $0x4c] sm:$0xf]
        %v7057 = vld [vmem:[#allocation2 + $0x50] sm:$0xf]
        %v7058 = vld [vmem:[#allocation2 + $0x54] sm:$0xf]
        %v7059 = vld [vmem:[#allocation2 + $0x58] sm:$0xf]
        %v7060 = vld [vmem:[#allocation2 + $0x5c] sm:$0xf]
        %v7061 = vld [vmem:[#allocation2 + $0x60] sm:$0xf]
        %v7062 = vld [vmem:[#allocation2 + $0x64] sm:$0xf]
        %v7063 = vld [vmem:[#allocation2 + $0x68] sm:$0xf]
        %v7064 = vld [vmem:[#allocation2 + $0x6c] sm:$0xf]
        %v7065 = vld [vmem:[#allocation2 + $0x70] sm:$0xf]
        %v7066 = vld [vmem:[#allocation2 + $0x74] sm:$0xf]
        %v7067 = vld [vmem:[#allocation2 + $0x78] sm:$0xf]
        %v7068 = vld [vmem:[#allocation2 + $0x7c] sm:$0xf]
        %v7069 = vld [vmem:[#allocation2 + $0x80] sm:$0xf]
        %v7070 = vld [vmem:[#allocation2 + $0x84] sm:$0xf]
        %v7071 = vld [vmem:[#allocation2 + $0x88] sm:$0xf]
        %v7072 = vld [vmem:[#allocation2 + $0x8c] sm:$0xf]
        %v7073 = vld [vmem:[#allocation2 + $0x90] sm:$0xf]
        %v7074 = vld [vmem:[#allocation2 + $0x94] sm:$0xf]
        %v7075 = vld [vmem:[#allocation2 + $0x98] sm:$0xf]
        %v7076 = vld [vmem:[#allocation2 + $0x9c] sm:$0xf]
        %v7077 = vld [vmem:[#allocation2 + $0xa0] sm:$0x7]
        %v7115 = vunpack.c.l.b16 %v7041
        %v7116 = vunpack.c.l.b16 %v7042
        %v7117 = vunpack.c.l.b16 %v7043
        %v7118 = vunpack.c.l.b16 %v7044
        %v7119 = vunpack.c.l.b16 %v7045
        %v7120 = vunpack.c.l.b16 %v7046
        %v7121 = vunpack.c.l.b16 %v7047
        %v7122 = vunpack.c.l.b16 %v7048
        %v7123 = vunpack.c.l.b16 %v7049
        %v7124 = vunpack.c.l.b16 %v7050
        %v7125 = vunpack.c.l.b16 %v7051
        %v7126 = vunpack.c.l.b16 %v7052
        %v7127 = vunpack.c.l.b16 %v7053
        %v7128 = vunpack.c.l.b16 %v7054
        %v7129 = vunpack.c.l.b16 %v7055
        %v7130 = vunpack.c.l.b16 %v7056
        %v7131 = vunpack.c.l.b16 %v7057
        %v7132 = vunpack.c.l.b16 %v7058
        %v7133 = vunpack.c.l.b16 %v7059
        %v7134 = vunpack.c.l.b16 %v7060
        %v7135 = vunpack.c.l.b16 %v7061
        %v7136 = vunpack.c.l.b16 %v7062
        %v7137 = vunpack.c.l.b16 %v7063
        %v7138 = vunpack.c.l.b16 %v7064
        %v7139 = vunpack.c.l.b16 %v7065
        %v7140 = vunpack.c.l.b16 %v7066
        %v7141 = vunpack.c.l.b16 %v7067
        %v7142 = vunpack.c.l.b16 %v7068
        %v7143 = vunpack.c.l.b16 %v7069
        %v7144 = vunpack.c.l.b16 %v7070
        %v7145 = vunpack.c.l.b16 %v7071
        %v7146 = vunpack.c.l.b16 %v7072
        %v7147 = vunpack.c.l.b16 %v7073
        %v7148 = vunpack.c.l.b16 %v7074
        %v7149 = vunpack.c.l.b16 %v7075
        %v7150 = vunpack.c.l.b16 %v7076
        %v7151 = vunpack.c.l.b16 %v7077
        %v7152 = vpack.c.b16 %v7116, %v7115
        %v7153 = vpack.c.b16 %v7118, %v7117
        %v7154 = vpack.c.b16 %v7120, %v7119
        %v7155 = vpack.c.b16 %v7122, %v7121
        %v7156 = vpack.c.b16 %v7124, %v7123
        %v7157 = vpack.c.b16 %v7126, %v7125
        %v7158 = vpack.c.b16 %v7128, %v7127
        %v7159 = vpack.c.b16 %v7130, %v7129
        %v7160 = vpack.c.b16 %v7132, %v7131
        %v7161 = vpack.c.b16 %v7134, %v7133
        %v7162 = vpack.c.b16 %v7136, %v7135
        %v7163 = vpack.c.b16 %v7138, %v7137
        %v7164 = vpack.c.b16 %v7140, %v7139
        %v7165 = vpack.c.b16 %v7142, %v7141
        %v7166 = vpack.c.b16 %v7144, %v7143
        %v7167 = vpack.c.b16 %v7146, %v7145
        %v7168 = vpack.c.b16 %v7148, %v7147
        %v7169 = vpack.c.b16 %v7150, %v7149
        %v7170 = vpack.c.b16 %v7151, %v7151
        %v7171 = vrot.slane %v7152, 3
        %v7172 = vrot.slane %v7153, 3
        %v7173 = vsel %vm2460, %v7171, %v7172
        %v7174 = vrot.slane %v7154, 3
        %v7175 = vsel %vm2460, %v7172, %v7174
        %v7176 = vrot.slane %v7155, 3
        %v7177 = vsel %vm2460, %v7174, %v7176
        %v7178 = vrot.slane %v7156, 3
        %v7179 = vsel %vm2460, %v7176, %v7178
        %v7180 = vrot.slane %v7157, 3
        %v7181 = vsel %vm2460, %v7178, %v7180
        %v7182 = vrot.slane %v7158, 3
        %v7183 = vsel %vm2460, %v7180, %v7182
        %v7184 = vrot.slane %v7159, 3
        %v7185 = vsel %vm2460, %v7182, %v7184
        %v7186 = vrot.slane %v7160, 3
        %v7187 = vsel %vm2460, %v7184, %v7186
        %v7188 = vrot.slane %v7161, 3
        %v7189 = vsel %vm2460, %v7186, %v7188
        %v7190 = vrot.slane %v7162, 3
        %v7191 = vsel %vm2460, %v7188, %v7190
        %v7192 = vrot.slane %v7163, 3
        %v7193 = vsel %vm2460, %v7190, %v7192
        %v7194 = vrot.slane %v7164, 3
        %v7195 = vsel %vm2460, %v7192, %v7194
        %v7196 = vrot.slane %v7165, 3
        %v7197 = vsel %vm2460, %v7194, %v7196
        %v7198 = vrot.slane %v7166, 3
        %v7199 = vsel %vm2460, %v7196, %v7198
        %v7200 = vrot.slane %v7167, 3
        %v7201 = vsel %vm2460, %v7198, %v7200
        %v7202 = vrot.slane %v7168, 3
        %v7203 = vsel %vm2460, %v7200, %v7202
        %v7204 = vrot.slane %v7169, 3
        %v7205 = vsel %vm2460, %v7202, %v7204
        %v7206 = vrot.slane %v7170, 3
        %v7207 = vsel %vm2460, %v7204, %v7206
        %7226 = vst [vmem:[#allocation3 + $0x40] sm:$0xff] %v7173
        %7227 = vst [vmem:[#allocation3 + $0x88] sm:$0xff] %v7175
        %7228 = vst [vmem:[#allocation3 + $0xd0] sm:$0xff] %v7177
        %7229 = vst [vmem:[#allocation3 + $0x118] sm:$0xff] %v7179
        %7230 = vst [vmem:[#allocation3 + $0x160] sm:$0xff] %v7181
        %7231 = vst [vmem:[#allocation3 + $0x1a8] sm:$0xff] %v7183
        %7232 = vst [vmem:[#allocation3 + $0x1f0] sm:$0xff] %v7185
        %7233 = vst [vmem:[#allocation3 + $0x238] sm:$0xff] %v7187
        %7234 = vst [vmem:[#allocation3 + $0x280] sm:$0xff] %v7189
        %7235 = vst [vmem:[#allocation3 + $0x2c8] sm:$0xff] %v7191
        %7236 = vst [vmem:[#allocation3 + $0x310] sm:$0xff] %v7193
        %7237 = vst [vmem:[#allocation3 + $0x358] sm:$0xff] %v7195
        %7238 = vst [vmem:[#allocation3 + $0x3a0] sm:$0xff] %v7197
        %7239 = vst [vmem:[#allocation3 + $0x3e8] sm:$0xff] %v7199
        %7240 = vst [vmem:[#allocation3 + $0x430] sm:$0xff] %v7201
        %7241 = vst [vmem:[#allocation3 + $0x478] sm:$0xff] %v7203
        %7242 = vst [vmem:[#allocation3 + $0x4c0] sm:$0xff] %v7205
        %7243 = vst [vmem:[#allocation3 + $0x508] sm:$0xff] %v7207
        %v7244 = vld [vmem:[#allocation3] sm:$0xff]
        %v7245 = vld [vmem:[#allocation3 + $0x8] sm:$0xff]
        %v7246 = vld [vmem:[#allocation3 + $0x10] sm:$0xff]
        %v7247 = vld [vmem:[#allocation3 + $0x18] sm:$0xff]
        %v7248 = vld [vmem:[#allocation3 + $0x20] sm:$0xff]
        %v7249 = vld [vmem:[#allocation3 + $0x28] sm:$0xff]
        %v7250 = vld [vmem:[#allocation3 + $0x30] sm:$0xff]
        %v7251 = vld [vmem:[#allocation3 + $0x38] sm:$0xff]
        %v7252 = vld [vmem:[#allocation3 + $0x40] sm:$0xff]
        %v7253 = vld [vmem:[#allocation3 + $0x48] sm:$0xff]
        %v7254 = vld [vmem:[#allocation3 + $0x50] sm:$0xff]
        %v7255 = vld [vmem:[#allocation3 + $0x58] sm:$0xff]
        %v7256 = vld [vmem:[#allocation3 + $0x60] sm:$0xff]
        %v7257 = vld [vmem:[#allocation3 + $0x68] sm:$0xff]
        %v7258 = vld [vmem:[#allocation3 + $0x70] sm:$0xff]
        %v7259 = vld [vmem:[#allocation3 + $0x78] sm:$0xff]
        %v7260 = vld [vmem:[#allocation3 + $0x80] sm:$0xff]
        %v7261 = vld [vmem:[#allocation3 + $0x88] sm:$0xff]
        %v7262 = vld [vmem:[#allocation3 + $0x90] sm:$0xff]
        %v7263 = vld [vmem:[#allocation3 + $0x98] sm:$0xff]
        %v7264 = vld [vmem:[#allocation3 + $0xa0] sm:$0xff]
        %v7265 = vld [vmem:[#allocation3 + $0xa8] sm:$0xff]
        %v7266 = vld [vmem:[#allocation3 + $0xb0] sm:$0xff]
        %v7267 = vld [vmem:[#allocation3 + $0xb8] sm:$0xff]
        %v7268 = vld [vmem:[#allocation3 + $0xc0] sm:$0xff]
        %v7269 = vld [vmem:[#allocation3 + $0xc8] sm:$0xff]
        %v7270 = vld [vmem:[#allocation3 + $0xd0] sm:$0xff]
        %v7271 = vld [vmem:[#allocation3 + $0xd8] sm:$0xff]
        %v7272 = vld [vmem:[#allocation3 + $0xe0] sm:$0xff]
        %v7273 = vld [vmem:[#allocation3 + $0xe8] sm:$0xff]
        %v7274 = vld [vmem:[#allocation3 + $0xf0] sm:$0xff]
        %v7275 = vld [vmem:[#allocation3 + $0xf8] sm:$0xff]
        %v7276 = vld [vmem:[#allocation3 + $0x100] sm:$0xff]
        %v7277 = vld [vmem:[#allocation3 + $0x108] sm:$0xff]
        %v7278 = vld [vmem:[#allocation3 + $0x110] sm:$0xff]
        %v7279 = vld [vmem:[#allocation3 + $0x118] sm:$0xff]
        %v7280 = vld [vmem:[#allocation3 + $0x120] sm:$0xff]
        %v7281 = vld [vmem:[#allocation3 + $0x128] sm:$0xff]
        %v7282 = vld [vmem:[#allocation3 + $0x130] sm:$0xff]
        %v7283 = vld [vmem:[#allocation3 + $0x138] sm:$0xff]
        %v7284 = vld [vmem:[#allocation3 + $0x140] sm:$0xff]
        %v7285 = vld [vmem:[#allocation3 + $0x148] sm:$0xff]
        %v7286 = vld [vmem:[#allocation3 + $0x150] sm:$0xff]
        %v7287 = vld [vmem:[#allocation3 + $0x158] sm:$0xff]
        %v7288 = vld [vmem:[#allocation3 + $0x160] sm:$0xff]
        %v7289 = vld [vmem:[#allocation3 + $0x168] sm:$0xff]
        %v7290 = vld [vmem:[#allocation3 + $0x170] sm:$0xff]
        %v7291 = vld [vmem:[#allocation3 + $0x178] sm:$0xff]
        %v7292 = vld [vmem:[#allocation3 + $0x180] sm:$0xff]
        %v7293 = vld [vmem:[#allocation3 + $0x188] sm:$0xff]
        %v7294 = vld [vmem:[#allocation3 + $0x190] sm:$0xff]
        %v7295 = vld [vmem:[#allocation3 + $0x198] sm:$0xff]
        %v7296 = vld [vmem:[#allocation3 + $0x1a0] sm:$0xff]
        %v7297 = vld [vmem:[#allocation3 + $0x1a8] sm:$0xff]
        %v7298 = vld [vmem:[#allocation3 + $0x1b0] sm:$0xff]
        %v7299 = vld [vmem:[#allocation3 + $0x1b8] sm:$0xff]
        %v7300 = vld [vmem:[#allocation3 + $0x1c0] sm:$0xff]
        %v7301 = vld [vmem:[#allocation3 + $0x1c8] sm:$0xff]
        %v7302 = vld [vmem:[#allocation3 + $0x1d0] sm:$0xff]
        %v7303 = vld [vmem:[#allocation3 + $0x1d8] sm:$0xff]
        %v7304 = vld [vmem:[#allocation3 + $0x1e0] sm:$0xff]
        %v7305 = vld [vmem:[#allocation3 + $0x1e8] sm:$0xff]
        %v7306 = vld [vmem:[#allocation3 + $0x1f0] sm:$0xff]
        %v7307 = vld [vmem:[#allocation3 + $0x1f8] sm:$0xff]
        %v7308 = vld [vmem:[#allocation3 + $0x200] sm:$0xff]
        %v7309 = vld [vmem:[#allocation3 + $0x208] sm:$0xff]
        %v7310 = vld [vmem:[#allocation3 + $0x210] sm:$0xff]
        %v7311 = vld [vmem:[#allocation3 + $0x218] sm:$0xff]
        %v7312 = vld [vmem:[#allocation3 + $0x220] sm:$0xff]
        %v7313 = vld [vmem:[#allocation3 + $0x228] sm:$0xff]
        %v7314 = vld [vmem:[#allocation3 + $0x230] sm:$0xff]
        %v7315 = vld [vmem:[#allocation3 + $0x238] sm:$0xff]
        %v7316 = vld [vmem:[#allocation3 + $0x240] sm:$0xff]
        %v7317 = vld [vmem:[#allocation3 + $0x248] sm:$0xff]
        %v7318 = vld [vmem:[#allocation3 + $0x250] sm:$0xff]
        %v7319 = vld [vmem:[#allocation3 + $0x258] sm:$0xff]
        %v7320 = vld [vmem:[#allocation3 + $0x260] sm:$0xff]
        %v7321 = vld [vmem:[#allocation3 + $0x268] sm:$0xff]
        %v7322 = vld [vmem:[#allocation3 + $0x270] sm:$0xff]
        %v7323 = vld [vmem:[#allocation3 + $0x278] sm:$0xff]
        %v7324 = vld [vmem:[#allocation3 + $0x280] sm:$0xff]
        %v7325 = vld [vmem:[#allocation3 + $0x288] sm:$0xff]
        %v7326 = vld [vmem:[#allocation3 + $0x290] sm:$0xff]
        %v7327 = vld [vmem:[#allocation3 + $0x298] sm:$0xff]
        %v7328 = vld [vmem:[#allocation3 + $0x2a0] sm:$0xff]
        %v7329 = vld [vmem:[#allocation3 + $0x2a8] sm:$0xff]
        %v7330 = vld [vmem:[#allocation3 + $0x2b0] sm:$0xff]
        %v7331 = vld [vmem:[#allocation3 + $0x2b8] sm:$0xff]
        %v7332 = vld [vmem:[#allocation3 + $0x2c0] sm:$0xff]
        %v7333 = vld [vmem:[#allocation3 + $0x2c8] sm:$0xff]
        %v7334 = vld [vmem:[#allocation3 + $0x2d0] sm:$0xff]
        %v7335 = vld [vmem:[#allocation3 + $0x2d8] sm:$0xff]
        %v7336 = vld [vmem:[#allocation3 + $0x2e0] sm:$0xff]
        %v7337 = vld [vmem:[#allocation3 + $0x2e8] sm:$0xff]
        %v7338 = vld [vmem:[#allocation3 + $0x2f0] sm:$0xff]
        %v7339 = vld [vmem:[#allocation3 + $0x2f8] sm:$0xff]
        %v7340 = vld [vmem:[#allocation3 + $0x300] sm:$0xff]
        %v7341 = vld [vmem:[#allocation3 + $0x308] sm:$0xff]
        %v7342 = vld [vmem:[#allocation3 + $0x310] sm:$0xff]
        %v7343 = vld [vmem:[#allocation3 + $0x318] sm:$0xff]
        %v7344 = vld [vmem:[#allocation3 + $0x320] sm:$0xff]
        %v7345 = vld [vmem:[#allocation3 + $0x328] sm:$0xff]
        %v7346 = vld [vmem:[#allocation3 + $0x330] sm:$0xff]
        %v7347 = vld [vmem:[#allocation3 + $0x338] sm:$0xff]
        %v7348 = vld [vmem:[#allocation3 + $0x340] sm:$0xff]
        %v7349 = vld [vmem:[#allocation3 + $0x348] sm:$0xff]
        %v7350 = vld [vmem:[#allocation3 + $0x350] sm:$0xff]
        %v7351 = vld [vmem:[#allocation3 + $0x358] sm:$0xff]
        %v7352 = vld [vmem:[#allocation3 + $0x360] sm:$0xff]
        %v7353 = vld [vmem:[#allocation3 + $0x368] sm:$0xff]
        %v7354 = vld [vmem:[#allocation3 + $0x370] sm:$0xff]
        %v7355 = vld [vmem:[#allocation3 + $0x378] sm:$0xff]
        %v7356 = vld [vmem:[#allocation3 + $0x380] sm:$0xff]
        %v7357 = vld [vmem:[#allocation3 + $0x388] sm:$0xff]
        %v7358 = vld [vmem:[#allocation3 + $0x390] sm:$0xff]
        %v7359 = vld [vmem:[#allocation3 + $0x398] sm:$0xff]
        %v7360 = vld [vmem:[#allocation3 + $0x3a0] sm:$0xff]
        %v7361 = vld [vmem:[#allocation3 + $0x3a8] sm:$0xff]
        %v7362 = vld [vmem:[#allocation3 + $0x3b0] sm:$0xff]
        %v7363 = vld [vmem:[#allocation3 + $0x3b8] sm:$0xff]
        %v7364 = vld [vmem:[#allocation3 + $0x3c0] sm:$0xff]
        %v7365 = vld [vmem:[#allocation3 + $0x3c8] sm:$0xff]
        %v7366 = vld [vmem:[#allocation3 + $0x3d0] sm:$0xff]
        %v7367 = vld [vmem:[#allocation3 + $0x3d8] sm:$0xff]
        %v7368 = vld [vmem:[#allocation3 + $0x3e0] sm:$0xff]
        %v7369 = vld [vmem:[#allocation3 + $0x3e8] sm:$0xff]
        %v7370 = vld [vmem:[#allocation3 + $0x3f0] sm:$0xff]
        %v7371 = vld [vmem:[#allocation3 + $0x3f8] sm:$0xff]
        %v7372 = vld [vmem:[#allocation3 + $0x400] sm:$0xff]
        %v7373 = vld [vmem:[#allocation3 + $0x408] sm:$0xff]
        %v7374 = vld [vmem:[#allocation3 + $0x410] sm:$0xff]
        %v7375 = vld [vmem:[#allocation3 + $0x418] sm:$0xff]
        %v7376 = vld [vmem:[#allocation3 + $0x420] sm:$0xff]
        %v7377 = vld [vmem:[#allocation3 + $0x428] sm:$0xff]
        %v7378 = vld [vmem:[#allocation3 + $0x430] sm:$0xff]
        %v7379 = vld [vmem:[#allocation3 + $0x438] sm:$0xff]
        %v7380 = vld [vmem:[#allocation3 + $0x440] sm:$0xff]
        %v7381 = vld [vmem:[#allocation3 + $0x448] sm:$0xff]
        %v7382 = vld [vmem:[#allocation3 + $0x450] sm:$0xff]
        %v7383 = vld [vmem:[#allocation3 + $0x458] sm:$0xff]
        %v7384 = vld [vmem:[#allocation3 + $0x460] sm:$0xff]
        %v7385 = vld [vmem:[#allocation3 + $0x468] sm:$0xff]
        %v7386 = vld [vmem:[#allocation3 + $0x470] sm:$0xff]
        %v7387 = vld [vmem:[#allocation3 + $0x478] sm:$0xff]
        %v7388 = vld [vmem:[#allocation3 + $0x480] sm:$0xff]
        %v7389 = vld [vmem:[#allocation3 + $0x488] sm:$0xff]
        %v7390 = vld [vmem:[#allocation3 + $0x490] sm:$0xff]
        %v7391 = vld [vmem:[#allocation3 + $0x498] sm:$0xff]
        %v7392 = vld [vmem:[#allocation3 + $0x4a0] sm:$0xff]
        %v7393 = vld [vmem:[#allocation3 + $0x4a8] sm:$0xff]
        %v7394 = vld [vmem:[#allocation3 + $0x4b0] sm:$0xff]
        %v7395 = vld [vmem:[#allocation3 + $0x4b8] sm:$0xff]
        %v7396 = vld [vmem:[#allocation3 + $0x4c0] sm:$0xff]
        %v7397 = vld [vmem:[#allocation3 + $0x4c8] sm:$0xff]
        %v7398 = vld [vmem:[#allocation3 + $0x4d0] sm:$0xff]
        %v7399 = vld [vmem:[#allocation3 + $0x4d8] sm:$0xff]
        %v7400 = vld [vmem:[#allocation3 + $0x4e0] sm:$0xff]
        %v7401 = vld [vmem:[#allocation3 + $0x4e8] sm:$0xff]
        %v7402 = vld [vmem:[#allocation3 + $0x4f0] sm:$0xff]
        %v7403 = vld [vmem:[#allocation3 + $0x4f8] sm:$0xff]
        %v7404 = vld [vmem:[#allocation3 + $0x500] sm:$0xff]
        %v7405 = vld [vmem:[#allocation3 + $0x508] sm:$0xff]
        %v7406 = vld [vmem:[#allocation9] sm:$0xf]
        %v7407 = vld [vmem:[#allocation9 + $0x4] sm:$0xf]
        %v7408 = vld [vmem:[#allocation9 + $0x8] sm:$0xf]
        %v7409 = vld [vmem:[#allocation9 + $0xc] sm:$0xf]
        %v7410 = vld [vmem:[#allocation9 + $0x10] sm:$0xf]
        %v7411 = vld [vmem:[#allocation9 + $0x14] sm:$0xf]
        %v7412 = vld [vmem:[#allocation9 + $0x18] sm:$0xf]
        %v7413 = vld [vmem:[#allocation9 + $0x1c] sm:$0xf]
        %v7414 = vld [vmem:[#allocation9 + $0x20] sm:$0xf]
        %v7415 = vld [vmem:[#allocation9 + $0x24] sm:$0xf]
        %v7416 = vld [vmem:[#allocation9 + $0x28] sm:$0xf]
        %v7417 = vld [vmem:[#allocation9 + $0x2c] sm:$0xf]
        %v7418 = vld [vmem:[#allocation9 + $0x30] sm:$0xf]
        %v7419 = vld [vmem:[#allocation9 + $0x34] sm:$0xf]
        %v7420 = vld [vmem:[#allocation9 + $0x38] sm:$0xf]
        %v7421 = vld [vmem:[#allocation9 + $0x3c] sm:$0xf]
        %v7422 = vld [vmem:[#allocation9 + $0x40] sm:$0xf]
        %v7423 = vld [vmem:[#allocation9 + $0x44] sm:$0xf]
        %v7424 = vld [vmem:[#allocation9 + $0x48] sm:$0xf]
        %v7425 = vld [vmem:[#allocation9 + $0x4c] sm:$0xf]
        %v7426 = vld [vmem:[#allocation9 + $0x50] sm:$0xf]
        %v7427 = vld [vmem:[#allocation9 + $0x54] sm:$0xf]
        %v7428 = vld [vmem:[#allocation9 + $0x58] sm:$0xf]
        %v7429 = vld [vmem:[#allocation9 + $0x5c] sm:$0xf]
        %v7430 = vld [vmem:[#allocation9 + $0x60] sm:$0xf]
        %v7431 = vld [vmem:[#allocation9 + $0x64] sm:$0xf]
        %v7432 = vld [vmem:[#allocation9 + $0x68] sm:$0xf]
        %v7433 = vld [vmem:[#allocation9 + $0x6c] sm:$0xf]
        %v7434 = vld [vmem:[#allocation9 + $0x70] sm:$0xf]
        %v7435 = vld [vmem:[#allocation9 + $0x74] sm:$0xf]
        %v7436 = vld [vmem:[#allocation9 + $0x78] sm:$0xf]
        %v7437 = vld [vmem:[#allocation9 + $0x7c] sm:$0xf]
        %v7438 = vld [vmem:[#allocation9 + $0x80] sm:$0xf]
        %v7439 = vld [vmem:[#allocation9 + $0x84] sm:$0xf]
        %v7440 = vld [vmem:[#allocation9 + $0x88] sm:$0xf]
        %v7441 = vld [vmem:[#allocation9 + $0x8c] sm:$0xf]
        %v7442 = vld [vmem:[#allocation9 + $0x90] sm:$0xf]
        %v7443 = vld [vmem:[#allocation9 + $0x94] sm:$0xf]
        %v7444 = vld [vmem:[#allocation9 + $0x98] sm:$0xf]
        %v7445 = vld [vmem:[#allocation9 + $0x9c] sm:$0xf]
        %v7446 = vld [vmem:[#allocation9 + $0xa0] sm:$0xf]
        %v7447 = vld [vmem:[#allocation9 + $0xa4] sm:$0xf]
        %v7448 = vld [vmem:[#allocation9 + $0xa8] sm:$0xf]
        %v7449 = vld [vmem:[#allocation9 + $0xac] sm:$0xf]
        %v7450 = vld [vmem:[#allocation9 + $0xb0] sm:$0xf]
        %v7451 = vld [vmem:[#allocation9 + $0xb4] sm:$0xf]
        %v7452 = vld [vmem:[#allocation9 + $0xb8] sm:$0xf]
        %v7453 = vld [vmem:[#allocation9 + $0xbc] sm:$0xf]
        %v7454 = vld [vmem:[#allocation9 + $0xc0] sm:$0xf]
        %v7455 = vld [vmem:[#allocation9 + $0xc4] sm:$0xf]
        %v7456 = vld [vmem:[#allocation9 + $0xc8] sm:$0xf]
        %v7457 = vld [vmem:[#allocation9 + $0xcc] sm:$0xf]
        %v7458 = vld [vmem:[#allocation9 + $0xd0] sm:$0xf]
        %v7459 = vld [vmem:[#allocation9 + $0xd4] sm:$0xf]
        %v7460 = vld [vmem:[#allocation9 + $0xd8] sm:$0xf]
        %v7461 = vld [vmem:[#allocation9 + $0xdc] sm:$0xf]
        %v7462 = vld [vmem:[#allocation9 + $0xe0] sm:$0xf]
        %v7463 = vld [vmem:[#allocation9 + $0xe4] sm:$0xf]
        %v7464 = vld [vmem:[#allocation9 + $0xe8] sm:$0xf]
        %v7465 = vld [vmem:[#allocation9 + $0xec] sm:$0xf]
        %v7466 = vld [vmem:[#allocation9 + $0xf0] sm:$0xf]
        %v7467 = vld [vmem:[#allocation9 + $0xf4] sm:$0xf]
        %v7468 = vld [vmem:[#allocation9 + $0xf8] sm:$0xf]
        %v7469 = vld [vmem:[#allocation9 + $0xfc] sm:$0xf]
        %v7470 = vld [vmem:[#allocation9 + $0x100] sm:$0xf]
        %v7471 = vld [vmem:[#allocation9 + $0x104] sm:$0xf]
        %v7472 = vld [vmem:[#allocation9 + $0x108] sm:$0xf]
        %v7473 = vld [vmem:[#allocation9 + $0x10c] sm:$0xf]
        %v7474 = vld [vmem:[#allocation9 + $0x110] sm:$0xf]
        %v7475 = vld [vmem:[#allocation9 + $0x114] sm:$0xf]
        %v7476 = vld [vmem:[#allocation9 + $0x118] sm:$0xf]
        %v7477 = vld [vmem:[#allocation9 + $0x11c] sm:$0xf]
        %v7478 = vld [vmem:[#allocation9 + $0x120] sm:$0xf]
        %v7479 = vld [vmem:[#allocation9 + $0x124] sm:$0xf]
        %v7480 = vld [vmem:[#allocation9 + $0x128] sm:$0xf]
        %v7481 = vld [vmem:[#allocation9 + $0x12c] sm:$0xf]
        %v7482 = vld [vmem:[#allocation9 + $0x130] sm:$0xf]
        %v7483 = vld [vmem:[#allocation9 + $0x134] sm:$0xf]
        %v7484 = vld [vmem:[#allocation9 + $0x138] sm:$0xf]
        %v7485 = vld [vmem:[#allocation9 + $0x13c] sm:$0xf]
        %v7486 = vld [vmem:[#allocation9 + $0x140] sm:$0xf]
        %v7487 = vld [vmem:[#allocation9 + $0x144] sm:$0xf]
        %v7488 = vld [vmem:[#allocation9 + $0x148] sm:$0xf]
        %v7489 = vld [vmem:[#allocation9 + $0x14c] sm:$0xf]
        %v7490 = vld [vmem:[#allocation9 + $0x150] sm:$0xf]
        %v7491 = vld [vmem:[#allocation9 + $0x154] sm:$0xf]
        %v7492 = vld [vmem:[#allocation9 + $0x158] sm:$0xf]
        %v7493 = vld [vmem:[#allocation9 + $0x15c] sm:$0xf]
        %v7494 = vld [vmem:[#allocation9 + $0x160] sm:$0xf]
        %v7495 = vld [vmem:[#allocation9 + $0x164] sm:$0xf]
        %v7496 = vld [vmem:[#allocation9 + $0x168] sm:$0xf]
        %v7497 = vld [vmem:[#allocation9 + $0x16c] sm:$0xf]
        %v7498 = vld [vmem:[#allocation9 + $0x170] sm:$0xf]
        %v7499 = vld [vmem:[#allocation9 + $0x174] sm:$0xf]
        %v7500 = vld [vmem:[#allocation9 + $0x178] sm:$0xf]
        %v7501 = vld [vmem:[#allocation9 + $0x17c] sm:$0xf]
        %v7502 = vld [vmem:[#allocation9 + $0x180] sm:$0xf]
        %v7503 = vld [vmem:[#allocation9 + $0x184] sm:$0xf]
        %v7504 = vld [vmem:[#allocation9 + $0x188] sm:$0xf]
        %v7505 = vld [vmem:[#allocation9 + $0x18c] sm:$0xf]
        %v7506 = vld [vmem:[#allocation9 + $0x190] sm:$0xf]
        %v7507 = vld [vmem:[#allocation9 + $0x194] sm:$0xf]
        %v7508 = vld [vmem:[#allocation9 + $0x198] sm:$0xf]
        %v7509 = vld [vmem:[#allocation9 + $0x19c] sm:$0xf]
        %v7510 = vld [vmem:[#allocation9 + $0x1a0] sm:$0xf]
        %v7511 = vld [vmem:[#allocation9 + $0x1a4] sm:$0xf]
        %v7512 = vld [vmem:[#allocation9 + $0x1a8] sm:$0xf]
        %v7513 = vld [vmem:[#allocation9 + $0x1ac] sm:$0xf]
        %v7514 = vld [vmem:[#allocation9 + $0x1b0] sm:$0xf]
        %v7515 = vld [vmem:[#allocation9 + $0x1b4] sm:$0xf]
        %v7516 = vld [vmem:[#allocation9 + $0x1b8] sm:$0xf]
        %v7517 = vld [vmem:[#allocation9 + $0x1bc] sm:$0xf]
        %v7518 = vld [vmem:[#allocation9 + $0x1c0] sm:$0xf]
        %v7519 = vld [vmem:[#allocation9 + $0x1c4] sm:$0xf]
        %v7520 = vld [vmem:[#allocation9 + $0x1c8] sm:$0xf]
        %v7521 = vld [vmem:[#allocation9 + $0x1cc] sm:$0xf]
        %v7522 = vld [vmem:[#allocation9 + $0x1d0] sm:$0xf]
        %v7523 = vld [vmem:[#allocation9 + $0x1d4] sm:$0xf]
        %v7524 = vld [vmem:[#allocation9 + $0x1d8] sm:$0xf]
        %v7525 = vld [vmem:[#allocation9 + $0x1dc] sm:$0xf]
        %v7526 = vld [vmem:[#allocation9 + $0x1e0] sm:$0xf]
        %v7527 = vld [vmem:[#allocation9 + $0x1e4] sm:$0xf]
        %v7528 = vld [vmem:[#allocation9 + $0x1e8] sm:$0xf]
        %v7529 = vld [vmem:[#allocation9 + $0x1ec] sm:$0xf]
        %v7530 = vld [vmem:[#allocation9 + $0x1f0] sm:$0xf]
        %v7531 = vld [vmem:[#allocation9 + $0x1f4] sm:$0xf]
        %v7532 = vld [vmem:[#allocation9 + $0x1f8] sm:$0xf]
        %v7533 = vld [vmem:[#allocation9 + $0x1fc] sm:$0xf]
        %v7534 = vld [vmem:[#allocation9 + $0x200] sm:$0xf]
        %v7535 = vld [vmem:[#allocation9 + $0x204] sm:$0xf]
        %v7536 = vld [vmem:[#allocation9 + $0x208] sm:$0xf]
        %v7537 = vld [vmem:[#allocation9 + $0x20c] sm:$0xf]
        %v7538 = vld [vmem:[#allocation9 + $0x210] sm:$0xf]
        %v7539 = vld [vmem:[#allocation9 + $0x214] sm:$0xf]
        %v7540 = vld [vmem:[#allocation9 + $0x218] sm:$0xf]
        %v7541 = vld [vmem:[#allocation9 + $0x21c] sm:$0xf]
        %v7542 = vld [vmem:[#allocation9 + $0x220] sm:$0xf]
        %v7543 = vld [vmem:[#allocation9 + $0x224] sm:$0xf]
        %v7544 = vld [vmem:[#allocation9 + $0x228] sm:$0xf]
        %v7545 = vld [vmem:[#allocation9 + $0x22c] sm:$0xf]
        %v7546 = vld [vmem:[#allocation9 + $0x230] sm:$0xf]
        %v7547 = vld [vmem:[#allocation9 + $0x234] sm:$0xf]
        %v7548 = vld [vmem:[#allocation9 + $0x238] sm:$0xf]
        %v7549 = vld [vmem:[#allocation9 + $0x23c] sm:$0xf]
        %v7694 = vunpack.c.l.b16 %v7406
        %v7695 = vunpack.c.l.b16 %v7407
        %v7696 = vunpack.c.l.b16 %v7408
        %v7697 = vunpack.c.l.b16 %v7409
        %v7698 = vunpack.c.l.b16 %v7410
        %v7699 = vunpack.c.l.b16 %v7411
        %v7700 = vunpack.c.l.b16 %v7412
        %v7701 = vunpack.c.l.b16 %v7413
        %v7702 = vunpack.c.l.b16 %v7414
        %v7703 = vunpack.c.l.b16 %v7415
        %v7704 = vunpack.c.l.b16 %v7416
        %v7705 = vunpack.c.l.b16 %v7417
        %v7706 = vunpack.c.l.b16 %v7418
        %v7707 = vunpack.c.l.b16 %v7419
        %v7708 = vunpack.c.l.b16 %v7420
        %v7709 = vunpack.c.l.b16 %v7421
        %v7710 = vunpack.c.l.b16 %v7422
        %v7711 = vunpack.c.l.b16 %v7423
        %v7712 = vunpack.c.l.b16 %v7424
        %v7713 = vunpack.c.l.b16 %v7425
        %v7714 = vunpack.c.l.b16 %v7426
        %v7715 = vunpack.c.l.b16 %v7427
        %v7716 = vunpack.c.l.b16 %v7428
        %v7717 = vunpack.c.l.b16 %v7429
        %v7718 = vunpack.c.l.b16 %v7430
        %v7719 = vunpack.c.l.b16 %v7431
        %v7720 = vunpack.c.l.b16 %v7432
        %v7721 = vunpack.c.l.b16 %v7433
        %v7722 = vunpack.c.l.b16 %v7434
        %v7723 = vunpack.c.l.b16 %v7435
        %v7724 = vunpack.c.l.b16 %v7436
        %v7725 = vunpack.c.l.b16 %v7437
        %v7726 = vunpack.c.l.b16 %v7438
        %v7727 = vunpack.c.l.b16 %v7439
        %v7728 = vunpack.c.l.b16 %v7440
        %v7729 = vunpack.c.l.b16 %v7441
        %v7730 = vunpack.c.l.b16 %v7442
        %v7731 = vunpack.c.l.b16 %v7443
        %v7732 = vunpack.c.l.b16 %v7444
        %v7733 = vunpack.c.l.b16 %v7445
        %v7734 = vunpack.c.l.b16 %v7446
        %v7735 = vunpack.c.l.b16 %v7447
        %v7736 = vunpack.c.l.b16 %v7448
        %v7737 = vunpack.c.l.b16 %v7449
        %v7738 = vunpack.c.l.b16 %v7450
        %v7739 = vunpack.c.l.b16 %v7451
        %v7740 = vunpack.c.l.b16 %v7452
        %v7741 = vunpack.c.l.b16 %v7453
        %v7742 = vunpack.c.l.b16 %v7454
        %v7743 = vunpack.c.l.b16 %v7455
        %v7744 = vunpack.c.l.b16 %v7456
        %v7745 = vunpack.c.l.b16 %v7457
        %v7746 = vunpack.c.l.b16 %v7458
        %v7747 = vunpack.c.l.b16 %v7459
        %v7748 = vunpack.c.l.b16 %v7460
        %v7749 = vunpack.c.l.b16 %v7461
        %v7750 = vunpack.c.l.b16 %v7462
        %v7751 = vunpack.c.l.b16 %v7463
        %v7752 = vunpack.c.l.b16 %v7464
        %v7753 = vunpack.c.l.b16 %v7465
        %v7754 = vunpack.c.l.b16 %v7466
        %v7755 = vunpack.c.l.b16 %v7467
        %v7756 = vunpack.c.l.b16 %v7468
        %v7757 = vunpack.c.l.b16 %v7469
        %v7758 = vunpack.c.l.b16 %v7470
        %v7759 = vunpack.c.l.b16 %v7471
        %v7760 = vunpack.c.l.b16 %v7472
        %v7761 = vunpack.c.l.b16 %v7473
        %v7762 = vunpack.c.l.b16 %v7474
        %v7763 = vunpack.c.l.b16 %v7475
        %v7764 = vunpack.c.l.b16 %v7476
        %v7765 = vunpack.c.l.b16 %v7477
        %v7766 = vunpack.c.l.b16 %v7478
        %v7767 = vunpack.c.l.b16 %v7479
        %v7768 = vunpack.c.l.b16 %v7480
        %v7769 = vunpack.c.l.b16 %v7481
        %v7770 = vunpack.c.l.b16 %v7482
        %v7771 = vunpack.c.l.b16 %v7483
        %v7772 = vunpack.c.l.b16 %v7484
        %v7773 = vunpack.c.l.b16 %v7485
        %v7774 = vunpack.c.l.b16 %v7486
        %v7775 = vunpack.c.l.b16 %v7487
        %v7776 = vunpack.c.l.b16 %v7488
        %v7777 = vunpack.c.l.b16 %v7489
        %v7778 = vunpack.c.l.b16 %v7490
        %v7779 = vunpack.c.l.b16 %v7491
        %v7780 = vunpack.c.l.b16 %v7492
        %v7781 = vunpack.c.l.b16 %v7493
        %v7782 = vunpack.c.l.b16 %v7494
        %v7783 = vunpack.c.l.b16 %v7495
        %v7784 = vunpack.c.l.b16 %v7496
        %v7785 = vunpack.c.l.b16 %v7497
        %v7786 = vunpack.c.l.b16 %v7498
        %v7787 = vunpack.c.l.b16 %v7499
        %v7788 = vunpack.c.l.b16 %v7500
        %v7789 = vunpack.c.l.b16 %v7501
        %v7790 = vunpack.c.l.b16 %v7502
        %v7791 = vunpack.c.l.b16 %v7503
        %v7792 = vunpack.c.l.b16 %v7504
        %v7793 = vunpack.c.l.b16 %v7505
        %v7794 = vunpack.c.l.b16 %v7506
        %v7795 = vunpack.c.l.b16 %v7507
        %v7796 = vunpack.c.l.b16 %v7508
        %v7797 = vunpack.c.l.b16 %v7509
        %v7798 = vunpack.c.l.b16 %v7510
        %v7799 = vunpack.c.l.b16 %v7511
        %v7800 = vunpack.c.l.b16 %v7512
        %v7801 = vunpack.c.l.b16 %v7513
        %v7802 = vunpack.c.l.b16 %v7514
        %v7803 = vunpack.c.l.b16 %v7515
        %v7804 = vunpack.c.l.b16 %v7516
        %v7805 = vunpack.c.l.b16 %v7517
        %v7806 = vunpack.c.l.b16 %v7518
        %v7807 = vunpack.c.l.b16 %v7519
        %v7808 = vunpack.c.l.b16 %v7520
        %v7809 = vunpack.c.l.b16 %v7521
        %v7810 = vunpack.c.l.b16 %v7522
        %v7811 = vunpack.c.l.b16 %v7523
        %v7812 = vunpack.c.l.b16 %v7524
        %v7813 = vunpack.c.l.b16 %v7525
        %v7814 = vunpack.c.l.b16 %v7526
        %v7815 = vunpack.c.l.b16 %v7527
        %v7816 = vunpack.c.l.b16 %v7528
        %v7817 = vunpack.c.l.b16 %v7529
        %v7818 = vunpack.c.l.b16 %v7530
        %v7819 = vunpack.c.l.b16 %v7531
        %v7820 = vunpack.c.l.b16 %v7532
        %v7821 = vunpack.c.l.b16 %v7533
        %v7822 = vunpack.c.l.b16 %v7534
        %v7823 = vunpack.c.l.b16 %v7535
        %v7824 = vunpack.c.l.b16 %v7536
        %v7825 = vunpack.c.l.b16 %v7537
        %v7826 = vunpack.c.l.b16 %v7538
        %v7827 = vunpack.c.l.b16 %v7539
        %v7828 = vunpack.c.l.b16 %v7540
        %v7829 = vunpack.c.l.b16 %v7541
        %v7830 = vunpack.c.l.b16 %v7542
        %v7831 = vunpack.c.l.b16 %v7543
        %v7832 = vunpack.c.l.b16 %v7544
        %v7833 = vunpack.c.l.b16 %v7545
        %v7834 = vunpack.c.l.b16 %v7546
        %v7835 = vunpack.c.l.b16 %v7547
        %v7836 = vunpack.c.l.b16 %v7548
        %v7837 = vunpack.c.l.b16 %v7549
        %v7838 = vpack.c.b16 %v7695, %v7694
        %v7839 = vpack.c.b16 %v7697, %v7696
        %v7840 = vpack.c.b16 %v7699, %v7698
        %v7841 = vpack.c.b16 %v7701, %v7700
        %v7842 = vpack.c.b16 %v7703, %v7702
        %v7843 = vpack.c.b16 %v7705, %v7704
        %v7844 = vpack.c.b16 %v7707, %v7706
        %v7845 = vpack.c.b16 %v7709, %v7708
        %v7846 = vpack.c.b16 %v7711, %v7710
        %v7847 = vpack.c.b16 %v7713, %v7712
        %v7848 = vpack.c.b16 %v7715, %v7714
        %v7849 = vpack.c.b16 %v7717, %v7716
        %v7850 = vpack.c.b16 %v7719, %v7718
        %v7851 = vpack.c.b16 %v7721, %v7720
        %v7852 = vpack.c.b16 %v7723, %v7722
        %v7853 = vpack.c.b16 %v7725, %v7724
        %v7854 = vpack.c.b16 %v7727, %v7726
        %v7855 = vpack.c.b16 %v7729, %v7728
        %v7856 = vpack.c.b16 %v7731, %v7730
        %v7857 = vpack.c.b16 %v7733, %v7732
        %v7858 = vpack.c.b16 %v7735, %v7734
        %v7859 = vpack.c.b16 %v7737, %v7736
        %v7860 = vpack.c.b16 %v7739, %v7738
        %v7861 = vpack.c.b16 %v7741, %v7740
        %v7862 = vpack.c.b16 %v7743, %v7742
        %v7863 = vpack.c.b16 %v7745, %v7744
        %v7864 = vpack.c.b16 %v7747, %v7746
        %v7865 = vpack.c.b16 %v7749, %v7748
        %v7866 = vpack.c.b16 %v7751, %v7750
        %v7867 = vpack.c.b16 %v7753, %v7752
        %v7868 = vpack.c.b16 %v7755, %v7754
        %v7869 = vpack.c.b16 %v7757, %v7756
        %v7870 = vpack.c.b16 %v7759, %v7758
        %v7871 = vpack.c.b16 %v7761, %v7760
        %v7872 = vpack.c.b16 %v7763, %v7762
        %v7873 = vpack.c.b16 %v7765, %v7764
        %v7874 = vpack.c.b16 %v7767, %v7766
        %v7875 = vpack.c.b16 %v7769, %v7768
        %v7876 = vpack.c.b16 %v7771, %v7770
        %v7877 = vpack.c.b16 %v7773, %v7772
        %v7878 = vpack.c.b16 %v7775, %v7774
        %v7879 = vpack.c.b16 %v7777, %v7776
        %v7880 = vpack.c.b16 %v7779, %v7778
        %v7881 = vpack.c.b16 %v7781, %v7780
        %v7882 = vpack.c.b16 %v7783, %v7782
        %v7883 = vpack.c.b16 %v7785, %v7784
        %v7884 = vpack.c.b16 %v7787, %v7786
        %v7885 = vpack.c.b16 %v7789, %v7788
        %v7886 = vpack.c.b16 %v7791, %v7790
        %v7887 = vpack.c.b16 %v7793, %v7792
        %v7888 = vpack.c.b16 %v7795, %v7794
        %v7889 = vpack.c.b16 %v7797, %v7796
        %v7890 = vpack.c.b16 %v7799, %v7798
        %v7891 = vpack.c.b16 %v7801, %v7800
        %v7892 = vpack.c.b16 %v7803, %v7802
        %v7893 = vpack.c.b16 %v7805, %v7804
        %v7894 = vpack.c.b16 %v7807, %v7806
        %v7895 = vpack.c.b16 %v7809, %v7808
        %v7896 = vpack.c.b16 %v7811, %v7810
        %v7897 = vpack.c.b16 %v7813, %v7812
        %v7898 = vpack.c.b16 %v7815, %v7814
        %v7899 = vpack.c.b16 %v7817, %v7816
        %v7900 = vpack.c.b16 %v7819, %v7818
        %v7901 = vpack.c.b16 %v7821, %v7820
        %v7902 = vpack.c.b16 %v7823, %v7822
        %v7903 = vpack.c.b16 %v7825, %v7824
        %v7904 = vpack.c.b16 %v7827, %v7826
        %v7905 = vpack.c.b16 %v7829, %v7828
        %v7906 = vpack.c.b16 %v7831, %v7830
        %v7907 = vpack.c.b16 %v7833, %v7832
        %v7908 = vpack.c.b16 %v7835, %v7834
        %v7909 = vpack.c.b16 %v7837, %v7836
        %7982 = vmatprep.subr.bf16.mxu0 0
        %7983 = vmatpush1.bf16.msra.mxu0 %v7838
        %7984 = vmatprep.subr.bf16.mxu0 0
        %7985 = vmatpush1.bf16.msra.mxu0 %v7839
        %7986 = vmatprep.subr.bf16.mxu0 0
        %7987 = vmatpush1.bf16.msra.mxu0 %v7840
        %7988 = vmatprep.subr.bf16.mxu0 0
        %7989 = vmatpush1.bf16.msra.mxu0 %v7841
        %7990 = vmatprep.subr.bf16.mxu0 0
        %7991 = vmatpush1.bf16.msra.mxu0 %v7842
        %7992 = vmatprep.subr.bf16.mxu0 0
        %7993 = vmatpush1.bf16.msra.mxu0 %v7843
        %7994 = vmatprep.subr.bf16.mxu0 0
        %7995 = vmatpush1.bf16.msra.mxu0 %v7844
        %7996 = vmatprep.subr.bf16.mxu0 0
        %7997 = vmatpush1.bf16.msra.mxu0 %v7845
        %7998 = vmatprep.subr.bf16.mxu0 0
        %7999 = vmatpush1.bf16.msra.mxu0 %v7846
        %8000 = vmatprep.subr.bf16.mxu0 0
        %8001 = vmatpush1.bf16.msra.mxu0 %v7847
        %8002 = vmatprep.subr.bf16.mxu0 0
        %8003 = vmatpush1.bf16.msra.mxu0 %v7848
        %8004 = vmatprep.subr.bf16.mxu0 0
        %8005 = vmatpush1.bf16.msra.mxu0 %v7849
        %8006 = vmatprep.subr.bf16.mxu0 0
        %8007 = vmatpush1.bf16.msra.mxu0 %v7850
        %8008 = vmatprep.subr.bf16.mxu0 0
        %8009 = vmatpush1.bf16.msra.mxu0 %v7851
        %8010 = vmatprep.subr.bf16.mxu0 0
        %8011 = vmatpush1.bf16.msra.mxu0 %v7852
        %8012 = vmatprep.subr.bf16.mxu0 0
        %8013 = vmatpush1.bf16.msra.mxu0 %v7853
        %8014 = vmatprep.mubr.bf16.mxu0 %v7245
        %8015 = vmatmul.mubr.bf16.gmra.mrb[0].mxu0 %v7244
        %v8016 = vpop.f32.mrb[0].mxu0
        %v8017 = vadd.f32 0.0, %v8016
        %v8018 = vpop.f32.mrb[0].mxu0
        %v8019 = vpop.f32.mrb[0].mxu0
        %v8020 = vadd.f32 0.0, %v8019
        %v8021 = vpop.f32.mrb[0].mxu0
        %8022 = vmatprep.mubr.bf16.mxu0 %v7254
        %8023 = vmatmul.mubr.bf16.gmra.mrb[0].mxu0 %v7253
        %v8024 = vpop.f32.mrb[0].mxu0
        %v8025 = vadd.f32 0.0, %v8024
        %v8026 = vpop.f32.mrb[0].mxu0
        %v8027 = vpop.f32.mrb[0].mxu0
        %v8028 = vadd.f32 0.0, %v8027
        %v8029 = vpop.f32.mrb[0].mxu0
        %8030 = vmatprep.mubr.bf16.mxu0 %v7263
        %8031 = vmatmul.mubr.bf16.gmra.mrb[0].mxu0 %v7262
        %v8032 = vpop.f32.mrb[0].mxu0
        %v8033 = vadd.f32 0.0, %v8032
        %v8034 = vpop.f32.mrb[0].mxu0
        %v8035 = vpop.f32.mrb[0].mxu0
        %v8036 = vadd.f32 0.0, %v8035
        %v8037 = vpop.f32.mrb[0].mxu0
        %8038 = vmatprep.mubr.bf16.mxu0 %v7272
        %8039 = vmatmul.mubr.bf16.gmra.mrb[0].mxu0 %v7271
        %v8040 = vpop.f32.mrb[0].mxu0
        %v8041 = vadd.f32 0.0, %v8040
        %v8042 = vpop.f32.mrb[0].mxu0
        %v8043 = vpop.f32.mrb[0].mxu0
        %v8044 = vadd.f32 0.0, %v8043
        %v8045 = vpop.f32.mrb[0].mxu0
        %8046 = vmatprep.mubr.bf16.mxu0 %v7281
        %8047 = vmatmul.mubr.bf16.gmra.mrb[0].mxu0 %v7280
        %v8048 = vpop.f32.mrb[0].mxu0
        %v8049 = vadd.f32 0.0, %v8048
        %v8050 = vpop.f32.mrb[0].mxu0
        %v8051 = vpop.f32.mrb[0].mxu0
        %v8052 = vadd.f32 0.0, %v8051
        %v8053 = vpop.f32.mrb[0].mxu0
        %8054 = vmatprep.mubr.bf16.mxu0 %v7290
        %8055 = vmatmul.mubr.bf16.gmra.mrb[0].mxu0 %v7289
        %v8056 = vpop.f32.mrb[0].mxu0
        %v8057 = vadd.f32 0.0, %v8056
        %v8058 = vpop.f32.mrb[0].mxu0
        %v8059 = vpop.f32.mrb[0].mxu0
        %v8060 = vadd.f32 0.0, %v8059
        %v8061 = vpop.f32.mrb[0].mxu0
        %8062 = vmatprep.mubr.bf16.mxu0 %v7299
        %8063 = vmatmul.mubr.bf16.gmra.mrb[0].mxu0 %v7298
        %v8064 = vpop.f32.mrb[0].mxu0
        %v8065 = vadd.f32 0.0, %v8064
        %v8066 = vpop.f32.mrb[0].mxu0
        %v8067 = vpop.f32.mrb[0].mxu0
        %v8068 = vadd.f32 0.0, %v8067
        %v8069 = vpop.f32.mrb[0].mxu0
        %8070 = vmatprep.mubr.bf16.mxu0 %v7308
        %8071 = vmatmul.mubr.bf16.gmra.mrb[0].mxu0 %v7307
        %v8072 = vpop.f32.mrb[0].mxu0
        %v8073 = vadd.f32 0.0, %v8072
        %v8074 = vpop.f32.mrb[0].mxu0
        %v8075 = vpop.f32.mrb[0].mxu0
        %v8076 = vadd.f32 0.0, %v8075
        %v8077 = vpop.f32.mrb[0].mxu0
        %8078 = vmatprep.mubr.bf16.mxu0 %v7317
        %8079 = vmatmul.mubr.bf16.gmra.mrb[0].mxu0 %v7316
        %v8080 = vpop.f32.mrb[0].mxu0
        %v8081 = vadd.f32 0.0, %v8080
        %v8082 = vpop.f32.mrb[0].mxu0
        %v8083 = vpop.f32.mrb[0].mxu0
        %v8084 = vadd.f32 0.0, %v8083
        %v8085 = vpop.f32.mrb[0].mxu0
        %8086 = vmatprep.mubr.bf16.mxu0 %v7326
        %8087 = vmatmul.mubr.bf16.gmra.mrb[0].mxu0 %v7325
        %v8088 = vpop.f32.mrb[0].mxu0
        %v8089 = vadd.f32 0.0, %v8088
        %v8090 = vpop.f32.mrb[0].mxu0
        %v8091 = vpop.f32.mrb[0].mxu0
        %v8092 = vadd.f32 0.0, %v8091
        %v8093 = vpop.f32.mrb[0].mxu0
        %8094 = vmatprep.mubr.bf16.mxu0 %v7335
        %8095 = vmatmul.mubr.bf16.gmra.mrb[0].mxu0 %v7334
        %v8096 = vpop.f32.mrb[0].mxu0
        %v8097 = vadd.f32 0.0, %v8096
        %v8098 = vpop.f32.mrb[0].mxu0
        %v8099 = vpop.f32.mrb[0].mxu0
        %v8100 = vadd.f32 0.0, %v8099
        %v8101 = vpop.f32.mrb[0].mxu0
        %8102 = vmatprep.mubr.bf16.mxu0 %v7344
        %8103 = vmatmul.mubr.bf16.gmra.mrb[0].mxu0 %v7343
        %v8104 = vpop.f32.mrb[0].mxu0
        %v8105 = vadd.f32 0.0, %v8104
        %v8106 = vpop.f32.mrb[0].mxu0
        %v8107 = vpop.f32.mrb[0].mxu0
        %v8108 = vadd.f32 0.0, %v8107
        %v8109 = vpop.f32.mrb[0].mxu0
        %8110 = vmatprep.mubr.bf16.mxu0 %v7353
        %8111 = vmatmul.mubr.bf16.gmra.mrb[0].mxu0 %v7352
        %v8112 = vpop.f32.mrb[0].mxu0
        %v8113 = vadd.f32 0.0, %v8112
        %v8114 = vpop.f32.mrb[0].mxu0
        %v8115 = vpop.f32.mrb[0].mxu0
        %v8116 = vadd.f32 0.0, %v8115
        %v8117 = vpop.f32.mrb[0].mxu0
        %8118 = vmatprep.mubr.bf16.mxu0 %v7362
        %8119 = vmatmul.mubr.bf16.gmra.mrb[0].mxu0 %v7361
        %v8120 = vpop.f32.mrb[0].mxu0
        %v8121 = vadd.f32 0.0, %v8120
        %v8122 = vpop.f32.mrb[0].mxu0
        %v8123 = vpop.f32.mrb[0].mxu0
        %v8124 = vadd.f32 0.0, %v8123
        %v8125 = vpop.f32.mrb[0].mxu0
        %8126 = vmatprep.mubr.bf16.mxu0 %v7371
        %8127 = vmatmul.mubr.bf16.gmra.mrb[0].mxu0 %v7370
        %v8128 = vpop.f32.mrb[0].mxu0
        %v8129 = vadd.f32 0.0, %v8128
        %v8130 = vpop.f32.mrb[0].mxu0
        %v8131 = vpop.f32.mrb[0].mxu0
        %v8132 = vadd.f32 0.0, %v8131
        %v8133 = vpop.f32.mrb[0].mxu0
        %8134 = vmatprep.mubr.bf16.mxu0 %v7380
        %8135 = vmatmul.mubr.bf16.gmra.mrb[0].mxu0 %v7379
        %v8136 = vpop.f32.mrb[0].mxu0
        %v8137 = vadd.f32 0.0, %v8136
        %v8138 = vpop.f32.mrb[0].mxu0
        %v8139 = vpop.f32.mrb[0].mxu0
        %v8140 = vadd.f32 0.0, %v8139
        %v8141 = vpop.f32.mrb[0].mxu0
        %8142 = vmatprep.mubr.bf16.mxu0 %v7389
        %8143 = vmatmul.mubr.bf16.gmra.mrb[0].mxu0 %v7388
        %v8144 = vpop.f32.mrb[0].mxu0
        %v8145 = vadd.f32 0.0, %v8144
        %v8146 = vpop.f32.mrb[0].mxu0
        %v8147 = vpop.f32.mrb[0].mxu0
        %v8148 = vadd.f32 0.0, %v8147
        %v8149 = vpop.f32.mrb[0].mxu0
        %8150 = vmatprep.mubr.bf16.mxu0 %v7398
        %8151 = vmatmul.mubr.bf16.gmra.mrb[0].mxu0 %v7397
        %v8152 = vpop.f32.mrb[0].mxu0
        %v8153 = vadd.f32 0.0, %v8152
        %v8154 = vpop.f32.mrb[0].mxu0
        %v8155 = vpop.f32.mrb[0].mxu0
        %v8156 = vadd.f32 0.0, %v8155
        %v8157 = vpop.f32.mrb[0].mxu0
        %8158 = vdwg.mxu0
        %8159 = vmatprep.subr.bf16.mxu0 0
        %8160 = vmatpush1.bf16.msra.mxu0 %v7854
        %8161 = vmatprep.subr.bf16.mxu0 0
        %8162 = vmatpush1.bf16.msra.mxu0 %v7855
        %8163 = vmatprep.subr.bf16.mxu0 0
        %8164 = vmatpush1.bf16.msra.mxu0 %v7856
        %8165 = vmatprep.subr.bf16.mxu0 0
        %8166 = vmatpush1.bf16.msra.mxu0 %v7857
        %8167 = vmatprep.subr.bf16.mxu0 0
        %8168 = vmatpush1.bf16.msra.mxu0 %v7858
        %8169 = vmatprep.subr.bf16.mxu0 0
        %8170 = vmatpush1.bf16.msra.mxu0 %v7859
        %8171 = vmatprep.subr.bf16.mxu0 0
        %8172 = vmatpush1.bf16.msra.mxu0 %v7860
        %8173 = vmatprep.subr.bf16.mxu0 0
        %8174 = vmatpush1.bf16.msra.mxu0 %v7861
        %8175 = vmatprep.subr.bf16.mxu0 0
        %8176 = vmatpush1.bf16.msra.mxu0 %v7862
        %8177 = vmatprep.subr.bf16.mxu0 0
        %8178 = vmatpush1.bf16.msra.mxu0 %v7863
        %8179 = vmatprep.subr.bf16.mxu0 0
        %8180 = vmatpush1.bf16.msra.mxu0 %v7864
        %8181 = vmatprep.subr.bf16.mxu0 0
        %8182 = vmatpush1.bf16.msra.mxu0 %v7865
        %8183 = vmatprep.subr.bf16.mxu0 0
        %8184 = vmatpush1.bf16.msra.mxu0 %v7866
        %8185 = vmatprep.subr.bf16.mxu0 0
        %8186 = vmatpush1.bf16.msra.mxu0 %v7867
        %8187 = vmatprep.subr.bf16.mxu0 0
        %8188 = vmatpush1.bf16.msra.mxu0 %v7868
        %8189 = vmatprep.subr.bf16.mxu0 0
        %8190 = vmatpush1.bf16.msra.mxu0 %v7869
        %8191 = vmatprep.mubr.bf16.mxu0 %v7247
        %8192 = vmatmul.mubr.bf16.gmra.mrb[0].mxu0 %v7246
        %v8193 = vpop.f32.mrb[0].mxu0
        %v8194 = vadd.f32 %v8017, %v8193
        %v8195 = vpop.f32.mrb[0].mxu0
        %v8196 = vpop.f32.mrb[0].mxu0
        %v8197 = vadd.f32 %v8020, %v8196
        %v8198 = vpop.f32.mrb[0].mxu0
        %8199 = vmatprep.mubr.bf16.mxu0 %v7256
        %8200 = vmatmul.mubr.bf16.gmra.mrb[0].mxu0 %v7255
        %v8201 = vpop.f32.mrb[0].mxu0
        %v8202 = vadd.f32 %v8025, %v8201
        %v8203 = vpop.f32.mrb[0].mxu0
        %v8204 = vpop.f32.mrb[0].mxu0
        %v8205 = vadd.f32 %v8028, %v8204
        %v8206 = vpop.f32.mrb[0].mxu0
        %8207 = vmatprep.mubr.bf16.mxu0 %v7265
        %8208 = vmatmul.mubr.bf16.gmra.mrb[0].mxu0 %v7264
        %v8209 = vpop.f32.mrb[0].mxu0
        %v8210 = vadd.f32 %v8033, %v8209
        %v8211 = vpop.f32.mrb[0].mxu0
        %v8212 = vpop.f32.mrb[0].mxu0
        %v8213 = vadd.f32 %v8036, %v8212
        %v8214 = vpop.f32.mrb[0].mxu0
        %8215 = vmatprep.mubr.bf16.mxu0 %v7274
        %8216 = vmatmul.mubr.bf16.gmra.mrb[0].mxu0 %v7273
        %v8217 = vpop.f32.mrb[0].mxu0
        %v8218 = vadd.f32 %v8041, %v8217
        %v8219 = vpop.f32.mrb[0].mxu0
        %v8220 = vpop.f32.mrb[0].mxu0
        %v8221 = vadd.f32 %v8044, %v8220
        %v8222 = vpop.f32.mrb[0].mxu0
        %8223 = vmatprep.mubr.bf16.mxu0 %v7283
        %8224 = vmatmul.mubr.bf16.gmra.mrb[0].mxu0 %v7282
        %v8225 = vpop.f32.mrb[0].mxu0
        %v8226 = vadd.f32 %v8049, %v8225
        %v8227 = vpop.f32.mrb[0].mxu0
        %v8228 = vpop.f32.mrb[0].mxu0
        %v8229 = vadd.f32 %v8052, %v8228
        %v8230 = vpop.f32.mrb[0].mxu0
        %8231 = vmatprep.mubr.bf16.mxu0 %v7292
        %8232 = vmatmul.mubr.bf16.gmra.mrb[0].mxu0 %v7291
        %v8233 = vpop.f32.mrb[0].mxu0
        %v8234 = vadd.f32 %v8057, %v8233
        %v8235 = vpop.f32.mrb[0].mxu0
        %v8236 = vpop.f32.mrb[0].mxu0
        %v8237 = vadd.f32 %v8060, %v8236
        %v8238 = vpop.f32.mrb[0].mxu0
        %8239 = vmatprep.mubr.bf16.mxu0 %v7301
        %8240 = vmatmul.mubr.bf16.gmra.mrb[0].mxu0 %v7300
        %v8241 = vpop.f32.mrb[0].mxu0
        %v8242 = vadd.f32 %v8065, %v8241
        %v8243 = vpop.f32.mrb[0].mxu0
        %v8244 = vpop.f32.mrb[0].mxu0
        %v8245 = vadd.f32 %v8068, %v8244
        %v8246 = vpop.f32.mrb[0].mxu0
        %8247 = vmatprep.mubr.bf16.mxu0 %v7310
        %8248 = vmatmul.mubr.bf16.gmra.mrb[0].mxu0 %v7309
        %v8249 = vpop.f32.mrb[0].mxu0
        %v8250 = vadd.f32 %v8073, %v8249
        %v8251 = vpop.f32.mrb[0].mxu0
        %v8252 = vpop.f32.mrb[0].mxu0
        %v8253 = vadd.f32 %v8076, %v8252
        %v8254 = vpop.f32.mrb[0].mxu0
        %8255 = vmatprep.mubr.bf16.mxu0 %v7319
        %8256 = vmatmul.mubr.bf16.gmra.mrb[0].mxu0 %v7318
        %v8257 = vpop.f32.mrb[0].mxu0
        %v8258 = vadd.f32 %v8081, %v8257
        %v8259 = vpop.f32.mrb[0].mxu0
        %v8260 = vpop.f32.mrb[0].mxu0
        %v8261 = vadd.f32 %v8084, %v8260
        %v8262 = vpop.f32.mrb[0].mxu0
        %8263 = vmatprep.mubr.bf16.mxu0 %v7328
        %8264 = vmatmul.mubr.bf16.gmra.mrb[0].mxu0 %v7327
        %v8265 = vpop.f32.mrb[0].mxu0
        %v8266 = vadd.f32 %v8089, %v8265
        %v8267 = vpop.f32.mrb[0].mxu0
        %v8268 = vpop.f32.mrb[0].mxu0
        %v8269 = vadd.f32 %v8092, %v8268
        %v8270 = vpop.f32.mrb[0].mxu0
        %8271 = vmatprep.mubr.bf16.mxu0 %v7337
        %8272 = vmatmul.mubr.bf16.gmra.mrb[0].mxu0 %v7336
        %v8273 = vpop.f32.mrb[0].mxu0
        %v8274 = vadd.f32 %v8097, %v8273
        %v8275 = vpop.f32.mrb[0].mxu0
        %v8276 = vpop.f32.mrb[0].mxu0
        %v8277 = vadd.f32 %v8100, %v8276
        %v8278 = vpop.f32.mrb[0].mxu0
        %8279 = vmatprep.mubr.bf16.mxu0 %v7346
        %8280 = vmatmul.mubr.bf16.gmra.mrb[0].mxu0 %v7345
        %v8281 = vpop.f32.mrb[0].mxu0
        %v8282 = vadd.f32 %v8105, %v8281
        %v8283 = vpop.f32.mrb[0].mxu0
        %v8284 = vpop.f32.mrb[0].mxu0
        %v8285 = vadd.f32 %v8108, %v8284
        %v8286 = vpop.f32.mrb[0].mxu0
        %8287 = vmatprep.mubr.bf16.mxu0 %v7355
        %8288 = vmatmul.mubr.bf16.gmra.mrb[0].mxu0 %v7354
        %v8289 = vpop.f32.mrb[0].mxu0
        %v8290 = vadd.f32 %v8113, %v8289
        %v8291 = vpop.f32.mrb[0].mxu0
        %v8292 = vpop.f32.mrb[0].mxu0
        %v8293 = vadd.f32 %v8116, %v8292
        %v8294 = vpop.f32.mrb[0].mxu0
        %8295 = vmatprep.mubr.bf16.mxu0 %v7364
        %8296 = vmatmul.mubr.bf16.gmra.mrb[0].mxu0 %v7363
        %v8297 = vpop.f32.mrb[0].mxu0
        %v8298 = vadd.f32 %v8121, %v8297
        %v8299 = vpop.f32.mrb[0].mxu0
        %v8300 = vpop.f32.mrb[0].mxu0
        %v8301 = vadd.f32 %v8124, %v8300
        %v8302 = vpop.f32.mrb[0].mxu0
        %8303 = vmatprep.mubr.bf16.mxu0 %v7373
        %8304 = vmatmul.mubr.bf16.gmra.mrb[0].mxu0 %v7372
        %v8305 = vpop.f32.mrb[0].mxu0
        %v8306 = vadd.f32 %v8129, %v8305
        %v8307 = vpop.f32.mrb[0].mxu0
        %v8308 = vpop.f32.mrb[0].mxu0
        %v8309 = vadd.f32 %v8132, %v8308
        %v8310 = vpop.f32.mrb[0].mxu0
        %8311 = vmatprep.mubr.bf16.mxu0 %v7382
        %8312 = vmatmul.mubr.bf16.gmra.mrb[0].mxu0 %v7381
        %v8313 = vpop.f32.mrb[0].mxu0
        %v8314 = vadd.f32 %v8137, %v8313
        %v8315 = vpop.f32.mrb[0].mxu0
        %v8316 = vpop.f32.mrb[0].mxu0
        %v8317 = vadd.f32 %v8140, %v8316
        %v8318 = vpop.f32.mrb[0].mxu0
        %8319 = vmatprep.mubr.bf16.mxu0 %v7391
        %8320 = vmatmul.mubr.bf16.gmra.mrb[0].mxu0 %v7390
        %v8321 = vpop.f32.mrb[0].mxu0
        %v8322 = vadd.f32 %v8145, %v8321
        %v8323 = vpop.f32.mrb[0].mxu0
        %v8324 = vpop.f32.mrb[0].mxu0
        %v8325 = vadd.f32 %v8148, %v8324
        %v8326 = vpop.f32.mrb[0].mxu0
        %8327 = vmatprep.mubr.bf16.mxu0 %v7400
        %8328 = vmatmul.mubr.bf16.gmra.mrb[0].mxu0 %v7399
        %v8329 = vpop.f32.mrb[0].mxu0
        %v8330 = vadd.f32 %v8153, %v8329
        %v8331 = vpop.f32.mrb[0].mxu0
        %v8332 = vpop.f32.mrb[0].mxu0
        %v8333 = vadd.f32 %v8156, %v8332
        %v8334 = vpop.f32.mrb[0].mxu0
        %8335 = vdwg.mxu0
        %8336 = vmatprep.subr.bf16.mxu0 0
        %8337 = vmatpush1.bf16.msra.mxu0 %v7870
        %8338 = vmatprep.subr.bf16.mxu0 0
        %8339 = vmatpush1.bf16.msra.mxu0 %v7871
        %8340 = vmatprep.subr.bf16.mxu0 0
        %8341 = vmatpush1.bf16.msra.mxu0 %v7872
        %8342 = vmatprep.subr.bf16.mxu0 0
        %8343 = vmatpush1.bf16.msra.mxu0 %v7873
        %8344 = vmatprep.subr.bf16.mxu0 0
        %8345 = vmatpush1.bf16.msra.mxu0 %v7874
        %8346 = vmatprep.subr.bf16.mxu0 0
        %8347 = vmatpush1.bf16.msra.mxu0 %v7875
        %8348 = vmatprep.subr.bf16.mxu0 0
        %8349 = vmatpush1.bf16.msra.mxu0 %v7876
        %8350 = vmatprep.subr.bf16.mxu0 0
        %8351 = vmatpush1.bf16.msra.mxu0 %v7877
        %8352 = vmatprep.subr.bf16.mxu0 0
        %8353 = vmatpush1.bf16.msra.mxu0 %v7878
        %8354 = vmatprep.subr.bf16.mxu0 0
        %8355 = vmatpush1.bf16.msra.mxu0 %v7879
        %8356 = vmatprep.subr.bf16.mxu0 0
        %8357 = vmatpush1.bf16.msra.mxu0 %v7880
        %8358 = vmatprep.subr.bf16.mxu0 0
        %8359 = vmatpush1.bf16.msra.mxu0 %v7881
        %8360 = vmatprep.subr.bf16.mxu0 0
        %8361 = vmatpush1.bf16.msra.mxu0 %v7882
        %8362 = vmatprep.subr.bf16.mxu0 0
        %8363 = vmatpush1.bf16.msra.mxu0 %v7883
        %8364 = vmatprep.subr.bf16.mxu0 0
        %8365 = vmatpush1.bf16.msra.mxu0 %v7884
        %8366 = vmatprep.subr.bf16.mxu0 0
        %8367 = vmatpush1.bf16.msra.mxu0 %v7885
        %8368 = vmatprep.mubr.bf16.mxu0 %v7249
        %8369 = vmatmul.mubr.bf16.gmra.mrb[0].mxu0 %v7248
        %v8370 = vpop.f32.mrb[0].mxu0
        %v8371 = vadd.f32 %v8194, %v8370
        %v8372 = vpop.f32.mrb[0].mxu0
        %v8373 = vpop.f32.mrb[0].mxu0
        %v8374 = vadd.f32 %v8197, %v8373
        %v8375 = vpop.f32.mrb[0].mxu0
        %8376 = vmatprep.mubr.bf16.mxu0 %v7258
        %8377 = vmatmul.mubr.bf16.gmra.mrb[0].mxu0 %v7257
        %v8378 = vpop.f32.mrb[0].mxu0
        %v8379 = vadd.f32 %v8202, %v8378
        %v8380 = vpop.f32.mrb[0].mxu0
        %v8381 = vpop.f32.mrb[0].mxu0
        %v8382 = vadd.f32 %v8205, %v8381
        %v8383 = vpop.f32.mrb[0].mxu0
        %8384 = vmatprep.mubr.bf16.mxu0 %v7267
        %8385 = vmatmul.mubr.bf16.gmra.mrb[0].mxu0 %v7266
        %v8386 = vpop.f32.mrb[0].mxu0
        %v8387 = vadd.f32 %v8210, %v8386
        %v8388 = vpop.f32.mrb[0].mxu0
        %v8389 = vpop.f32.mrb[0].mxu0
        %v8390 = vadd.f32 %v8213, %v8389
        %v8391 = vpop.f32.mrb[0].mxu0
        %8392 = vmatprep.mubr.bf16.mxu0 %v7276
        %8393 = vmatmul.mubr.bf16.gmra.mrb[0].mxu0 %v7275
        %v8394 = vpop.f32.mrb[0].mxu0
        %v8395 = vadd.f32 %v8218, %v8394
        %v8396 = vpop.f32.mrb[0].mxu0
        %v8397 = vpop.f32.mrb[0].mxu0
        %v8398 = vadd.f32 %v8221, %v8397
        %v8399 = vpop.f32.mrb[0].mxu0
        %8400 = vmatprep.mubr.bf16.mxu0 %v7285
        %8401 = vmatmul.mubr.bf16.gmra.mrb[0].mxu0 %v7284
        %v8402 = vpop.f32.mrb[0].mxu0
        %v8403 = vadd.f32 %v8226, %v8402
        %v8404 = vpop.f32.mrb[0].mxu0
        %v8405 = vpop.f32.mrb[0].mxu0
        %v8406 = vadd.f32 %v8229, %v8405
        %v8407 = vpop.f32.mrb[0].mxu0
        %8408 = vmatprep.mubr.bf16.mxu0 %v7294
        %8409 = vmatmul.mubr.bf16.gmra.mrb[0].mxu0 %v7293
        %v8410 = vpop.f32.mrb[0].mxu0
        %v8411 = vadd.f32 %v8234, %v8410
        %v8412 = vpop.f32.mrb[0].mxu0
        %v8413 = vpop.f32.mrb[0].mxu0
        %v8414 = vadd.f32 %v8237, %v8413
        %v8415 = vpop.f32.mrb[0].mxu0
        %8416 = vmatprep.mubr.bf16.mxu0 %v7303
        %8417 = vmatmul.mubr.bf16.gmra.mrb[0].mxu0 %v7302
        %v8418 = vpop.f32.mrb[0].mxu0
        %v8419 = vadd.f32 %v8242, %v8418
        %v8420 = vpop.f32.mrb[0].mxu0
        %v8421 = vpop.f32.mrb[0].mxu0
        %v8422 = vadd.f32 %v8245, %v8421
        %v8423 = vpop.f32.mrb[0].mxu0
        %8424 = vmatprep.mubr.bf16.mxu0 %v7312
        %8425 = vmatmul.mubr.bf16.gmra.mrb[0].mxu0 %v7311
        %v8426 = vpop.f32.mrb[0].mxu0
        %v8427 = vadd.f32 %v8250, %v8426
        %v8428 = vpop.f32.mrb[0].mxu0
        %v8429 = vpop.f32.mrb[0].mxu0
        %v8430 = vadd.f32 %v8253, %v8429
        %v8431 = vpop.f32.mrb[0].mxu0
        %8432 = vmatprep.mubr.bf16.mxu0 %v7321
        %8433 = vmatmul.mubr.bf16.gmra.mrb[0].mxu0 %v7320
        %v8434 = vpop.f32.mrb[0].mxu0
        %v8435 = vadd.f32 %v8258, %v8434
        %v8436 = vpop.f32.mrb[0].mxu0
        %v8437 = vpop.f32.mrb[0].mxu0
        %v8438 = vadd.f32 %v8261, %v8437
        %v8439 = vpop.f32.mrb[0].mxu0
        %8440 = vmatprep.mubr.bf16.mxu0 %v7330
        %8441 = vmatmul.mubr.bf16.gmra.mrb[0].mxu0 %v7329
        %v8442 = vpop.f32.mrb[0].mxu0
        %v8443 = vadd.f32 %v8266, %v8442
        %v8444 = vpop.f32.mrb[0].mxu0
        %v8445 = vpop.f32.mrb[0].mxu0
        %v8446 = vadd.f32 %v8269, %v8445
        %v8447 = vpop.f32.mrb[0].mxu0
        %8448 = vmatprep.mubr.bf16.mxu0 %v7339
        %8449 = vmatmul.mubr.bf16.gmra.mrb[0].mxu0 %v7338
        %v8450 = vpop.f32.mrb[0].mxu0
        %v8451 = vadd.f32 %v8274, %v8450
        %v8452 = vpop.f32.mrb[0].mxu0
        %v8453 = vpop.f32.mrb[0].mxu0
        %v8454 = vadd.f32 %v8277, %v8453
        %v8455 = vpop.f32.mrb[0].mxu0
        %8456 = vmatprep.mubr.bf16.mxu0 %v7348
        %8457 = vmatmul.mubr.bf16.gmra.mrb[0].mxu0 %v7347
        %v8458 = vpop.f32.mrb[0].mxu0
        %v8459 = vadd.f32 %v8282, %v8458
        %v8460 = vpop.f32.mrb[0].mxu0
        %v8461 = vpop.f32.mrb[0].mxu0
        %v8462 = vadd.f32 %v8285, %v8461
        %v8463 = vpop.f32.mrb[0].mxu0
        %8464 = vmatprep.mubr.bf16.mxu0 %v7357
        %8465 = vmatmul.mubr.bf16.gmra.mrb[0].mxu0 %v7356
        %v8466 = vpop.f32.mrb[0].mxu0
        %v8467 = vadd.f32 %v8290, %v8466
        %v8468 = vpop.f32.mrb[0].mxu0
        %v8469 = vpop.f32.mrb[0].mxu0
        %v8470 = vadd.f32 %v8293, %v8469
        %v8471 = vpop.f32.mrb[0].mxu0
        %8472 = vmatprep.mubr.bf16.mxu0 %v7366
        %8473 = vmatmul.mubr.bf16.gmra.mrb[0].mxu0 %v7365
        %v8474 = vpop.f32.mrb[0].mxu0
        %v8475 = vadd.f32 %v8298, %v8474
        %v8476 = vpop.f32.mrb[0].mxu0
        %v8477 = vpop.f32.mrb[0].mxu0
        %v8478 = vadd.f32 %v8301, %v8477
        %v8479 = vpop.f32.mrb[0].mxu0
        %8480 = vmatprep.mubr.bf16.mxu0 %v7375
        %8481 = vmatmul.mubr.bf16.gmra.mrb[0].mxu0 %v7374
        %v8482 = vpop.f32.mrb[0].mxu0
        %v8483 = vadd.f32 %v8306, %v8482
        %v8484 = vpop.f32.mrb[0].mxu0
        %v8485 = vpop.f32.mrb[0].mxu0
        %v8486 = vadd.f32 %v8309, %v8485
        %v8487 = vpop.f32.mrb[0].mxu0
        %8488 = vmatprep.mubr.bf16.mxu0 %v7384
        %8489 = vmatmul.mubr.bf16.gmra.mrb[0].mxu0 %v7383
        %v8490 = vpop.f32.mrb[0].mxu0
        %v8491 = vadd.f32 %v8314, %v8490
        %v8492 = vpop.f32.mrb[0].mxu0
        %v8493 = vpop.f32.mrb[0].mxu0
        %v8494 = vadd.f32 %v8317, %v8493
        %v8495 = vpop.f32.mrb[0].mxu0
        %8496 = vmatprep.mubr.bf16.mxu0 %v7393
        %8497 = vmatmul.mubr.bf16.gmra.mrb[0].mxu0 %v7392
        %v8498 = vpop.f32.mrb[0].mxu0
        %v8499 = vadd.f32 %v8322, %v8498
        %v8500 = vpop.f32.mrb[0].mxu0
        %v8501 = vpop.f32.mrb[0].mxu0
        %v8502 = vadd.f32 %v8325, %v8501
        %v8503 = vpop.f32.mrb[0].mxu0
        %8504 = vmatprep.mubr.bf16.mxu0 %v7402
        %8505 = vmatmul.mubr.bf16.gmra.mrb[0].mxu0 %v7401
        %v8506 = vpop.f32.mrb[0].mxu0
        %v8507 = vadd.f32 %v8330, %v8506
        %v8508 = vpop.f32.mrb[0].mxu0
        %v8509 = vpop.f32.mrb[0].mxu0
        %v8510 = vadd.f32 %v8333, %v8509
        %v8511 = vpop.f32.mrb[0].mxu0
        %8512 = vdwg.mxu0
        %8513 = vmatprep.subr.bf16.mxu0 0
        %8514 = vmatpush1.bf16.msra.mxu0 %v7886
        %8515 = vmatprep.subr.bf16.mxu0 0
        %8516 = vmatpush1.bf16.msra.mxu0 %v7887
        %8517 = vmatprep.subr.bf16.mxu0 0
        %8518 = vmatpush1.bf16.msra.mxu0 %v7888
        %8519 = vmatprep.subr.bf16.mxu0 0
        %8520 = vmatpush1.bf16.msra.mxu0 %v7889
        %8521 = vmatprep.subr.bf16.mxu0 0
        %8522 = vmatpush1.bf16.msra.mxu0 %v7890
        %8523 = vmatprep.subr.bf16.mxu0 0
        %8524 = vmatpush1.bf16.msra.mxu0 %v7891
        %8525 = vmatprep.subr.bf16.mxu0 0
        %8526 = vmatpush1.bf16.msra.mxu0 %v7892
        %8527 = vmatprep.subr.bf16.mxu0 0
        %8528 = vmatpush1.bf16.msra.mxu0 %v7893
        %8529 = vmatprep.subr.bf16.mxu0 0
        %8530 = vmatpush1.bf16.msra.mxu0 %v7894
        %8531 = vmatprep.subr.bf16.mxu0 0
        %8532 = vmatpush1.bf16.msra.mxu0 %v7895
        %8533 = vmatprep.subr.bf16.mxu0 0
        %8534 = vmatpush1.bf16.msra.mxu0 %v7896
        %8535 = vmatprep.subr.bf16.mxu0 0
        %8536 = vmatpush1.bf16.msra.mxu0 %v7897
        %8537 = vmatprep.subr.bf16.mxu0 0
        %8538 = vmatpush1.bf16.msra.mxu0 %v7898
        %8539 = vmatprep.subr.bf16.mxu0 0
        %8540 = vmatpush1.bf16.msra.mxu0 %v7899
        %8541 = vmatprep.subr.bf16.mxu0 0
        %8542 = vmatpush1.bf16.msra.mxu0 %v7900
        %8543 = vmatprep.subr.bf16.mxu0 0
        %8544 = vmatpush1.bf16.msra.mxu0 %v7901
        %8545 = vmatprep.mubr.bf16.mxu0 %v7251
        %8546 = vmatmul.mubr.bf16.gmra.mrb[0].mxu0 %v7250
        %v8547 = vpop.f32.mrb[0].mxu0
        %v8548 = vadd.f32 %v8371, %v8547
        %v8549 = vpop.f32.mrb[0].mxu0
        %v8550 = vpop.f32.mrb[0].mxu0
        %v8551 = vadd.f32 %v8374, %v8550
        %v8552 = vpop.f32.mrb[0].mxu0
        %8553 = vmatprep.mubr.bf16.mxu0 %v7260
        %8554 = vmatmul.mubr.bf16.gmra.mrb[0].mxu0 %v7259
        %v8555 = vpop.f32.mrb[0].mxu0
        %v8556 = vadd.f32 %v8379, %v8555
        %v8557 = vpop.f32.mrb[0].mxu0
        %v8558 = vpop.f32.mrb[0].mxu0
        %v8559 = vadd.f32 %v8382, %v8558
        %v8560 = vpop.f32.mrb[0].mxu0
        %8561 = vmatprep.mubr.bf16.mxu0 %v7269
        %8562 = vmatmul.mubr.bf16.gmra.mrb[0].mxu0 %v7268
        %v8563 = vpop.f32.mrb[0].mxu0
        %v8564 = vadd.f32 %v8387, %v8563
        %v8565 = vpop.f32.mrb[0].mxu0
        %v8566 = vpop.f32.mrb[0].mxu0
        %v8567 = vadd.f32 %v8390, %v8566
        %v8568 = vpop.f32.mrb[0].mxu0
        %8569 = vmatprep.mubr.bf16.mxu0 %v7278
        %8570 = vmatmul.mubr.bf16.gmra.mrb[0].mxu0 %v7277
        %v8571 = vpop.f32.mrb[0].mxu0
        %v8572 = vadd.f32 %v8395, %v8571
        %v8573 = vpop.f32.mrb[0].mxu0
        %v8574 = vpop.f32.mrb[0].mxu0
        %v8575 = vadd.f32 %v8398, %v8574
        %v8576 = vpop.f32.mrb[0].mxu0
        %8577 = vmatprep.mubr.bf16.mxu0 %v7287
        %8578 = vmatmul.mubr.bf16.gmra.mrb[0].mxu0 %v7286
        %v8579 = vpop.f32.mrb[0].mxu0
        %v8580 = vadd.f32 %v8403, %v8579
        %v8581 = vpop.f32.mrb[0].mxu0
        %v8582 = vpop.f32.mrb[0].mxu0
        %v8583 = vadd.f32 %v8406, %v8582
        %v8584 = vpop.f32.mrb[0].mxu0
        %8585 = vmatprep.mubr.bf16.mxu0 %v7296
        %8586 = vmatmul.mubr.bf16.gmra.mrb[0].mxu0 %v7295
        %v8587 = vpop.f32.mrb[0].mxu0
        %v8588 = vadd.f32 %v8411, %v8587
        %v8589 = vpop.f32.mrb[0].mxu0
        %v8590 = vpop.f32.mrb[0].mxu0
        %v8591 = vadd.f32 %v8414, %v8590
        %v8592 = vpop.f32.mrb[0].mxu0
        %8593 = vmatprep.mubr.bf16.mxu0 %v7305
        %8594 = vmatmul.mubr.bf16.gmra.mrb[0].mxu0 %v7304
        %v8595 = vpop.f32.mrb[0].mxu0
        %v8596 = vadd.f32 %v8419, %v8595
        %v8597 = vpop.f32.mrb[0].mxu0
        %v8598 = vpop.f32.mrb[0].mxu0
        %v8599 = vadd.f32 %v8422, %v8598
        %v8600 = vpop.f32.mrb[0].mxu0
        %8601 = vmatprep.mubr.bf16.mxu0 %v7314
        %8602 = vmatmul.mubr.bf16.gmra.mrb[0].mxu0 %v7313
        %v8603 = vpop.f32.mrb[0].mxu0
        %v8604 = vadd.f32 %v8427, %v8603
        %v8605 = vpop.f32.mrb[0].mxu0
        %v8606 = vpop.f32.mrb[0].mxu0
        %v8607 = vadd.f32 %v8430, %v8606
        %v8608 = vpop.f32.mrb[0].mxu0
        %8609 = vmatprep.mubr.bf16.mxu0 %v7323
        %8610 = vmatmul.mubr.bf16.gmra.mrb[0].mxu0 %v7322
        %v8611 = vpop.f32.mrb[0].mxu0
        %v8612 = vadd.f32 %v8435, %v8611
        %v8613 = vpop.f32.mrb[0].mxu0
        %v8614 = vpop.f32.mrb[0].mxu0
        %v8615 = vadd.f32 %v8438, %v8614
        %v8616 = vpop.f32.mrb[0].mxu0
        %8617 = vmatprep.mubr.bf16.mxu0 %v7332
        %8618 = vmatmul.mubr.bf16.gmra.mrb[0].mxu0 %v7331
        %v8619 = vpop.f32.mrb[0].mxu0
        %v8620 = vadd.f32 %v8443, %v8619
        %v8621 = vpop.f32.mrb[0].mxu0
        %v8622 = vpop.f32.mrb[0].mxu0
        %v8623 = vadd.f32 %v8446, %v8622
        %v8624 = vpop.f32.mrb[0].mxu0
        %8625 = vmatprep.mubr.bf16.mxu0 %v7341
        %8626 = vmatmul.mubr.bf16.gmra.mrb[0].mxu0 %v7340
        %v8627 = vpop.f32.mrb[0].mxu0
        %v8628 = vadd.f32 %v8451, %v8627
        %v8629 = vpop.f32.mrb[0].mxu0
        %v8630 = vpop.f32.mrb[0].mxu0
        %v8631 = vadd.f32 %v8454, %v8630
        %v8632 = vpop.f32.mrb[0].mxu0
        %8633 = vmatprep.mubr.bf16.mxu0 %v7350
        %8634 = vmatmul.mubr.bf16.gmra.mrb[0].mxu0 %v7349
        %v8635 = vpop.f32.mrb[0].mxu0
        %v8636 = vadd.f32 %v8459, %v8635
        %v8637 = vpop.f32.mrb[0].mxu0
        %v8638 = vpop.f32.mrb[0].mxu0
        %v8639 = vadd.f32 %v8462, %v8638
        %v8640 = vpop.f32.mrb[0].mxu0
        %8641 = vmatprep.mubr.bf16.mxu0 %v7359
        %8642 = vmatmul.mubr.bf16.gmra.mrb[0].mxu0 %v7358
        %v8643 = vpop.f32.mrb[0].mxu0
        %v8644 = vadd.f32 %v8467, %v8643
        %v8645 = vpop.f32.mrb[0].mxu0
        %v8646 = vpop.f32.mrb[0].mxu0
        %v8647 = vadd.f32 %v8470, %v8646
        %v8648 = vpop.f32.mrb[0].mxu0
        %8649 = vmatprep.mubr.bf16.mxu0 %v7368
        %8650 = vmatmul.mubr.bf16.gmra.mrb[0].mxu0 %v7367
        %v8651 = vpop.f32.mrb[0].mxu0
        %v8652 = vadd.f32 %v8475, %v8651
        %v8653 = vpop.f32.mrb[0].mxu0
        %v8654 = vpop.f32.mrb[0].mxu0
        %v8655 = vadd.f32 %v8478, %v8654
        %v8656 = vpop.f32.mrb[0].mxu0
        %8657 = vmatprep.mubr.bf16.mxu0 %v7377
        %8658 = vmatmul.mubr.bf16.gmra.mrb[0].mxu0 %v7376
        %v8659 = vpop.f32.mrb[0].mxu0
        %v8660 = vadd.f32 %v8483, %v8659
        %v8661 = vpop.f32.mrb[0].mxu0
        %v8662 = vpop.f32.mrb[0].mxu0
        %v8663 = vadd.f32 %v8486, %v8662
        %v8664 = vpop.f32.mrb[0].mxu0
        %8665 = vmatprep.mubr.bf16.mxu0 %v7386
        %8666 = vmatmul.mubr.bf16.gmra.mrb[0].mxu0 %v7385
        %v8667 = vpop.f32.mrb[0].mxu0
        %v8668 = vadd.f32 %v8491, %v8667
        %v8669 = vpop.f32.mrb[0].mxu0
        %v8670 = vpop.f32.mrb[0].mxu0
        %v8671 = vadd.f32 %v8494, %v8670
        %v8672 = vpop.f32.mrb[0].mxu0
        %8673 = vmatprep.mubr.bf16.mxu0 %v7395
        %8674 = vmatmul.mubr.bf16.gmra.mrb[0].mxu0 %v7394
        %v8675 = vpop.f32.mrb[0].mxu0
        %v8676 = vadd.f32 %v8499, %v8675
        %v8677 = vpop.f32.mrb[0].mxu0
        %v8678 = vpop.f32.mrb[0].mxu0
        %v8679 = vadd.f32 %v8502, %v8678
        %v8680 = vpop.f32.mrb[0].mxu0
        %8681 = vmatprep.mubr.bf16.mxu0 %v7404
        %8682 = vmatmul.mubr.bf16.gmra.mrb[0].mxu0 %v7403
        %v8683 = vpop.f32.mrb[0].mxu0
        %v8684 = vadd.f32 %v8507, %v8683
        %v8685 = vpop.f32.mrb[0].mxu0
        %v8686 = vpop.f32.mrb[0].mxu0
        %v8687 = vadd.f32 %v8510, %v8686
        %v8688 = vpop.f32.mrb[0].mxu0
        %8689 = vdwg.mxu0
        %8690 = vmatprep.subr.bf16.mxu0 0
        %8691 = vmatpush1.bf16.msra.mxu0 %v7902
        %8692 = vmatprep.subr.bf16.mxu0 0
        %8693 = vmatpush1.bf16.msra.mxu0 %v7903
        %8694 = vmatprep.subr.bf16.mxu0 0
        %8695 = vmatpush1.bf16.msra.mxu0 %v7904
        %8696 = vmatprep.subr.bf16.mxu0 0
        %8697 = vmatpush1.bf16.msra.mxu0 %v7905
        %8698 = vmatprep.subr.bf16.mxu0 0
        %8699 = vmatpush1.bf16.msra.mxu0 %v7906
        %8700 = vmatprep.subr.bf16.mxu0 0
        %8701 = vmatpush1.bf16.msra.mxu0 %v7907
        %8702 = vmatprep.subr.bf16.mxu0 0
        %8703 = vmatpush1.bf16.msra.mxu0 %v7908
        %8704 = vmatprep.subr.bf16.mxu0 0
        %8705 = vmatpush1.bf16.msra.mxu0 %v7909
        %8706 = vmatprep.subr.bf16.mxu0 0
        %8707 = vmatpush1.bf16.msra.mxu0 0
        %8708 = vmatprep.subr.bf16.mxu0 0
        %8709 = vmatpush1.bf16.msra.mxu0 0
        %8710 = vmatprep.subr.bf16.mxu0 0
        %8711 = vmatpush1.bf16.msra.mxu0 0
        %8712 = vmatprep.subr.bf16.mxu0 0
        %8713 = vmatpush1.bf16.msra.mxu0 0
        %8714 = vmatprep.subr.bf16.mxu0 0
        %8715 = vmatpush1.bf16.msra.mxu0 0
        %8716 = vmatprep.subr.bf16.mxu0 0
        %8717 = vmatpush1.bf16.msra.mxu0 0
        %8718 = vmatprep.subr.bf16.mxu0 0
        %8719 = vmatpush1.bf16.msra.mxu0 0
        %8720 = vmatprep.subr.bf16.mxu0 0
        %8721 = vmatpush1.bf16.msra.mxu0 0
        %8722 = vmatprep.mubr.bf16.mxu0 0
        %8723 = vmatmul.mubr.bf16.gmra.mrb[0].mxu0 %v7252
        %v8724 = vpop.f32.mrb[0].mxu0
        %v8725 = vadd.f32 %v8548, %v8724
        %v8726 = vpop.f32.mrb[0].mxu0
        %v8727 = vpop.f32.mrb[0].mxu0
        %v8728 = vadd.f32 %v8551, %v8727
        %v8729 = vpop.f32.mrb[0].mxu0
        %8730 = vmatprep.mubr.bf16.mxu0 0
        %8731 = vmatmul.mubr.bf16.gmra.mrb[0].mxu0 %v7261
        %v8732 = vpop.f32.mrb[0].mxu0
        %v8733 = vadd.f32 %v8556, %v8732
        %v8734 = vpop.f32.mrb[0].mxu0
        %v8735 = vpop.f32.mrb[0].mxu0
        %v8736 = vadd.f32 %v8559, %v8735
        %v8737 = vpop.f32.mrb[0].mxu0
        %8738 = vmatprep.mubr.bf16.mxu0 0
        %8739 = vmatmul.mubr.bf16.gmra.mrb[0].mxu0 %v7270
        %v8740 = vpop.f32.mrb[0].mxu0
        %v8741 = vadd.f32 %v8564, %v8740
        %v8742 = vpop.f32.mrb[0].mxu0
        %v8743 = vpop.f32.mrb[0].mxu0
        %v8744 = vadd.f32 %v8567, %v8743
        %v8745 = vpop.f32.mrb[0].mxu0
        %8746 = vmatprep.mubr.bf16.mxu0 0
        %8747 = vmatmul.mubr.bf16.gmra.mrb[0].mxu0 %v7279
        %v8748 = vpop.f32.mrb[0].mxu0
        %v8749 = vadd.f32 %v8572, %v8748
        %v8750 = vpop.f32.mrb[0].mxu0
        %v8751 = vpop.f32.mrb[0].mxu0
        %v8752 = vadd.f32 %v8575, %v8751
        %v8753 = vpop.f32.mrb[0].mxu0
        %8754 = vmatprep.mubr.bf16.mxu0 0
        %8755 = vmatmul.mubr.bf16.gmra.mrb[0].mxu0 %v7288
        %v8756 = vpop.f32.mrb[0].mxu0
        %v8757 = vadd.f32 %v8580, %v8756
        %v8758 = vpop.f32.mrb[0].mxu0
        %v8759 = vpop.f32.mrb[0].mxu0
        %v8760 = vadd.f32 %v8583, %v8759
        %v8761 = vpop.f32.mrb[0].mxu0
        %8762 = vmatprep.mubr.bf16.mxu0 0
        %8763 = vmatmul.mubr.bf16.gmra.mrb[0].mxu0 %v7297
        %v8764 = vpop.f32.mrb[0].mxu0
        %v8765 = vadd.f32 %v8588, %v8764
        %v8766 = vpop.f32.mrb[0].mxu0
        %v8767 = vpop.f32.mrb[0].mxu0
        %v8768 = vadd.f32 %v8591, %v8767
        %v8769 = vpop.f32.mrb[0].mxu0
        %8770 = vmatprep.mubr.bf16.mxu0 0
        %8771 = vmatmul.mubr.bf16.gmra.mrb[0].mxu0 %v7306
        %v8772 = vpop.f32.mrb[0].mxu0
        %v8773 = vadd.f32 %v8596, %v8772
        %v8774 = vpop.f32.mrb[0].mxu0
        %v8775 = vpop.f32.mrb[0].mxu0
        %v8776 = vadd.f32 %v8599, %v8775
        %v8777 = vpop.f32.mrb[0].mxu0
        %8778 = vmatprep.mubr.bf16.mxu0 0
        %8779 = vmatmul.mubr.bf16.gmra.mrb[0].mxu0 %v7315
        %v8780 = vpop.f32.mrb[0].mxu0
        %v8781 = vadd.f32 %v8604, %v8780
        %v8782 = vpop.f32.mrb[0].mxu0
        %v8783 = vpop.f32.mrb[0].mxu0
        %v8784 = vadd.f32 %v8607, %v8783
        %v8785 = vpop.f32.mrb[0].mxu0
        %8786 = vmatprep.mubr.bf16.mxu0 0
        %8787 = vmatmul.mubr.bf16.gmra.mrb[0].mxu0 %v7324
        %v8788 = vpop.f32.mrb[0].mxu0
        %v8789 = vadd.f32 %v8612, %v8788
        %v8790 = vpop.f32.mrb[0].mxu0
        %v8791 = vpop.f32.mrb[0].mxu0
        %v8792 = vadd.f32 %v8615, %v8791
        %v8793 = vpop.f32.mrb[0].mxu0
        %8794 = vmatprep.mubr.bf16.mxu0 0
        %8795 = vmatmul.mubr.bf16.gmra.mrb[0].mxu0 %v7333
        %v8796 = vpop.f32.mrb[0].mxu0
        %v8797 = vadd.f32 %v8620, %v8796
        %v8798 = vpop.f32.mrb[0].mxu0
        %v8799 = vpop.f32.mrb[0].mxu0
        %v8800 = vadd.f32 %v8623, %v8799
        %v8801 = vpop.f32.mrb[0].mxu0
        %8802 = vmatprep.mubr.bf16.mxu0 0
        %8803 = vmatmul.mubr.bf16.gmra.mrb[0].mxu0 %v7342
        %v8804 = vpop.f32.mrb[0].mxu0
        %v8805 = vadd.f32 %v8628, %v8804
        %v8806 = vpop.f32.mrb[0].mxu0
        %v8807 = vpop.f32.mrb[0].mxu0
        %v8808 = vadd.f32 %v8631, %v8807
        %v8809 = vpop.f32.mrb[0].mxu0
        %8810 = vmatprep.mubr.bf16.mxu0 0
        %8811 = vmatmul.mubr.bf16.gmra.mrb[0].mxu0 %v7351
        %v8812 = vpop.f32.mrb[0].mxu0
        %v8813 = vadd.f32 %v8636, %v8812
        %v8814 = vpop.f32.mrb[0].mxu0
        %v8815 = vpop.f32.mrb[0].mxu0
        %v8816 = vadd.f32 %v8639, %v8815
        %v8817 = vpop.f32.mrb[0].mxu0
        %8818 = vmatprep.mubr.bf16.mxu0 0
        %8819 = vmatmul.mubr.bf16.gmra.mrb[0].mxu0 %v7360
        %v8820 = vpop.f32.mrb[0].mxu0
        %v8821 = vadd.f32 %v8644, %v8820
        %v8822 = vpop.f32.mrb[0].mxu0
        %v8823 = vpop.f32.mrb[0].mxu0
        %v8824 = vadd.f32 %v8647, %v8823
        %v8825 = vpop.f32.mrb[0].mxu0
        %8826 = vmatprep.mubr.bf16.mxu0 0
        %8827 = vmatmul.mubr.bf16.gmra.mrb[0].mxu0 %v7369
        %v8828 = vpop.f32.mrb[0].mxu0
        %v8829 = vadd.f32 %v8652, %v8828
        %v8830 = vpop.f32.mrb[0].mxu0
        %v8831 = vpop.f32.mrb[0].mxu0
        %v8832 = vadd.f32 %v8655, %v8831
        %v8833 = vpop.f32.mrb[0].mxu0
        %8834 = vmatprep.mubr.bf16.mxu0 0
        %8835 = vmatmul.mubr.bf16.gmra.mrb[0].mxu0 %v7378
        %v8836 = vpop.f32.mrb[0].mxu0
        %v8837 = vadd.f32 %v8660, %v8836
        %v8838 = vpop.f32.mrb[0].mxu0
        %v8839 = vpop.f32.mrb[0].mxu0
        %v8840 = vadd.f32 %v8663, %v8839
        %v8841 = vpop.f32.mrb[0].mxu0
        %8842 = vmatprep.mubr.bf16.mxu0 0
        %8843 = vmatmul.mubr.bf16.gmra.mrb[0].mxu0 %v7387
        %v8844 = vpop.f32.mrb[0].mxu0
        %v8845 = vadd.f32 %v8668, %v8844
        %v8846 = vpop.f32.mrb[0].mxu0
        %v8847 = vpop.f32.mrb[0].mxu0
        %v8848 = vadd.f32 %v8671, %v8847
        %v8849 = vpop.f32.mrb[0].mxu0
        %8850 = vmatprep.mubr.bf16.mxu0 0
        %8851 = vmatmul.mubr.bf16.gmra.mrb[0].mxu0 %v7396
        %v8852 = vpop.f32.mrb[0].mxu0
        %v8853 = vadd.f32 %v8676, %v8852
        %v8854 = vpop.f32.mrb[0].mxu0
        %v8855 = vpop.f32.mrb[0].mxu0
        %v8856 = vadd.f32 %v8679, %v8855
        %v8857 = vpop.f32.mrb[0].mxu0
        %8858 = vmatprep.mubr.bf16.mxu0 0
        %8859 = vmatmul.mubr.bf16.gmra.mrb[0].mxu0 %v7405
        %v8860 = vpop.f32.mrb[0].mxu0
        %v8861 = vadd.f32 %v8684, %v8860
        %v8862 = vpop.f32.mrb[0].mxu0
        %v8863 = vpop.f32.mrb[0].mxu0
        %v8864 = vadd.f32 %v8687, %v8863
        %v8865 = vpop.f32.mrb[0].mxu0
        %8866 = vdwg.mxu0
        %v8867 = vld [vmem:[%s312 + $0x8] sm:$0xe]
        %v8868 = vld [vmem:[%s312 + $0xc] sm:$0xf]
        %v8869 = vld [vmem:[%s312 + $0x10] sm:$0xf]
        %v8870 = vld [vmem:[%s312 + $0x14] sm:$0xf]
        %v8871 = vld [vmem:[%s312 + $0x18] sm:$0xf]
        %v8872 = vld [vmem:[%s312 + $0x1c] sm:$0xf]
        %v8873 = vld [vmem:[%s312 + $0x20] sm:$0xf]
        %v8874 = vld [vmem:[%s312 + $0x24] sm:$0xf]
        %v8875 = vld [vmem:[%s312 + $0x28] sm:$0xf]
        %v8876 = vld [vmem:[%s312 + $0x2c] sm:$0xf]
        %v8877 = vld [vmem:[%s312 + $0x30] sm:$0xf]
        %v8878 = vld [vmem:[%s312 + $0x34] sm:$0xf]
        %v8879 = vld [vmem:[%s312 + $0x38] sm:$0xf]
        %v8880 = vld [vmem:[%s312 + $0x3c] sm:$0xf]
        %v8881 = vld [vmem:[%s312 + $0x40] sm:$0xf]
        %v8882 = vld [vmem:[%s312 + $0x44] sm:$0xf]
        %v8883 = vld [vmem:[%s312 + $0x48] sm:$0xf]
        %v8884 = vld [vmem:[%s312 + $0x4c] sm:$0xf]
        %v8885 = vld [vmem:[%s312 + $0x50] sm:$0xf]
        %v8886 = vld [vmem:[%s312 + $0x54] sm:$0xf]
        %v8887 = vld [vmem:[%s312 + $0x58] sm:$0xf]
        %v8888 = vld [vmem:[%s312 + $0x5c] sm:$0xf]
        %v8889 = vld [vmem:[%s312 + $0x60] sm:$0xf]
        %v8890 = vld [vmem:[%s312 + $0x64] sm:$0xf]
        %v8891 = vld [vmem:[%s312 + $0x68] sm:$0xf]
        %v8892 = vld [vmem:[%s312 + $0x6c] sm:$0xf]
        %v8893 = vld [vmem:[%s312 + $0x70] sm:$0xf]
        %v8894 = vld [vmem:[%s312 + $0x74] sm:$0xf]
        %v8895 = vld [vmem:[%s312 + $0x78] sm:$0xf]
        %v8896 = vld [vmem:[%s312 + $0x7c] sm:$0xf]
        %v8897 = vld [vmem:[%s312 + $0x80] sm:$0xf]
        %v8898 = vld [vmem:[%s312 + $0x84] sm:$0xf]
        %v8899 = vld [vmem:[%s312 + $0x88] sm:$0xf]
        %v8900 = vld [vmem:[%s312 + $0x8c] sm:$0xf]
        %v8901 = vld [vmem:[%s312 + $0x90] sm:$0xf]
        %v8902 = vld [vmem:[%s312 + $0x94] sm:$0xf]
        %v8903 = vld [vmem:[%s312 + $0x98] sm:$0x3]
        %v8904 = vunpack.c.l.bf16 %v8867
        %v8905 = vunpack.c.l.bf16 %v8868
        %v8906 = vunpack.c.l.bf16 %v8869
        %v8907 = vunpack.c.l.bf16 %v8870
        %v8908 = vunpack.c.l.bf16 %v8871
        %v8909 = vunpack.c.l.bf16 %v8872
        %v8910 = vunpack.c.l.bf16 %v8873
        %v8911 = vunpack.c.l.bf16 %v8874
        %v8912 = vunpack.c.l.bf16 %v8875
        %v8913 = vunpack.c.l.bf16 %v8876
        %v8914 = vunpack.c.l.bf16 %v8877
        %v8915 = vunpack.c.l.bf16 %v8878
        %v8916 = vunpack.c.l.bf16 %v8879
        %v8917 = vunpack.c.l.bf16 %v8880
        %v8918 = vunpack.c.l.bf16 %v8881
        %v8919 = vunpack.c.l.bf16 %v8882
        %v8920 = vunpack.c.l.bf16 %v8883
        %v8921 = vunpack.c.l.bf16 %v8884
        %v8922 = vunpack.c.l.bf16 %v8885
        %v8923 = vunpack.c.l.bf16 %v8886
        %v8924 = vunpack.c.l.bf16 %v8887
        %v8925 = vunpack.c.l.bf16 %v8888
        %v8926 = vunpack.c.l.bf16 %v8889
        %v8927 = vunpack.c.l.bf16 %v8890
        %v8928 = vunpack.c.l.bf16 %v8891
        %v8929 = vunpack.c.l.bf16 %v8892
        %v8930 = vunpack.c.l.bf16 %v8893
        %v8931 = vunpack.c.l.bf16 %v8894
        %v8932 = vunpack.c.l.bf16 %v8895
        %v8933 = vunpack.c.l.bf16 %v8896
        %v8934 = vunpack.c.l.bf16 %v8897
        %v8935 = vunpack.c.l.bf16 %v8898
        %v8936 = vunpack.c.l.bf16 %v8899
        %v8937 = vunpack.c.l.bf16 %v8900
        %v8938 = vunpack.c.l.bf16 %v8901
        %v8939 = vunpack.c.l.bf16 %v8902
        %v8940 = vunpack.c.l.bf16 %v8903
        %v8941 = vld [vmem:[%s6] sm:$0x1]
        %v8943 = vlaneseq
        %v8944 = vshrl.u32 %v8943, 7
        %v8945 = vsub.s32 0, %v8944
        %v8946 = vrot.slane %v8941, %v8945
        %v8948 = vmul.f32 %v8725, %v8946
        %v8949 = vmul.f32 %v8728, %v8946
        %v8950 = vmul.f32 %v8733, %v8946
        %v8951 = vmul.f32 %v8736, %v8946
        %v8952 = vmul.f32 %v8741, %v8946
        %v8953 = vmul.f32 %v8744, %v8946
        %v8954 = vmul.f32 %v8749, %v8946
        %v8955 = vmul.f32 %v8752, %v8946
        %v8956 = vmul.f32 %v8757, %v8946
        %v8957 = vmul.f32 %v8760, %v8946
        %v8958 = vmul.f32 %v8765, %v8946
        %v8959 = vmul.f32 %v8768, %v8946
        %v8960 = vmul.f32 %v8773, %v8946
        %v8961 = vmul.f32 %v8776, %v8946
        %v8962 = vmul.f32 %v8781, %v8946
        %v8963 = vmul.f32 %v8784, %v8946
        %v8964 = vmul.f32 %v8789, %v8946
        %v8965 = vmul.f32 %v8792, %v8946
        %v8966 = vmul.f32 %v8797, %v8946
        %v8967 = vmul.f32 %v8800, %v8946
        %v8968 = vmul.f32 %v8805, %v8946
        %v8969 = vmul.f32 %v8808, %v8946
        %v8970 = vmul.f32 %v8813, %v8946
        %v8971 = vmul.f32 %v8816, %v8946
        %v8972 = vmul.f32 %v8821, %v8946
        %v8973 = vmul.f32 %v8824, %v8946
        %v8974 = vmul.f32 %v8829, %v8946
        %v8975 = vmul.f32 %v8832, %v8946
        %v8976 = vmul.f32 %v8837, %v8946
        %v8977 = vmul.f32 %v8840, %v8946
        %v8978 = vmul.f32 %v8845, %v8946
        %v8979 = vmul.f32 %v8848, %v8946
        %v8980 = vmul.f32 %v8853, %v8946
        %v8981 = vmul.f32 %v8856, %v8946
        %v8982 = vmul.f32 %v8861, %v8946
        %v8983 = vmul.f32 %v8864, %v8946
        %v8984 = vld [vmem:[%s7] sm:$0x1]
        %v8986 = vlaneseq
        %v8987 = vshrl.u32 %v8986, 7
        %v8988 = vsub.s32 0, %v8987
        %v8989 = vrot.slane %v8984, %v8988
        %v8991 = vadd.f32 %v8948, %v8989
        %v8992 = vadd.f32 %v8949, %v8989
        %v8993 = vadd.f32 %v8950, %v8989
        %v8994 = vadd.f32 %v8951, %v8989
        %v8995 = vadd.f32 %v8952, %v8989
        %v8996 = vadd.f32 %v8953, %v8989
        %v8997 = vadd.f32 %v8954, %v8989
        %v8998 = vadd.f32 %v8955, %v8989
        %v8999 = vadd.f32 %v8956, %v8989
        %v9000 = vadd.f32 %v8957, %v8989
        %v9001 = vadd.f32 %v8958, %v8989
        %v9002 = vadd.f32 %v8959, %v8989
        %v9003 = vadd.f32 %v8960, %v8989
        %v9004 = vadd.f32 %v8961, %v8989
        %v9005 = vadd.f32 %v8962, %v8989
        %v9006 = vadd.f32 %v8963, %v8989
        %v9007 = vadd.f32 %v8964, %v8989
        %v9008 = vadd.f32 %v8965, %v8989
        %v9009 = vadd.f32 %v8966, %v8989
        %v9010 = vadd.f32 %v8967, %v8989
        %v9011 = vadd.f32 %v8968, %v8989
        %v9012 = vadd.f32 %v8969, %v8989
        %v9013 = vadd.f32 %v8970, %v8989
        %v9014 = vadd.f32 %v8971, %v8989
        %v9015 = vadd.f32 %v8972, %v8989
        %v9016 = vadd.f32 %v8973, %v8989
        %v9017 = vadd.f32 %v8974, %v8989
        %v9018 = vadd.f32 %v8975, %v8989
        %v9019 = vadd.f32 %v8976, %v8989
        %v9020 = vadd.f32 %v8977, %v8989
        %v9021 = vadd.f32 %v8978, %v8989
        %v9022 = vadd.f32 %v8979, %v8989
        %v9023 = vadd.f32 %v8980, %v8989
        %v9024 = vadd.f32 %v8981, %v8989
        %v9025 = vadd.f32 %v8982, %v8989
        %v9026 = vadd.f32 %v8983, %v8989
        %vm9064 = vcmask 1044480
        %v9065 = vrot.slane %v8904, 3
        %v9066 = vrot.slane %v8905, 3
        %v9067 = vsel %vm9064, %v9065, %v9066
        %v9068 = vrot.slane %v8906, 3
        %v9069 = vsel %vm9064, %v9066, %v9068
        %v9070 = vrot.slane %v8907, 3
        %v9071 = vsel %vm9064, %v9068, %v9070
        %v9072 = vrot.slane %v8908, 3
        %v9073 = vsel %vm9064, %v9070, %v9072
        %v9074 = vrot.slane %v8909, 3
        %v9075 = vsel %vm9064, %v9072, %v9074
        %v9076 = vrot.slane %v8910, 3
        %v9077 = vsel %vm9064, %v9074, %v9076
        %v9078 = vrot.slane %v8911, 3
        %v9079 = vsel %vm9064, %v9076, %v9078
        %v9080 = vrot.slane %v8912, 3
        %v9081 = vsel %vm9064, %v9078, %v9080
        %v9082 = vrot.slane %v8913, 3
        %v9083 = vsel %vm9064, %v9080, %v9082
        %v9084 = vrot.slane %v8914, 3
        %v9085 = vsel %vm9064, %v9082, %v9084
        %v9086 = vrot.slane %v8915, 3
        %v9087 = vsel %vm9064, %v9084, %v9086
        %v9088 = vrot.slane %v8916, 3
        %v9089 = vsel %vm9064, %v9086, %v9088
        %v9090 = vrot.slane %v8917, 3
        %v9091 = vsel %vm9064, %v9088, %v9090
        %v9092 = vrot.slane %v8918, 3
        %v9093 = vsel %vm9064, %v9090, %v9092
        %v9094 = vrot.slane %v8919, 3
        %v9095 = vsel %vm9064, %v9092, %v9094
        %v9096 = vrot.slane %v8920, 3
        %v9097 = vsel %vm9064, %v9094, %v9096
        %v9098 = vrot.slane %v8921, 3
        %v9099 = vsel %vm9064, %v9096, %v9098
        %v9100 = vrot.slane %v8922, 3
        %v9101 = vsel %vm9064, %v9098, %v9100
        %v9102 = vrot.slane %v8923, 3
        %v9103 = vsel %vm9064, %v9100, %v9102
        %v9104 = vrot.slane %v8924, 3
        %v9105 = vsel %vm9064, %v9102, %v9104
        %v9106 = vrot.slane %v8925, 3
        %v9107 = vsel %vm9064, %v9104, %v9106
        %v9108 = vrot.slane %v8926, 3
        %v9109 = vsel %vm9064, %v9106, %v9108
        %v9110 = vrot.slane %v8927, 3
        %v9111 = vsel %vm9064, %v9108, %v9110
        %v9112 = vrot.slane %v8928, 3
        %v9113 = vsel %vm9064, %v9110, %v9112
        %v9114 = vrot.slane %v8929, 3
        %v9115 = vsel %vm9064, %v9112, %v9114
        %v9116 = vrot.slane %v8930, 3
        %v9117 = vsel %vm9064, %v9114, %v9116
        %v9118 = vrot.slane %v8931, 3
        %v9119 = vsel %vm9064, %v9116, %v9118
        %v9120 = vrot.slane %v8932, 3
        %v9121 = vsel %vm9064, %v9118, %v9120
        %v9122 = vrot.slane %v8933, 3
        %v9123 = vsel %vm9064, %v9120, %v9122
        %v9124 = vrot.slane %v8934, 3
        %v9125 = vsel %vm9064, %v9122, %v9124
        %v9126 = vrot.slane %v8935, 3
        %v9127 = vsel %vm9064, %v9124, %v9126
        %v9128 = vrot.slane %v8936, 3
        %v9129 = vsel %vm9064, %v9126, %v9128
        %v9130 = vrot.slane %v8937, 3
        %v9131 = vsel %vm9064, %v9128, %v9130
        %v9132 = vrot.slane %v8938, 3
        %v9133 = vsel %vm9064, %v9130, %v9132
        %v9134 = vrot.slane %v8939, 3
        %v9135 = vsel %vm9064, %v9132, %v9134
        %v9136 = vrot.slane %v8940, 3
        %v9137 = vsel %vm9064, %v9134, %v9136
        %v9174 = vadd.f32 %v8991, %v9067
        %v9175 = vadd.f32 %v8992, %v9069
        %v9176 = vadd.f32 %v8993, %v9071
        %v9177 = vadd.f32 %v8994, %v9073
        %v9178 = vadd.f32 %v8995, %v9075
        %v9179 = vadd.f32 %v8996, %v9077
        %v9180 = vadd.f32 %v8997, %v9079
        %v9181 = vadd.f32 %v8998, %v9081
        %v9182 = vadd.f32 %v8999, %v9083
        %v9183 = vadd.f32 %v9000, %v9085
        %v9184 = vadd.f32 %v9001, %v9087
        %v9185 = vadd.f32 %v9002, %v9089
        %v9186 = vadd.f32 %v9003, %v9091
        %v9187 = vadd.f32 %v9004, %v9093
        %v9188 = vadd.f32 %v9005, %v9095
        %v9189 = vadd.f32 %v9006, %v9097
        %v9190 = vadd.f32 %v9007, %v9099
        %v9191 = vadd.f32 %v9008, %v9101
        %v9192 = vadd.f32 %v9009, %v9103
        %v9193 = vadd.f32 %v9010, %v9105
        %v9194 = vadd.f32 %v9011, %v9107
        %v9195 = vadd.f32 %v9012, %v9109
        %v9196 = vadd.f32 %v9013, %v9111
        %v9197 = vadd.f32 %v9014, %v9113
        %v9198 = vadd.f32 %v9015, %v9115
        %v9199 = vadd.f32 %v9016, %v9117
        %v9200 = vadd.f32 %v9017, %v9119
        %v9201 = vadd.f32 %v9018, %v9121
        %v9202 = vadd.f32 %v9019, %v9123
        %v9203 = vadd.f32 %v9020, %v9125
        %v9204 = vadd.f32 %v9021, %v9127
        %v9205 = vadd.f32 %v9022, %v9129
        %v9206 = vadd.f32 %v9023, %v9131
        %v9207 = vadd.f32 %v9024, %v9133
        %v9208 = vadd.f32 %v9025, %v9135
        %v9209 = vadd.f32 %v9026, %v9137
        %v9210 = vmax.f32 %v9174, 0.0
        %v9211 = vmax.f32 %v9175, 0.0
        %v9212 = vmax.f32 %v9176, 0.0
        %v9213 = vmax.f32 %v9177, 0.0
        %v9214 = vmax.f32 %v9178, 0.0
        %v9215 = vmax.f32 %v9179, 0.0
        %v9216 = vmax.f32 %v9180, 0.0
        %v9217 = vmax.f32 %v9181, 0.0
        %v9218 = vmax.f32 %v9182, 0.0
        %v9219 = vmax.f32 %v9183, 0.0
        %v9220 = vmax.f32 %v9184, 0.0
        %v9221 = vmax.f32 %v9185, 0.0
        %v9222 = vmax.f32 %v9186, 0.0
        %v9223 = vmax.f32 %v9187, 0.0
        %v9224 = vmax.f32 %v9188, 0.0
        %v9225 = vmax.f32 %v9189, 0.0
        %v9226 = vmax.f32 %v9190, 0.0
        %v9227 = vmax.f32 %v9191, 0.0
        %v9228 = vmax.f32 %v9192, 0.0
        %v9229 = vmax.f32 %v9193, 0.0
        %v9230 = vmax.f32 %v9194, 0.0
        %v9231 = vmax.f32 %v9195, 0.0
        %v9232 = vmax.f32 %v9196, 0.0
        %v9233 = vmax.f32 %v9197, 0.0
        %v9234 = vmax.f32 %v9198, 0.0
        %v9235 = vmax.f32 %v9199, 0.0
        %v9236 = vmax.f32 %v9200, 0.0
        %v9237 = vmax.f32 %v9201, 0.0
        %v9238 = vmax.f32 %v9202, 0.0
        %v9239 = vmax.f32 %v9203, 0.0
        %v9240 = vmax.f32 %v9204, 0.0
        %v9241 = vmax.f32 %v9205, 0.0
        %v9242 = vmax.f32 %v9206, 0.0
        %v9243 = vmax.f32 %v9207, 0.0
        %v9244 = vmax.f32 %v9208, 0.0
        %v9245 = vmax.f32 %v9209, 0.0
        %9246 = vst [vmem:[%s352] sm:$0xff] %v9210
        %9247 = vst [vmem:[%s352 + $0x8] sm:$0xff] %v9211
        %9248 = vst [vmem:[%s352 + $0x10] sm:$0xff] %v9212
        %9249 = vst [vmem:[%s352 + $0x18] sm:$0xff] %v9213
        %9250 = vst [vmem:[%s352 + $0x20] sm:$0xff] %v9214
        %9251 = vst [vmem:[%s352 + $0x28] sm:$0xff] %v9215
        %9252 = vst [vmem:[%s352 + $0x30] sm:$0xff] %v9216
        %9253 = vst [vmem:[%s352 + $0x38] sm:$0xff] %v9217
        %9254 = vst [vmem:[%s352 + $0x40] sm:$0xff] %v9218
        %9255 = vst [vmem:[%s352 + $0x48] sm:$0xff] %v9219
        %9256 = vst [vmem:[%s352 + $0x50] sm:$0xff] %v9220
        %9257 = vst [vmem:[%s352 + $0x58] sm:$0xff] %v9221
        %9258 = vst [vmem:[%s352 + $0x60] sm:$0xff] %v9222
        %9259 = vst [vmem:[%s352 + $0x68] sm:$0xff] %v9223
        %9260 = vst [vmem:[%s352 + $0x70] sm:$0xff] %v9224
        %9261 = vst [vmem:[%s352 + $0x78] sm:$0xff] %v9225
        %9262 = vst [vmem:[%s352 + $0x80] sm:$0xff] %v9226
        %9263 = vst [vmem:[%s352 + $0x88] sm:$0xff] %v9227
        %9264 = vst [vmem:[%s352 + $0x90] sm:$0xff] %v9228
        %9265 = vst [vmem:[%s352 + $0x98] sm:$0xff] %v9229
        %9266 = vst [vmem:[%s352 + $0xa0] sm:$0xff] %v9230
        %9267 = vst [vmem:[%s352 + $0xa8] sm:$0xff] %v9231
        %9268 = vst [vmem:[%s352 + $0xb0] sm:$0xff] %v9232
        %9269 = vst [vmem:[%s352 + $0xb8] sm:$0xff] %v9233
        %9270 = vst [vmem:[%s352 + $0xc0] sm:$0xff] %v9234
        %9271 = vst [vmem:[%s352 + $0xc8] sm:$0xff] %v9235
        %9272 = vst [vmem:[%s352 + $0xd0] sm:$0xff] %v9236
        %9273 = vst [vmem:[%s352 + $0xd8] sm:$0xff] %v9237
        %9274 = vst [vmem:[%s352 + $0xe0] sm:$0xff] %v9238
        %9275 = vst [vmem:[%s352 + $0xe8] sm:$0xff] %v9239
        %9276 = vst [vmem:[%s352 + $0xf0] sm:$0xff] %v9240
        %9277 = vst [vmem:[%s352 + $0xf8] sm:$0xff] %v9241
        %9278 = vst [vmem:[%s352 + $0x100] sm:$0xff] %v9242
        %9279 = vst [vmem:[%s352 + $0x108] sm:$0xff] %v9243
        %9280 = vst [vmem:[%s352 + $0x110] sm:$0xff] %v9244
        %9281 = vst [vmem:[%s352 + $0x118] sm:$0xff] %v9245
        %s9282 = sand.u32 %s207, 1
        %s9283 = scalar_lea.sflag [#allocation6], %s9282
        %s9284 = sand.u32 %s207, 1
        %s9285 = smul.addr %s9284, 288
        %s9286 = scalar_lea.vmem [#allocation10], %s9285
        // Predicated region
        $region65: #{tpu_custom_call.1} parent=51 // pred_check
          %p9287 = pneg %p217
        $region66: #{tpu_custom_call.1} parent=51 // pred_check_branch
          %9289 = sbr.rel (%p9287) target = $region68
        $region67: #{tpu_custom_call.1} parent=51 // pred_region
          %s9291 = ssub.s32 4608, 4608
          %9292 = vsyncadd %s9283, %s9291
          %s9293 = smul.addr %s26, 36
          %s9294 = smul.addr %s9293, 128
          %s9295 = scalar_lea.hbm %s8, %s9294
          %s9296 = sshll.u32 %s9286, 4
          %s9297 = int_to_ptr.vmem [resolvable:$true] %s9296
          %9302 = dma.vmem_to_hbm [thread:$0]  %s9297, 4608, %s9295, %s9283, 128, 128, 8
        $region68: #{tpu_custom_call.1} parent=51 // pred_fallthru
          _
      $region52: #{tpu_custom_call.1} parent=5 // pred_fallthru
        _
      %p9303 = scmp.le.s32.totalorder 2, %s21
      // Predicated region
      $region69: #{tpu_custom_call.1} parent=5 // pred_check
        %p9304 = pneg %p9303
      $region70: #{tpu_custom_call.1} parent=5 // pred_check_branch
        %9306 = sbr.rel (%p9304) target = $region72
      $region71: #{tpu_custom_call.1} parent=5 // pred_region
        %s9307 = ssub.s32 %s21, 2
        // Predicated region
        $region73: #{tpu_custom_call.1} parent=71 // pred_check
          %p9308 = pneg %p223
        $region74: #{tpu_custom_call.1} parent=71 // pred_check_branch
          %9310 = sbr.rel (%p9308) target = $region76
        $region75: #{tpu_custom_call.1} parent=71 // pred_region
          %s9311 = sand.u32 %s208, 1
          %s9312 = scalar_lea.sflag [#allocation6], %s9311
          %s9313 = sand.u32 %s208, 1
          %s9314 = smul.addr %s9313, 288
          %s9315 = scalar_lea.vmem [#allocation10], %s9314
          %9316 = dma.done %s9312, 4608
        $region76: #{tpu_custom_call.1} parent=71 // pred_fallthru
          _
      $region72: #{tpu_custom_call.1} parent=5 // pred_fallthru
        _
    $region6: #{tpu_custom_call.1} parent=1 // loop_footer
      %s25 = sadd.s32 1, %s21
    $region7: #{tpu_custom_call.1} parent=1 // loop_footer_branch
      %20 = sbr.rel target = $region3
    $region8: #{tpu_custom_call.1} parent=1 // loop_exit
      _
    %9317 = vsyncpa [#allocation5], 1
    %s9318 = scalar_lea.sflag [#allocation5], 1
    %9319 = vsyncpa %s9318, 1
    %9320 = vsyncpa [#allocation8], 1
    %9321 = vsyncpa [#allocation6], 1
    %s9322 = scalar_lea.sflag [#allocation6], 1
    %9323 = vsyncpa %s9322, 1

</llo_original>
